<compile_context>
chip_gen: v6e
topology: v6e:2x2x1
jax: 0.10.0
libtpu: 0.0.40
codegen_flags: <defaults>
</compile_context>

<pallas_src>
import functools

import jax
import jax.numpy as jnp
from jax.experimental import pallas as pl
from jax.experimental.pallas import tpu as pltpu


def _attention_mlp_kernel(has_mask, *refs):
    """Per grid step i (grid = (B // b_tile,)):
         t_ref     [Bt, H]       target block
         ck_ref    [S, Bt, H]    context-key block  (original [S,B,H] layout)
         cv_ref    [S, Bt, H]    context-value block
         mask_ref  [Bt, S]       additive mask block (only if has_mask)
         wt/wc     [H, H],  b_ref/v_ref [1, H]
         ctx_ref   [Bt, H]       attention-context output
         score_ref [Bt, S]       softmax scores, lane-dense along S
    """
    if has_mask:
        (t_ref, ck_ref, cv_ref, mask_ref,
         wt_ref, wc_ref, b_ref, v_ref, ctx_ref, score_ref) = refs
    else:
        (t_ref, ck_ref, cv_ref,
         wt_ref, wc_ref, b_ref, v_ref, ctx_ref, score_ref) = refs
        mask_ref = None

    S, Bt, H = ck_ref.shape

    # cat([target, context]) @ W_attn.T  ==  target @ Wt + context @ Wc
    # Target projection: once per batch block.
    proj_t = jnp.dot(t_ref[...], wt_ref[...],
                     preferred_element_type=jnp.float32) + b_ref[...]        # [Bt,H]

    # Context projection: a single non-degenerate MXU matmul over all S rows.
    proj_c = jnp.dot(ck_ref[...].reshape(S * Bt, H), wc_ref[...],
                     preferred_element_type=jnp.float32)                     # [S*Bt,H]
    energy = jnp.tanh(proj_c.reshape(S, Bt, H) + proj_t[None, :, :])         # [S,Bt,H]

    # v-projection: VPU multiply + lane reduce over H (avoids Bt tiny M=1 MXU
    # dispatches), then one small transpose to the lane-dense [Bt, S] layout.
    logits = jnp.transpose(
        jnp.sum(energy * v_ref[...][None, :, :], axis=-1))                   # [Bt,S]
    if has_mask:
        logits = logits + mask_ref[...]

    # Plain single-pass softmax over S (full-S resident, no online softmax).
    m = jnp.max(logits, axis=-1, keepdims=True)
    p = jnp.exp(logits - m)
    inv_l = 1.0 / jnp.sum(p, axis=-1, keepdims=True)    # exact; [Bt,1] is free
    score = p * inv_l                                                        # [Bt,S]
    score_ref[...] = score.astype(score_ref.dtype)

    # Score-weighted context sum over S: VPU multiply + reduce (no degenerate
    # per-batch M=1 MXU einsum).
    ctx = jnp.sum(jnp.transpose(score)[:, :, None] * cv_ref[...], axis=0)    # [Bt,H]
    ctx_ref[...] = ctx.astype(ctx_ref.dtype)


def prepare_attention_params(w_attn, b_attn, w_v):
    """One-time preprocessing of PyTorch-layout parameters.
    w_attn: [H, H + C] (nn.Linear(H + C, H).weight), b_attn: [H], w_v: [1, H]."""
    H = b_attn.shape[0]
    w_attn_t = jnp.transpose(w_attn)          # [H + C, H]
    wt = w_attn_t[:H, :]                      # acts on the (broadcast) target
    wc = w_attn_t[H:, :]                      # acts on the context key
    return wt, wc, b_attn.reshape(1, H), w_v.reshape(1, H)


def _pick_b_tile(B, S, H, vmem_budget=16 * 1024 * 1024):
    """Prefer >= 2 batch blocks (so the 'parallel' grid axis can shard across
    v7x's two TensorCores) with multiple-of-8 sublane tiles, while keeping the
    double-buffered key+value tiles inside a conservative VMEM budget."""
    if B % 8 != 0 or B == 8:
        return B                                 # single full-B block
    b_tile = (B // 2) if (B // 2) % 8 == 0 else 8
    while (b_tile > 8 and (b_tile // 2) % 8 == 0
           and 2 * 2 * S * b_tile * H * 4 > vmem_budget):
        b_tile //= 2
    return b_tile


@functools.partial(jax.jit, static_argnames=("b_tile",))
def _attention_mlp_forward(target, context_key, context_value, attention_mask,
                           wt, wc, b2d, v2d, *, b_tile):
    S, B, H = context_key.shape
    if B % b_tile:
        raise ValueError("B must be divisible by b_tile")
    n_b = B // b_tile
    has_mask = attention_mask is not None

    inputs = [target, context_key, context_value]
    in_specs = [
        pl.BlockSpec((b_tile, H), lambda i: (i, 0)),            # target
        pl.BlockSpec((S, b_tile, H), lambda i: (0, i, 0)),      # key   (no transpose)
        pl.BlockSpec((S, b_tile, H), lambda i: (0, i, 0)),      # value (no transpose)
    ]
    if has_mask:
        # Tiny [S,B] -> [B,S] relayout so the mask tile is lane-dense along S.
        inputs.append(jnp.transpose(attention_mask.astype(jnp.float32)))
        in_specs.append(pl.BlockSpec((b_tile, S), lambda i: (i, 0)))
    inputs += [wt, wc, b2d, v2d]
    in_specs += [
        pl.BlockSpec((H, H), lambda i: (0, 0)),                 # Wt
        pl.BlockSpec((H, H), lambda i: (0, 0)),                 # Wc
        pl.BlockSpec((1, H), lambda i: (0, 0)),                 # bias
        pl.BlockSpec((1, H), lambda i: (0, 0)),                 # v
    ]

    ctx, score_bs = pl.pallas_call(
        functools.partial(_attention_mlp_kernel, has_mask),
        out_shape=(jax.ShapeDtypeStruct((B, H), jnp.float32),
                   jax.ShapeDtypeStruct((B, S), jnp.float32)),
        grid_spec=pltpu.PrefetchScalarGridSpec(
            num_scalar_prefetch=0,
            grid=(n_b,),
            in_specs=in_specs,
            out_specs=(
                pl.BlockSpec((b_tile, H), lambda i: (i, 0)),    # ctx
                pl.BlockSpec((b_tile, S), lambda i: (i, 0)),    # score (lane-dense)
            )),
        compiler_params=pltpu.CompilerParams(
            dimension_semantics=("parallel",)),
    )(*inputs)

    # Module contract returns scores as [S, B]; this is a tiny (S*B f32) relayout.
    return ctx, jnp.transpose(score_bs)


def attention_mlp_forward(target, context_key, context_value, attention_mask,
                          params):
    """Mirrors Attention.forward for type='mlp'. params = prepare_attention_params(...)."""
    S, B, H = context_key.shape
    wt, wc, b2d, v2d = params
    b_tile = _pick_b_tile(B, S, H)
    return _attention_mlp_forward(target, context_key, context_value,
                                  attention_mask, wt, wc, b2d, v2d,
                                  b_tile=b_tile)


def _reference(target, ck, cv, mask, w_attn, b_attn, w_v):
    S, B, H = ck.shape
    tgt = jnp.broadcast_to(target[None], (S, B, H))
    attn_in = jnp.concatenate([tgt, ck], axis=2)                        # [S,B,2H]
    energy = jnp.tanh(attn_in @ w_attn.T + b_attn)                      # [S,B,H]
    score = (energy @ w_v.T)[..., 0]                                    # [S,B]
    if mask is not None:
        score = score + mask
    score = jax.nn.softmax(score, axis=0)
    ctx = jnp.sum(score[:, :, None] * cv, axis=0)                       # [B,H]
    return ctx, score


if __name__ == "__main__":
    S, B, H = 256, 16, 32        # seq_len, batch, hidden_dim (= context_dim)
    C = H

    key = jax.random.PRNGKey(0)
    k_t, k_ck, k_cv, k_m, k_w, k_b, k_v = jax.random.split(key, 7)

    target = jax.random.normal(k_t, (B, H), jnp.float32)
    context_key = jax.random.normal(k_ck, (S, B, H), jnp.float32)
    context_value = jax.random.normal(k_cv, (S, B, H), jnp.float32)
    attention_mask = 0.5 * jax.random.normal(k_m, (S, B), jnp.float32)

    # Parameter init matching the module's __init__ shapes:
    #   attn: nn.Linear(H + C, H) -> weight [H, H+C] (xavier), bias [H] (U(-0.1,0.1))
    #   v:    nn.Linear(H, 1, bias=False) -> weight [1, H] (xavier)
    std_attn = (2.0 / ((H + C) + H)) ** 0.5
    w_attn = std_attn * jax.random.normal(k_w, (H, H + C), jnp.float32)
    b_attn = jax.random.uniform(k_b, (H,), jnp.float32, minval=-0.1, maxval=0.1)
    std_v = (2.0 / (H + 1)) ** 0.5
    w_v = std_v * jax.random.normal(k_v, (1, H), jnp.float32)

    params = prepare_attention_params(w_attn, b_attn, w_v)   # hoisted, one-time

    # With mask.
    ctx, score = attention_mlp_forward(target, context_key, context_value,
                                       attention_mask, params)
    jax.block_until_ready((ctx, score))
    ctx_ref, score_ref = _reference(target, context_key, context_value,
                                    attention_mask, w_attn, b_attn, w_v)
    assert ctx.shape == (B, H) and score.shape == (S, B)
    assert jnp.allclose(ctx, ctx_ref, atol=1e-4, rtol=1e-3)
    assert jnp.allclose(score, score_ref, atol=1e-5, rtol=1e-3)

    # mask=None specialization (skips the mask input entirely).
    ctx0, score0 = attention_mlp_forward(target, context_key, context_value,
                                         None, params)
    jax.block_until_ready((ctx0, score0))
    ctx0_ref, score0_ref = _reference(target, context_key, context_value,
                                      None, w_attn, b_attn, w_v)
    assert jnp.allclose(ctx0, ctx0_ref, atol=1e-4, rtol=1e-3)
    assert jnp.allclose(score0, score0_ref, atol=1e-5, rtol=1e-3)

    print("KERNEL_OK")
</pallas_src>

<mosaic_0001>
module attributes {stable_mosaic.version = 11 : i64} {
  func.func @_attention_mlp_kernel(%arg0: i32, %arg1: memref<8x32xf32, #tpu.memory_space<vmem>>, %arg2: memref<256x8x32xf32, #tpu.memory_space<vmem>>, %arg3: memref<256x8x32xf32, #tpu.memory_space<vmem>>, %arg4: memref<8x256xf32, #tpu.memory_space<vmem>>, %arg5: memref<32x32xf32, #tpu.memory_space<vmem>>, %arg6: memref<32x32xf32, #tpu.memory_space<vmem>>, %arg7: memref<1x32xf32, #tpu.memory_space<vmem>>, %arg8: memref<1x32xf32, #tpu.memory_space<vmem>>, %arg9: memref<8x32xf32, #tpu.memory_space<vmem>>, %arg10: memref<8x256xf32, #tpu.memory_space<vmem>>) attributes {dimension_semantics = [#tpu.dimension_semantics<parallel>], iteration_bounds = array<i64: 2>, scalar_prefetch = 0 : i64, scratch_operands = 0 : i64, tpu.core_type = #tpu.core_type<tc>, window_params = [{transform_indices = @transform_0, window_bounds = array<i64: 8, 32>}, {transform_indices = @transform_1, window_bounds = array<i64: 256, 8, 32>}, {transform_indices = @transform_2, window_bounds = array<i64: 256, 8, 32>}, {transform_indices = @transform_3, window_bounds = array<i64: 8, 256>}, {pipeline_mode = #tpu.pipeline_mode<synchronous>, transform_indices = @transform_4, window_bounds = array<i64: 32, 32>}, {pipeline_mode = #tpu.pipeline_mode<synchronous>, transform_indices = @transform_5, window_bounds = array<i64: 32, 32>}, {pipeline_mode = #tpu.pipeline_mode<synchronous>, transform_indices = @transform_6, window_bounds = array<i64: 1, 32>}, {pipeline_mode = #tpu.pipeline_mode<synchronous>, transform_indices = @transform_7, window_bounds = array<i64: 1, 32>}, {transform_indices = @transform_8, window_bounds = array<i64: 8, 32>}, {transform_indices = @transform_9, window_bounds = array<i64: 8, 256>}]} {
    %c0 = arith.constant 0 : index
    %c0_0 = arith.constant 0 : index
    %0 = vector.load %arg1[%c0, %c0_0] : memref<8x32xf32, #tpu.memory_space<vmem>>, vector<8x32xf32>
    %c0_1 = arith.constant 0 : index
    %c0_2 = arith.constant 0 : index
    %1 = vector.load %arg5[%c0_1, %c0_2] : memref<32x32xf32, #tpu.memory_space<vmem>>, vector<32x32xf32>
    %cst = arith.constant dense<0.000000e+00> : vector<8x32xf32>
    %2 = tpu.matmul %0, %1, %cst {dimension_numbers = #tpu.dot_dimension_numbers<[1], [0], [0], [1], [0, 0, 1, 1], [], []>} : vector<8x32xf32>, vector<32x32xf32>, vector<8x32xf32> -> vector<8x32xf32>
    %c0_3 = arith.constant 0 : index
    %c0_4 = arith.constant 0 : index
    %3 = vector.load %arg7[%c0_3, %c0_4] : memref<1x32xf32, #tpu.memory_space<vmem>>, vector<1x32xf32>
    %4 = vector.broadcast %3 : vector<1x32xf32> to vector<8x32xf32>
    %5 = arith.addf %2, %4 : vector<8x32xf32>
    %c0_5 = arith.constant 0 : index
    %c0_6 = arith.constant 0 : index
    %c0_7 = arith.constant 0 : index
    %6 = vector.load %arg2[%c0_5, %c0_6, %c0_7] : memref<256x8x32xf32, #tpu.memory_space<vmem>>, vector<256x8x32xf32>
    %7 = vector.shape_cast %6 : vector<256x8x32xf32> to vector<2048x32xf32>
    %c0_8 = arith.constant 0 : index
    %c0_9 = arith.constant 0 : index
    %8 = vector.load %arg6[%c0_8, %c0_9] : memref<32x32xf32, #tpu.memory_space<vmem>>, vector<32x32xf32>
    %cst_10 = arith.constant dense<0.000000e+00> : vector<2048x32xf32>
    %9 = tpu.matmul %7, %8, %cst_10 {dimension_numbers = #tpu.dot_dimension_numbers<[1], [0], [0], [1], [0, 0, 1, 1], [], []>} : vector<2048x32xf32>, vector<32x32xf32>, vector<2048x32xf32> -> vector<2048x32xf32>
    %10 = vector.shape_cast %9 : vector<2048x32xf32> to vector<256x8x32xf32>
    %11 = vector.shape_cast %5 : vector<8x32xf32> to vector<1x8x32xf32>
    %12 = vector.broadcast %11 : vector<1x8x32xf32> to vector<256x8x32xf32>
    %13 = arith.addf %10, %12 : vector<256x8x32xf32>
    %14 = math.tanh %13 : vector<256x8x32xf32>
    %c0_11 = arith.constant 0 : index
    %c0_12 = arith.constant 0 : index
    %15 = vector.load %arg8[%c0_11, %c0_12] : memref<1x32xf32, #tpu.memory_space<vmem>>, vector<1x32xf32>
    %16 = vector.shape_cast %15 : vector<1x32xf32> to vector<1x1x32xf32>
    %17 = vector.broadcast %16 : vector<1x1x32xf32> to vector<256x8x32xf32>
    %18 = arith.mulf %14, %17 : vector<256x8x32xf32>
    %cst_13 = arith.constant dense<0.000000e+00> : vector<256x8xf32>
    %19 = vector.multi_reduction <add>, %18, %cst_13 [2] : vector<256x8x32xf32> to vector<256x8xf32>
    %20 = tpu.transpose %19, [1, 0] : vector<256x8xf32> -> vector<8x256xf32>
    %c0_14 = arith.constant 0 : index
    %c0_15 = arith.constant 0 : index
    %21 = vector.load %arg4[%c0_14, %c0_15] : memref<8x256xf32, #tpu.memory_space<vmem>>, vector<8x256xf32>
    %22 = arith.addf %20, %21 : vector<8x256xf32>
    %cst_16 = arith.constant dense<0xFF800000> : vector<8xf32>
    %23 = vector.multi_reduction <maximumf>, %22, %cst_16 [1] : vector<8x256xf32> to vector<8xf32>
    %24 = vector.shape_cast %23 : vector<8xf32> to vector<8x1xf32>
    %25 = vector.broadcast %24 : vector<8x1xf32> to vector<8x256xf32>
    %26 = arith.subf %22, %25 : vector<8x256xf32>
    %27 = math.exp %26 : vector<8x256xf32>
    %cst_17 = arith.constant dense<0.000000e+00> : vector<8xf32>
    %28 = vector.multi_reduction <add>, %27, %cst_17 [1] : vector<8x256xf32> to vector<8xf32>
    %29 = vector.shape_cast %28 : vector<8xf32> to vector<8x1xf32>
    %cst_18 = arith.constant 1.000000e+00 : f32
    %30 = vector.broadcast %cst_18 : f32 to vector<8x1xf32>
    %31 = arith.divf %30, %29 : vector<8x1xf32>
    %32 = vector.broadcast %31 : vector<8x1xf32> to vector<8x256xf32>
    %33 = arith.mulf %27, %32 : vector<8x256xf32>
    %c0_19 = arith.constant 0 : index
    %c0_20 = arith.constant 0 : index
    %34 = vector.load %arg10[%c0_19, %c0_20] : memref<8x256xf32, #tpu.memory_space<vmem>>, vector<8x256xf32>
    tpu.vector_store %arg10[%c0_19, %c0_20], %33 {strides = array<i32>} : memref<8x256xf32, #tpu.memory_space<vmem>>, vector<8x256xf32>,
    %35 = tpu.transpose %33, [1, 0] : vector<8x256xf32> -> vector<256x8xf32>
    %36 = vector.shape_cast %35 : vector<256x8xf32> to vector<256x8x1xf32>
    %c0_21 = arith.constant 0 : index
    %c0_22 = arith.constant 0 : index
    %c0_23 = arith.constant 0 : index
    %37 = vector.load %arg3[%c0_21, %c0_22, %c0_23] : memref<256x8x32xf32, #tpu.memory_space<vmem>>, vector<256x8x32xf32>
    %38 = vector.broadcast %36 : vector<256x8x1xf32> to vector<256x8x32xf32>
    %39 = arith.mulf %38, %37 : vector<256x8x32xf32>
    %cst_24 = arith.constant dense<0.000000e+00> : vector<8x32xf32>
    %40 = vector.multi_reduction <add>, %39, %cst_24 [0] : vector<256x8x32xf32> to vector<8x32xf32>
    %c0_25 = arith.constant 0 : index
    %c0_26 = arith.constant 0 : index
    %41 = vector.load %arg9[%c0_25, %c0_26] : memref<8x32xf32, #tpu.memory_space<vmem>>, vector<8x32xf32>
    tpu.vector_store %arg9[%c0_25, %c0_26], %40 {strides = array<i32>} : memref<8x32xf32, #tpu.memory_space<vmem>>, vector<8x32xf32>,
    return
  }
  func.func @transform_0(%arg0: i32) -> (i32, i32) {
    %c0_i32 = arith.constant 0 : i32
    %c0_i32_0 = arith.constant 0 : i32
    return %arg0, %c0_i32 : i32, i32
  }
  func.func @transform_1(%arg0: i32) -> (i32, i32, i32) {
    %c0_i32 = arith.constant 0 : i32
    %c0_i32_0 = arith.constant 0 : i32
    %c0_i32_1 = arith.constant 0 : i32
    return %c0_i32, %arg0, %c0_i32_0 : i32, i32, i32
  }
  func.func @transform_2(%arg0: i32) -> (i32, i32, i32) {
    %c0_i32 = arith.constant 0 : i32
    %c0_i32_0 = arith.constant 0 : i32
    %c0_i32_1 = arith.constant 0 : i32
    return %c0_i32, %arg0, %c0_i32_0 : i32, i32, i32
  }
  func.func @transform_3(%arg0: i32) -> (i32, i32) {
    %c0_i32 = arith.constant 0 : i32
    %c0_i32_0 = arith.constant 0 : i32
    return %arg0, %c0_i32 : i32, i32
  }
  func.func @transform_4(%arg0: i32) -> (i32, i32) {
    %c0_i32 = arith.constant 0 : i32
    %c0_i32_0 = arith.constant 0 : i32
    %c0_i32_1 = arith.constant 0 : i32
    return %c0_i32, %c0_i32_0 : i32, i32
  }
  func.func @transform_5(%arg0: i32) -> (i32, i32) {
    %c0_i32 = arith.constant 0 : i32
    %c0_i32_0 = arith.constant 0 : i32
    %c0_i32_1 = arith.constant 0 : i32
    return %c0_i32, %c0_i32_0 : i32, i32
  }
  func.func @transform_6(%arg0: i32) -> (i32, i32) {
    %c0_i32 = arith.constant 0 : i32
    %c0_i32_0 = arith.constant 0 : i32
    %c0_i32_1 = arith.constant 0 : i32
    return %c0_i32, %c0_i32_0 : i32, i32
  }
  func.func @transform_7(%arg0: i32) -> (i32, i32) {
    %c0_i32 = arith.constant 0 : i32
    %c0_i32_0 = arith.constant 0 : i32
    %c0_i32_1 = arith.constant 0 : i32
    return %c0_i32, %c0_i32_0 : i32, i32
  }
  func.func @transform_8(%arg0: i32) -> (i32, i32) {
    %c0_i32 = arith.constant 0 : i32
    %c0_i32_0 = arith.constant 0 : i32
    return %arg0, %c0_i32 : i32, i32
  }
  func.func @transform_9(%arg0: i32) -> (i32, i32) {
    %c0_i32 = arith.constant 0 : i32
    %c0_i32_0 = arith.constant 0 : i32
    return %arg0, %c0_i32 : i32, i32
  }
}

</mosaic_0001>

<llo_original>
// kernel: _attention_mlp_forward.1
$region0: #{_attention_mlp_forward.1}
  #allocation0 [shape = 'u32[]', space=smem, size = 0x4, offset = 0x4, fixed_abs, tag = 'smem constant byte address 0x4 - core index']
  #allocation1 [shape = 'u32[144,128]{1,0:T(1,128)}', space=vmem, size = 0x12000, scoped, tag = 'internal scratch']
  %s0 = inlined_call_operand.vmem [shape: f32[16,32], index: 0, kind: input, shape index: {}]
  %s1 = inlined_call_operand.vmem [shape: f32[256,16,32], index: 1, kind: input, shape index: {}]
  %s2 = inlined_call_operand.vmem [shape: f32[256,16,32], index: 2, kind: input, shape index: {}]
  %s3 = inlined_call_operand.vmem [shape: f32[16,256], index: 3, kind: input, shape index: {}]
  %s4 = inlined_call_operand.vmem [shape: f32[32,32], index: 4, kind: input, shape index: {}]
  %s5 = inlined_call_operand.vmem [shape: f32[32,32], index: 5, kind: input, shape index: {}]
  %s6 = inlined_call_operand.vmem [shape: f32[1,32], index: 6, kind: input, shape index: {}]
  %s7 = inlined_call_operand.vmem [shape: f32[1,32], index: 7, kind: input, shape index: {}]
  %s8 = inlined_call_operand.hbm [shape: f32[16,32], index: 8, kind: output, shape index: {0}]
  %s9 = inlined_call_operand.hbm [shape: f32[16,256], index: 9, kind: output, shape index: {1}]
  %10 = xla_tuple %s8, %s9
  %s11 = sld [smem:[#allocation0]]
  $region149: #{_attention_mlp_forward.1} parent=0
    _
  %s13 = ssub.s32 1, %s11
  %s14 = scalar_select 0, %s13, %s11
  $region1: #{_attention_mlp_forward.1} parent=0
    #allocation2 [shape = 'u8[2097152]{0}', space=vmem, size = 0x200000, scoped, tag = 'input window, operand 1']
    #allocation3 [shape = 'u8[2097152]{0}', space=vmem, size = 0x200000, scoped, tag = 'input window, operand 2']
    #allocation4 [shape = 'u8[8192]{0}', space=vmem, size = 0x2000, scoped, tag = 'output window, operand 0']
    #allocation5 [shape = 's32[2]{0}', space=sflag, size = 0x8, scoped, tag = 'scoped memory for _attention_mlp_forward.1']
    #allocation6 [shape = 'u8[16384]{0}', space=vmem, size = 0x4000, scoped, tag = 'output window, operand 1']
    #allocation7 [shape = 's32[2]{0}', space=sflag, size = 0x8, scoped, tag = 'scoped memory for _attention_mlp_forward.1']
    %15 = vsyncpa [#allocation5], 0
    %s16 = scalar_lea.sflag [#allocation5], 1
    %17 = vsyncpa %s16, 0
    %18 = vsyncpa [#allocation7], 0
    %s19 = scalar_lea.sflag [#allocation7], 1
    %20 = vsyncpa %s19, 0
    loop: start=0, step=1, limit=4
    $region2: #{_attention_mlp_forward.1} parent=1 // loop_pre_header
      _
    $region3: #{_attention_mlp_forward.1} parent=1 // loop_header
      %s22 = sphi 0, %s26
      %p23 = scmp.ge.s32.totalorder %s22, 4
      %s32 = sphi 0, %s34
      %s35 = sphi 0, %s32
      %s36 = sphi 0, %s35
      %s52 = sphi 0, %s36
      %s58 = sphi 0, %s60
      %s61 = sphi 0, %s58
      %s62 = sphi 0, %s61
      %s78 = sphi 0, %s62
      %s84 = sphi 0, %s86
      %s87 = sphi 0, %s84
      %s88 = sphi 0, %s87
      %s104 = sphi 0, %s88
      %s110 = sphi 0, %s112
      %s113 = sphi 0, %s110
      %s114 = sphi 0, %s113
      %s130 = sphi 0, %s114
      %s134 = sphi 0, %s134
      %s136 = sphi 0, %s134
      %s137 = sphi 0, %s136
      %s151 = sphi 0, %s137
      %s155 = sphi 0, %s155
      %s157 = sphi 0, %s155
      %s158 = sphi 0, %s157
      %s172 = sphi 0, %s158
      %s176 = sphi 0, %s176
      %s178 = sphi 0, %s176
      %s179 = sphi 0, %s178
      %s193 = sphi 0, %s179
      %s197 = sphi 0, %s197
      %s199 = sphi 0, %s197
      %s200 = sphi 0, %s199
      %s214 = sphi 0, %s200
      %s220 = sphi 0, %s222
      %s223 = sphi 0, %s220
      %s224 = sphi 0, %s223
      %s240 = sphi 0, %s224
      %s246 = sphi 0, %s248
      %s249 = sphi 0, %s246
      %s250 = sphi 0, %s249
      %s266 = sphi 0, %s250
    $region4: #{_attention_mlp_forward.1} parent=1 // loop_header_branch
      %25 = sbr.rel (%p23) target = $region8
    $region5: #{_attention_mlp_forward.1} parent=1 // loop_body
      %s27 = ssub.s32 %s22, 1
      %s28 = ssub.s32 %s22, 2
      %s29 = sadd.s32 %s22, 1
      %s30 = ssub.s32 %s22, %s29
      %p31 = scmp.eq.s32.totalorder %s30, 0
      %s33 = sadd.s32 %s32, 1
      %s34 = scalar_select %p31, %s32, %s33
      %p37 = pneg %p31
      %p38 = scmp.eq.s32.totalorder %s22, 1
      %p39 = por %p37, %p38
      %p40 = scmp.ne.s32.totalorder %s32, %s35
      %p41 = scmp.eq.s32.totalorder %s22, 0
      %p42 = por %p40, %p41
      %p43 = scmp.ne.s32.totalorder %s32, %s35
      %p44 = scmp.eq.s32.totalorder %s27, 1
      %p45 = por %p43, %p44
      %p46 = scmp.ne.s32.totalorder %s35, %s36
      %p47 = scmp.eq.s32.totalorder %s27, 0
      %p48 = por %p46, %p47
      %p49 = scmp.ne.s32.totalorder %s35, %s36
      %p50 = scmp.eq.s32.totalorder %s28, 1
      %p51 = por %p49, %p50
      %p53 = scmp.ne.s32.totalorder %s36, %s52
      %p54 = scmp.eq.s32.totalorder %s28, 0
      %p55 = por %p53, %p54
      %s56 = ssub.s32 %s22, %s29
      %p57 = scmp.eq.s32.totalorder %s56, 0
      %s59 = sadd.s32 %s58, 1
      %s60 = scalar_select %p57, %s58, %s59
      %p63 = pneg %p57
      %p64 = scmp.eq.s32.totalorder %s22, 1
      %p65 = por %p63, %p64
      %p66 = scmp.ne.s32.totalorder %s58, %s61
      %p67 = scmp.eq.s32.totalorder %s22, 0
      %p68 = por %p66, %p67
      %p69 = scmp.ne.s32.totalorder %s58, %s61
      %p70 = scmp.eq.s32.totalorder %s27, 1
      %p71 = por %p69, %p70
      %p72 = scmp.ne.s32.totalorder %s61, %s62
      %p73 = scmp.eq.s32.totalorder %s27, 0
      %p74 = por %p72, %p73
      %p75 = scmp.ne.s32.totalorder %s61, %s62
      %p76 = scmp.eq.s32.totalorder %s28, 1
      %p77 = por %p75, %p76
      %p79 = scmp.ne.s32.totalorder %s62, %s78
      %p80 = scmp.eq.s32.totalorder %s28, 0
      %p81 = por %p79, %p80
      %s82 = ssub.s32 %s22, %s29
      %p83 = scmp.eq.s32.totalorder %s82, 0
      %s85 = sadd.s32 %s84, 1
      %s86 = scalar_select %p83, %s84, %s85
      %p89 = pneg %p83
      %p90 = scmp.eq.s32.totalorder %s22, 1
      %p91 = por %p89, %p90
      %p92 = scmp.ne.s32.totalorder %s84, %s87
      %p93 = scmp.eq.s32.totalorder %s22, 0
      %p94 = por %p92, %p93
      %p95 = scmp.ne.s32.totalorder %s84, %s87
      %p96 = scmp.eq.s32.totalorder %s27, 1
      %p97 = por %p95, %p96
      %p98 = scmp.ne.s32.totalorder %s87, %s88
      %p99 = scmp.eq.s32.totalorder %s27, 0
      %p100 = por %p98, %p99
      %p101 = scmp.ne.s32.totalorder %s87, %s88
      %p102 = scmp.eq.s32.totalorder %s28, 1
      %p103 = por %p101, %p102
      %p105 = scmp.ne.s32.totalorder %s88, %s104
      %p106 = scmp.eq.s32.totalorder %s28, 0
      %p107 = por %p105, %p106
      %s108 = ssub.s32 %s22, %s29
      %p109 = scmp.eq.s32.totalorder %s108, 0
      %s111 = sadd.s32 %s110, 1
      %s112 = scalar_select %p109, %s110, %s111
      %p115 = pneg %p109
      %p116 = scmp.eq.s32.totalorder %s22, 1
      %p117 = por %p115, %p116
      %p118 = scmp.ne.s32.totalorder %s110, %s113
      %p119 = scmp.eq.s32.totalorder %s22, 0
      %p120 = por %p118, %p119
      %p121 = scmp.ne.s32.totalorder %s110, %s113
      %p122 = scmp.eq.s32.totalorder %s27, 1
      %p123 = por %p121, %p122
      %p124 = scmp.ne.s32.totalorder %s113, %s114
      %p125 = scmp.eq.s32.totalorder %s27, 0
      %p126 = por %p124, %p125
      %p127 = scmp.ne.s32.totalorder %s113, %s114
      %p128 = scmp.eq.s32.totalorder %s28, 1
      %p129 = por %p127, %p128
      %p131 = scmp.ne.s32.totalorder %s114, %s130
      %p132 = scmp.eq.s32.totalorder %s28, 0
      %p133 = por %p131, %p132
      %s135 = sadd.s32 %s134, 1
      %p138 = scmp.eq.s32.totalorder %s22, 1
      %p139 = scmp.ne.s32.totalorder %s134, %s136
      %p140 = scmp.eq.s32.totalorder %s22, 0
      %p141 = por %p139, %p140
      %p142 = scmp.ne.s32.totalorder %s134, %s136
      %p143 = scmp.eq.s32.totalorder %s27, 1
      %p144 = por %p142, %p143
      %p145 = scmp.ne.s32.totalorder %s136, %s137
      %p146 = scmp.eq.s32.totalorder %s27, 0
      %p147 = por %p145, %p146
      %p148 = scmp.ne.s32.totalorder %s136, %s137
      %p149 = scmp.eq.s32.totalorder %s28, 1
      %p150 = por %p148, %p149
      %p152 = scmp.ne.s32.totalorder %s137, %s151
      %p153 = scmp.eq.s32.totalorder %s28, 0
      %p154 = por %p152, %p153
      %s156 = sadd.s32 %s155, 1
      %p159 = scmp.eq.s32.totalorder %s22, 1
      %p160 = scmp.ne.s32.totalorder %s155, %s157
      %p161 = scmp.eq.s32.totalorder %s22, 0
      %p162 = por %p160, %p161
      %p163 = scmp.ne.s32.totalorder %s155, %s157
      %p164 = scmp.eq.s32.totalorder %s27, 1
      %p165 = por %p163, %p164
      %p166 = scmp.ne.s32.totalorder %s157, %s158
      %p167 = scmp.eq.s32.totalorder %s27, 0
      %p168 = por %p166, %p167
      %p169 = scmp.ne.s32.totalorder %s157, %s158
      %p170 = scmp.eq.s32.totalorder %s28, 1
      %p171 = por %p169, %p170
      %p173 = scmp.ne.s32.totalorder %s158, %s172
      %p174 = scmp.eq.s32.totalorder %s28, 0
      %p175 = por %p173, %p174
      %s177 = sadd.s32 %s176, 1
      %p180 = scmp.eq.s32.totalorder %s22, 1
      %p181 = scmp.ne.s32.totalorder %s176, %s178
      %p182 = scmp.eq.s32.totalorder %s22, 0
      %p183 = por %p181, %p182
      %p184 = scmp.ne.s32.totalorder %s176, %s178
      %p185 = scmp.eq.s32.totalorder %s27, 1
      %p186 = por %p184, %p185
      %p187 = scmp.ne.s32.totalorder %s178, %s179
      %p188 = scmp.eq.s32.totalorder %s27, 0
      %p189 = por %p187, %p188
      %p190 = scmp.ne.s32.totalorder %s178, %s179
      %p191 = scmp.eq.s32.totalorder %s28, 1
      %p192 = por %p190, %p191
      %p194 = scmp.ne.s32.totalorder %s179, %s193
      %p195 = scmp.eq.s32.totalorder %s28, 0
      %p196 = por %p194, %p195
      %s198 = sadd.s32 %s197, 1
      %p201 = scmp.eq.s32.totalorder %s22, 1
      %p202 = scmp.ne.s32.totalorder %s197, %s199
      %p203 = scmp.eq.s32.totalorder %s22, 0
      %p204 = por %p202, %p203
      %p205 = scmp.ne.s32.totalorder %s197, %s199
      %p206 = scmp.eq.s32.totalorder %s27, 1
      %p207 = por %p205, %p206
      %p208 = scmp.ne.s32.totalorder %s199, %s200
      %p209 = scmp.eq.s32.totalorder %s27, 0
      %p210 = por %p208, %p209
      %p211 = scmp.ne.s32.totalorder %s199, %s200
      %p212 = scmp.eq.s32.totalorder %s28, 1
      %p213 = por %p211, %p212
      %p215 = scmp.ne.s32.totalorder %s200, %s214
      %p216 = scmp.eq.s32.totalorder %s28, 0
      %p217 = por %p215, %p216
      %s218 = ssub.s32 %s22, %s29
      %p219 = scmp.eq.s32.totalorder %s218, 0
      %s221 = sadd.s32 %s220, 1
      %s222 = scalar_select %p219, %s220, %s221
      %p225 = pneg %p219
      %p226 = scmp.eq.s32.totalorder %s22, 1
      %p227 = por %p225, %p226
      %p228 = scmp.ne.s32.totalorder %s220, %s223
      %p229 = scmp.eq.s32.totalorder %s22, 0
      %p230 = por %p228, %p229
      %p231 = scmp.ne.s32.totalorder %s220, %s223
      %p232 = scmp.eq.s32.totalorder %s27, 1
      %p233 = por %p231, %p232
      %p234 = scmp.ne.s32.totalorder %s223, %s224
      %p235 = scmp.eq.s32.totalorder %s27, 0
      %p236 = por %p234, %p235
      %p237 = scmp.ne.s32.totalorder %s223, %s224
      %p238 = scmp.eq.s32.totalorder %s28, 1
      %p239 = por %p237, %p238
      %p241 = scmp.ne.s32.totalorder %s224, %s240
      %p242 = scmp.eq.s32.totalorder %s28, 0
      %p243 = por %p241, %p242
      %s244 = ssub.s32 %s22, %s29
      %p245 = scmp.eq.s32.totalorder %s244, 0
      %s247 = sadd.s32 %s246, 1
      %s248 = scalar_select %p245, %s246, %s247
      %p251 = pneg %p245
      %p252 = scmp.eq.s32.totalorder %s22, 1
      %p253 = por %p251, %p252
      %p254 = scmp.ne.s32.totalorder %s246, %s249
      %p255 = scmp.eq.s32.totalorder %s22, 0
      %p256 = por %p254, %p255
      %p257 = scmp.ne.s32.totalorder %s246, %s249
      %p258 = scmp.eq.s32.totalorder %s27, 1
      %p259 = por %p257, %p258
      %p260 = scmp.ne.s32.totalorder %s249, %s250
      %p261 = scmp.eq.s32.totalorder %s27, 0
      %p262 = por %p260, %p261
      %p263 = scmp.ne.s32.totalorder %s249, %s250
      %p264 = scmp.eq.s32.totalorder %s28, 1
      %p265 = por %p263, %p264
      %p267 = scmp.ne.s32.totalorder %s250, %s266
      %p268 = scmp.eq.s32.totalorder %s28, 0
      %p269 = por %p267, %p268
      %p270 = scmp.le.s32.totalorder 1, %s22
      %p271 = scmp.lt.s32.totalorder %s22, 3
      %p272 = pnand %p270, %p271
      %p273 = pneg %p272
      // Predicated region
      $region9: #{_attention_mlp_forward.1} parent=5 // pred_check
        _
      $region10: #{_attention_mlp_forward.1} parent=5 // pred_check_branch
        %275 = sbr.rel (%p272) target = $region12
      $region11: #{_attention_mlp_forward.1} parent=5 // pred_region
        %s276 = ssub.s32 %s22, 1
        // Predicated region
        $region13: #{_attention_mlp_forward.1} parent=11 // pred_check
          %p277 = pneg %p147
        $region14: #{_attention_mlp_forward.1} parent=11 // pred_check_branch
          %279 = sbr.rel (%p277) target = $region16
        $region15: #{_attention_mlp_forward.1} parent=11 // pred_region
          _
        $region16: #{_attention_mlp_forward.1} parent=11 // pred_fallthru
          _
        // Predicated region
        $region17: #{_attention_mlp_forward.1} parent=11 // pred_check
          %p280 = pneg %p168
        $region18: #{_attention_mlp_forward.1} parent=11 // pred_check_branch
          %282 = sbr.rel (%p280) target = $region20
        $region19: #{_attention_mlp_forward.1} parent=11 // pred_region
          _
        $region20: #{_attention_mlp_forward.1} parent=11 // pred_fallthru
          _
        // Predicated region
        $region21: #{_attention_mlp_forward.1} parent=11 // pred_check
          %p283 = pneg %p189
        $region22: #{_attention_mlp_forward.1} parent=11 // pred_check_branch
          %285 = sbr.rel (%p283) target = $region24
        $region23: #{_attention_mlp_forward.1} parent=11 // pred_region
          _
        $region24: #{_attention_mlp_forward.1} parent=11 // pred_fallthru
          _
        // Predicated region
        $region25: #{_attention_mlp_forward.1} parent=11 // pred_check
          %p286 = pneg %p210
        $region26: #{_attention_mlp_forward.1} parent=11 // pred_check_branch
          %288 = sbr.rel (%p286) target = $region28
        $region27: #{_attention_mlp_forward.1} parent=11 // pred_region
          _
        $region28: #{_attention_mlp_forward.1} parent=11 // pred_fallthru
          _
      $region12: #{_attention_mlp_forward.1} parent=5 // pred_fallthru
        _
      %p289 = scmp.lt.s32.totalorder %s22, 2
      // Predicated region
      $region29: #{_attention_mlp_forward.1} parent=5 // pred_check
        %p290 = pneg %p289
      $region30: #{_attention_mlp_forward.1} parent=5 // pred_check_branch
        %292 = sbr.rel (%p290) target = $region32
      $region31: #{_attention_mlp_forward.1} parent=5 // pred_region
        // Predicated region
        $region33: #{_attention_mlp_forward.1} parent=31 // pred_check
          %p293 = pneg %p42
        $region34: #{_attention_mlp_forward.1} parent=31 // pred_check_branch
          %295 = sbr.rel (%p293) target = $region36
        $region35: #{_attention_mlp_forward.1} parent=31 // pred_region
          %p296 = scmp.lt.s32.totalorder %s22, 1
          %s297 = scalar_select %p296, %s22, 1
          %s298 = smul.addr %s297, 8
          %s299 = scalar_lea.vmem %s0, %s298
        $region36: #{_attention_mlp_forward.1} parent=31 // pred_fallthru
          _
        // Predicated region
        $region37: #{_attention_mlp_forward.1} parent=31 // pred_check
          %p300 = pneg %p68
        $region38: #{_attention_mlp_forward.1} parent=31 // pred_check_branch
          %302 = sbr.rel (%p300) target = $region40
        $region39: #{_attention_mlp_forward.1} parent=31 // pred_region
          %s303 = sand.u32 %s58, 1
          %s304 = sand.u32 %s58, 1
          %s305 = smul.addr %s304, 2048
          %s306 = scalar_lea.vmem [#allocation2], %s305
          %s307 = smul.addr %s22, 8
          %s308 = scalar_lea.vmem %s1, %s307
          // Predicated region
          $region41: #{_attention_mlp_forward.1} parent=39 // pred_check
            _
          $region42: #{_attention_mlp_forward.1} parent=39 // pred_check_branch
            %310 = sbr.rel (0) target = $region44
          $region43: #{_attention_mlp_forward.1} parent=39 // pred_region
            // Predicated region
            $region45: #{_attention_mlp_forward.1} parent=43 // pred_check
              _
            $region46: #{_attention_mlp_forward.1} parent=43 // pred_check_branch
              %312 = sbr.rel (0) target = $region48
            $region47: #{_attention_mlp_forward.1} parent=43 // pred_region
              // Predicated region
              $region60: #{_attention_mlp_forward.1} parent=47 // pred_check
                _
              $region61: #{_attention_mlp_forward.1} parent=47 // pred_check_branch
                %838 = sbr.rel (0) target = $region63
              $region62: #{_attention_mlp_forward.1} parent=47 // pred_region
                loop: start=0, step=1, limit=1
                $region64: #{_attention_mlp_forward.1} parent=62 // loop_pre_header
                  _
                $region65: #{_attention_mlp_forward.1} parent=62 // loop_header
                  %s840 = sphi 0, %s844
                  %p841 = scmp.ge.s32.totalorder %s840, 1
                  %s845 = sphi %s308, %s308
                  %s846 = sphi %s306, %s306
                $region66: #{_attention_mlp_forward.1} parent=62 // loop_header_branch
                  %843 = sbr.rel (%p841) target = $region70
                $region67: #{_attention_mlp_forward.1} parent=62 // loop_body
                  %v847 = vld [vmem:[%s845] sm:$0xff]
                  %848 = vst [vmem:[%s846] sm:$0xff] %v847
                  %v849 = vld [vmem:[%s845 + $0x10] sm:$0xff]
                  %850 = vst [vmem:[%s846 + $0x8] sm:$0xff] %v849
                  %v851 = vld [vmem:[%s845 + $0x20] sm:$0xff]
                  %852 = vst [vmem:[%s846 + $0x10] sm:$0xff] %v851
                  %v853 = vld [vmem:[%s845 + $0x30] sm:$0xff]
                  %854 = vst [vmem:[%s846 + $0x18] sm:$0xff] %v853
                  %v855 = vld [vmem:[%s845 + $0x40] sm:$0xff]
                  %856 = vst [vmem:[%s846 + $0x20] sm:$0xff] %v855
                  %v857 = vld [vmem:[%s845 + $0x50] sm:$0xff]
                  %858 = vst [vmem:[%s846 + $0x28] sm:$0xff] %v857
                  %v859 = vld [vmem:[%s845 + $0x60] sm:$0xff]
                  %860 = vst [vmem:[%s846 + $0x30] sm:$0xff] %v859
                  %v861 = vld [vmem:[%s845 + $0x70] sm:$0xff]
                  %862 = vst [vmem:[%s846 + $0x38] sm:$0xff] %v861
                  %v863 = vld [vmem:[%s845 + $0x80] sm:$0xff]
                  %864 = vst [vmem:[%s846 + $0x40] sm:$0xff] %v863
                  %v865 = vld [vmem:[%s845 + $0x90] sm:$0xff]
                  %866 = vst [vmem:[%s846 + $0x48] sm:$0xff] %v865
                  %v867 = vld [vmem:[%s845 + $0xa0] sm:$0xff]
                  %868 = vst [vmem:[%s846 + $0x50] sm:$0xff] %v867
                  %v869 = vld [vmem:[%s845 + $0xb0] sm:$0xff]
                  %870 = vst [vmem:[%s846 + $0x58] sm:$0xff] %v869
                  %v871 = vld [vmem:[%s845 + $0xc0] sm:$0xff]
                  %872 = vst [vmem:[%s846 + $0x60] sm:$0xff] %v871
                  %v873 = vld [vmem:[%s845 + $0xd0] sm:$0xff]
                  %874 = vst [vmem:[%s846 + $0x68] sm:$0xff] %v873
                  %v875 = vld [vmem:[%s845 + $0xe0] sm:$0xff]
                  %876 = vst [vmem:[%s846 + $0x70] sm:$0xff] %v875
                  %v877 = vld [vmem:[%s845 + $0xf0] sm:$0xff]
                  %878 = vst [vmem:[%s846 + $0x78] sm:$0xff] %v877
                  %v879 = vld [vmem:[%s845 + $0x100] sm:$0xff]
                  %880 = vst [vmem:[%s846 + $0x80] sm:$0xff] %v879
                  %v881 = vld [vmem:[%s845 + $0x110] sm:$0xff]
                  %882 = vst [vmem:[%s846 + $0x88] sm:$0xff] %v881
                  %v883 = vld [vmem:[%s845 + $0x120] sm:$0xff]
                  %884 = vst [vmem:[%s846 + $0x90] sm:$0xff] %v883
                  %v885 = vld [vmem:[%s845 + $0x130] sm:$0xff]
                  %886 = vst [vmem:[%s846 + $0x98] sm:$0xff] %v885
                  %v887 = vld [vmem:[%s845 + $0x140] sm:$0xff]
                  %888 = vst [vmem:[%s846 + $0xa0] sm:$0xff] %v887
                  %v889 = vld [vmem:[%s845 + $0x150] sm:$0xff]
                  %890 = vst [vmem:[%s846 + $0xa8] sm:$0xff] %v889
                  %v891 = vld [vmem:[%s845 + $0x160] sm:$0xff]
                  %892 = vst [vmem:[%s846 + $0xb0] sm:$0xff] %v891
                  %v893 = vld [vmem:[%s845 + $0x170] sm:$0xff]
                  %894 = vst [vmem:[%s846 + $0xb8] sm:$0xff] %v893
                  %v895 = vld [vmem:[%s845 + $0x180] sm:$0xff]
                  %896 = vst [vmem:[%s846 + $0xc0] sm:$0xff] %v895
                  %v897 = vld [vmem:[%s845 + $0x190] sm:$0xff]
                  %898 = vst [vmem:[%s846 + $0xc8] sm:$0xff] %v897
                  %v899 = vld [vmem:[%s845 + $0x1a0] sm:$0xff]
                  %900 = vst [vmem:[%s846 + $0xd0] sm:$0xff] %v899
                  %v901 = vld [vmem:[%s845 + $0x1b0] sm:$0xff]
                  %902 = vst [vmem:[%s846 + $0xd8] sm:$0xff] %v901
                  %v903 = vld [vmem:[%s845 + $0x1c0] sm:$0xff]
                  %904 = vst [vmem:[%s846 + $0xe0] sm:$0xff] %v903
                  %v905 = vld [vmem:[%s845 + $0x1d0] sm:$0xff]
                  %906 = vst [vmem:[%s846 + $0xe8] sm:$0xff] %v905
                  %v907 = vld [vmem:[%s845 + $0x1e0] sm:$0xff]
                  %908 = vst [vmem:[%s846 + $0xf0] sm:$0xff] %v907
                  %v909 = vld [vmem:[%s845 + $0x1f0] sm:$0xff]
                  %910 = vst [vmem:[%s846 + $0xf8] sm:$0xff] %v909
                  %v911 = vld [vmem:[%s845 + $0x200] sm:$0xff]
                  %912 = vst [vmem:[%s846 + $0x100] sm:$0xff] %v911
                  %v913 = vld [vmem:[%s845 + $0x210] sm:$0xff]
                  %914 = vst [vmem:[%s846 + $0x108] sm:$0xff] %v913
                  %v915 = vld [vmem:[%s845 + $0x220] sm:$0xff]
                  %916 = vst [vmem:[%s846 + $0x110] sm:$0xff] %v915
                  %v917 = vld [vmem:[%s845 + $0x230] sm:$0xff]
                  %918 = vst [vmem:[%s846 + $0x118] sm:$0xff] %v917
                  %v919 = vld [vmem:[%s845 + $0x240] sm:$0xff]
                  %920 = vst [vmem:[%s846 + $0x120] sm:$0xff] %v919
                  %v921 = vld [vmem:[%s845 + $0x250] sm:$0xff]
                  %922 = vst [vmem:[%s846 + $0x128] sm:$0xff] %v921
                  %v923 = vld [vmem:[%s845 + $0x260] sm:$0xff]
                  %924 = vst [vmem:[%s846 + $0x130] sm:$0xff] %v923
                  %v925 = vld [vmem:[%s845 + $0x270] sm:$0xff]
                  %926 = vst [vmem:[%s846 + $0x138] sm:$0xff] %v925
                  %v927 = vld [vmem:[%s845 + $0x280] sm:$0xff]
                  %928 = vst [vmem:[%s846 + $0x140] sm:$0xff] %v927
                  %v929 = vld [vmem:[%s845 + $0x290] sm:$0xff]
                  %930 = vst [vmem:[%s846 + $0x148] sm:$0xff] %v929
                  %v931 = vld [vmem:[%s845 + $0x2a0] sm:$0xff]
                  %932 = vst [vmem:[%s846 + $0x150] sm:$0xff] %v931
                  %v933 = vld [vmem:[%s845 + $0x2b0] sm:$0xff]
                  %934 = vst [vmem:[%s846 + $0x158] sm:$0xff] %v933
                  %v935 = vld [vmem:[%s845 + $0x2c0] sm:$0xff]
                  %936 = vst [vmem:[%s846 + $0x160] sm:$0xff] %v935
                  %v937 = vld [vmem:[%s845 + $0x2d0] sm:$0xff]
                  %938 = vst [vmem:[%s846 + $0x168] sm:$0xff] %v937
                  %v939 = vld [vmem:[%s845 + $0x2e0] sm:$0xff]
                  %940 = vst [vmem:[%s846 + $0x170] sm:$0xff] %v939
                  %v941 = vld [vmem:[%s845 + $0x2f0] sm:$0xff]
                  %942 = vst [vmem:[%s846 + $0x178] sm:$0xff] %v941
                  %v943 = vld [vmem:[%s845 + $0x300] sm:$0xff]
                  %944 = vst [vmem:[%s846 + $0x180] sm:$0xff] %v943
                  %v945 = vld [vmem:[%s845 + $0x310] sm:$0xff]
                  %946 = vst [vmem:[%s846 + $0x188] sm:$0xff] %v945
                  %v947 = vld [vmem:[%s845 + $0x320] sm:$0xff]
                  %948 = vst [vmem:[%s846 + $0x190] sm:$0xff] %v947
                  %v949 = vld [vmem:[%s845 + $0x330] sm:$0xff]
                  %950 = vst [vmem:[%s846 + $0x198] sm:$0xff] %v949
                  %v951 = vld [vmem:[%s845 + $0x340] sm:$0xff]
                  %952 = vst [vmem:[%s846 + $0x1a0] sm:$0xff] %v951
                  %v953 = vld [vmem:[%s845 + $0x350] sm:$0xff]
                  %954 = vst [vmem:[%s846 + $0x1a8] sm:$0xff] %v953
                  %v955 = vld [vmem:[%s845 + $0x360] sm:$0xff]
                  %956 = vst [vmem:[%s846 + $0x1b0] sm:$0xff] %v955
                  %v957 = vld [vmem:[%s845 + $0x370] sm:$0xff]
                  %958 = vst [vmem:[%s846 + $0x1b8] sm:$0xff] %v957
                  %v959 = vld [vmem:[%s845 + $0x380] sm:$0xff]
                  %960 = vst [vmem:[%s846 + $0x1c0] sm:$0xff] %v959
                  %v961 = vld [vmem:[%s845 + $0x390] sm:$0xff]
                  %962 = vst [vmem:[%s846 + $0x1c8] sm:$0xff] %v961
                  %v963 = vld [vmem:[%s845 + $0x3a0] sm:$0xff]
                  %964 = vst [vmem:[%s846 + $0x1d0] sm:$0xff] %v963
                  %v965 = vld [vmem:[%s845 + $0x3b0] sm:$0xff]
                  %966 = vst [vmem:[%s846 + $0x1d8] sm:$0xff] %v965
                  %v967 = vld [vmem:[%s845 + $0x3c0] sm:$0xff]
                  %968 = vst [vmem:[%s846 + $0x1e0] sm:$0xff] %v967
                  %v969 = vld [vmem:[%s845 + $0x3d0] sm:$0xff]
                  %970 = vst [vmem:[%s846 + $0x1e8] sm:$0xff] %v969
                  %v971 = vld [vmem:[%s845 + $0x3e0] sm:$0xff]
                  %972 = vst [vmem:[%s846 + $0x1f0] sm:$0xff] %v971
                  %v973 = vld [vmem:[%s845 + $0x3f0] sm:$0xff]
                  %974 = vst [vmem:[%s846 + $0x1f8] sm:$0xff] %v973
                  %v975 = vld [vmem:[%s845 + $0x400] sm:$0xff]
                  %976 = vst [vmem:[%s846 + $0x200] sm:$0xff] %v975
                  %v977 = vld [vmem:[%s845 + $0x410] sm:$0xff]
                  %978 = vst [vmem:[%s846 + $0x208] sm:$0xff] %v977
                  %v979 = vld [vmem:[%s845 + $0x420] sm:$0xff]
                  %980 = vst [vmem:[%s846 + $0x210] sm:$0xff] %v979
                  %v981 = vld [vmem:[%s845 + $0x430] sm:$0xff]
                  %982 = vst [vmem:[%s846 + $0x218] sm:$0xff] %v981
                  %v983 = vld [vmem:[%s845 + $0x440] sm:$0xff]
                  %984 = vst [vmem:[%s846 + $0x220] sm:$0xff] %v983
                  %v985 = vld [vmem:[%s845 + $0x450] sm:$0xff]
                  %986 = vst [vmem:[%s846 + $0x228] sm:$0xff] %v985
                  %v987 = vld [vmem:[%s845 + $0x460] sm:$0xff]
                  %988 = vst [vmem:[%s846 + $0x230] sm:$0xff] %v987
                  %v989 = vld [vmem:[%s845 + $0x470] sm:$0xff]
                  %990 = vst [vmem:[%s846 + $0x238] sm:$0xff] %v989
                  %v991 = vld [vmem:[%s845 + $0x480] sm:$0xff]
                  %992 = vst [vmem:[%s846 + $0x240] sm:$0xff] %v991
                  %v993 = vld [vmem:[%s845 + $0x490] sm:$0xff]
                  %994 = vst [vmem:[%s846 + $0x248] sm:$0xff] %v993
                  %v995 = vld [vmem:[%s845 + $0x4a0] sm:$0xff]
                  %996 = vst [vmem:[%s846 + $0x250] sm:$0xff] %v995
                  %v997 = vld [vmem:[%s845 + $0x4b0] sm:$0xff]
                  %998 = vst [vmem:[%s846 + $0x258] sm:$0xff] %v997
                  %v999 = vld [vmem:[%s845 + $0x4c0] sm:$0xff]
                  %1000 = vst [vmem:[%s846 + $0x260] sm:$0xff] %v999
                  %v1001 = vld [vmem:[%s845 + $0x4d0] sm:$0xff]
                  %1002 = vst [vmem:[%s846 + $0x268] sm:$0xff] %v1001
                  %v1003 = vld [vmem:[%s845 + $0x4e0] sm:$0xff]
                  %1004 = vst [vmem:[%s846 + $0x270] sm:$0xff] %v1003
                  %v1005 = vld [vmem:[%s845 + $0x4f0] sm:$0xff]
                  %1006 = vst [vmem:[%s846 + $0x278] sm:$0xff] %v1005
                  %v1007 = vld [vmem:[%s845 + $0x500] sm:$0xff]
                  %1008 = vst [vmem:[%s846 + $0x280] sm:$0xff] %v1007
                  %v1009 = vld [vmem:[%s845 + $0x510] sm:$0xff]
                  %1010 = vst [vmem:[%s846 + $0x288] sm:$0xff] %v1009
                  %v1011 = vld [vmem:[%s845 + $0x520] sm:$0xff]
                  %1012 = vst [vmem:[%s846 + $0x290] sm:$0xff] %v1011
                  %v1013 = vld [vmem:[%s845 + $0x530] sm:$0xff]
                  %1014 = vst [vmem:[%s846 + $0x298] sm:$0xff] %v1013
                  %v1015 = vld [vmem:[%s845 + $0x540] sm:$0xff]
                  %1016 = vst [vmem:[%s846 + $0x2a0] sm:$0xff] %v1015
                  %v1017 = vld [vmem:[%s845 + $0x550] sm:$0xff]
                  %1018 = vst [vmem:[%s846 + $0x2a8] sm:$0xff] %v1017
                  %v1019 = vld [vmem:[%s845 + $0x560] sm:$0xff]
                  %1020 = vst [vmem:[%s846 + $0x2b0] sm:$0xff] %v1019
                  %v1021 = vld [vmem:[%s845 + $0x570] sm:$0xff]
                  %1022 = vst [vmem:[%s846 + $0x2b8] sm:$0xff] %v1021
                  %v1023 = vld [vmem:[%s845 + $0x580] sm:$0xff]
                  %1024 = vst [vmem:[%s846 + $0x2c0] sm:$0xff] %v1023
                  %v1025 = vld [vmem:[%s845 + $0x590] sm:$0xff]
                  %1026 = vst [vmem:[%s846 + $0x2c8] sm:$0xff] %v1025
                  %v1027 = vld [vmem:[%s845 + $0x5a0] sm:$0xff]
                  %1028 = vst [vmem:[%s846 + $0x2d0] sm:$0xff] %v1027
                  %v1029 = vld [vmem:[%s845 + $0x5b0] sm:$0xff]
                  %1030 = vst [vmem:[%s846 + $0x2d8] sm:$0xff] %v1029
                  %v1031 = vld [vmem:[%s845 + $0x5c0] sm:$0xff]
                  %1032 = vst [vmem:[%s846 + $0x2e0] sm:$0xff] %v1031
                  %v1033 = vld [vmem:[%s845 + $0x5d0] sm:$0xff]
                  %1034 = vst [vmem:[%s846 + $0x2e8] sm:$0xff] %v1033
                  %v1035 = vld [vmem:[%s845 + $0x5e0] sm:$0xff]
                  %1036 = vst [vmem:[%s846 + $0x2f0] sm:$0xff] %v1035
                  %v1037 = vld [vmem:[%s845 + $0x5f0] sm:$0xff]
                  %1038 = vst [vmem:[%s846 + $0x2f8] sm:$0xff] %v1037
                  %v1039 = vld [vmem:[%s845 + $0x600] sm:$0xff]
                  %1040 = vst [vmem:[%s846 + $0x300] sm:$0xff] %v1039
                  %v1041 = vld [vmem:[%s845 + $0x610] sm:$0xff]
                  %1042 = vst [vmem:[%s846 + $0x308] sm:$0xff] %v1041
                  %v1043 = vld [vmem:[%s845 + $0x620] sm:$0xff]
                  %1044 = vst [vmem:[%s846 + $0x310] sm:$0xff] %v1043
                  %v1045 = vld [vmem:[%s845 + $0x630] sm:$0xff]
                  %1046 = vst [vmem:[%s846 + $0x318] sm:$0xff] %v1045
                  %v1047 = vld [vmem:[%s845 + $0x640] sm:$0xff]
                  %1048 = vst [vmem:[%s846 + $0x320] sm:$0xff] %v1047
                  %v1049 = vld [vmem:[%s845 + $0x650] sm:$0xff]
                  %1050 = vst [vmem:[%s846 + $0x328] sm:$0xff] %v1049
                  %v1051 = vld [vmem:[%s845 + $0x660] sm:$0xff]
                  %1052 = vst [vmem:[%s846 + $0x330] sm:$0xff] %v1051
                  %v1053 = vld [vmem:[%s845 + $0x670] sm:$0xff]
                  %1054 = vst [vmem:[%s846 + $0x338] sm:$0xff] %v1053
                  %v1055 = vld [vmem:[%s845 + $0x680] sm:$0xff]
                  %1056 = vst [vmem:[%s846 + $0x340] sm:$0xff] %v1055
                  %v1057 = vld [vmem:[%s845 + $0x690] sm:$0xff]
                  %1058 = vst [vmem:[%s846 + $0x348] sm:$0xff] %v1057
                  %v1059 = vld [vmem:[%s845 + $0x6a0] sm:$0xff]
                  %1060 = vst [vmem:[%s846 + $0x350] sm:$0xff] %v1059
                  %v1061 = vld [vmem:[%s845 + $0x6b0] sm:$0xff]
                  %1062 = vst [vmem:[%s846 + $0x358] sm:$0xff] %v1061
                  %v1063 = vld [vmem:[%s845 + $0x6c0] sm:$0xff]
                  %1064 = vst [vmem:[%s846 + $0x360] sm:$0xff] %v1063
                  %v1065 = vld [vmem:[%s845 + $0x6d0] sm:$0xff]
                  %1066 = vst [vmem:[%s846 + $0x368] sm:$0xff] %v1065
                  %v1067 = vld [vmem:[%s845 + $0x6e0] sm:$0xff]
                  %1068 = vst [vmem:[%s846 + $0x370] sm:$0xff] %v1067
                  %v1069 = vld [vmem:[%s845 + $0x6f0] sm:$0xff]
                  %1070 = vst [vmem:[%s846 + $0x378] sm:$0xff] %v1069
                  %v1071 = vld [vmem:[%s845 + $0x700] sm:$0xff]
                  %1072 = vst [vmem:[%s846 + $0x380] sm:$0xff] %v1071
                  %v1073 = vld [vmem:[%s845 + $0x710] sm:$0xff]
                  %1074 = vst [vmem:[%s846 + $0x388] sm:$0xff] %v1073
                  %v1075 = vld [vmem:[%s845 + $0x720] sm:$0xff]
                  %1076 = vst [vmem:[%s846 + $0x390] sm:$0xff] %v1075
                  %v1077 = vld [vmem:[%s845 + $0x730] sm:$0xff]
                  %1078 = vst [vmem:[%s846 + $0x398] sm:$0xff] %v1077
                  %v1079 = vld [vmem:[%s845 + $0x740] sm:$0xff]
                  %1080 = vst [vmem:[%s846 + $0x3a0] sm:$0xff] %v1079
                  %v1081 = vld [vmem:[%s845 + $0x750] sm:$0xff]
                  %1082 = vst [vmem:[%s846 + $0x3a8] sm:$0xff] %v1081
                  %v1083 = vld [vmem:[%s845 + $0x760] sm:$0xff]
                  %1084 = vst [vmem:[%s846 + $0x3b0] sm:$0xff] %v1083
                  %v1085 = vld [vmem:[%s845 + $0x770] sm:$0xff]
                  %1086 = vst [vmem:[%s846 + $0x3b8] sm:$0xff] %v1085
                  %v1087 = vld [vmem:[%s845 + $0x780] sm:$0xff]
                  %1088 = vst [vmem:[%s846 + $0x3c0] sm:$0xff] %v1087
                  %v1089 = vld [vmem:[%s845 + $0x790] sm:$0xff]
                  %1090 = vst [vmem:[%s846 + $0x3c8] sm:$0xff] %v1089
                  %v1091 = vld [vmem:[%s845 + $0x7a0] sm:$0xff]
                  %1092 = vst [vmem:[%s846 + $0x3d0] sm:$0xff] %v1091
                  %v1093 = vld [vmem:[%s845 + $0x7b0] sm:$0xff]
                  %1094 = vst [vmem:[%s846 + $0x3d8] sm:$0xff] %v1093
                  %v1095 = vld [vmem:[%s845 + $0x7c0] sm:$0xff]
                  %1096 = vst [vmem:[%s846 + $0x3e0] sm:$0xff] %v1095
                  %v1097 = vld [vmem:[%s845 + $0x7d0] sm:$0xff]
                  %1098 = vst [vmem:[%s846 + $0x3e8] sm:$0xff] %v1097
                  %v1099 = vld [vmem:[%s845 + $0x7e0] sm:$0xff]
                  %1100 = vst [vmem:[%s846 + $0x3f0] sm:$0xff] %v1099
                  %v1101 = vld [vmem:[%s845 + $0x7f0] sm:$0xff]
                  %1102 = vst [vmem:[%s846 + $0x3f8] sm:$0xff] %v1101
                  %v1103 = vld [vmem:[%s845 + $0x800] sm:$0xff]
                  %1104 = vst [vmem:[%s846 + $0x400] sm:$0xff] %v1103
                  %v1105 = vld [vmem:[%s845 + $0x810] sm:$0xff]
                  %1106 = vst [vmem:[%s846 + $0x408] sm:$0xff] %v1105
                  %v1107 = vld [vmem:[%s845 + $0x820] sm:$0xff]
                  %1108 = vst [vmem:[%s846 + $0x410] sm:$0xff] %v1107
                  %v1109 = vld [vmem:[%s845 + $0x830] sm:$0xff]
                  %1110 = vst [vmem:[%s846 + $0x418] sm:$0xff] %v1109
                  %v1111 = vld [vmem:[%s845 + $0x840] sm:$0xff]
                  %1112 = vst [vmem:[%s846 + $0x420] sm:$0xff] %v1111
                  %v1113 = vld [vmem:[%s845 + $0x850] sm:$0xff]
                  %1114 = vst [vmem:[%s846 + $0x428] sm:$0xff] %v1113
                  %v1115 = vld [vmem:[%s845 + $0x860] sm:$0xff]
                  %1116 = vst [vmem:[%s846 + $0x430] sm:$0xff] %v1115
                  %v1117 = vld [vmem:[%s845 + $0x870] sm:$0xff]
                  %1118 = vst [vmem:[%s846 + $0x438] sm:$0xff] %v1117
                  %v1119 = vld [vmem:[%s845 + $0x880] sm:$0xff]
                  %1120 = vst [vmem:[%s846 + $0x440] sm:$0xff] %v1119
                  %v1121 = vld [vmem:[%s845 + $0x890] sm:$0xff]
                  %1122 = vst [vmem:[%s846 + $0x448] sm:$0xff] %v1121
                  %v1123 = vld [vmem:[%s845 + $0x8a0] sm:$0xff]
                  %1124 = vst [vmem:[%s846 + $0x450] sm:$0xff] %v1123
                  %v1125 = vld [vmem:[%s845 + $0x8b0] sm:$0xff]
                  %1126 = vst [vmem:[%s846 + $0x458] sm:$0xff] %v1125
                  %v1127 = vld [vmem:[%s845 + $0x8c0] sm:$0xff]
                  %1128 = vst [vmem:[%s846 + $0x460] sm:$0xff] %v1127
                  %v1129 = vld [vmem:[%s845 + $0x8d0] sm:$0xff]
                  %1130 = vst [vmem:[%s846 + $0x468] sm:$0xff] %v1129
                  %v1131 = vld [vmem:[%s845 + $0x8e0] sm:$0xff]
                  %1132 = vst [vmem:[%s846 + $0x470] sm:$0xff] %v1131
                  %v1133 = vld [vmem:[%s845 + $0x8f0] sm:$0xff]
                  %1134 = vst [vmem:[%s846 + $0x478] sm:$0xff] %v1133
                  %v1135 = vld [vmem:[%s845 + $0x900] sm:$0xff]
                  %1136 = vst [vmem:[%s846 + $0x480] sm:$0xff] %v1135
                  %v1137 = vld [vmem:[%s845 + $0x910] sm:$0xff]
                  %1138 = vst [vmem:[%s846 + $0x488] sm:$0xff] %v1137
                  %v1139 = vld [vmem:[%s845 + $0x920] sm:$0xff]
                  %1140 = vst [vmem:[%s846 + $0x490] sm:$0xff] %v1139
                  %v1141 = vld [vmem:[%s845 + $0x930] sm:$0xff]
                  %1142 = vst [vmem:[%s846 + $0x498] sm:$0xff] %v1141
                  %v1143 = vld [vmem:[%s845 + $0x940] sm:$0xff]
                  %1144 = vst [vmem:[%s846 + $0x4a0] sm:$0xff] %v1143
                  %v1145 = vld [vmem:[%s845 + $0x950] sm:$0xff]
                  %1146 = vst [vmem:[%s846 + $0x4a8] sm:$0xff] %v1145
                  %v1147 = vld [vmem:[%s845 + $0x960] sm:$0xff]
                  %1148 = vst [vmem:[%s846 + $0x4b0] sm:$0xff] %v1147
                  %v1149 = vld [vmem:[%s845 + $0x970] sm:$0xff]
                  %1150 = vst [vmem:[%s846 + $0x4b8] sm:$0xff] %v1149
                  %v1151 = vld [vmem:[%s845 + $0x980] sm:$0xff]
                  %1152 = vst [vmem:[%s846 + $0x4c0] sm:$0xff] %v1151
                  %v1153 = vld [vmem:[%s845 + $0x990] sm:$0xff]
                  %1154 = vst [vmem:[%s846 + $0x4c8] sm:$0xff] %v1153
                  %v1155 = vld [vmem:[%s845 + $0x9a0] sm:$0xff]
                  %1156 = vst [vmem:[%s846 + $0x4d0] sm:$0xff] %v1155
                  %v1157 = vld [vmem:[%s845 + $0x9b0] sm:$0xff]
                  %1158 = vst [vmem:[%s846 + $0x4d8] sm:$0xff] %v1157
                  %v1159 = vld [vmem:[%s845 + $0x9c0] sm:$0xff]
                  %1160 = vst [vmem:[%s846 + $0x4e0] sm:$0xff] %v1159
                  %v1161 = vld [vmem:[%s845 + $0x9d0] sm:$0xff]
                  %1162 = vst [vmem:[%s846 + $0x4e8] sm:$0xff] %v1161
                  %v1163 = vld [vmem:[%s845 + $0x9e0] sm:$0xff]
                  %1164 = vst [vmem:[%s846 + $0x4f0] sm:$0xff] %v1163
                  %v1165 = vld [vmem:[%s845 + $0x9f0] sm:$0xff]
                  %1166 = vst [vmem:[%s846 + $0x4f8] sm:$0xff] %v1165
                  %v1167 = vld [vmem:[%s845 + $0xa00] sm:$0xff]
                  %1168 = vst [vmem:[%s846 + $0x500] sm:$0xff] %v1167
                  %v1169 = vld [vmem:[%s845 + $0xa10] sm:$0xff]
                  %1170 = vst [vmem:[%s846 + $0x508] sm:$0xff] %v1169
                  %v1171 = vld [vmem:[%s845 + $0xa20] sm:$0xff]
                  %1172 = vst [vmem:[%s846 + $0x510] sm:$0xff] %v1171
                  %v1173 = vld [vmem:[%s845 + $0xa30] sm:$0xff]
                  %1174 = vst [vmem:[%s846 + $0x518] sm:$0xff] %v1173
                  %v1175 = vld [vmem:[%s845 + $0xa40] sm:$0xff]
                  %1176 = vst [vmem:[%s846 + $0x520] sm:$0xff] %v1175
                  %v1177 = vld [vmem:[%s845 + $0xa50] sm:$0xff]
                  %1178 = vst [vmem:[%s846 + $0x528] sm:$0xff] %v1177
                  %v1179 = vld [vmem:[%s845 + $0xa60] sm:$0xff]
                  %1180 = vst [vmem:[%s846 + $0x530] sm:$0xff] %v1179
                  %v1181 = vld [vmem:[%s845 + $0xa70] sm:$0xff]
                  %1182 = vst [vmem:[%s846 + $0x538] sm:$0xff] %v1181
                  %v1183 = vld [vmem:[%s845 + $0xa80] sm:$0xff]
                  %1184 = vst [vmem:[%s846 + $0x540] sm:$0xff] %v1183
                  %v1185 = vld [vmem:[%s845 + $0xa90] sm:$0xff]
                  %1186 = vst [vmem:[%s846 + $0x548] sm:$0xff] %v1185
                  %v1187 = vld [vmem:[%s845 + $0xaa0] sm:$0xff]
                  %1188 = vst [vmem:[%s846 + $0x550] sm:$0xff] %v1187
                  %v1189 = vld [vmem:[%s845 + $0xab0] sm:$0xff]
                  %1190 = vst [vmem:[%s846 + $0x558] sm:$0xff] %v1189
                  %v1191 = vld [vmem:[%s845 + $0xac0] sm:$0xff]
                  %1192 = vst [vmem:[%s846 + $0x560] sm:$0xff] %v1191
                  %v1193 = vld [vmem:[%s845 + $0xad0] sm:$0xff]
                  %1194 = vst [vmem:[%s846 + $0x568] sm:$0xff] %v1193
                  %v1195 = vld [vmem:[%s845 + $0xae0] sm:$0xff]
                  %1196 = vst [vmem:[%s846 + $0x570] sm:$0xff] %v1195
                  %v1197 = vld [vmem:[%s845 + $0xaf0] sm:$0xff]
                  %1198 = vst [vmem:[%s846 + $0x578] sm:$0xff] %v1197
                  %v1199 = vld [vmem:[%s845 + $0xb00] sm:$0xff]
                  %1200 = vst [vmem:[%s846 + $0x580] sm:$0xff] %v1199
                  %v1201 = vld [vmem:[%s845 + $0xb10] sm:$0xff]
                  %1202 = vst [vmem:[%s846 + $0x588] sm:$0xff] %v1201
                  %v1203 = vld [vmem:[%s845 + $0xb20] sm:$0xff]
                  %1204 = vst [vmem:[%s846 + $0x590] sm:$0xff] %v1203
                  %v1205 = vld [vmem:[%s845 + $0xb30] sm:$0xff]
                  %1206 = vst [vmem:[%s846 + $0x598] sm:$0xff] %v1205
                  %v1207 = vld [vmem:[%s845 + $0xb40] sm:$0xff]
                  %1208 = vst [vmem:[%s846 + $0x5a0] sm:$0xff] %v1207
                  %v1209 = vld [vmem:[%s845 + $0xb50] sm:$0xff]
                  %1210 = vst [vmem:[%s846 + $0x5a8] sm:$0xff] %v1209
                  %v1211 = vld [vmem:[%s845 + $0xb60] sm:$0xff]
                  %1212 = vst [vmem:[%s846 + $0x5b0] sm:$0xff] %v1211
                  %v1213 = vld [vmem:[%s845 + $0xb70] sm:$0xff]
                  %1214 = vst [vmem:[%s846 + $0x5b8] sm:$0xff] %v1213
                  %v1215 = vld [vmem:[%s845 + $0xb80] sm:$0xff]
                  %1216 = vst [vmem:[%s846 + $0x5c0] sm:$0xff] %v1215
                  %v1217 = vld [vmem:[%s845 + $0xb90] sm:$0xff]
                  %1218 = vst [vmem:[%s846 + $0x5c8] sm:$0xff] %v1217
                  %v1219 = vld [vmem:[%s845 + $0xba0] sm:$0xff]
                  %1220 = vst [vmem:[%s846 + $0x5d0] sm:$0xff] %v1219
                  %v1221 = vld [vmem:[%s845 + $0xbb0] sm:$0xff]
                  %1222 = vst [vmem:[%s846 + $0x5d8] sm:$0xff] %v1221
                  %v1223 = vld [vmem:[%s845 + $0xbc0] sm:$0xff]
                  %1224 = vst [vmem:[%s846 + $0x5e0] sm:$0xff] %v1223
                  %v1225 = vld [vmem:[%s845 + $0xbd0] sm:$0xff]
                  %1226 = vst [vmem:[%s846 + $0x5e8] sm:$0xff] %v1225
                  %v1227 = vld [vmem:[%s845 + $0xbe0] sm:$0xff]
                  %1228 = vst [vmem:[%s846 + $0x5f0] sm:$0xff] %v1227
                  %v1229 = vld [vmem:[%s845 + $0xbf0] sm:$0xff]
                  %1230 = vst [vmem:[%s846 + $0x5f8] sm:$0xff] %v1229
                  %v1231 = vld [vmem:[%s845 + $0xc00] sm:$0xff]
                  %1232 = vst [vmem:[%s846 + $0x600] sm:$0xff] %v1231
                  %v1233 = vld [vmem:[%s845 + $0xc10] sm:$0xff]
                  %1234 = vst [vmem:[%s846 + $0x608] sm:$0xff] %v1233
                  %v1235 = vld [vmem:[%s845 + $0xc20] sm:$0xff]
                  %1236 = vst [vmem:[%s846 + $0x610] sm:$0xff] %v1235
                  %v1237 = vld [vmem:[%s845 + $0xc30] sm:$0xff]
                  %1238 = vst [vmem:[%s846 + $0x618] sm:$0xff] %v1237
                  %v1239 = vld [vmem:[%s845 + $0xc40] sm:$0xff]
                  %1240 = vst [vmem:[%s846 + $0x620] sm:$0xff] %v1239
                  %v1241 = vld [vmem:[%s845 + $0xc50] sm:$0xff]
                  %1242 = vst [vmem:[%s846 + $0x628] sm:$0xff] %v1241
                  %v1243 = vld [vmem:[%s845 + $0xc60] sm:$0xff]
                  %1244 = vst [vmem:[%s846 + $0x630] sm:$0xff] %v1243
                  %v1245 = vld [vmem:[%s845 + $0xc70] sm:$0xff]
                  %1246 = vst [vmem:[%s846 + $0x638] sm:$0xff] %v1245
                  %v1247 = vld [vmem:[%s845 + $0xc80] sm:$0xff]
                  %1248 = vst [vmem:[%s846 + $0x640] sm:$0xff] %v1247
                  %v1249 = vld [vmem:[%s845 + $0xc90] sm:$0xff]
                  %1250 = vst [vmem:[%s846 + $0x648] sm:$0xff] %v1249
                  %v1251 = vld [vmem:[%s845 + $0xca0] sm:$0xff]
                  %1252 = vst [vmem:[%s846 + $0x650] sm:$0xff] %v1251
                  %v1253 = vld [vmem:[%s845 + $0xcb0] sm:$0xff]
                  %1254 = vst [vmem:[%s846 + $0x658] sm:$0xff] %v1253
                  %v1255 = vld [vmem:[%s845 + $0xcc0] sm:$0xff]
                  %1256 = vst [vmem:[%s846 + $0x660] sm:$0xff] %v1255
                  %v1257 = vld [vmem:[%s845 + $0xcd0] sm:$0xff]
                  %1258 = vst [vmem:[%s846 + $0x668] sm:$0xff] %v1257
                  %v1259 = vld [vmem:[%s845 + $0xce0] sm:$0xff]
                  %1260 = vst [vmem:[%s846 + $0x670] sm:$0xff] %v1259
                  %v1261 = vld [vmem:[%s845 + $0xcf0] sm:$0xff]
                  %1262 = vst [vmem:[%s846 + $0x678] sm:$0xff] %v1261
                  %v1263 = vld [vmem:[%s845 + $0xd00] sm:$0xff]
                  %1264 = vst [vmem:[%s846 + $0x680] sm:$0xff] %v1263
                  %v1265 = vld [vmem:[%s845 + $0xd10] sm:$0xff]
                  %1266 = vst [vmem:[%s846 + $0x688] sm:$0xff] %v1265
                  %v1267 = vld [vmem:[%s845 + $0xd20] sm:$0xff]
                  %1268 = vst [vmem:[%s846 + $0x690] sm:$0xff] %v1267
                  %v1269 = vld [vmem:[%s845 + $0xd30] sm:$0xff]
                  %1270 = vst [vmem:[%s846 + $0x698] sm:$0xff] %v1269
                  %v1271 = vld [vmem:[%s845 + $0xd40] sm:$0xff]
                  %1272 = vst [vmem:[%s846 + $0x6a0] sm:$0xff] %v1271
                  %v1273 = vld [vmem:[%s845 + $0xd50] sm:$0xff]
                  %1274 = vst [vmem:[%s846 + $0x6a8] sm:$0xff] %v1273
                  %v1275 = vld [vmem:[%s845 + $0xd60] sm:$0xff]
                  %1276 = vst [vmem:[%s846 + $0x6b0] sm:$0xff] %v1275
                  %v1277 = vld [vmem:[%s845 + $0xd70] sm:$0xff]
                  %1278 = vst [vmem:[%s846 + $0x6b8] sm:$0xff] %v1277
                  %v1279 = vld [vmem:[%s845 + $0xd80] sm:$0xff]
                  %1280 = vst [vmem:[%s846 + $0x6c0] sm:$0xff] %v1279
                  %v1281 = vld [vmem:[%s845 + $0xd90] sm:$0xff]
                  %1282 = vst [vmem:[%s846 + $0x6c8] sm:$0xff] %v1281
                  %v1283 = vld [vmem:[%s845 + $0xda0] sm:$0xff]
                  %1284 = vst [vmem:[%s846 + $0x6d0] sm:$0xff] %v1283
                  %v1285 = vld [vmem:[%s845 + $0xdb0] sm:$0xff]
                  %1286 = vst [vmem:[%s846 + $0x6d8] sm:$0xff] %v1285
                  %v1287 = vld [vmem:[%s845 + $0xdc0] sm:$0xff]
                  %1288 = vst [vmem:[%s846 + $0x6e0] sm:$0xff] %v1287
                  %v1289 = vld [vmem:[%s845 + $0xdd0] sm:$0xff]
                  %1290 = vst [vmem:[%s846 + $0x6e8] sm:$0xff] %v1289
                  %v1291 = vld [vmem:[%s845 + $0xde0] sm:$0xff]
                  %1292 = vst [vmem:[%s846 + $0x6f0] sm:$0xff] %v1291
                  %v1293 = vld [vmem:[%s845 + $0xdf0] sm:$0xff]
                  %1294 = vst [vmem:[%s846 + $0x6f8] sm:$0xff] %v1293
                  %v1295 = vld [vmem:[%s845 + $0xe00] sm:$0xff]
                  %1296 = vst [vmem:[%s846 + $0x700] sm:$0xff] %v1295
                  %v1297 = vld [vmem:[%s845 + $0xe10] sm:$0xff]
                  %1298 = vst [vmem:[%s846 + $0x708] sm:$0xff] %v1297
                  %v1299 = vld [vmem:[%s845 + $0xe20] sm:$0xff]
                  %1300 = vst [vmem:[%s846 + $0x710] sm:$0xff] %v1299
                  %v1301 = vld [vmem:[%s845 + $0xe30] sm:$0xff]
                  %1302 = vst [vmem:[%s846 + $0x718] sm:$0xff] %v1301
                  %v1303 = vld [vmem:[%s845 + $0xe40] sm:$0xff]
                  %1304 = vst [vmem:[%s846 + $0x720] sm:$0xff] %v1303
                  %v1305 = vld [vmem:[%s845 + $0xe50] sm:$0xff]
                  %1306 = vst [vmem:[%s846 + $0x728] sm:$0xff] %v1305
                  %v1307 = vld [vmem:[%s845 + $0xe60] sm:$0xff]
                  %1308 = vst [vmem:[%s846 + $0x730] sm:$0xff] %v1307
                  %v1309 = vld [vmem:[%s845 + $0xe70] sm:$0xff]
                  %1310 = vst [vmem:[%s846 + $0x738] sm:$0xff] %v1309
                  %v1311 = vld [vmem:[%s845 + $0xe80] sm:$0xff]
                  %1312 = vst [vmem:[%s846 + $0x740] sm:$0xff] %v1311
                  %v1313 = vld [vmem:[%s845 + $0xe90] sm:$0xff]
                  %1314 = vst [vmem:[%s846 + $0x748] sm:$0xff] %v1313
                  %v1315 = vld [vmem:[%s845 + $0xea0] sm:$0xff]
                  %1316 = vst [vmem:[%s846 + $0x750] sm:$0xff] %v1315
                  %v1317 = vld [vmem:[%s845 + $0xeb0] sm:$0xff]
                  %1318 = vst [vmem:[%s846 + $0x758] sm:$0xff] %v1317
                  %v1319 = vld [vmem:[%s845 + $0xec0] sm:$0xff]
                  %1320 = vst [vmem:[%s846 + $0x760] sm:$0xff] %v1319
                  %v1321 = vld [vmem:[%s845 + $0xed0] sm:$0xff]
                  %1322 = vst [vmem:[%s846 + $0x768] sm:$0xff] %v1321
                  %v1323 = vld [vmem:[%s845 + $0xee0] sm:$0xff]
                  %1324 = vst [vmem:[%s846 + $0x770] sm:$0xff] %v1323
                  %v1325 = vld [vmem:[%s845 + $0xef0] sm:$0xff]
                  %1326 = vst [vmem:[%s846 + $0x778] sm:$0xff] %v1325
                  %v1327 = vld [vmem:[%s845 + $0xf00] sm:$0xff]
                  %1328 = vst [vmem:[%s846 + $0x780] sm:$0xff] %v1327
                  %v1329 = vld [vmem:[%s845 + $0xf10] sm:$0xff]
                  %1330 = vst [vmem:[%s846 + $0x788] sm:$0xff] %v1329
                  %v1331 = vld [vmem:[%s845 + $0xf20] sm:$0xff]
                  %1332 = vst [vmem:[%s846 + $0x790] sm:$0xff] %v1331
                  %v1333 = vld [vmem:[%s845 + $0xf30] sm:$0xff]
                  %1334 = vst [vmem:[%s846 + $0x798] sm:$0xff] %v1333
                  %v1335 = vld [vmem:[%s845 + $0xf40] sm:$0xff]
                  %1336 = vst [vmem:[%s846 + $0x7a0] sm:$0xff] %v1335
                  %v1337 = vld [vmem:[%s845 + $0xf50] sm:$0xff]
                  %1338 = vst [vmem:[%s846 + $0x7a8] sm:$0xff] %v1337
                  %v1339 = vld [vmem:[%s845 + $0xf60] sm:$0xff]
                  %1340 = vst [vmem:[%s846 + $0x7b0] sm:$0xff] %v1339
                  %v1341 = vld [vmem:[%s845 + $0xf70] sm:$0xff]
                  %1342 = vst [vmem:[%s846 + $0x7b8] sm:$0xff] %v1341
                  %v1343 = vld [vmem:[%s845 + $0xf80] sm:$0xff]
                  %1344 = vst [vmem:[%s846 + $0x7c0] sm:$0xff] %v1343
                  %v1345 = vld [vmem:[%s845 + $0xf90] sm:$0xff]
                  %1346 = vst [vmem:[%s846 + $0x7c8] sm:$0xff] %v1345
                  %v1347 = vld [vmem:[%s845 + $0xfa0] sm:$0xff]
                  %1348 = vst [vmem:[%s846 + $0x7d0] sm:$0xff] %v1347
                  %v1349 = vld [vmem:[%s845 + $0xfb0] sm:$0xff]
                  %1350 = vst [vmem:[%s846 + $0x7d8] sm:$0xff] %v1349
                  %v1351 = vld [vmem:[%s845 + $0xfc0] sm:$0xff]
                  %1352 = vst [vmem:[%s846 + $0x7e0] sm:$0xff] %v1351
                  %v1353 = vld [vmem:[%s845 + $0xfd0] sm:$0xff]
                  %1354 = vst [vmem:[%s846 + $0x7e8] sm:$0xff] %v1353
                  %v1355 = vld [vmem:[%s845 + $0xfe0] sm:$0xff]
                  %1356 = vst [vmem:[%s846 + $0x7f0] sm:$0xff] %v1355
                  %v1357 = vld [vmem:[%s845 + $0xff0] sm:$0xff]
                  %1358 = vst [vmem:[%s846 + $0x7f8] sm:$0xff] %v1357
                $region68: #{_attention_mlp_forward.1} parent=62 // loop_footer
                  %s844 = sadd.s32 1, %s840
                $region69: #{_attention_mlp_forward.1} parent=62 // loop_footer_branch
                  %839 = sbr.rel target = $region65
                $region70: #{_attention_mlp_forward.1} parent=62 // loop_exit
                  _
              $region63: #{_attention_mlp_forward.1} parent=47 // pred_fallthru
                _
              // Predicated region
              $region71: #{_attention_mlp_forward.1} parent=47 // pred_check
                _
              $region72: #{_attention_mlp_forward.1} parent=47 // pred_check_branch
                %1360 = sbr.rel target = $region74
              $region73: #{_attention_mlp_forward.1} parent=47 // pred_region
                _
              $region74: #{_attention_mlp_forward.1} parent=47 // pred_fallthru
                _
            $region48: #{_attention_mlp_forward.1} parent=43 // pred_fallthru
              _
            // Predicated region
            $region49: #{_attention_mlp_forward.1} parent=43 // pred_check
              _
            $region50: #{_attention_mlp_forward.1} parent=43 // pred_check_branch
              %314 = sbr.rel target = $region52
            $region51: #{_attention_mlp_forward.1} parent=43 // pred_region
              %s316 = ssub.s32 256, 1
              loop: start=0, step=1, limit=1
              $region53: #{_attention_mlp_forward.1} parent=51 // loop_pre_header
                _
              $region54: #{_attention_mlp_forward.1} parent=51 // loop_header
                %s318 = sphi 0, %s322
                %p319 = scmp.ge.s32.totalorder %s318, 1
                %s323 = sphi %s308, %s308
                %s324 = sphi %s306, %s306
              $region55: #{_attention_mlp_forward.1} parent=51 // loop_header_branch
                %321 = sbr.rel (%p319) target = $region59
              $region56: #{_attention_mlp_forward.1} parent=51 // loop_body
                %v325 = vld [vmem:[%s323] sm:%s316]
                %326 = vst [vmem:[%s324] sm:%s316] %v325
                %v327 = vld [vmem:[%s323 + $0x10] sm:%s316]
                %328 = vst [vmem:[%s324 + $0x8] sm:%s316] %v327
                %v329 = vld [vmem:[%s323 + $0x20] sm:%s316]
                %330 = vst [vmem:[%s324 + $0x10] sm:%s316] %v329
                %v331 = vld [vmem:[%s323 + $0x30] sm:%s316]
                %332 = vst [vmem:[%s324 + $0x18] sm:%s316] %v331
                %v333 = vld [vmem:[%s323 + $0x40] sm:%s316]
                %334 = vst [vmem:[%s324 + $0x20] sm:%s316] %v333
                %v335 = vld [vmem:[%s323 + $0x50] sm:%s316]
                %336 = vst [vmem:[%s324 + $0x28] sm:%s316] %v335
                %v337 = vld [vmem:[%s323 + $0x60] sm:%s316]
                %338 = vst [vmem:[%s324 + $0x30] sm:%s316] %v337
                %v339 = vld [vmem:[%s323 + $0x70] sm:%s316]
                %340 = vst [vmem:[%s324 + $0x38] sm:%s316] %v339
                %v341 = vld [vmem:[%s323 + $0x80] sm:%s316]
                %342 = vst [vmem:[%s324 + $0x40] sm:%s316] %v341
                %v343 = vld [vmem:[%s323 + $0x90] sm:%s316]
                %344 = vst [vmem:[%s324 + $0x48] sm:%s316] %v343
                %v345 = vld [vmem:[%s323 + $0xa0] sm:%s316]
                %346 = vst [vmem:[%s324 + $0x50] sm:%s316] %v345
                %v347 = vld [vmem:[%s323 + $0xb0] sm:%s316]
                %348 = vst [vmem:[%s324 + $0x58] sm:%s316] %v347
                %v349 = vld [vmem:[%s323 + $0xc0] sm:%s316]
                %350 = vst [vmem:[%s324 + $0x60] sm:%s316] %v349
                %v351 = vld [vmem:[%s323 + $0xd0] sm:%s316]
                %352 = vst [vmem:[%s324 + $0x68] sm:%s316] %v351
                %v353 = vld [vmem:[%s323 + $0xe0] sm:%s316]
                %354 = vst [vmem:[%s324 + $0x70] sm:%s316] %v353
                %v355 = vld [vmem:[%s323 + $0xf0] sm:%s316]
                %356 = vst [vmem:[%s324 + $0x78] sm:%s316] %v355
                %v357 = vld [vmem:[%s323 + $0x100] sm:%s316]
                %358 = vst [vmem:[%s324 + $0x80] sm:%s316] %v357
                %v359 = vld [vmem:[%s323 + $0x110] sm:%s316]
                %360 = vst [vmem:[%s324 + $0x88] sm:%s316] %v359
                %v361 = vld [vmem:[%s323 + $0x120] sm:%s316]
                %362 = vst [vmem:[%s324 + $0x90] sm:%s316] %v361
                %v363 = vld [vmem:[%s323 + $0x130] sm:%s316]
                %364 = vst [vmem:[%s324 + $0x98] sm:%s316] %v363
                %v365 = vld [vmem:[%s323 + $0x140] sm:%s316]
                %366 = vst [vmem:[%s324 + $0xa0] sm:%s316] %v365
                %v367 = vld [vmem:[%s323 + $0x150] sm:%s316]
                %368 = vst [vmem:[%s324 + $0xa8] sm:%s316] %v367
                %v369 = vld [vmem:[%s323 + $0x160] sm:%s316]
                %370 = vst [vmem:[%s324 + $0xb0] sm:%s316] %v369
                %v371 = vld [vmem:[%s323 + $0x170] sm:%s316]
                %372 = vst [vmem:[%s324 + $0xb8] sm:%s316] %v371
                %v373 = vld [vmem:[%s323 + $0x180] sm:%s316]
                %374 = vst [vmem:[%s324 + $0xc0] sm:%s316] %v373
                %v375 = vld [vmem:[%s323 + $0x190] sm:%s316]
                %376 = vst [vmem:[%s324 + $0xc8] sm:%s316] %v375
                %v377 = vld [vmem:[%s323 + $0x1a0] sm:%s316]
                %378 = vst [vmem:[%s324 + $0xd0] sm:%s316] %v377
                %v379 = vld [vmem:[%s323 + $0x1b0] sm:%s316]
                %380 = vst [vmem:[%s324 + $0xd8] sm:%s316] %v379
                %v381 = vld [vmem:[%s323 + $0x1c0] sm:%s316]
                %382 = vst [vmem:[%s324 + $0xe0] sm:%s316] %v381
                %v383 = vld [vmem:[%s323 + $0x1d0] sm:%s316]
                %384 = vst [vmem:[%s324 + $0xe8] sm:%s316] %v383
                %v385 = vld [vmem:[%s323 + $0x1e0] sm:%s316]
                %386 = vst [vmem:[%s324 + $0xf0] sm:%s316] %v385
                %v387 = vld [vmem:[%s323 + $0x1f0] sm:%s316]
                %388 = vst [vmem:[%s324 + $0xf8] sm:%s316] %v387
                %v389 = vld [vmem:[%s323 + $0x200] sm:%s316]
                %390 = vst [vmem:[%s324 + $0x100] sm:%s316] %v389
                %v391 = vld [vmem:[%s323 + $0x210] sm:%s316]
                %392 = vst [vmem:[%s324 + $0x108] sm:%s316] %v391
                %v393 = vld [vmem:[%s323 + $0x220] sm:%s316]
                %394 = vst [vmem:[%s324 + $0x110] sm:%s316] %v393
                %v395 = vld [vmem:[%s323 + $0x230] sm:%s316]
                %396 = vst [vmem:[%s324 + $0x118] sm:%s316] %v395
                %v397 = vld [vmem:[%s323 + $0x240] sm:%s316]
                %398 = vst [vmem:[%s324 + $0x120] sm:%s316] %v397
                %v399 = vld [vmem:[%s323 + $0x250] sm:%s316]
                %400 = vst [vmem:[%s324 + $0x128] sm:%s316] %v399
                %v401 = vld [vmem:[%s323 + $0x260] sm:%s316]
                %402 = vst [vmem:[%s324 + $0x130] sm:%s316] %v401
                %v403 = vld [vmem:[%s323 + $0x270] sm:%s316]
                %404 = vst [vmem:[%s324 + $0x138] sm:%s316] %v403
                %v405 = vld [vmem:[%s323 + $0x280] sm:%s316]
                %406 = vst [vmem:[%s324 + $0x140] sm:%s316] %v405
                %v407 = vld [vmem:[%s323 + $0x290] sm:%s316]
                %408 = vst [vmem:[%s324 + $0x148] sm:%s316] %v407
                %v409 = vld [vmem:[%s323 + $0x2a0] sm:%s316]
                %410 = vst [vmem:[%s324 + $0x150] sm:%s316] %v409
                %v411 = vld [vmem:[%s323 + $0x2b0] sm:%s316]
                %412 = vst [vmem:[%s324 + $0x158] sm:%s316] %v411
                %v413 = vld [vmem:[%s323 + $0x2c0] sm:%s316]
                %414 = vst [vmem:[%s324 + $0x160] sm:%s316] %v413
                %v415 = vld [vmem:[%s323 + $0x2d0] sm:%s316]
                %416 = vst [vmem:[%s324 + $0x168] sm:%s316] %v415
                %v417 = vld [vmem:[%s323 + $0x2e0] sm:%s316]
                %418 = vst [vmem:[%s324 + $0x170] sm:%s316] %v417
                %v419 = vld [vmem:[%s323 + $0x2f0] sm:%s316]
                %420 = vst [vmem:[%s324 + $0x178] sm:%s316] %v419
                %v421 = vld [vmem:[%s323 + $0x300] sm:%s316]
                %422 = vst [vmem:[%s324 + $0x180] sm:%s316] %v421
                %v423 = vld [vmem:[%s323 + $0x310] sm:%s316]
                %424 = vst [vmem:[%s324 + $0x188] sm:%s316] %v423
                %v425 = vld [vmem:[%s323 + $0x320] sm:%s316]
                %426 = vst [vmem:[%s324 + $0x190] sm:%s316] %v425
                %v427 = vld [vmem:[%s323 + $0x330] sm:%s316]
                %428 = vst [vmem:[%s324 + $0x198] sm:%s316] %v427
                %v429 = vld [vmem:[%s323 + $0x340] sm:%s316]
                %430 = vst [vmem:[%s324 + $0x1a0] sm:%s316] %v429
                %v431 = vld [vmem:[%s323 + $0x350] sm:%s316]
                %432 = vst [vmem:[%s324 + $0x1a8] sm:%s316] %v431
                %v433 = vld [vmem:[%s323 + $0x360] sm:%s316]
                %434 = vst [vmem:[%s324 + $0x1b0] sm:%s316] %v433
                %v435 = vld [vmem:[%s323 + $0x370] sm:%s316]
                %436 = vst [vmem:[%s324 + $0x1b8] sm:%s316] %v435
                %v437 = vld [vmem:[%s323 + $0x380] sm:%s316]
                %438 = vst [vmem:[%s324 + $0x1c0] sm:%s316] %v437
                %v439 = vld [vmem:[%s323 + $0x390] sm:%s316]
                %440 = vst [vmem:[%s324 + $0x1c8] sm:%s316] %v439
                %v441 = vld [vmem:[%s323 + $0x3a0] sm:%s316]
                %442 = vst [vmem:[%s324 + $0x1d0] sm:%s316] %v441
                %v443 = vld [vmem:[%s323 + $0x3b0] sm:%s316]
                %444 = vst [vmem:[%s324 + $0x1d8] sm:%s316] %v443
                %v445 = vld [vmem:[%s323 + $0x3c0] sm:%s316]
                %446 = vst [vmem:[%s324 + $0x1e0] sm:%s316] %v445
                %v447 = vld [vmem:[%s323 + $0x3d0] sm:%s316]
                %448 = vst [vmem:[%s324 + $0x1e8] sm:%s316] %v447
                %v449 = vld [vmem:[%s323 + $0x3e0] sm:%s316]
                %450 = vst [vmem:[%s324 + $0x1f0] sm:%s316] %v449
                %v451 = vld [vmem:[%s323 + $0x3f0] sm:%s316]
                %452 = vst [vmem:[%s324 + $0x1f8] sm:%s316] %v451
                %v453 = vld [vmem:[%s323 + $0x400] sm:%s316]
                %454 = vst [vmem:[%s324 + $0x200] sm:%s316] %v453
                %v455 = vld [vmem:[%s323 + $0x410] sm:%s316]
                %456 = vst [vmem:[%s324 + $0x208] sm:%s316] %v455
                %v457 = vld [vmem:[%s323 + $0x420] sm:%s316]
                %458 = vst [vmem:[%s324 + $0x210] sm:%s316] %v457
                %v459 = vld [vmem:[%s323 + $0x430] sm:%s316]
                %460 = vst [vmem:[%s324 + $0x218] sm:%s316] %v459
                %v461 = vld [vmem:[%s323 + $0x440] sm:%s316]
                %462 = vst [vmem:[%s324 + $0x220] sm:%s316] %v461
                %v463 = vld [vmem:[%s323 + $0x450] sm:%s316]
                %464 = vst [vmem:[%s324 + $0x228] sm:%s316] %v463
                %v465 = vld [vmem:[%s323 + $0x460] sm:%s316]
                %466 = vst [vmem:[%s324 + $0x230] sm:%s316] %v465
                %v467 = vld [vmem:[%s323 + $0x470] sm:%s316]
                %468 = vst [vmem:[%s324 + $0x238] sm:%s316] %v467
                %v469 = vld [vmem:[%s323 + $0x480] sm:%s316]
                %470 = vst [vmem:[%s324 + $0x240] sm:%s316] %v469
                %v471 = vld [vmem:[%s323 + $0x490] sm:%s316]
                %472 = vst [vmem:[%s324 + $0x248] sm:%s316] %v471
                %v473 = vld [vmem:[%s323 + $0x4a0] sm:%s316]
                %474 = vst [vmem:[%s324 + $0x250] sm:%s316] %v473
                %v475 = vld [vmem:[%s323 + $0x4b0] sm:%s316]
                %476 = vst [vmem:[%s324 + $0x258] sm:%s316] %v475
                %v477 = vld [vmem:[%s323 + $0x4c0] sm:%s316]
                %478 = vst [vmem:[%s324 + $0x260] sm:%s316] %v477
                %v479 = vld [vmem:[%s323 + $0x4d0] sm:%s316]
                %480 = vst [vmem:[%s324 + $0x268] sm:%s316] %v479
                %v481 = vld [vmem:[%s323 + $0x4e0] sm:%s316]
                %482 = vst [vmem:[%s324 + $0x270] sm:%s316] %v481
                %v483 = vld [vmem:[%s323 + $0x4f0] sm:%s316]
                %484 = vst [vmem:[%s324 + $0x278] sm:%s316] %v483
                %v485 = vld [vmem:[%s323 + $0x500] sm:%s316]
                %486 = vst [vmem:[%s324 + $0x280] sm:%s316] %v485
                %v487 = vld [vmem:[%s323 + $0x510] sm:%s316]
                %488 = vst [vmem:[%s324 + $0x288] sm:%s316] %v487
                %v489 = vld [vmem:[%s323 + $0x520] sm:%s316]
                %490 = vst [vmem:[%s324 + $0x290] sm:%s316] %v489
                %v491 = vld [vmem:[%s323 + $0x530] sm:%s316]
                %492 = vst [vmem:[%s324 + $0x298] sm:%s316] %v491
                %v493 = vld [vmem:[%s323 + $0x540] sm:%s316]
                %494 = vst [vmem:[%s324 + $0x2a0] sm:%s316] %v493
                %v495 = vld [vmem:[%s323 + $0x550] sm:%s316]
                %496 = vst [vmem:[%s324 + $0x2a8] sm:%s316] %v495
                %v497 = vld [vmem:[%s323 + $0x560] sm:%s316]
                %498 = vst [vmem:[%s324 + $0x2b0] sm:%s316] %v497
                %v499 = vld [vmem:[%s323 + $0x570] sm:%s316]
                %500 = vst [vmem:[%s324 + $0x2b8] sm:%s316] %v499
                %v501 = vld [vmem:[%s323 + $0x580] sm:%s316]
                %502 = vst [vmem:[%s324 + $0x2c0] sm:%s316] %v501
                %v503 = vld [vmem:[%s323 + $0x590] sm:%s316]
                %504 = vst [vmem:[%s324 + $0x2c8] sm:%s316] %v503
                %v505 = vld [vmem:[%s323 + $0x5a0] sm:%s316]
                %506 = vst [vmem:[%s324 + $0x2d0] sm:%s316] %v505
                %v507 = vld [vmem:[%s323 + $0x5b0] sm:%s316]
                %508 = vst [vmem:[%s324 + $0x2d8] sm:%s316] %v507
                %v509 = vld [vmem:[%s323 + $0x5c0] sm:%s316]
                %510 = vst [vmem:[%s324 + $0x2e0] sm:%s316] %v509
                %v511 = vld [vmem:[%s323 + $0x5d0] sm:%s316]
                %512 = vst [vmem:[%s324 + $0x2e8] sm:%s316] %v511
                %v513 = vld [vmem:[%s323 + $0x5e0] sm:%s316]
                %514 = vst [vmem:[%s324 + $0x2f0] sm:%s316] %v513
                %v515 = vld [vmem:[%s323 + $0x5f0] sm:%s316]
                %516 = vst [vmem:[%s324 + $0x2f8] sm:%s316] %v515
                %v517 = vld [vmem:[%s323 + $0x600] sm:%s316]
                %518 = vst [vmem:[%s324 + $0x300] sm:%s316] %v517
                %v519 = vld [vmem:[%s323 + $0x610] sm:%s316]
                %520 = vst [vmem:[%s324 + $0x308] sm:%s316] %v519
                %v521 = vld [vmem:[%s323 + $0x620] sm:%s316]
                %522 = vst [vmem:[%s324 + $0x310] sm:%s316] %v521
                %v523 = vld [vmem:[%s323 + $0x630] sm:%s316]
                %524 = vst [vmem:[%s324 + $0x318] sm:%s316] %v523
                %v525 = vld [vmem:[%s323 + $0x640] sm:%s316]
                %526 = vst [vmem:[%s324 + $0x320] sm:%s316] %v525
                %v527 = vld [vmem:[%s323 + $0x650] sm:%s316]
                %528 = vst [vmem:[%s324 + $0x328] sm:%s316] %v527
                %v529 = vld [vmem:[%s323 + $0x660] sm:%s316]
                %530 = vst [vmem:[%s324 + $0x330] sm:%s316] %v529
                %v531 = vld [vmem:[%s323 + $0x670] sm:%s316]
                %532 = vst [vmem:[%s324 + $0x338] sm:%s316] %v531
                %v533 = vld [vmem:[%s323 + $0x680] sm:%s316]
                %534 = vst [vmem:[%s324 + $0x340] sm:%s316] %v533
                %v535 = vld [vmem:[%s323 + $0x690] sm:%s316]
                %536 = vst [vmem:[%s324 + $0x348] sm:%s316] %v535
                %v537 = vld [vmem:[%s323 + $0x6a0] sm:%s316]
                %538 = vst [vmem:[%s324 + $0x350] sm:%s316] %v537
                %v539 = vld [vmem:[%s323 + $0x6b0] sm:%s316]
                %540 = vst [vmem:[%s324 + $0x358] sm:%s316] %v539
                %v541 = vld [vmem:[%s323 + $0x6c0] sm:%s316]
                %542 = vst [vmem:[%s324 + $0x360] sm:%s316] %v541
                %v543 = vld [vmem:[%s323 + $0x6d0] sm:%s316]
                %544 = vst [vmem:[%s324 + $0x368] sm:%s316] %v543
                %v545 = vld [vmem:[%s323 + $0x6e0] sm:%s316]
                %546 = vst [vmem:[%s324 + $0x370] sm:%s316] %v545
                %v547 = vld [vmem:[%s323 + $0x6f0] sm:%s316]
                %548 = vst [vmem:[%s324 + $0x378] sm:%s316] %v547
                %v549 = vld [vmem:[%s323 + $0x700] sm:%s316]
                %550 = vst [vmem:[%s324 + $0x380] sm:%s316] %v549
                %v551 = vld [vmem:[%s323 + $0x710] sm:%s316]
                %552 = vst [vmem:[%s324 + $0x388] sm:%s316] %v551
                %v553 = vld [vmem:[%s323 + $0x720] sm:%s316]
                %554 = vst [vmem:[%s324 + $0x390] sm:%s316] %v553
                %v555 = vld [vmem:[%s323 + $0x730] sm:%s316]
                %556 = vst [vmem:[%s324 + $0x398] sm:%s316] %v555
                %v557 = vld [vmem:[%s323 + $0x740] sm:%s316]
                %558 = vst [vmem:[%s324 + $0x3a0] sm:%s316] %v557
                %v559 = vld [vmem:[%s323 + $0x750] sm:%s316]
                %560 = vst [vmem:[%s324 + $0x3a8] sm:%s316] %v559
                %v561 = vld [vmem:[%s323 + $0x760] sm:%s316]
                %562 = vst [vmem:[%s324 + $0x3b0] sm:%s316] %v561
                %v563 = vld [vmem:[%s323 + $0x770] sm:%s316]
                %564 = vst [vmem:[%s324 + $0x3b8] sm:%s316] %v563
                %v565 = vld [vmem:[%s323 + $0x780] sm:%s316]
                %566 = vst [vmem:[%s324 + $0x3c0] sm:%s316] %v565
                %v567 = vld [vmem:[%s323 + $0x790] sm:%s316]
                %568 = vst [vmem:[%s324 + $0x3c8] sm:%s316] %v567
                %v569 = vld [vmem:[%s323 + $0x7a0] sm:%s316]
                %570 = vst [vmem:[%s324 + $0x3d0] sm:%s316] %v569
                %v571 = vld [vmem:[%s323 + $0x7b0] sm:%s316]
                %572 = vst [vmem:[%s324 + $0x3d8] sm:%s316] %v571
                %v573 = vld [vmem:[%s323 + $0x7c0] sm:%s316]
                %574 = vst [vmem:[%s324 + $0x3e0] sm:%s316] %v573
                %v575 = vld [vmem:[%s323 + $0x7d0] sm:%s316]
                %576 = vst [vmem:[%s324 + $0x3e8] sm:%s316] %v575
                %v577 = vld [vmem:[%s323 + $0x7e0] sm:%s316]
                %578 = vst [vmem:[%s324 + $0x3f0] sm:%s316] %v577
                %v579 = vld [vmem:[%s323 + $0x7f0] sm:%s316]
                %580 = vst [vmem:[%s324 + $0x3f8] sm:%s316] %v579
                %v581 = vld [vmem:[%s323 + $0x800] sm:%s316]
                %582 = vst [vmem:[%s324 + $0x400] sm:%s316] %v581
                %v583 = vld [vmem:[%s323 + $0x810] sm:%s316]
                %584 = vst [vmem:[%s324 + $0x408] sm:%s316] %v583
                %v585 = vld [vmem:[%s323 + $0x820] sm:%s316]
                %586 = vst [vmem:[%s324 + $0x410] sm:%s316] %v585
                %v587 = vld [vmem:[%s323 + $0x830] sm:%s316]
                %588 = vst [vmem:[%s324 + $0x418] sm:%s316] %v587
                %v589 = vld [vmem:[%s323 + $0x840] sm:%s316]
                %590 = vst [vmem:[%s324 + $0x420] sm:%s316] %v589
                %v591 = vld [vmem:[%s323 + $0x850] sm:%s316]
                %592 = vst [vmem:[%s324 + $0x428] sm:%s316] %v591
                %v593 = vld [vmem:[%s323 + $0x860] sm:%s316]
                %594 = vst [vmem:[%s324 + $0x430] sm:%s316] %v593
                %v595 = vld [vmem:[%s323 + $0x870] sm:%s316]
                %596 = vst [vmem:[%s324 + $0x438] sm:%s316] %v595
                %v597 = vld [vmem:[%s323 + $0x880] sm:%s316]
                %598 = vst [vmem:[%s324 + $0x440] sm:%s316] %v597
                %v599 = vld [vmem:[%s323 + $0x890] sm:%s316]
                %600 = vst [vmem:[%s324 + $0x448] sm:%s316] %v599
                %v601 = vld [vmem:[%s323 + $0x8a0] sm:%s316]
                %602 = vst [vmem:[%s324 + $0x450] sm:%s316] %v601
                %v603 = vld [vmem:[%s323 + $0x8b0] sm:%s316]
                %604 = vst [vmem:[%s324 + $0x458] sm:%s316] %v603
                %v605 = vld [vmem:[%s323 + $0x8c0] sm:%s316]
                %606 = vst [vmem:[%s324 + $0x460] sm:%s316] %v605
                %v607 = vld [vmem:[%s323 + $0x8d0] sm:%s316]
                %608 = vst [vmem:[%s324 + $0x468] sm:%s316] %v607
                %v609 = vld [vmem:[%s323 + $0x8e0] sm:%s316]
                %610 = vst [vmem:[%s324 + $0x470] sm:%s316] %v609
                %v611 = vld [vmem:[%s323 + $0x8f0] sm:%s316]
                %612 = vst [vmem:[%s324 + $0x478] sm:%s316] %v611
                %v613 = vld [vmem:[%s323 + $0x900] sm:%s316]
                %614 = vst [vmem:[%s324 + $0x480] sm:%s316] %v613
                %v615 = vld [vmem:[%s323 + $0x910] sm:%s316]
                %616 = vst [vmem:[%s324 + $0x488] sm:%s316] %v615
                %v617 = vld [vmem:[%s323 + $0x920] sm:%s316]
                %618 = vst [vmem:[%s324 + $0x490] sm:%s316] %v617
                %v619 = vld [vmem:[%s323 + $0x930] sm:%s316]
                %620 = vst [vmem:[%s324 + $0x498] sm:%s316] %v619
                %v621 = vld [vmem:[%s323 + $0x940] sm:%s316]
                %622 = vst [vmem:[%s324 + $0x4a0] sm:%s316] %v621
                %v623 = vld [vmem:[%s323 + $0x950] sm:%s316]
                %624 = vst [vmem:[%s324 + $0x4a8] sm:%s316] %v623
                %v625 = vld [vmem:[%s323 + $0x960] sm:%s316]
                %626 = vst [vmem:[%s324 + $0x4b0] sm:%s316] %v625
                %v627 = vld [vmem:[%s323 + $0x970] sm:%s316]
                %628 = vst [vmem:[%s324 + $0x4b8] sm:%s316] %v627
                %v629 = vld [vmem:[%s323 + $0x980] sm:%s316]
                %630 = vst [vmem:[%s324 + $0x4c0] sm:%s316] %v629
                %v631 = vld [vmem:[%s323 + $0x990] sm:%s316]
                %632 = vst [vmem:[%s324 + $0x4c8] sm:%s316] %v631
                %v633 = vld [vmem:[%s323 + $0x9a0] sm:%s316]
                %634 = vst [vmem:[%s324 + $0x4d0] sm:%s316] %v633
                %v635 = vld [vmem:[%s323 + $0x9b0] sm:%s316]
                %636 = vst [vmem:[%s324 + $0x4d8] sm:%s316] %v635
                %v637 = vld [vmem:[%s323 + $0x9c0] sm:%s316]
                %638 = vst [vmem:[%s324 + $0x4e0] sm:%s316] %v637
                %v639 = vld [vmem:[%s323 + $0x9d0] sm:%s316]
                %640 = vst [vmem:[%s324 + $0x4e8] sm:%s316] %v639
                %v641 = vld [vmem:[%s323 + $0x9e0] sm:%s316]
                %642 = vst [vmem:[%s324 + $0x4f0] sm:%s316] %v641
                %v643 = vld [vmem:[%s323 + $0x9f0] sm:%s316]
                %644 = vst [vmem:[%s324 + $0x4f8] sm:%s316] %v643
                %v645 = vld [vmem:[%s323 + $0xa00] sm:%s316]
                %646 = vst [vmem:[%s324 + $0x500] sm:%s316] %v645
                %v647 = vld [vmem:[%s323 + $0xa10] sm:%s316]
                %648 = vst [vmem:[%s324 + $0x508] sm:%s316] %v647
                %v649 = vld [vmem:[%s323 + $0xa20] sm:%s316]
                %650 = vst [vmem:[%s324 + $0x510] sm:%s316] %v649
                %v651 = vld [vmem:[%s323 + $0xa30] sm:%s316]
                %652 = vst [vmem:[%s324 + $0x518] sm:%s316] %v651
                %v653 = vld [vmem:[%s323 + $0xa40] sm:%s316]
                %654 = vst [vmem:[%s324 + $0x520] sm:%s316] %v653
                %v655 = vld [vmem:[%s323 + $0xa50] sm:%s316]
                %656 = vst [vmem:[%s324 + $0x528] sm:%s316] %v655
                %v657 = vld [vmem:[%s323 + $0xa60] sm:%s316]
                %658 = vst [vmem:[%s324 + $0x530] sm:%s316] %v657
                %v659 = vld [vmem:[%s323 + $0xa70] sm:%s316]
                %660 = vst [vmem:[%s324 + $0x538] sm:%s316] %v659
                %v661 = vld [vmem:[%s323 + $0xa80] sm:%s316]
                %662 = vst [vmem:[%s324 + $0x540] sm:%s316] %v661
                %v663 = vld [vmem:[%s323 + $0xa90] sm:%s316]
                %664 = vst [vmem:[%s324 + $0x548] sm:%s316] %v663
                %v665 = vld [vmem:[%s323 + $0xaa0] sm:%s316]
                %666 = vst [vmem:[%s324 + $0x550] sm:%s316] %v665
                %v667 = vld [vmem:[%s323 + $0xab0] sm:%s316]
                %668 = vst [vmem:[%s324 + $0x558] sm:%s316] %v667
                %v669 = vld [vmem:[%s323 + $0xac0] sm:%s316]
                %670 = vst [vmem:[%s324 + $0x560] sm:%s316] %v669
                %v671 = vld [vmem:[%s323 + $0xad0] sm:%s316]
                %672 = vst [vmem:[%s324 + $0x568] sm:%s316] %v671
                %v673 = vld [vmem:[%s323 + $0xae0] sm:%s316]
                %674 = vst [vmem:[%s324 + $0x570] sm:%s316] %v673
                %v675 = vld [vmem:[%s323 + $0xaf0] sm:%s316]
                %676 = vst [vmem:[%s324 + $0x578] sm:%s316] %v675
                %v677 = vld [vmem:[%s323 + $0xb00] sm:%s316]
                %678 = vst [vmem:[%s324 + $0x580] sm:%s316] %v677
                %v679 = vld [vmem:[%s323 + $0xb10] sm:%s316]
                %680 = vst [vmem:[%s324 + $0x588] sm:%s316] %v679
                %v681 = vld [vmem:[%s323 + $0xb20] sm:%s316]
                %682 = vst [vmem:[%s324 + $0x590] sm:%s316] %v681
                %v683 = vld [vmem:[%s323 + $0xb30] sm:%s316]
                %684 = vst [vmem:[%s324 + $0x598] sm:%s316] %v683
                %v685 = vld [vmem:[%s323 + $0xb40] sm:%s316]
                %686 = vst [vmem:[%s324 + $0x5a0] sm:%s316] %v685
                %v687 = vld [vmem:[%s323 + $0xb50] sm:%s316]
                %688 = vst [vmem:[%s324 + $0x5a8] sm:%s316] %v687
                %v689 = vld [vmem:[%s323 + $0xb60] sm:%s316]
                %690 = vst [vmem:[%s324 + $0x5b0] sm:%s316] %v689
                %v691 = vld [vmem:[%s323 + $0xb70] sm:%s316]
                %692 = vst [vmem:[%s324 + $0x5b8] sm:%s316] %v691
                %v693 = vld [vmem:[%s323 + $0xb80] sm:%s316]
                %694 = vst [vmem:[%s324 + $0x5c0] sm:%s316] %v693
                %v695 = vld [vmem:[%s323 + $0xb90] sm:%s316]
                %696 = vst [vmem:[%s324 + $0x5c8] sm:%s316] %v695
                %v697 = vld [vmem:[%s323 + $0xba0] sm:%s316]
                %698 = vst [vmem:[%s324 + $0x5d0] sm:%s316] %v697
                %v699 = vld [vmem:[%s323 + $0xbb0] sm:%s316]
                %700 = vst [vmem:[%s324 + $0x5d8] sm:%s316] %v699
                %v701 = vld [vmem:[%s323 + $0xbc0] sm:%s316]
                %702 = vst [vmem:[%s324 + $0x5e0] sm:%s316] %v701
                %v703 = vld [vmem:[%s323 + $0xbd0] sm:%s316]
                %704 = vst [vmem:[%s324 + $0x5e8] sm:%s316] %v703
                %v705 = vld [vmem:[%s323 + $0xbe0] sm:%s316]
                %706 = vst [vmem:[%s324 + $0x5f0] sm:%s316] %v705
                %v707 = vld [vmem:[%s323 + $0xbf0] sm:%s316]
                %708 = vst [vmem:[%s324 + $0x5f8] sm:%s316] %v707
                %v709 = vld [vmem:[%s323 + $0xc00] sm:%s316]
                %710 = vst [vmem:[%s324 + $0x600] sm:%s316] %v709
                %v711 = vld [vmem:[%s323 + $0xc10] sm:%s316]
                %712 = vst [vmem:[%s324 + $0x608] sm:%s316] %v711
                %v713 = vld [vmem:[%s323 + $0xc20] sm:%s316]
                %714 = vst [vmem:[%s324 + $0x610] sm:%s316] %v713
                %v715 = vld [vmem:[%s323 + $0xc30] sm:%s316]
                %716 = vst [vmem:[%s324 + $0x618] sm:%s316] %v715
                %v717 = vld [vmem:[%s323 + $0xc40] sm:%s316]
                %718 = vst [vmem:[%s324 + $0x620] sm:%s316] %v717
                %v719 = vld [vmem:[%s323 + $0xc50] sm:%s316]
                %720 = vst [vmem:[%s324 + $0x628] sm:%s316] %v719
                %v721 = vld [vmem:[%s323 + $0xc60] sm:%s316]
                %722 = vst [vmem:[%s324 + $0x630] sm:%s316] %v721
                %v723 = vld [vmem:[%s323 + $0xc70] sm:%s316]
                %724 = vst [vmem:[%s324 + $0x638] sm:%s316] %v723
                %v725 = vld [vmem:[%s323 + $0xc80] sm:%s316]
                %726 = vst [vmem:[%s324 + $0x640] sm:%s316] %v725
                %v727 = vld [vmem:[%s323 + $0xc90] sm:%s316]
                %728 = vst [vmem:[%s324 + $0x648] sm:%s316] %v727
                %v729 = vld [vmem:[%s323 + $0xca0] sm:%s316]
                %730 = vst [vmem:[%s324 + $0x650] sm:%s316] %v729
                %v731 = vld [vmem:[%s323 + $0xcb0] sm:%s316]
                %732 = vst [vmem:[%s324 + $0x658] sm:%s316] %v731
                %v733 = vld [vmem:[%s323 + $0xcc0] sm:%s316]
                %734 = vst [vmem:[%s324 + $0x660] sm:%s316] %v733
                %v735 = vld [vmem:[%s323 + $0xcd0] sm:%s316]
                %736 = vst [vmem:[%s324 + $0x668] sm:%s316] %v735
                %v737 = vld [vmem:[%s323 + $0xce0] sm:%s316]
                %738 = vst [vmem:[%s324 + $0x670] sm:%s316] %v737
                %v739 = vld [vmem:[%s323 + $0xcf0] sm:%s316]
                %740 = vst [vmem:[%s324 + $0x678] sm:%s316] %v739
                %v741 = vld [vmem:[%s323 + $0xd00] sm:%s316]
                %742 = vst [vmem:[%s324 + $0x680] sm:%s316] %v741
                %v743 = vld [vmem:[%s323 + $0xd10] sm:%s316]
                %744 = vst [vmem:[%s324 + $0x688] sm:%s316] %v743
                %v745 = vld [vmem:[%s323 + $0xd20] sm:%s316]
                %746 = vst [vmem:[%s324 + $0x690] sm:%s316] %v745
                %v747 = vld [vmem:[%s323 + $0xd30] sm:%s316]
                %748 = vst [vmem:[%s324 + $0x698] sm:%s316] %v747
                %v749 = vld [vmem:[%s323 + $0xd40] sm:%s316]
                %750 = vst [vmem:[%s324 + $0x6a0] sm:%s316] %v749
                %v751 = vld [vmem:[%s323 + $0xd50] sm:%s316]
                %752 = vst [vmem:[%s324 + $0x6a8] sm:%s316] %v751
                %v753 = vld [vmem:[%s323 + $0xd60] sm:%s316]
                %754 = vst [vmem:[%s324 + $0x6b0] sm:%s316] %v753
                %v755 = vld [vmem:[%s323 + $0xd70] sm:%s316]
                %756 = vst [vmem:[%s324 + $0x6b8] sm:%s316] %v755
                %v757 = vld [vmem:[%s323 + $0xd80] sm:%s316]
                %758 = vst [vmem:[%s324 + $0x6c0] sm:%s316] %v757
                %v759 = vld [vmem:[%s323 + $0xd90] sm:%s316]
                %760 = vst [vmem:[%s324 + $0x6c8] sm:%s316] %v759
                %v761 = vld [vmem:[%s323 + $0xda0] sm:%s316]
                %762 = vst [vmem:[%s324 + $0x6d0] sm:%s316] %v761
                %v763 = vld [vmem:[%s323 + $0xdb0] sm:%s316]
                %764 = vst [vmem:[%s324 + $0x6d8] sm:%s316] %v763
                %v765 = vld [vmem:[%s323 + $0xdc0] sm:%s316]
                %766 = vst [vmem:[%s324 + $0x6e0] sm:%s316] %v765
                %v767 = vld [vmem:[%s323 + $0xdd0] sm:%s316]
                %768 = vst [vmem:[%s324 + $0x6e8] sm:%s316] %v767
                %v769 = vld [vmem:[%s323 + $0xde0] sm:%s316]
                %770 = vst [vmem:[%s324 + $0x6f0] sm:%s316] %v769
                %v771 = vld [vmem:[%s323 + $0xdf0] sm:%s316]
                %772 = vst [vmem:[%s324 + $0x6f8] sm:%s316] %v771
                %v773 = vld [vmem:[%s323 + $0xe00] sm:%s316]
                %774 = vst [vmem:[%s324 + $0x700] sm:%s316] %v773
                %v775 = vld [vmem:[%s323 + $0xe10] sm:%s316]
                %776 = vst [vmem:[%s324 + $0x708] sm:%s316] %v775
                %v777 = vld [vmem:[%s323 + $0xe20] sm:%s316]
                %778 = vst [vmem:[%s324 + $0x710] sm:%s316] %v777
                %v779 = vld [vmem:[%s323 + $0xe30] sm:%s316]
                %780 = vst [vmem:[%s324 + $0x718] sm:%s316] %v779
                %v781 = vld [vmem:[%s323 + $0xe40] sm:%s316]
                %782 = vst [vmem:[%s324 + $0x720] sm:%s316] %v781
                %v783 = vld [vmem:[%s323 + $0xe50] sm:%s316]
                %784 = vst [vmem:[%s324 + $0x728] sm:%s316] %v783
                %v785 = vld [vmem:[%s323 + $0xe60] sm:%s316]
                %786 = vst [vmem:[%s324 + $0x730] sm:%s316] %v785
                %v787 = vld [vmem:[%s323 + $0xe70] sm:%s316]
                %788 = vst [vmem:[%s324 + $0x738] sm:%s316] %v787
                %v789 = vld [vmem:[%s323 + $0xe80] sm:%s316]
                %790 = vst [vmem:[%s324 + $0x740] sm:%s316] %v789
                %v791 = vld [vmem:[%s323 + $0xe90] sm:%s316]
                %792 = vst [vmem:[%s324 + $0x748] sm:%s316] %v791
                %v793 = vld [vmem:[%s323 + $0xea0] sm:%s316]
                %794 = vst [vmem:[%s324 + $0x750] sm:%s316] %v793
                %v795 = vld [vmem:[%s323 + $0xeb0] sm:%s316]
                %796 = vst [vmem:[%s324 + $0x758] sm:%s316] %v795
                %v797 = vld [vmem:[%s323 + $0xec0] sm:%s316]
                %798 = vst [vmem:[%s324 + $0x760] sm:%s316] %v797
                %v799 = vld [vmem:[%s323 + $0xed0] sm:%s316]
                %800 = vst [vmem:[%s324 + $0x768] sm:%s316] %v799
                %v801 = vld [vmem:[%s323 + $0xee0] sm:%s316]
                %802 = vst [vmem:[%s324 + $0x770] sm:%s316] %v801
                %v803 = vld [vmem:[%s323 + $0xef0] sm:%s316]
                %804 = vst [vmem:[%s324 + $0x778] sm:%s316] %v803
                %v805 = vld [vmem:[%s323 + $0xf00] sm:%s316]
                %806 = vst [vmem:[%s324 + $0x780] sm:%s316] %v805
                %v807 = vld [vmem:[%s323 + $0xf10] sm:%s316]
                %808 = vst [vmem:[%s324 + $0x788] sm:%s316] %v807
                %v809 = vld [vmem:[%s323 + $0xf20] sm:%s316]
                %810 = vst [vmem:[%s324 + $0x790] sm:%s316] %v809
                %v811 = vld [vmem:[%s323 + $0xf30] sm:%s316]
                %812 = vst [vmem:[%s324 + $0x798] sm:%s316] %v811
                %v813 = vld [vmem:[%s323 + $0xf40] sm:%s316]
                %814 = vst [vmem:[%s324 + $0x7a0] sm:%s316] %v813
                %v815 = vld [vmem:[%s323 + $0xf50] sm:%s316]
                %816 = vst [vmem:[%s324 + $0x7a8] sm:%s316] %v815
                %v817 = vld [vmem:[%s323 + $0xf60] sm:%s316]
                %818 = vst [vmem:[%s324 + $0x7b0] sm:%s316] %v817
                %v819 = vld [vmem:[%s323 + $0xf70] sm:%s316]
                %820 = vst [vmem:[%s324 + $0x7b8] sm:%s316] %v819
                %v821 = vld [vmem:[%s323 + $0xf80] sm:%s316]
                %822 = vst [vmem:[%s324 + $0x7c0] sm:%s316] %v821
                %v823 = vld [vmem:[%s323 + $0xf90] sm:%s316]
                %824 = vst [vmem:[%s324 + $0x7c8] sm:%s316] %v823
                %v825 = vld [vmem:[%s323 + $0xfa0] sm:%s316]
                %826 = vst [vmem:[%s324 + $0x7d0] sm:%s316] %v825
                %v827 = vld [vmem:[%s323 + $0xfb0] sm:%s316]
                %828 = vst [vmem:[%s324 + $0x7d8] sm:%s316] %v827
                %v829 = vld [vmem:[%s323 + $0xfc0] sm:%s316]
                %830 = vst [vmem:[%s324 + $0x7e0] sm:%s316] %v829
                %v831 = vld [vmem:[%s323 + $0xfd0] sm:%s316]
                %832 = vst [vmem:[%s324 + $0x7e8] sm:%s316] %v831
                %v833 = vld [vmem:[%s323 + $0xfe0] sm:%s316]
                %834 = vst [vmem:[%s324 + $0x7f0] sm:%s316] %v833
                %v835 = vld [vmem:[%s323 + $0xff0] sm:%s316]
                %836 = vst [vmem:[%s324 + $0x7f8] sm:%s316] %v835
              $region57: #{_attention_mlp_forward.1} parent=51 // loop_footer
                %s322 = sadd.s32 1, %s318
              $region58: #{_attention_mlp_forward.1} parent=51 // loop_footer_branch
                %317 = sbr.rel target = $region54
              $region59: #{_attention_mlp_forward.1} parent=51 // loop_exit
                _
            $region52: #{_attention_mlp_forward.1} parent=43 // pred_fallthru
              _
          $region44: #{_attention_mlp_forward.1} parent=39 // pred_fallthru
            _
          %1361 = vnop
        $region40: #{_attention_mlp_forward.1} parent=31 // pred_fallthru
          _
        // Predicated region
        $region75: #{_attention_mlp_forward.1} parent=31 // pred_check
          %p1362 = pneg %p94
        $region76: #{_attention_mlp_forward.1} parent=31 // pred_check_branch
          %1364 = sbr.rel (%p1362) target = $region78
        $region77: #{_attention_mlp_forward.1} parent=31 // pred_region
          %s1365 = sand.u32 %s84, 1
          %s1366 = sand.u32 %s84, 1
          %s1367 = smul.addr %s1366, 2048
          %s1368 = scalar_lea.vmem [#allocation3], %s1367
          %s1369 = smul.addr %s22, 8
          %s1370 = scalar_lea.vmem %s2, %s1369
          // Predicated region
          $region79: #{_attention_mlp_forward.1} parent=77 // pred_check
            _
          $region80: #{_attention_mlp_forward.1} parent=77 // pred_check_branch
            %1372 = sbr.rel (0) target = $region82
          $region81: #{_attention_mlp_forward.1} parent=77 // pred_region
            // Predicated region
            $region83: #{_attention_mlp_forward.1} parent=81 // pred_check
              _
            $region84: #{_attention_mlp_forward.1} parent=81 // pred_check_branch
              %1374 = sbr.rel (0) target = $region86
            $region85: #{_attention_mlp_forward.1} parent=81 // pred_region
              // Predicated region
              $region98: #{_attention_mlp_forward.1} parent=85 // pred_check
                _
              $region99: #{_attention_mlp_forward.1} parent=85 // pred_check_branch
                %1900 = sbr.rel (0) target = $region101
              $region100: #{_attention_mlp_forward.1} parent=85 // pred_region
                loop: start=0, step=1, limit=1
                $region102: #{_attention_mlp_forward.1} parent=100 // loop_pre_header
                  _
                $region103: #{_attention_mlp_forward.1} parent=100 // loop_header
                  %s1902 = sphi 0, %s1906
                  %p1903 = scmp.ge.s32.totalorder %s1902, 1
                  %s1907 = sphi %s1370, %s1370
                  %s1908 = sphi %s1368, %s1368
                $region104: #{_attention_mlp_forward.1} parent=100 // loop_header_branch
                  %1905 = sbr.rel (%p1903) target = $region108
                $region105: #{_attention_mlp_forward.1} parent=100 // loop_body
                  %v1909 = vld [vmem:[%s1907] sm:$0xff]
                  %1910 = vst [vmem:[%s1908] sm:$0xff] %v1909
                  %v1911 = vld [vmem:[%s1907 + $0x10] sm:$0xff]
                  %1912 = vst [vmem:[%s1908 + $0x8] sm:$0xff] %v1911
                  %v1913 = vld [vmem:[%s1907 + $0x20] sm:$0xff]
                  %1914 = vst [vmem:[%s1908 + $0x10] sm:$0xff] %v1913
                  %v1915 = vld [vmem:[%s1907 + $0x30] sm:$0xff]
                  %1916 = vst [vmem:[%s1908 + $0x18] sm:$0xff] %v1915
                  %v1917 = vld [vmem:[%s1907 + $0x40] sm:$0xff]
                  %1918 = vst [vmem:[%s1908 + $0x20] sm:$0xff] %v1917
                  %v1919 = vld [vmem:[%s1907 + $0x50] sm:$0xff]
                  %1920 = vst [vmem:[%s1908 + $0x28] sm:$0xff] %v1919
                  %v1921 = vld [vmem:[%s1907 + $0x60] sm:$0xff]
                  %1922 = vst [vmem:[%s1908 + $0x30] sm:$0xff] %v1921
                  %v1923 = vld [vmem:[%s1907 + $0x70] sm:$0xff]
                  %1924 = vst [vmem:[%s1908 + $0x38] sm:$0xff] %v1923
                  %v1925 = vld [vmem:[%s1907 + $0x80] sm:$0xff]
                  %1926 = vst [vmem:[%s1908 + $0x40] sm:$0xff] %v1925
                  %v1927 = vld [vmem:[%s1907 + $0x90] sm:$0xff]
                  %1928 = vst [vmem:[%s1908 + $0x48] sm:$0xff] %v1927
                  %v1929 = vld [vmem:[%s1907 + $0xa0] sm:$0xff]
                  %1930 = vst [vmem:[%s1908 + $0x50] sm:$0xff] %v1929
                  %v1931 = vld [vmem:[%s1907 + $0xb0] sm:$0xff]
                  %1932 = vst [vmem:[%s1908 + $0x58] sm:$0xff] %v1931
                  %v1933 = vld [vmem:[%s1907 + $0xc0] sm:$0xff]
                  %1934 = vst [vmem:[%s1908 + $0x60] sm:$0xff] %v1933
                  %v1935 = vld [vmem:[%s1907 + $0xd0] sm:$0xff]
                  %1936 = vst [vmem:[%s1908 + $0x68] sm:$0xff] %v1935
                  %v1937 = vld [vmem:[%s1907 + $0xe0] sm:$0xff]
                  %1938 = vst [vmem:[%s1908 + $0x70] sm:$0xff] %v1937
                  %v1939 = vld [vmem:[%s1907 + $0xf0] sm:$0xff]
                  %1940 = vst [vmem:[%s1908 + $0x78] sm:$0xff] %v1939
                  %v1941 = vld [vmem:[%s1907 + $0x100] sm:$0xff]
                  %1942 = vst [vmem:[%s1908 + $0x80] sm:$0xff] %v1941
                  %v1943 = vld [vmem:[%s1907 + $0x110] sm:$0xff]
                  %1944 = vst [vmem:[%s1908 + $0x88] sm:$0xff] %v1943
                  %v1945 = vld [vmem:[%s1907 + $0x120] sm:$0xff]
                  %1946 = vst [vmem:[%s1908 + $0x90] sm:$0xff] %v1945
                  %v1947 = vld [vmem:[%s1907 + $0x130] sm:$0xff]
                  %1948 = vst [vmem:[%s1908 + $0x98] sm:$0xff] %v1947
                  %v1949 = vld [vmem:[%s1907 + $0x140] sm:$0xff]
                  %1950 = vst [vmem:[%s1908 + $0xa0] sm:$0xff] %v1949
                  %v1951 = vld [vmem:[%s1907 + $0x150] sm:$0xff]
                  %1952 = vst [vmem:[%s1908 + $0xa8] sm:$0xff] %v1951
                  %v1953 = vld [vmem:[%s1907 + $0x160] sm:$0xff]
                  %1954 = vst [vmem:[%s1908 + $0xb0] sm:$0xff] %v1953
                  %v1955 = vld [vmem:[%s1907 + $0x170] sm:$0xff]
                  %1956 = vst [vmem:[%s1908 + $0xb8] sm:$0xff] %v1955
                  %v1957 = vld [vmem:[%s1907 + $0x180] sm:$0xff]
                  %1958 = vst [vmem:[%s1908 + $0xc0] sm:$0xff] %v1957
                  %v1959 = vld [vmem:[%s1907 + $0x190] sm:$0xff]
                  %1960 = vst [vmem:[%s1908 + $0xc8] sm:$0xff] %v1959
                  %v1961 = vld [vmem:[%s1907 + $0x1a0] sm:$0xff]
                  %1962 = vst [vmem:[%s1908 + $0xd0] sm:$0xff] %v1961
                  %v1963 = vld [vmem:[%s1907 + $0x1b0] sm:$0xff]
                  %1964 = vst [vmem:[%s1908 + $0xd8] sm:$0xff] %v1963
                  %v1965 = vld [vmem:[%s1907 + $0x1c0] sm:$0xff]
                  %1966 = vst [vmem:[%s1908 + $0xe0] sm:$0xff] %v1965
                  %v1967 = vld [vmem:[%s1907 + $0x1d0] sm:$0xff]
                  %1968 = vst [vmem:[%s1908 + $0xe8] sm:$0xff] %v1967
                  %v1969 = vld [vmem:[%s1907 + $0x1e0] sm:$0xff]
                  %1970 = vst [vmem:[%s1908 + $0xf0] sm:$0xff] %v1969
                  %v1971 = vld [vmem:[%s1907 + $0x1f0] sm:$0xff]
                  %1972 = vst [vmem:[%s1908 + $0xf8] sm:$0xff] %v1971
                  %v1973 = vld [vmem:[%s1907 + $0x200] sm:$0xff]
                  %1974 = vst [vmem:[%s1908 + $0x100] sm:$0xff] %v1973
                  %v1975 = vld [vmem:[%s1907 + $0x210] sm:$0xff]
                  %1976 = vst [vmem:[%s1908 + $0x108] sm:$0xff] %v1975
                  %v1977 = vld [vmem:[%s1907 + $0x220] sm:$0xff]
                  %1978 = vst [vmem:[%s1908 + $0x110] sm:$0xff] %v1977
                  %v1979 = vld [vmem:[%s1907 + $0x230] sm:$0xff]
                  %1980 = vst [vmem:[%s1908 + $0x118] sm:$0xff] %v1979
                  %v1981 = vld [vmem:[%s1907 + $0x240] sm:$0xff]
                  %1982 = vst [vmem:[%s1908 + $0x120] sm:$0xff] %v1981
                  %v1983 = vld [vmem:[%s1907 + $0x250] sm:$0xff]
                  %1984 = vst [vmem:[%s1908 + $0x128] sm:$0xff] %v1983
                  %v1985 = vld [vmem:[%s1907 + $0x260] sm:$0xff]
                  %1986 = vst [vmem:[%s1908 + $0x130] sm:$0xff] %v1985
                  %v1987 = vld [vmem:[%s1907 + $0x270] sm:$0xff]
                  %1988 = vst [vmem:[%s1908 + $0x138] sm:$0xff] %v1987
                  %v1989 = vld [vmem:[%s1907 + $0x280] sm:$0xff]
                  %1990 = vst [vmem:[%s1908 + $0x140] sm:$0xff] %v1989
                  %v1991 = vld [vmem:[%s1907 + $0x290] sm:$0xff]
                  %1992 = vst [vmem:[%s1908 + $0x148] sm:$0xff] %v1991
                  %v1993 = vld [vmem:[%s1907 + $0x2a0] sm:$0xff]
                  %1994 = vst [vmem:[%s1908 + $0x150] sm:$0xff] %v1993
                  %v1995 = vld [vmem:[%s1907 + $0x2b0] sm:$0xff]
                  %1996 = vst [vmem:[%s1908 + $0x158] sm:$0xff] %v1995
                  %v1997 = vld [vmem:[%s1907 + $0x2c0] sm:$0xff]
                  %1998 = vst [vmem:[%s1908 + $0x160] sm:$0xff] %v1997
                  %v1999 = vld [vmem:[%s1907 + $0x2d0] sm:$0xff]
                  %2000 = vst [vmem:[%s1908 + $0x168] sm:$0xff] %v1999
                  %v2001 = vld [vmem:[%s1907 + $0x2e0] sm:$0xff]
                  %2002 = vst [vmem:[%s1908 + $0x170] sm:$0xff] %v2001
                  %v2003 = vld [vmem:[%s1907 + $0x2f0] sm:$0xff]
                  %2004 = vst [vmem:[%s1908 + $0x178] sm:$0xff] %v2003
                  %v2005 = vld [vmem:[%s1907 + $0x300] sm:$0xff]
                  %2006 = vst [vmem:[%s1908 + $0x180] sm:$0xff] %v2005
                  %v2007 = vld [vmem:[%s1907 + $0x310] sm:$0xff]
                  %2008 = vst [vmem:[%s1908 + $0x188] sm:$0xff] %v2007
                  %v2009 = vld [vmem:[%s1907 + $0x320] sm:$0xff]
                  %2010 = vst [vmem:[%s1908 + $0x190] sm:$0xff] %v2009
                  %v2011 = vld [vmem:[%s1907 + $0x330] sm:$0xff]
                  %2012 = vst [vmem:[%s1908 + $0x198] sm:$0xff] %v2011
                  %v2013 = vld [vmem:[%s1907 + $0x340] sm:$0xff]
                  %2014 = vst [vmem:[%s1908 + $0x1a0] sm:$0xff] %v2013
                  %v2015 = vld [vmem:[%s1907 + $0x350] sm:$0xff]
                  %2016 = vst [vmem:[%s1908 + $0x1a8] sm:$0xff] %v2015
                  %v2017 = vld [vmem:[%s1907 + $0x360] sm:$0xff]
                  %2018 = vst [vmem:[%s1908 + $0x1b0] sm:$0xff] %v2017
                  %v2019 = vld [vmem:[%s1907 + $0x370] sm:$0xff]
                  %2020 = vst [vmem:[%s1908 + $0x1b8] sm:$0xff] %v2019
                  %v2021 = vld [vmem:[%s1907 + $0x380] sm:$0xff]
                  %2022 = vst [vmem:[%s1908 + $0x1c0] sm:$0xff] %v2021
                  %v2023 = vld [vmem:[%s1907 + $0x390] sm:$0xff]
                  %2024 = vst [vmem:[%s1908 + $0x1c8] sm:$0xff] %v2023
                  %v2025 = vld [vmem:[%s1907 + $0x3a0] sm:$0xff]
                  %2026 = vst [vmem:[%s1908 + $0x1d0] sm:$0xff] %v2025
                  %v2027 = vld [vmem:[%s1907 + $0x3b0] sm:$0xff]
                  %2028 = vst [vmem:[%s1908 + $0x1d8] sm:$0xff] %v2027
                  %v2029 = vld [vmem:[%s1907 + $0x3c0] sm:$0xff]
                  %2030 = vst [vmem:[%s1908 + $0x1e0] sm:$0xff] %v2029
                  %v2031 = vld [vmem:[%s1907 + $0x3d0] sm:$0xff]
                  %2032 = vst [vmem:[%s1908 + $0x1e8] sm:$0xff] %v2031
                  %v2033 = vld [vmem:[%s1907 + $0x3e0] sm:$0xff]
                  %2034 = vst [vmem:[%s1908 + $0x1f0] sm:$0xff] %v2033
                  %v2035 = vld [vmem:[%s1907 + $0x3f0] sm:$0xff]
                  %2036 = vst [vmem:[%s1908 + $0x1f8] sm:$0xff] %v2035
                  %v2037 = vld [vmem:[%s1907 + $0x400] sm:$0xff]
                  %2038 = vst [vmem:[%s1908 + $0x200] sm:$0xff] %v2037
                  %v2039 = vld [vmem:[%s1907 + $0x410] sm:$0xff]
                  %2040 = vst [vmem:[%s1908 + $0x208] sm:$0xff] %v2039
                  %v2041 = vld [vmem:[%s1907 + $0x420] sm:$0xff]
                  %2042 = vst [vmem:[%s1908 + $0x210] sm:$0xff] %v2041
                  %v2043 = vld [vmem:[%s1907 + $0x430] sm:$0xff]
                  %2044 = vst [vmem:[%s1908 + $0x218] sm:$0xff] %v2043
                  %v2045 = vld [vmem:[%s1907 + $0x440] sm:$0xff]
                  %2046 = vst [vmem:[%s1908 + $0x220] sm:$0xff] %v2045
                  %v2047 = vld [vmem:[%s1907 + $0x450] sm:$0xff]
                  %2048 = vst [vmem:[%s1908 + $0x228] sm:$0xff] %v2047
                  %v2049 = vld [vmem:[%s1907 + $0x460] sm:$0xff]
                  %2050 = vst [vmem:[%s1908 + $0x230] sm:$0xff] %v2049
                  %v2051 = vld [vmem:[%s1907 + $0x470] sm:$0xff]
                  %2052 = vst [vmem:[%s1908 + $0x238] sm:$0xff] %v2051
                  %v2053 = vld [vmem:[%s1907 + $0x480] sm:$0xff]
                  %2054 = vst [vmem:[%s1908 + $0x240] sm:$0xff] %v2053
                  %v2055 = vld [vmem:[%s1907 + $0x490] sm:$0xff]
                  %2056 = vst [vmem:[%s1908 + $0x248] sm:$0xff] %v2055
                  %v2057 = vld [vmem:[%s1907 + $0x4a0] sm:$0xff]
                  %2058 = vst [vmem:[%s1908 + $0x250] sm:$0xff] %v2057
                  %v2059 = vld [vmem:[%s1907 + $0x4b0] sm:$0xff]
                  %2060 = vst [vmem:[%s1908 + $0x258] sm:$0xff] %v2059
                  %v2061 = vld [vmem:[%s1907 + $0x4c0] sm:$0xff]
                  %2062 = vst [vmem:[%s1908 + $0x260] sm:$0xff] %v2061
                  %v2063 = vld [vmem:[%s1907 + $0x4d0] sm:$0xff]
                  %2064 = vst [vmem:[%s1908 + $0x268] sm:$0xff] %v2063
                  %v2065 = vld [vmem:[%s1907 + $0x4e0] sm:$0xff]
                  %2066 = vst [vmem:[%s1908 + $0x270] sm:$0xff] %v2065
                  %v2067 = vld [vmem:[%s1907 + $0x4f0] sm:$0xff]
                  %2068 = vst [vmem:[%s1908 + $0x278] sm:$0xff] %v2067
                  %v2069 = vld [vmem:[%s1907 + $0x500] sm:$0xff]
                  %2070 = vst [vmem:[%s1908 + $0x280] sm:$0xff] %v2069
                  %v2071 = vld [vmem:[%s1907 + $0x510] sm:$0xff]
                  %2072 = vst [vmem:[%s1908 + $0x288] sm:$0xff] %v2071
                  %v2073 = vld [vmem:[%s1907 + $0x520] sm:$0xff]
                  %2074 = vst [vmem:[%s1908 + $0x290] sm:$0xff] %v2073
                  %v2075 = vld [vmem:[%s1907 + $0x530] sm:$0xff]
                  %2076 = vst [vmem:[%s1908 + $0x298] sm:$0xff] %v2075
                  %v2077 = vld [vmem:[%s1907 + $0x540] sm:$0xff]
                  %2078 = vst [vmem:[%s1908 + $0x2a0] sm:$0xff] %v2077
                  %v2079 = vld [vmem:[%s1907 + $0x550] sm:$0xff]
                  %2080 = vst [vmem:[%s1908 + $0x2a8] sm:$0xff] %v2079
                  %v2081 = vld [vmem:[%s1907 + $0x560] sm:$0xff]
                  %2082 = vst [vmem:[%s1908 + $0x2b0] sm:$0xff] %v2081
                  %v2083 = vld [vmem:[%s1907 + $0x570] sm:$0xff]
                  %2084 = vst [vmem:[%s1908 + $0x2b8] sm:$0xff] %v2083
                  %v2085 = vld [vmem:[%s1907 + $0x580] sm:$0xff]
                  %2086 = vst [vmem:[%s1908 + $0x2c0] sm:$0xff] %v2085
                  %v2087 = vld [vmem:[%s1907 + $0x590] sm:$0xff]
                  %2088 = vst [vmem:[%s1908 + $0x2c8] sm:$0xff] %v2087
                  %v2089 = vld [vmem:[%s1907 + $0x5a0] sm:$0xff]
                  %2090 = vst [vmem:[%s1908 + $0x2d0] sm:$0xff] %v2089
                  %v2091 = vld [vmem:[%s1907 + $0x5b0] sm:$0xff]
                  %2092 = vst [vmem:[%s1908 + $0x2d8] sm:$0xff] %v2091
                  %v2093 = vld [vmem:[%s1907 + $0x5c0] sm:$0xff]
                  %2094 = vst [vmem:[%s1908 + $0x2e0] sm:$0xff] %v2093
                  %v2095 = vld [vmem:[%s1907 + $0x5d0] sm:$0xff]
                  %2096 = vst [vmem:[%s1908 + $0x2e8] sm:$0xff] %v2095
                  %v2097 = vld [vmem:[%s1907 + $0x5e0] sm:$0xff]
                  %2098 = vst [vmem:[%s1908 + $0x2f0] sm:$0xff] %v2097
                  %v2099 = vld [vmem:[%s1907 + $0x5f0] sm:$0xff]
                  %2100 = vst [vmem:[%s1908 + $0x2f8] sm:$0xff] %v2099
                  %v2101 = vld [vmem:[%s1907 + $0x600] sm:$0xff]
                  %2102 = vst [vmem:[%s1908 + $0x300] sm:$0xff] %v2101
                  %v2103 = vld [vmem:[%s1907 + $0x610] sm:$0xff]
                  %2104 = vst [vmem:[%s1908 + $0x308] sm:$0xff] %v2103
                  %v2105 = vld [vmem:[%s1907 + $0x620] sm:$0xff]
                  %2106 = vst [vmem:[%s1908 + $0x310] sm:$0xff] %v2105
                  %v2107 = vld [vmem:[%s1907 + $0x630] sm:$0xff]
                  %2108 = vst [vmem:[%s1908 + $0x318] sm:$0xff] %v2107
                  %v2109 = vld [vmem:[%s1907 + $0x640] sm:$0xff]
                  %2110 = vst [vmem:[%s1908 + $0x320] sm:$0xff] %v2109
                  %v2111 = vld [vmem:[%s1907 + $0x650] sm:$0xff]
                  %2112 = vst [vmem:[%s1908 + $0x328] sm:$0xff] %v2111
                  %v2113 = vld [vmem:[%s1907 + $0x660] sm:$0xff]
                  %2114 = vst [vmem:[%s1908 + $0x330] sm:$0xff] %v2113
                  %v2115 = vld [vmem:[%s1907 + $0x670] sm:$0xff]
                  %2116 = vst [vmem:[%s1908 + $0x338] sm:$0xff] %v2115
                  %v2117 = vld [vmem:[%s1907 + $0x680] sm:$0xff]
                  %2118 = vst [vmem:[%s1908 + $0x340] sm:$0xff] %v2117
                  %v2119 = vld [vmem:[%s1907 + $0x690] sm:$0xff]
                  %2120 = vst [vmem:[%s1908 + $0x348] sm:$0xff] %v2119
                  %v2121 = vld [vmem:[%s1907 + $0x6a0] sm:$0xff]
                  %2122 = vst [vmem:[%s1908 + $0x350] sm:$0xff] %v2121
                  %v2123 = vld [vmem:[%s1907 + $0x6b0] sm:$0xff]
                  %2124 = vst [vmem:[%s1908 + $0x358] sm:$0xff] %v2123
                  %v2125 = vld [vmem:[%s1907 + $0x6c0] sm:$0xff]
                  %2126 = vst [vmem:[%s1908 + $0x360] sm:$0xff] %v2125
                  %v2127 = vld [vmem:[%s1907 + $0x6d0] sm:$0xff]
                  %2128 = vst [vmem:[%s1908 + $0x368] sm:$0xff] %v2127
                  %v2129 = vld [vmem:[%s1907 + $0x6e0] sm:$0xff]
                  %2130 = vst [vmem:[%s1908 + $0x370] sm:$0xff] %v2129
                  %v2131 = vld [vmem:[%s1907 + $0x6f0] sm:$0xff]
                  %2132 = vst [vmem:[%s1908 + $0x378] sm:$0xff] %v2131
                  %v2133 = vld [vmem:[%s1907 + $0x700] sm:$0xff]
                  %2134 = vst [vmem:[%s1908 + $0x380] sm:$0xff] %v2133
                  %v2135 = vld [vmem:[%s1907 + $0x710] sm:$0xff]
                  %2136 = vst [vmem:[%s1908 + $0x388] sm:$0xff] %v2135
                  %v2137 = vld [vmem:[%s1907 + $0x720] sm:$0xff]
                  %2138 = vst [vmem:[%s1908 + $0x390] sm:$0xff] %v2137
                  %v2139 = vld [vmem:[%s1907 + $0x730] sm:$0xff]
                  %2140 = vst [vmem:[%s1908 + $0x398] sm:$0xff] %v2139
                  %v2141 = vld [vmem:[%s1907 + $0x740] sm:$0xff]
                  %2142 = vst [vmem:[%s1908 + $0x3a0] sm:$0xff] %v2141
                  %v2143 = vld [vmem:[%s1907 + $0x750] sm:$0xff]
                  %2144 = vst [vmem:[%s1908 + $0x3a8] sm:$0xff] %v2143
                  %v2145 = vld [vmem:[%s1907 + $0x760] sm:$0xff]
                  %2146 = vst [vmem:[%s1908 + $0x3b0] sm:$0xff] %v2145
                  %v2147 = vld [vmem:[%s1907 + $0x770] sm:$0xff]
                  %2148 = vst [vmem:[%s1908 + $0x3b8] sm:$0xff] %v2147
                  %v2149 = vld [vmem:[%s1907 + $0x780] sm:$0xff]
                  %2150 = vst [vmem:[%s1908 + $0x3c0] sm:$0xff] %v2149
                  %v2151 = vld [vmem:[%s1907 + $0x790] sm:$0xff]
                  %2152 = vst [vmem:[%s1908 + $0x3c8] sm:$0xff] %v2151
                  %v2153 = vld [vmem:[%s1907 + $0x7a0] sm:$0xff]
                  %2154 = vst [vmem:[%s1908 + $0x3d0] sm:$0xff] %v2153
                  %v2155 = vld [vmem:[%s1907 + $0x7b0] sm:$0xff]
                  %2156 = vst [vmem:[%s1908 + $0x3d8] sm:$0xff] %v2155
                  %v2157 = vld [vmem:[%s1907 + $0x7c0] sm:$0xff]
                  %2158 = vst [vmem:[%s1908 + $0x3e0] sm:$0xff] %v2157
                  %v2159 = vld [vmem:[%s1907 + $0x7d0] sm:$0xff]
                  %2160 = vst [vmem:[%s1908 + $0x3e8] sm:$0xff] %v2159
                  %v2161 = vld [vmem:[%s1907 + $0x7e0] sm:$0xff]
                  %2162 = vst [vmem:[%s1908 + $0x3f0] sm:$0xff] %v2161
                  %v2163 = vld [vmem:[%s1907 + $0x7f0] sm:$0xff]
                  %2164 = vst [vmem:[%s1908 + $0x3f8] sm:$0xff] %v2163
                  %v2165 = vld [vmem:[%s1907 + $0x800] sm:$0xff]
                  %2166 = vst [vmem:[%s1908 + $0x400] sm:$0xff] %v2165
                  %v2167 = vld [vmem:[%s1907 + $0x810] sm:$0xff]
                  %2168 = vst [vmem:[%s1908 + $0x408] sm:$0xff] %v2167
                  %v2169 = vld [vmem:[%s1907 + $0x820] sm:$0xff]
                  %2170 = vst [vmem:[%s1908 + $0x410] sm:$0xff] %v2169
                  %v2171 = vld [vmem:[%s1907 + $0x830] sm:$0xff]
                  %2172 = vst [vmem:[%s1908 + $0x418] sm:$0xff] %v2171
                  %v2173 = vld [vmem:[%s1907 + $0x840] sm:$0xff]
                  %2174 = vst [vmem:[%s1908 + $0x420] sm:$0xff] %v2173
                  %v2175 = vld [vmem:[%s1907 + $0x850] sm:$0xff]
                  %2176 = vst [vmem:[%s1908 + $0x428] sm:$0xff] %v2175
                  %v2177 = vld [vmem:[%s1907 + $0x860] sm:$0xff]
                  %2178 = vst [vmem:[%s1908 + $0x430] sm:$0xff] %v2177
                  %v2179 = vld [vmem:[%s1907 + $0x870] sm:$0xff]
                  %2180 = vst [vmem:[%s1908 + $0x438] sm:$0xff] %v2179
                  %v2181 = vld [vmem:[%s1907 + $0x880] sm:$0xff]
                  %2182 = vst [vmem:[%s1908 + $0x440] sm:$0xff] %v2181
                  %v2183 = vld [vmem:[%s1907 + $0x890] sm:$0xff]
                  %2184 = vst [vmem:[%s1908 + $0x448] sm:$0xff] %v2183
                  %v2185 = vld [vmem:[%s1907 + $0x8a0] sm:$0xff]
                  %2186 = vst [vmem:[%s1908 + $0x450] sm:$0xff] %v2185
                  %v2187 = vld [vmem:[%s1907 + $0x8b0] sm:$0xff]
                  %2188 = vst [vmem:[%s1908 + $0x458] sm:$0xff] %v2187
                  %v2189 = vld [vmem:[%s1907 + $0x8c0] sm:$0xff]
                  %2190 = vst [vmem:[%s1908 + $0x460] sm:$0xff] %v2189
                  %v2191 = vld [vmem:[%s1907 + $0x8d0] sm:$0xff]
                  %2192 = vst [vmem:[%s1908 + $0x468] sm:$0xff] %v2191
                  %v2193 = vld [vmem:[%s1907 + $0x8e0] sm:$0xff]
                  %2194 = vst [vmem:[%s1908 + $0x470] sm:$0xff] %v2193
                  %v2195 = vld [vmem:[%s1907 + $0x8f0] sm:$0xff]
                  %2196 = vst [vmem:[%s1908 + $0x478] sm:$0xff] %v2195
                  %v2197 = vld [vmem:[%s1907 + $0x900] sm:$0xff]
                  %2198 = vst [vmem:[%s1908 + $0x480] sm:$0xff] %v2197
                  %v2199 = vld [vmem:[%s1907 + $0x910] sm:$0xff]
                  %2200 = vst [vmem:[%s1908 + $0x488] sm:$0xff] %v2199
                  %v2201 = vld [vmem:[%s1907 + $0x920] sm:$0xff]
                  %2202 = vst [vmem:[%s1908 + $0x490] sm:$0xff] %v2201
                  %v2203 = vld [vmem:[%s1907 + $0x930] sm:$0xff]
                  %2204 = vst [vmem:[%s1908 + $0x498] sm:$0xff] %v2203
                  %v2205 = vld [vmem:[%s1907 + $0x940] sm:$0xff]
                  %2206 = vst [vmem:[%s1908 + $0x4a0] sm:$0xff] %v2205
                  %v2207 = vld [vmem:[%s1907 + $0x950] sm:$0xff]
                  %2208 = vst [vmem:[%s1908 + $0x4a8] sm:$0xff] %v2207
                  %v2209 = vld [vmem:[%s1907 + $0x960] sm:$0xff]
                  %2210 = vst [vmem:[%s1908 + $0x4b0] sm:$0xff] %v2209
                  %v2211 = vld [vmem:[%s1907 + $0x970] sm:$0xff]
                  %2212 = vst [vmem:[%s1908 + $0x4b8] sm:$0xff] %v2211
                  %v2213 = vld [vmem:[%s1907 + $0x980] sm:$0xff]
                  %2214 = vst [vmem:[%s1908 + $0x4c0] sm:$0xff] %v2213
                  %v2215 = vld [vmem:[%s1907 + $0x990] sm:$0xff]
                  %2216 = vst [vmem:[%s1908 + $0x4c8] sm:$0xff] %v2215
                  %v2217 = vld [vmem:[%s1907 + $0x9a0] sm:$0xff]
                  %2218 = vst [vmem:[%s1908 + $0x4d0] sm:$0xff] %v2217
                  %v2219 = vld [vmem:[%s1907 + $0x9b0] sm:$0xff]
                  %2220 = vst [vmem:[%s1908 + $0x4d8] sm:$0xff] %v2219
                  %v2221 = vld [vmem:[%s1907 + $0x9c0] sm:$0xff]
                  %2222 = vst [vmem:[%s1908 + $0x4e0] sm:$0xff] %v2221
                  %v2223 = vld [vmem:[%s1907 + $0x9d0] sm:$0xff]
                  %2224 = vst [vmem:[%s1908 + $0x4e8] sm:$0xff] %v2223
                  %v2225 = vld [vmem:[%s1907 + $0x9e0] sm:$0xff]
                  %2226 = vst [vmem:[%s1908 + $0x4f0] sm:$0xff] %v2225
                  %v2227 = vld [vmem:[%s1907 + $0x9f0] sm:$0xff]
                  %2228 = vst [vmem:[%s1908 + $0x4f8] sm:$0xff] %v2227
                  %v2229 = vld [vmem:[%s1907 + $0xa00] sm:$0xff]
                  %2230 = vst [vmem:[%s1908 + $0x500] sm:$0xff] %v2229
                  %v2231 = vld [vmem:[%s1907 + $0xa10] sm:$0xff]
                  %2232 = vst [vmem:[%s1908 + $0x508] sm:$0xff] %v2231
                  %v2233 = vld [vmem:[%s1907 + $0xa20] sm:$0xff]
                  %2234 = vst [vmem:[%s1908 + $0x510] sm:$0xff] %v2233
                  %v2235 = vld [vmem:[%s1907 + $0xa30] sm:$0xff]
                  %2236 = vst [vmem:[%s1908 + $0x518] sm:$0xff] %v2235
                  %v2237 = vld [vmem:[%s1907 + $0xa40] sm:$0xff]
                  %2238 = vst [vmem:[%s1908 + $0x520] sm:$0xff] %v2237
                  %v2239 = vld [vmem:[%s1907 + $0xa50] sm:$0xff]
                  %2240 = vst [vmem:[%s1908 + $0x528] sm:$0xff] %v2239
                  %v2241 = vld [vmem:[%s1907 + $0xa60] sm:$0xff]
                  %2242 = vst [vmem:[%s1908 + $0x530] sm:$0xff] %v2241
                  %v2243 = vld [vmem:[%s1907 + $0xa70] sm:$0xff]
                  %2244 = vst [vmem:[%s1908 + $0x538] sm:$0xff] %v2243
                  %v2245 = vld [vmem:[%s1907 + $0xa80] sm:$0xff]
                  %2246 = vst [vmem:[%s1908 + $0x540] sm:$0xff] %v2245
                  %v2247 = vld [vmem:[%s1907 + $0xa90] sm:$0xff]
                  %2248 = vst [vmem:[%s1908 + $0x548] sm:$0xff] %v2247
                  %v2249 = vld [vmem:[%s1907 + $0xaa0] sm:$0xff]
                  %2250 = vst [vmem:[%s1908 + $0x550] sm:$0xff] %v2249
                  %v2251 = vld [vmem:[%s1907 + $0xab0] sm:$0xff]
                  %2252 = vst [vmem:[%s1908 + $0x558] sm:$0xff] %v2251
                  %v2253 = vld [vmem:[%s1907 + $0xac0] sm:$0xff]
                  %2254 = vst [vmem:[%s1908 + $0x560] sm:$0xff] %v2253
                  %v2255 = vld [vmem:[%s1907 + $0xad0] sm:$0xff]
                  %2256 = vst [vmem:[%s1908 + $0x568] sm:$0xff] %v2255
                  %v2257 = vld [vmem:[%s1907 + $0xae0] sm:$0xff]
                  %2258 = vst [vmem:[%s1908 + $0x570] sm:$0xff] %v2257
                  %v2259 = vld [vmem:[%s1907 + $0xaf0] sm:$0xff]
                  %2260 = vst [vmem:[%s1908 + $0x578] sm:$0xff] %v2259
                  %v2261 = vld [vmem:[%s1907 + $0xb00] sm:$0xff]
                  %2262 = vst [vmem:[%s1908 + $0x580] sm:$0xff] %v2261
                  %v2263 = vld [vmem:[%s1907 + $0xb10] sm:$0xff]
                  %2264 = vst [vmem:[%s1908 + $0x588] sm:$0xff] %v2263
                  %v2265 = vld [vmem:[%s1907 + $0xb20] sm:$0xff]
                  %2266 = vst [vmem:[%s1908 + $0x590] sm:$0xff] %v2265
                  %v2267 = vld [vmem:[%s1907 + $0xb30] sm:$0xff]
                  %2268 = vst [vmem:[%s1908 + $0x598] sm:$0xff] %v2267
                  %v2269 = vld [vmem:[%s1907 + $0xb40] sm:$0xff]
                  %2270 = vst [vmem:[%s1908 + $0x5a0] sm:$0xff] %v2269
                  %v2271 = vld [vmem:[%s1907 + $0xb50] sm:$0xff]
                  %2272 = vst [vmem:[%s1908 + $0x5a8] sm:$0xff] %v2271
                  %v2273 = vld [vmem:[%s1907 + $0xb60] sm:$0xff]
                  %2274 = vst [vmem:[%s1908 + $0x5b0] sm:$0xff] %v2273
                  %v2275 = vld [vmem:[%s1907 + $0xb70] sm:$0xff]
                  %2276 = vst [vmem:[%s1908 + $0x5b8] sm:$0xff] %v2275
                  %v2277 = vld [vmem:[%s1907 + $0xb80] sm:$0xff]
                  %2278 = vst [vmem:[%s1908 + $0x5c0] sm:$0xff] %v2277
                  %v2279 = vld [vmem:[%s1907 + $0xb90] sm:$0xff]
                  %2280 = vst [vmem:[%s1908 + $0x5c8] sm:$0xff] %v2279
                  %v2281 = vld [vmem:[%s1907 + $0xba0] sm:$0xff]
                  %2282 = vst [vmem:[%s1908 + $0x5d0] sm:$0xff] %v2281
                  %v2283 = vld [vmem:[%s1907 + $0xbb0] sm:$0xff]
                  %2284 = vst [vmem:[%s1908 + $0x5d8] sm:$0xff] %v2283
                  %v2285 = vld [vmem:[%s1907 + $0xbc0] sm:$0xff]
                  %2286 = vst [vmem:[%s1908 + $0x5e0] sm:$0xff] %v2285
                  %v2287 = vld [vmem:[%s1907 + $0xbd0] sm:$0xff]
                  %2288 = vst [vmem:[%s1908 + $0x5e8] sm:$0xff] %v2287
                  %v2289 = vld [vmem:[%s1907 + $0xbe0] sm:$0xff]
                  %2290 = vst [vmem:[%s1908 + $0x5f0] sm:$0xff] %v2289
                  %v2291 = vld [vmem:[%s1907 + $0xbf0] sm:$0xff]
                  %2292 = vst [vmem:[%s1908 + $0x5f8] sm:$0xff] %v2291
                  %v2293 = vld [vmem:[%s1907 + $0xc00] sm:$0xff]
                  %2294 = vst [vmem:[%s1908 + $0x600] sm:$0xff] %v2293
                  %v2295 = vld [vmem:[%s1907 + $0xc10] sm:$0xff]
                  %2296 = vst [vmem:[%s1908 + $0x608] sm:$0xff] %v2295
                  %v2297 = vld [vmem:[%s1907 + $0xc20] sm:$0xff]
                  %2298 = vst [vmem:[%s1908 + $0x610] sm:$0xff] %v2297
                  %v2299 = vld [vmem:[%s1907 + $0xc30] sm:$0xff]
                  %2300 = vst [vmem:[%s1908 + $0x618] sm:$0xff] %v2299
                  %v2301 = vld [vmem:[%s1907 + $0xc40] sm:$0xff]
                  %2302 = vst [vmem:[%s1908 + $0x620] sm:$0xff] %v2301
                  %v2303 = vld [vmem:[%s1907 + $0xc50] sm:$0xff]
                  %2304 = vst [vmem:[%s1908 + $0x628] sm:$0xff] %v2303
                  %v2305 = vld [vmem:[%s1907 + $0xc60] sm:$0xff]
                  %2306 = vst [vmem:[%s1908 + $0x630] sm:$0xff] %v2305
                  %v2307 = vld [vmem:[%s1907 + $0xc70] sm:$0xff]
                  %2308 = vst [vmem:[%s1908 + $0x638] sm:$0xff] %v2307
                  %v2309 = vld [vmem:[%s1907 + $0xc80] sm:$0xff]
                  %2310 = vst [vmem:[%s1908 + $0x640] sm:$0xff] %v2309
                  %v2311 = vld [vmem:[%s1907 + $0xc90] sm:$0xff]
                  %2312 = vst [vmem:[%s1908 + $0x648] sm:$0xff] %v2311
                  %v2313 = vld [vmem:[%s1907 + $0xca0] sm:$0xff]
                  %2314 = vst [vmem:[%s1908 + $0x650] sm:$0xff] %v2313
                  %v2315 = vld [vmem:[%s1907 + $0xcb0] sm:$0xff]
                  %2316 = vst [vmem:[%s1908 + $0x658] sm:$0xff] %v2315
                  %v2317 = vld [vmem:[%s1907 + $0xcc0] sm:$0xff]
                  %2318 = vst [vmem:[%s1908 + $0x660] sm:$0xff] %v2317
                  %v2319 = vld [vmem:[%s1907 + $0xcd0] sm:$0xff]
                  %2320 = vst [vmem:[%s1908 + $0x668] sm:$0xff] %v2319
                  %v2321 = vld [vmem:[%s1907 + $0xce0] sm:$0xff]
                  %2322 = vst [vmem:[%s1908 + $0x670] sm:$0xff] %v2321
                  %v2323 = vld [vmem:[%s1907 + $0xcf0] sm:$0xff]
                  %2324 = vst [vmem:[%s1908 + $0x678] sm:$0xff] %v2323
                  %v2325 = vld [vmem:[%s1907 + $0xd00] sm:$0xff]
                  %2326 = vst [vmem:[%s1908 + $0x680] sm:$0xff] %v2325
                  %v2327 = vld [vmem:[%s1907 + $0xd10] sm:$0xff]
                  %2328 = vst [vmem:[%s1908 + $0x688] sm:$0xff] %v2327
                  %v2329 = vld [vmem:[%s1907 + $0xd20] sm:$0xff]
                  %2330 = vst [vmem:[%s1908 + $0x690] sm:$0xff] %v2329
                  %v2331 = vld [vmem:[%s1907 + $0xd30] sm:$0xff]
                  %2332 = vst [vmem:[%s1908 + $0x698] sm:$0xff] %v2331
                  %v2333 = vld [vmem:[%s1907 + $0xd40] sm:$0xff]
                  %2334 = vst [vmem:[%s1908 + $0x6a0] sm:$0xff] %v2333
                  %v2335 = vld [vmem:[%s1907 + $0xd50] sm:$0xff]
                  %2336 = vst [vmem:[%s1908 + $0x6a8] sm:$0xff] %v2335
                  %v2337 = vld [vmem:[%s1907 + $0xd60] sm:$0xff]
                  %2338 = vst [vmem:[%s1908 + $0x6b0] sm:$0xff] %v2337
                  %v2339 = vld [vmem:[%s1907 + $0xd70] sm:$0xff]
                  %2340 = vst [vmem:[%s1908 + $0x6b8] sm:$0xff] %v2339
                  %v2341 = vld [vmem:[%s1907 + $0xd80] sm:$0xff]
                  %2342 = vst [vmem:[%s1908 + $0x6c0] sm:$0xff] %v2341
                  %v2343 = vld [vmem:[%s1907 + $0xd90] sm:$0xff]
                  %2344 = vst [vmem:[%s1908 + $0x6c8] sm:$0xff] %v2343
                  %v2345 = vld [vmem:[%s1907 + $0xda0] sm:$0xff]
                  %2346 = vst [vmem:[%s1908 + $0x6d0] sm:$0xff] %v2345
                  %v2347 = vld [vmem:[%s1907 + $0xdb0] sm:$0xff]
                  %2348 = vst [vmem:[%s1908 + $0x6d8] sm:$0xff] %v2347
                  %v2349 = vld [vmem:[%s1907 + $0xdc0] sm:$0xff]
                  %2350 = vst [vmem:[%s1908 + $0x6e0] sm:$0xff] %v2349
                  %v2351 = vld [vmem:[%s1907 + $0xdd0] sm:$0xff]
                  %2352 = vst [vmem:[%s1908 + $0x6e8] sm:$0xff] %v2351
                  %v2353 = vld [vmem:[%s1907 + $0xde0] sm:$0xff]
                  %2354 = vst [vmem:[%s1908 + $0x6f0] sm:$0xff] %v2353
                  %v2355 = vld [vmem:[%s1907 + $0xdf0] sm:$0xff]
                  %2356 = vst [vmem:[%s1908 + $0x6f8] sm:$0xff] %v2355
                  %v2357 = vld [vmem:[%s1907 + $0xe00] sm:$0xff]
                  %2358 = vst [vmem:[%s1908 + $0x700] sm:$0xff] %v2357
                  %v2359 = vld [vmem:[%s1907 + $0xe10] sm:$0xff]
                  %2360 = vst [vmem:[%s1908 + $0x708] sm:$0xff] %v2359
                  %v2361 = vld [vmem:[%s1907 + $0xe20] sm:$0xff]
                  %2362 = vst [vmem:[%s1908 + $0x710] sm:$0xff] %v2361
                  %v2363 = vld [vmem:[%s1907 + $0xe30] sm:$0xff]
                  %2364 = vst [vmem:[%s1908 + $0x718] sm:$0xff] %v2363
                  %v2365 = vld [vmem:[%s1907 + $0xe40] sm:$0xff]
                  %2366 = vst [vmem:[%s1908 + $0x720] sm:$0xff] %v2365
                  %v2367 = vld [vmem:[%s1907 + $0xe50] sm:$0xff]
                  %2368 = vst [vmem:[%s1908 + $0x728] sm:$0xff] %v2367
                  %v2369 = vld [vmem:[%s1907 + $0xe60] sm:$0xff]
                  %2370 = vst [vmem:[%s1908 + $0x730] sm:$0xff] %v2369
                  %v2371 = vld [vmem:[%s1907 + $0xe70] sm:$0xff]
                  %2372 = vst [vmem:[%s1908 + $0x738] sm:$0xff] %v2371
                  %v2373 = vld [vmem:[%s1907 + $0xe80] sm:$0xff]
                  %2374 = vst [vmem:[%s1908 + $0x740] sm:$0xff] %v2373
                  %v2375 = vld [vmem:[%s1907 + $0xe90] sm:$0xff]
                  %2376 = vst [vmem:[%s1908 + $0x748] sm:$0xff] %v2375
                  %v2377 = vld [vmem:[%s1907 + $0xea0] sm:$0xff]
                  %2378 = vst [vmem:[%s1908 + $0x750] sm:$0xff] %v2377
                  %v2379 = vld [vmem:[%s1907 + $0xeb0] sm:$0xff]
                  %2380 = vst [vmem:[%s1908 + $0x758] sm:$0xff] %v2379
                  %v2381 = vld [vmem:[%s1907 + $0xec0] sm:$0xff]
                  %2382 = vst [vmem:[%s1908 + $0x760] sm:$0xff] %v2381
                  %v2383 = vld [vmem:[%s1907 + $0xed0] sm:$0xff]
                  %2384 = vst [vmem:[%s1908 + $0x768] sm:$0xff] %v2383
                  %v2385 = vld [vmem:[%s1907 + $0xee0] sm:$0xff]
                  %2386 = vst [vmem:[%s1908 + $0x770] sm:$0xff] %v2385
                  %v2387 = vld [vmem:[%s1907 + $0xef0] sm:$0xff]
                  %2388 = vst [vmem:[%s1908 + $0x778] sm:$0xff] %v2387
                  %v2389 = vld [vmem:[%s1907 + $0xf00] sm:$0xff]
                  %2390 = vst [vmem:[%s1908 + $0x780] sm:$0xff] %v2389
                  %v2391 = vld [vmem:[%s1907 + $0xf10] sm:$0xff]
                  %2392 = vst [vmem:[%s1908 + $0x788] sm:$0xff] %v2391
                  %v2393 = vld [vmem:[%s1907 + $0xf20] sm:$0xff]
                  %2394 = vst [vmem:[%s1908 + $0x790] sm:$0xff] %v2393
                  %v2395 = vld [vmem:[%s1907 + $0xf30] sm:$0xff]
                  %2396 = vst [vmem:[%s1908 + $0x798] sm:$0xff] %v2395
                  %v2397 = vld [vmem:[%s1907 + $0xf40] sm:$0xff]
                  %2398 = vst [vmem:[%s1908 + $0x7a0] sm:$0xff] %v2397
                  %v2399 = vld [vmem:[%s1907 + $0xf50] sm:$0xff]
                  %2400 = vst [vmem:[%s1908 + $0x7a8] sm:$0xff] %v2399
                  %v2401 = vld [vmem:[%s1907 + $0xf60] sm:$0xff]
                  %2402 = vst [vmem:[%s1908 + $0x7b0] sm:$0xff] %v2401
                  %v2403 = vld [vmem:[%s1907 + $0xf70] sm:$0xff]
                  %2404 = vst [vmem:[%s1908 + $0x7b8] sm:$0xff] %v2403
                  %v2405 = vld [vmem:[%s1907 + $0xf80] sm:$0xff]
                  %2406 = vst [vmem:[%s1908 + $0x7c0] sm:$0xff] %v2405
                  %v2407 = vld [vmem:[%s1907 + $0xf90] sm:$0xff]
                  %2408 = vst [vmem:[%s1908 + $0x7c8] sm:$0xff] %v2407
                  %v2409 = vld [vmem:[%s1907 + $0xfa0] sm:$0xff]
                  %2410 = vst [vmem:[%s1908 + $0x7d0] sm:$0xff] %v2409
                  %v2411 = vld [vmem:[%s1907 + $0xfb0] sm:$0xff]
                  %2412 = vst [vmem:[%s1908 + $0x7d8] sm:$0xff] %v2411
                  %v2413 = vld [vmem:[%s1907 + $0xfc0] sm:$0xff]
                  %2414 = vst [vmem:[%s1908 + $0x7e0] sm:$0xff] %v2413
                  %v2415 = vld [vmem:[%s1907 + $0xfd0] sm:$0xff]
                  %2416 = vst [vmem:[%s1908 + $0x7e8] sm:$0xff] %v2415
                  %v2417 = vld [vmem:[%s1907 + $0xfe0] sm:$0xff]
                  %2418 = vst [vmem:[%s1908 + $0x7f0] sm:$0xff] %v2417
                  %v2419 = vld [vmem:[%s1907 + $0xff0] sm:$0xff]
                  %2420 = vst [vmem:[%s1908 + $0x7f8] sm:$0xff] %v2419
                $region106: #{_attention_mlp_forward.1} parent=100 // loop_footer
                  %s1906 = sadd.s32 1, %s1902
                $region107: #{_attention_mlp_forward.1} parent=100 // loop_footer_branch
                  %1901 = sbr.rel target = $region103
                $region108: #{_attention_mlp_forward.1} parent=100 // loop_exit
                  _
              $region101: #{_attention_mlp_forward.1} parent=85 // pred_fallthru
                _
              // Predicated region
              $region109: #{_attention_mlp_forward.1} parent=85 // pred_check
                _
              $region110: #{_attention_mlp_forward.1} parent=85 // pred_check_branch
                %2422 = sbr.rel target = $region112
              $region111: #{_attention_mlp_forward.1} parent=85 // pred_region
                _
              $region112: #{_attention_mlp_forward.1} parent=85 // pred_fallthru
                _
            $region86: #{_attention_mlp_forward.1} parent=81 // pred_fallthru
              _
            // Predicated region
            $region87: #{_attention_mlp_forward.1} parent=81 // pred_check
              _
            $region88: #{_attention_mlp_forward.1} parent=81 // pred_check_branch
              %1376 = sbr.rel target = $region90
            $region89: #{_attention_mlp_forward.1} parent=81 // pred_region
              %s1378 = ssub.s32 256, 1
              loop: start=0, step=1, limit=1
              $region91: #{_attention_mlp_forward.1} parent=89 // loop_pre_header
                _
              $region92: #{_attention_mlp_forward.1} parent=89 // loop_header
                %s1380 = sphi 0, %s1384
                %p1381 = scmp.ge.s32.totalorder %s1380, 1
                %s1385 = sphi %s1370, %s1370
                %s1386 = sphi %s1368, %s1368
              $region93: #{_attention_mlp_forward.1} parent=89 // loop_header_branch
                %1383 = sbr.rel (%p1381) target = $region97
              $region94: #{_attention_mlp_forward.1} parent=89 // loop_body
                %v1387 = vld [vmem:[%s1385] sm:%s1378]
                %1388 = vst [vmem:[%s1386] sm:%s1378] %v1387
                %v1389 = vld [vmem:[%s1385 + $0x10] sm:%s1378]
                %1390 = vst [vmem:[%s1386 + $0x8] sm:%s1378] %v1389
                %v1391 = vld [vmem:[%s1385 + $0x20] sm:%s1378]
                %1392 = vst [vmem:[%s1386 + $0x10] sm:%s1378] %v1391
                %v1393 = vld [vmem:[%s1385 + $0x30] sm:%s1378]
                %1394 = vst [vmem:[%s1386 + $0x18] sm:%s1378] %v1393
                %v1395 = vld [vmem:[%s1385 + $0x40] sm:%s1378]
                %1396 = vst [vmem:[%s1386 + $0x20] sm:%s1378] %v1395
                %v1397 = vld [vmem:[%s1385 + $0x50] sm:%s1378]
                %1398 = vst [vmem:[%s1386 + $0x28] sm:%s1378] %v1397
                %v1399 = vld [vmem:[%s1385 + $0x60] sm:%s1378]
                %1400 = vst [vmem:[%s1386 + $0x30] sm:%s1378] %v1399
                %v1401 = vld [vmem:[%s1385 + $0x70] sm:%s1378]
                %1402 = vst [vmem:[%s1386 + $0x38] sm:%s1378] %v1401
                %v1403 = vld [vmem:[%s1385 + $0x80] sm:%s1378]
                %1404 = vst [vmem:[%s1386 + $0x40] sm:%s1378] %v1403
                %v1405 = vld [vmem:[%s1385 + $0x90] sm:%s1378]
                %1406 = vst [vmem:[%s1386 + $0x48] sm:%s1378] %v1405
                %v1407 = vld [vmem:[%s1385 + $0xa0] sm:%s1378]
                %1408 = vst [vmem:[%s1386 + $0x50] sm:%s1378] %v1407
                %v1409 = vld [vmem:[%s1385 + $0xb0] sm:%s1378]
                %1410 = vst [vmem:[%s1386 + $0x58] sm:%s1378] %v1409
                %v1411 = vld [vmem:[%s1385 + $0xc0] sm:%s1378]
                %1412 = vst [vmem:[%s1386 + $0x60] sm:%s1378] %v1411
                %v1413 = vld [vmem:[%s1385 + $0xd0] sm:%s1378]
                %1414 = vst [vmem:[%s1386 + $0x68] sm:%s1378] %v1413
                %v1415 = vld [vmem:[%s1385 + $0xe0] sm:%s1378]
                %1416 = vst [vmem:[%s1386 + $0x70] sm:%s1378] %v1415
                %v1417 = vld [vmem:[%s1385 + $0xf0] sm:%s1378]
                %1418 = vst [vmem:[%s1386 + $0x78] sm:%s1378] %v1417
                %v1419 = vld [vmem:[%s1385 + $0x100] sm:%s1378]
                %1420 = vst [vmem:[%s1386 + $0x80] sm:%s1378] %v1419
                %v1421 = vld [vmem:[%s1385 + $0x110] sm:%s1378]
                %1422 = vst [vmem:[%s1386 + $0x88] sm:%s1378] %v1421
                %v1423 = vld [vmem:[%s1385 + $0x120] sm:%s1378]
                %1424 = vst [vmem:[%s1386 + $0x90] sm:%s1378] %v1423
                %v1425 = vld [vmem:[%s1385 + $0x130] sm:%s1378]
                %1426 = vst [vmem:[%s1386 + $0x98] sm:%s1378] %v1425
                %v1427 = vld [vmem:[%s1385 + $0x140] sm:%s1378]
                %1428 = vst [vmem:[%s1386 + $0xa0] sm:%s1378] %v1427
                %v1429 = vld [vmem:[%s1385 + $0x150] sm:%s1378]
                %1430 = vst [vmem:[%s1386 + $0xa8] sm:%s1378] %v1429
                %v1431 = vld [vmem:[%s1385 + $0x160] sm:%s1378]
                %1432 = vst [vmem:[%s1386 + $0xb0] sm:%s1378] %v1431
                %v1433 = vld [vmem:[%s1385 + $0x170] sm:%s1378]
                %1434 = vst [vmem:[%s1386 + $0xb8] sm:%s1378] %v1433
                %v1435 = vld [vmem:[%s1385 + $0x180] sm:%s1378]
                %1436 = vst [vmem:[%s1386 + $0xc0] sm:%s1378] %v1435
                %v1437 = vld [vmem:[%s1385 + $0x190] sm:%s1378]
                %1438 = vst [vmem:[%s1386 + $0xc8] sm:%s1378] %v1437
                %v1439 = vld [vmem:[%s1385 + $0x1a0] sm:%s1378]
                %1440 = vst [vmem:[%s1386 + $0xd0] sm:%s1378] %v1439
                %v1441 = vld [vmem:[%s1385 + $0x1b0] sm:%s1378]
                %1442 = vst [vmem:[%s1386 + $0xd8] sm:%s1378] %v1441
                %v1443 = vld [vmem:[%s1385 + $0x1c0] sm:%s1378]
                %1444 = vst [vmem:[%s1386 + $0xe0] sm:%s1378] %v1443
                %v1445 = vld [vmem:[%s1385 + $0x1d0] sm:%s1378]
                %1446 = vst [vmem:[%s1386 + $0xe8] sm:%s1378] %v1445
                %v1447 = vld [vmem:[%s1385 + $0x1e0] sm:%s1378]
                %1448 = vst [vmem:[%s1386 + $0xf0] sm:%s1378] %v1447
                %v1449 = vld [vmem:[%s1385 + $0x1f0] sm:%s1378]
                %1450 = vst [vmem:[%s1386 + $0xf8] sm:%s1378] %v1449
                %v1451 = vld [vmem:[%s1385 + $0x200] sm:%s1378]
                %1452 = vst [vmem:[%s1386 + $0x100] sm:%s1378] %v1451
                %v1453 = vld [vmem:[%s1385 + $0x210] sm:%s1378]
                %1454 = vst [vmem:[%s1386 + $0x108] sm:%s1378] %v1453
                %v1455 = vld [vmem:[%s1385 + $0x220] sm:%s1378]
                %1456 = vst [vmem:[%s1386 + $0x110] sm:%s1378] %v1455
                %v1457 = vld [vmem:[%s1385 + $0x230] sm:%s1378]
                %1458 = vst [vmem:[%s1386 + $0x118] sm:%s1378] %v1457
                %v1459 = vld [vmem:[%s1385 + $0x240] sm:%s1378]
                %1460 = vst [vmem:[%s1386 + $0x120] sm:%s1378] %v1459
                %v1461 = vld [vmem:[%s1385 + $0x250] sm:%s1378]
                %1462 = vst [vmem:[%s1386 + $0x128] sm:%s1378] %v1461
                %v1463 = vld [vmem:[%s1385 + $0x260] sm:%s1378]
                %1464 = vst [vmem:[%s1386 + $0x130] sm:%s1378] %v1463
                %v1465 = vld [vmem:[%s1385 + $0x270] sm:%s1378]
                %1466 = vst [vmem:[%s1386 + $0x138] sm:%s1378] %v1465
                %v1467 = vld [vmem:[%s1385 + $0x280] sm:%s1378]
                %1468 = vst [vmem:[%s1386 + $0x140] sm:%s1378] %v1467
                %v1469 = vld [vmem:[%s1385 + $0x290] sm:%s1378]
                %1470 = vst [vmem:[%s1386 + $0x148] sm:%s1378] %v1469
                %v1471 = vld [vmem:[%s1385 + $0x2a0] sm:%s1378]
                %1472 = vst [vmem:[%s1386 + $0x150] sm:%s1378] %v1471
                %v1473 = vld [vmem:[%s1385 + $0x2b0] sm:%s1378]
                %1474 = vst [vmem:[%s1386 + $0x158] sm:%s1378] %v1473
                %v1475 = vld [vmem:[%s1385 + $0x2c0] sm:%s1378]
                %1476 = vst [vmem:[%s1386 + $0x160] sm:%s1378] %v1475
                %v1477 = vld [vmem:[%s1385 + $0x2d0] sm:%s1378]
                %1478 = vst [vmem:[%s1386 + $0x168] sm:%s1378] %v1477
                %v1479 = vld [vmem:[%s1385 + $0x2e0] sm:%s1378]
                %1480 = vst [vmem:[%s1386 + $0x170] sm:%s1378] %v1479
                %v1481 = vld [vmem:[%s1385 + $0x2f0] sm:%s1378]
                %1482 = vst [vmem:[%s1386 + $0x178] sm:%s1378] %v1481
                %v1483 = vld [vmem:[%s1385 + $0x300] sm:%s1378]
                %1484 = vst [vmem:[%s1386 + $0x180] sm:%s1378] %v1483
                %v1485 = vld [vmem:[%s1385 + $0x310] sm:%s1378]
                %1486 = vst [vmem:[%s1386 + $0x188] sm:%s1378] %v1485
                %v1487 = vld [vmem:[%s1385 + $0x320] sm:%s1378]
                %1488 = vst [vmem:[%s1386 + $0x190] sm:%s1378] %v1487
                %v1489 = vld [vmem:[%s1385 + $0x330] sm:%s1378]
                %1490 = vst [vmem:[%s1386 + $0x198] sm:%s1378] %v1489
                %v1491 = vld [vmem:[%s1385 + $0x340] sm:%s1378]
                %1492 = vst [vmem:[%s1386 + $0x1a0] sm:%s1378] %v1491
                %v1493 = vld [vmem:[%s1385 + $0x350] sm:%s1378]
                %1494 = vst [vmem:[%s1386 + $0x1a8] sm:%s1378] %v1493
                %v1495 = vld [vmem:[%s1385 + $0x360] sm:%s1378]
                %1496 = vst [vmem:[%s1386 + $0x1b0] sm:%s1378] %v1495
                %v1497 = vld [vmem:[%s1385 + $0x370] sm:%s1378]
                %1498 = vst [vmem:[%s1386 + $0x1b8] sm:%s1378] %v1497
                %v1499 = vld [vmem:[%s1385 + $0x380] sm:%s1378]
                %1500 = vst [vmem:[%s1386 + $0x1c0] sm:%s1378] %v1499
                %v1501 = vld [vmem:[%s1385 + $0x390] sm:%s1378]
                %1502 = vst [vmem:[%s1386 + $0x1c8] sm:%s1378] %v1501
                %v1503 = vld [vmem:[%s1385 + $0x3a0] sm:%s1378]
                %1504 = vst [vmem:[%s1386 + $0x1d0] sm:%s1378] %v1503
                %v1505 = vld [vmem:[%s1385 + $0x3b0] sm:%s1378]
                %1506 = vst [vmem:[%s1386 + $0x1d8] sm:%s1378] %v1505
                %v1507 = vld [vmem:[%s1385 + $0x3c0] sm:%s1378]
                %1508 = vst [vmem:[%s1386 + $0x1e0] sm:%s1378] %v1507
                %v1509 = vld [vmem:[%s1385 + $0x3d0] sm:%s1378]
                %1510 = vst [vmem:[%s1386 + $0x1e8] sm:%s1378] %v1509
                %v1511 = vld [vmem:[%s1385 + $0x3e0] sm:%s1378]
                %1512 = vst [vmem:[%s1386 + $0x1f0] sm:%s1378] %v1511
                %v1513 = vld [vmem:[%s1385 + $0x3f0] sm:%s1378]
                %1514 = vst [vmem:[%s1386 + $0x1f8] sm:%s1378] %v1513
                %v1515 = vld [vmem:[%s1385 + $0x400] sm:%s1378]
                %1516 = vst [vmem:[%s1386 + $0x200] sm:%s1378] %v1515
                %v1517 = vld [vmem:[%s1385 + $0x410] sm:%s1378]
                %1518 = vst [vmem:[%s1386 + $0x208] sm:%s1378] %v1517
                %v1519 = vld [vmem:[%s1385 + $0x420] sm:%s1378]
                %1520 = vst [vmem:[%s1386 + $0x210] sm:%s1378] %v1519
                %v1521 = vld [vmem:[%s1385 + $0x430] sm:%s1378]
                %1522 = vst [vmem:[%s1386 + $0x218] sm:%s1378] %v1521
                %v1523 = vld [vmem:[%s1385 + $0x440] sm:%s1378]
                %1524 = vst [vmem:[%s1386 + $0x220] sm:%s1378] %v1523
                %v1525 = vld [vmem:[%s1385 + $0x450] sm:%s1378]
                %1526 = vst [vmem:[%s1386 + $0x228] sm:%s1378] %v1525
                %v1527 = vld [vmem:[%s1385 + $0x460] sm:%s1378]
                %1528 = vst [vmem:[%s1386 + $0x230] sm:%s1378] %v1527
                %v1529 = vld [vmem:[%s1385 + $0x470] sm:%s1378]
                %1530 = vst [vmem:[%s1386 + $0x238] sm:%s1378] %v1529
                %v1531 = vld [vmem:[%s1385 + $0x480] sm:%s1378]
                %1532 = vst [vmem:[%s1386 + $0x240] sm:%s1378] %v1531
                %v1533 = vld [vmem:[%s1385 + $0x490] sm:%s1378]
                %1534 = vst [vmem:[%s1386 + $0x248] sm:%s1378] %v1533
                %v1535 = vld [vmem:[%s1385 + $0x4a0] sm:%s1378]
                %1536 = vst [vmem:[%s1386 + $0x250] sm:%s1378] %v1535
                %v1537 = vld [vmem:[%s1385 + $0x4b0] sm:%s1378]
                %1538 = vst [vmem:[%s1386 + $0x258] sm:%s1378] %v1537
                %v1539 = vld [vmem:[%s1385 + $0x4c0] sm:%s1378]
                %1540 = vst [vmem:[%s1386 + $0x260] sm:%s1378] %v1539
                %v1541 = vld [vmem:[%s1385 + $0x4d0] sm:%s1378]
                %1542 = vst [vmem:[%s1386 + $0x268] sm:%s1378] %v1541
                %v1543 = vld [vmem:[%s1385 + $0x4e0] sm:%s1378]
                %1544 = vst [vmem:[%s1386 + $0x270] sm:%s1378] %v1543
                %v1545 = vld [vmem:[%s1385 + $0x4f0] sm:%s1378]
                %1546 = vst [vmem:[%s1386 + $0x278] sm:%s1378] %v1545
                %v1547 = vld [vmem:[%s1385 + $0x500] sm:%s1378]
                %1548 = vst [vmem:[%s1386 + $0x280] sm:%s1378] %v1547
                %v1549 = vld [vmem:[%s1385 + $0x510] sm:%s1378]
                %1550 = vst [vmem:[%s1386 + $0x288] sm:%s1378] %v1549
                %v1551 = vld [vmem:[%s1385 + $0x520] sm:%s1378]
                %1552 = vst [vmem:[%s1386 + $0x290] sm:%s1378] %v1551
                %v1553 = vld [vmem:[%s1385 + $0x530] sm:%s1378]
                %1554 = vst [vmem:[%s1386 + $0x298] sm:%s1378] %v1553
                %v1555 = vld [vmem:[%s1385 + $0x540] sm:%s1378]
                %1556 = vst [vmem:[%s1386 + $0x2a0] sm:%s1378] %v1555
                %v1557 = vld [vmem:[%s1385 + $0x550] sm:%s1378]
                %1558 = vst [vmem:[%s1386 + $0x2a8] sm:%s1378] %v1557
                %v1559 = vld [vmem:[%s1385 + $0x560] sm:%s1378]
                %1560 = vst [vmem:[%s1386 + $0x2b0] sm:%s1378] %v1559
                %v1561 = vld [vmem:[%s1385 + $0x570] sm:%s1378]
                %1562 = vst [vmem:[%s1386 + $0x2b8] sm:%s1378] %v1561
                %v1563 = vld [vmem:[%s1385 + $0x580] sm:%s1378]
                %1564 = vst [vmem:[%s1386 + $0x2c0] sm:%s1378] %v1563
                %v1565 = vld [vmem:[%s1385 + $0x590] sm:%s1378]
                %1566 = vst [vmem:[%s1386 + $0x2c8] sm:%s1378] %v1565
                %v1567 = vld [vmem:[%s1385 + $0x5a0] sm:%s1378]
                %1568 = vst [vmem:[%s1386 + $0x2d0] sm:%s1378] %v1567
                %v1569 = vld [vmem:[%s1385 + $0x5b0] sm:%s1378]
                %1570 = vst [vmem:[%s1386 + $0x2d8] sm:%s1378] %v1569
                %v1571 = vld [vmem:[%s1385 + $0x5c0] sm:%s1378]
                %1572 = vst [vmem:[%s1386 + $0x2e0] sm:%s1378] %v1571
                %v1573 = vld [vmem:[%s1385 + $0x5d0] sm:%s1378]
                %1574 = vst [vmem:[%s1386 + $0x2e8] sm:%s1378] %v1573
                %v1575 = vld [vmem:[%s1385 + $0x5e0] sm:%s1378]
                %1576 = vst [vmem:[%s1386 + $0x2f0] sm:%s1378] %v1575
                %v1577 = vld [vmem:[%s1385 + $0x5f0] sm:%s1378]
                %1578 = vst [vmem:[%s1386 + $0x2f8] sm:%s1378] %v1577
                %v1579 = vld [vmem:[%s1385 + $0x600] sm:%s1378]
                %1580 = vst [vmem:[%s1386 + $0x300] sm:%s1378] %v1579
                %v1581 = vld [vmem:[%s1385 + $0x610] sm:%s1378]
                %1582 = vst [vmem:[%s1386 + $0x308] sm:%s1378] %v1581
                %v1583 = vld [vmem:[%s1385 + $0x620] sm:%s1378]
                %1584 = vst [vmem:[%s1386 + $0x310] sm:%s1378] %v1583
                %v1585 = vld [vmem:[%s1385 + $0x630] sm:%s1378]
                %1586 = vst [vmem:[%s1386 + $0x318] sm:%s1378] %v1585
                %v1587 = vld [vmem:[%s1385 + $0x640] sm:%s1378]
                %1588 = vst [vmem:[%s1386 + $0x320] sm:%s1378] %v1587
                %v1589 = vld [vmem:[%s1385 + $0x650] sm:%s1378]
                %1590 = vst [vmem:[%s1386 + $0x328] sm:%s1378] %v1589
                %v1591 = vld [vmem:[%s1385 + $0x660] sm:%s1378]
                %1592 = vst [vmem:[%s1386 + $0x330] sm:%s1378] %v1591
                %v1593 = vld [vmem:[%s1385 + $0x670] sm:%s1378]
                %1594 = vst [vmem:[%s1386 + $0x338] sm:%s1378] %v1593
                %v1595 = vld [vmem:[%s1385 + $0x680] sm:%s1378]
                %1596 = vst [vmem:[%s1386 + $0x340] sm:%s1378] %v1595
                %v1597 = vld [vmem:[%s1385 + $0x690] sm:%s1378]
                %1598 = vst [vmem:[%s1386 + $0x348] sm:%s1378] %v1597
                %v1599 = vld [vmem:[%s1385 + $0x6a0] sm:%s1378]
                %1600 = vst [vmem:[%s1386 + $0x350] sm:%s1378] %v1599
                %v1601 = vld [vmem:[%s1385 + $0x6b0] sm:%s1378]
                %1602 = vst [vmem:[%s1386 + $0x358] sm:%s1378] %v1601
                %v1603 = vld [vmem:[%s1385 + $0x6c0] sm:%s1378]
                %1604 = vst [vmem:[%s1386 + $0x360] sm:%s1378] %v1603
                %v1605 = vld [vmem:[%s1385 + $0x6d0] sm:%s1378]
                %1606 = vst [vmem:[%s1386 + $0x368] sm:%s1378] %v1605
                %v1607 = vld [vmem:[%s1385 + $0x6e0] sm:%s1378]
                %1608 = vst [vmem:[%s1386 + $0x370] sm:%s1378] %v1607
                %v1609 = vld [vmem:[%s1385 + $0x6f0] sm:%s1378]
                %1610 = vst [vmem:[%s1386 + $0x378] sm:%s1378] %v1609
                %v1611 = vld [vmem:[%s1385 + $0x700] sm:%s1378]
                %1612 = vst [vmem:[%s1386 + $0x380] sm:%s1378] %v1611
                %v1613 = vld [vmem:[%s1385 + $0x710] sm:%s1378]
                %1614 = vst [vmem:[%s1386 + $0x388] sm:%s1378] %v1613
                %v1615 = vld [vmem:[%s1385 + $0x720] sm:%s1378]
                %1616 = vst [vmem:[%s1386 + $0x390] sm:%s1378] %v1615
                %v1617 = vld [vmem:[%s1385 + $0x730] sm:%s1378]
                %1618 = vst [vmem:[%s1386 + $0x398] sm:%s1378] %v1617
                %v1619 = vld [vmem:[%s1385 + $0x740] sm:%s1378]
                %1620 = vst [vmem:[%s1386 + $0x3a0] sm:%s1378] %v1619
                %v1621 = vld [vmem:[%s1385 + $0x750] sm:%s1378]
                %1622 = vst [vmem:[%s1386 + $0x3a8] sm:%s1378] %v1621
                %v1623 = vld [vmem:[%s1385 + $0x760] sm:%s1378]
                %1624 = vst [vmem:[%s1386 + $0x3b0] sm:%s1378] %v1623
                %v1625 = vld [vmem:[%s1385 + $0x770] sm:%s1378]
                %1626 = vst [vmem:[%s1386 + $0x3b8] sm:%s1378] %v1625
                %v1627 = vld [vmem:[%s1385 + $0x780] sm:%s1378]
                %1628 = vst [vmem:[%s1386 + $0x3c0] sm:%s1378] %v1627
                %v1629 = vld [vmem:[%s1385 + $0x790] sm:%s1378]
                %1630 = vst [vmem:[%s1386 + $0x3c8] sm:%s1378] %v1629
                %v1631 = vld [vmem:[%s1385 + $0x7a0] sm:%s1378]
                %1632 = vst [vmem:[%s1386 + $0x3d0] sm:%s1378] %v1631
                %v1633 = vld [vmem:[%s1385 + $0x7b0] sm:%s1378]
                %1634 = vst [vmem:[%s1386 + $0x3d8] sm:%s1378] %v1633
                %v1635 = vld [vmem:[%s1385 + $0x7c0] sm:%s1378]
                %1636 = vst [vmem:[%s1386 + $0x3e0] sm:%s1378] %v1635
                %v1637 = vld [vmem:[%s1385 + $0x7d0] sm:%s1378]
                %1638 = vst [vmem:[%s1386 + $0x3e8] sm:%s1378] %v1637
                %v1639 = vld [vmem:[%s1385 + $0x7e0] sm:%s1378]
                %1640 = vst [vmem:[%s1386 + $0x3f0] sm:%s1378] %v1639
                %v1641 = vld [vmem:[%s1385 + $0x7f0] sm:%s1378]
                %1642 = vst [vmem:[%s1386 + $0x3f8] sm:%s1378] %v1641
                %v1643 = vld [vmem:[%s1385 + $0x800] sm:%s1378]
                %1644 = vst [vmem:[%s1386 + $0x400] sm:%s1378] %v1643
                %v1645 = vld [vmem:[%s1385 + $0x810] sm:%s1378]
                %1646 = vst [vmem:[%s1386 + $0x408] sm:%s1378] %v1645
                %v1647 = vld [vmem:[%s1385 + $0x820] sm:%s1378]
                %1648 = vst [vmem:[%s1386 + $0x410] sm:%s1378] %v1647
                %v1649 = vld [vmem:[%s1385 + $0x830] sm:%s1378]
                %1650 = vst [vmem:[%s1386 + $0x418] sm:%s1378] %v1649
                %v1651 = vld [vmem:[%s1385 + $0x840] sm:%s1378]
                %1652 = vst [vmem:[%s1386 + $0x420] sm:%s1378] %v1651
                %v1653 = vld [vmem:[%s1385 + $0x850] sm:%s1378]
                %1654 = vst [vmem:[%s1386 + $0x428] sm:%s1378] %v1653
                %v1655 = vld [vmem:[%s1385 + $0x860] sm:%s1378]
                %1656 = vst [vmem:[%s1386 + $0x430] sm:%s1378] %v1655
                %v1657 = vld [vmem:[%s1385 + $0x870] sm:%s1378]
                %1658 = vst [vmem:[%s1386 + $0x438] sm:%s1378] %v1657
                %v1659 = vld [vmem:[%s1385 + $0x880] sm:%s1378]
                %1660 = vst [vmem:[%s1386 + $0x440] sm:%s1378] %v1659
                %v1661 = vld [vmem:[%s1385 + $0x890] sm:%s1378]
                %1662 = vst [vmem:[%s1386 + $0x448] sm:%s1378] %v1661
                %v1663 = vld [vmem:[%s1385 + $0x8a0] sm:%s1378]
                %1664 = vst [vmem:[%s1386 + $0x450] sm:%s1378] %v1663
                %v1665 = vld [vmem:[%s1385 + $0x8b0] sm:%s1378]
                %1666 = vst [vmem:[%s1386 + $0x458] sm:%s1378] %v1665
                %v1667 = vld [vmem:[%s1385 + $0x8c0] sm:%s1378]
                %1668 = vst [vmem:[%s1386 + $0x460] sm:%s1378] %v1667
                %v1669 = vld [vmem:[%s1385 + $0x8d0] sm:%s1378]
                %1670 = vst [vmem:[%s1386 + $0x468] sm:%s1378] %v1669
                %v1671 = vld [vmem:[%s1385 + $0x8e0] sm:%s1378]
                %1672 = vst [vmem:[%s1386 + $0x470] sm:%s1378] %v1671
                %v1673 = vld [vmem:[%s1385 + $0x8f0] sm:%s1378]
                %1674 = vst [vmem:[%s1386 + $0x478] sm:%s1378] %v1673
                %v1675 = vld [vmem:[%s1385 + $0x900] sm:%s1378]
                %1676 = vst [vmem:[%s1386 + $0x480] sm:%s1378] %v1675
                %v1677 = vld [vmem:[%s1385 + $0x910] sm:%s1378]
                %1678 = vst [vmem:[%s1386 + $0x488] sm:%s1378] %v1677
                %v1679 = vld [vmem:[%s1385 + $0x920] sm:%s1378]
                %1680 = vst [vmem:[%s1386 + $0x490] sm:%s1378] %v1679
                %v1681 = vld [vmem:[%s1385 + $0x930] sm:%s1378]
                %1682 = vst [vmem:[%s1386 + $0x498] sm:%s1378] %v1681
                %v1683 = vld [vmem:[%s1385 + $0x940] sm:%s1378]
                %1684 = vst [vmem:[%s1386 + $0x4a0] sm:%s1378] %v1683
                %v1685 = vld [vmem:[%s1385 + $0x950] sm:%s1378]
                %1686 = vst [vmem:[%s1386 + $0x4a8] sm:%s1378] %v1685
                %v1687 = vld [vmem:[%s1385 + $0x960] sm:%s1378]
                %1688 = vst [vmem:[%s1386 + $0x4b0] sm:%s1378] %v1687
                %v1689 = vld [vmem:[%s1385 + $0x970] sm:%s1378]
                %1690 = vst [vmem:[%s1386 + $0x4b8] sm:%s1378] %v1689
                %v1691 = vld [vmem:[%s1385 + $0x980] sm:%s1378]
                %1692 = vst [vmem:[%s1386 + $0x4c0] sm:%s1378] %v1691
                %v1693 = vld [vmem:[%s1385 + $0x990] sm:%s1378]
                %1694 = vst [vmem:[%s1386 + $0x4c8] sm:%s1378] %v1693
                %v1695 = vld [vmem:[%s1385 + $0x9a0] sm:%s1378]
                %1696 = vst [vmem:[%s1386 + $0x4d0] sm:%s1378] %v1695
                %v1697 = vld [vmem:[%s1385 + $0x9b0] sm:%s1378]
                %1698 = vst [vmem:[%s1386 + $0x4d8] sm:%s1378] %v1697
                %v1699 = vld [vmem:[%s1385 + $0x9c0] sm:%s1378]
                %1700 = vst [vmem:[%s1386 + $0x4e0] sm:%s1378] %v1699
                %v1701 = vld [vmem:[%s1385 + $0x9d0] sm:%s1378]
                %1702 = vst [vmem:[%s1386 + $0x4e8] sm:%s1378] %v1701
                %v1703 = vld [vmem:[%s1385 + $0x9e0] sm:%s1378]
                %1704 = vst [vmem:[%s1386 + $0x4f0] sm:%s1378] %v1703
                %v1705 = vld [vmem:[%s1385 + $0x9f0] sm:%s1378]
                %1706 = vst [vmem:[%s1386 + $0x4f8] sm:%s1378] %v1705
                %v1707 = vld [vmem:[%s1385 + $0xa00] sm:%s1378]
                %1708 = vst [vmem:[%s1386 + $0x500] sm:%s1378] %v1707
                %v1709 = vld [vmem:[%s1385 + $0xa10] sm:%s1378]
                %1710 = vst [vmem:[%s1386 + $0x508] sm:%s1378] %v1709
                %v1711 = vld [vmem:[%s1385 + $0xa20] sm:%s1378]
                %1712 = vst [vmem:[%s1386 + $0x510] sm:%s1378] %v1711
                %v1713 = vld [vmem:[%s1385 + $0xa30] sm:%s1378]
                %1714 = vst [vmem:[%s1386 + $0x518] sm:%s1378] %v1713
                %v1715 = vld [vmem:[%s1385 + $0xa40] sm:%s1378]
                %1716 = vst [vmem:[%s1386 + $0x520] sm:%s1378] %v1715
                %v1717 = vld [vmem:[%s1385 + $0xa50] sm:%s1378]
                %1718 = vst [vmem:[%s1386 + $0x528] sm:%s1378] %v1717
                %v1719 = vld [vmem:[%s1385 + $0xa60] sm:%s1378]
                %1720 = vst [vmem:[%s1386 + $0x530] sm:%s1378] %v1719
                %v1721 = vld [vmem:[%s1385 + $0xa70] sm:%s1378]
                %1722 = vst [vmem:[%s1386 + $0x538] sm:%s1378] %v1721
                %v1723 = vld [vmem:[%s1385 + $0xa80] sm:%s1378]
                %1724 = vst [vmem:[%s1386 + $0x540] sm:%s1378] %v1723
                %v1725 = vld [vmem:[%s1385 + $0xa90] sm:%s1378]
                %1726 = vst [vmem:[%s1386 + $0x548] sm:%s1378] %v1725
                %v1727 = vld [vmem:[%s1385 + $0xaa0] sm:%s1378]
                %1728 = vst [vmem:[%s1386 + $0x550] sm:%s1378] %v1727
                %v1729 = vld [vmem:[%s1385 + $0xab0] sm:%s1378]
                %1730 = vst [vmem:[%s1386 + $0x558] sm:%s1378] %v1729
                %v1731 = vld [vmem:[%s1385 + $0xac0] sm:%s1378]
                %1732 = vst [vmem:[%s1386 + $0x560] sm:%s1378] %v1731
                %v1733 = vld [vmem:[%s1385 + $0xad0] sm:%s1378]
                %1734 = vst [vmem:[%s1386 + $0x568] sm:%s1378] %v1733
                %v1735 = vld [vmem:[%s1385 + $0xae0] sm:%s1378]
                %1736 = vst [vmem:[%s1386 + $0x570] sm:%s1378] %v1735
                %v1737 = vld [vmem:[%s1385 + $0xaf0] sm:%s1378]
                %1738 = vst [vmem:[%s1386 + $0x578] sm:%s1378] %v1737
                %v1739 = vld [vmem:[%s1385 + $0xb00] sm:%s1378]
                %1740 = vst [vmem:[%s1386 + $0x580] sm:%s1378] %v1739
                %v1741 = vld [vmem:[%s1385 + $0xb10] sm:%s1378]
                %1742 = vst [vmem:[%s1386 + $0x588] sm:%s1378] %v1741
                %v1743 = vld [vmem:[%s1385 + $0xb20] sm:%s1378]
                %1744 = vst [vmem:[%s1386 + $0x590] sm:%s1378] %v1743
                %v1745 = vld [vmem:[%s1385 + $0xb30] sm:%s1378]
                %1746 = vst [vmem:[%s1386 + $0x598] sm:%s1378] %v1745
                %v1747 = vld [vmem:[%s1385 + $0xb40] sm:%s1378]
                %1748 = vst [vmem:[%s1386 + $0x5a0] sm:%s1378] %v1747
                %v1749 = vld [vmem:[%s1385 + $0xb50] sm:%s1378]
                %1750 = vst [vmem:[%s1386 + $0x5a8] sm:%s1378] %v1749
                %v1751 = vld [vmem:[%s1385 + $0xb60] sm:%s1378]
                %1752 = vst [vmem:[%s1386 + $0x5b0] sm:%s1378] %v1751
                %v1753 = vld [vmem:[%s1385 + $0xb70] sm:%s1378]
                %1754 = vst [vmem:[%s1386 + $0x5b8] sm:%s1378] %v1753
                %v1755 = vld [vmem:[%s1385 + $0xb80] sm:%s1378]
                %1756 = vst [vmem:[%s1386 + $0x5c0] sm:%s1378] %v1755
                %v1757 = vld [vmem:[%s1385 + $0xb90] sm:%s1378]
                %1758 = vst [vmem:[%s1386 + $0x5c8] sm:%s1378] %v1757
                %v1759 = vld [vmem:[%s1385 + $0xba0] sm:%s1378]
                %1760 = vst [vmem:[%s1386 + $0x5d0] sm:%s1378] %v1759
                %v1761 = vld [vmem:[%s1385 + $0xbb0] sm:%s1378]
                %1762 = vst [vmem:[%s1386 + $0x5d8] sm:%s1378] %v1761
                %v1763 = vld [vmem:[%s1385 + $0xbc0] sm:%s1378]
                %1764 = vst [vmem:[%s1386 + $0x5e0] sm:%s1378] %v1763
                %v1765 = vld [vmem:[%s1385 + $0xbd0] sm:%s1378]
                %1766 = vst [vmem:[%s1386 + $0x5e8] sm:%s1378] %v1765
                %v1767 = vld [vmem:[%s1385 + $0xbe0] sm:%s1378]
                %1768 = vst [vmem:[%s1386 + $0x5f0] sm:%s1378] %v1767
                %v1769 = vld [vmem:[%s1385 + $0xbf0] sm:%s1378]
                %1770 = vst [vmem:[%s1386 + $0x5f8] sm:%s1378] %v1769
                %v1771 = vld [vmem:[%s1385 + $0xc00] sm:%s1378]
                %1772 = vst [vmem:[%s1386 + $0x600] sm:%s1378] %v1771
                %v1773 = vld [vmem:[%s1385 + $0xc10] sm:%s1378]
                %1774 = vst [vmem:[%s1386 + $0x608] sm:%s1378] %v1773
                %v1775 = vld [vmem:[%s1385 + $0xc20] sm:%s1378]
                %1776 = vst [vmem:[%s1386 + $0x610] sm:%s1378] %v1775
                %v1777 = vld [vmem:[%s1385 + $0xc30] sm:%s1378]
                %1778 = vst [vmem:[%s1386 + $0x618] sm:%s1378] %v1777
                %v1779 = vld [vmem:[%s1385 + $0xc40] sm:%s1378]
                %1780 = vst [vmem:[%s1386 + $0x620] sm:%s1378] %v1779
                %v1781 = vld [vmem:[%s1385 + $0xc50] sm:%s1378]
                %1782 = vst [vmem:[%s1386 + $0x628] sm:%s1378] %v1781
                %v1783 = vld [vmem:[%s1385 + $0xc60] sm:%s1378]
                %1784 = vst [vmem:[%s1386 + $0x630] sm:%s1378] %v1783
                %v1785 = vld [vmem:[%s1385 + $0xc70] sm:%s1378]
                %1786 = vst [vmem:[%s1386 + $0x638] sm:%s1378] %v1785
                %v1787 = vld [vmem:[%s1385 + $0xc80] sm:%s1378]
                %1788 = vst [vmem:[%s1386 + $0x640] sm:%s1378] %v1787
                %v1789 = vld [vmem:[%s1385 + $0xc90] sm:%s1378]
                %1790 = vst [vmem:[%s1386 + $0x648] sm:%s1378] %v1789
                %v1791 = vld [vmem:[%s1385 + $0xca0] sm:%s1378]
                %1792 = vst [vmem:[%s1386 + $0x650] sm:%s1378] %v1791
                %v1793 = vld [vmem:[%s1385 + $0xcb0] sm:%s1378]
                %1794 = vst [vmem:[%s1386 + $0x658] sm:%s1378] %v1793
                %v1795 = vld [vmem:[%s1385 + $0xcc0] sm:%s1378]
                %1796 = vst [vmem:[%s1386 + $0x660] sm:%s1378] %v1795
                %v1797 = vld [vmem:[%s1385 + $0xcd0] sm:%s1378]
                %1798 = vst [vmem:[%s1386 + $0x668] sm:%s1378] %v1797
                %v1799 = vld [vmem:[%s1385 + $0xce0] sm:%s1378]
                %1800 = vst [vmem:[%s1386 + $0x670] sm:%s1378] %v1799
                %v1801 = vld [vmem:[%s1385 + $0xcf0] sm:%s1378]
                %1802 = vst [vmem:[%s1386 + $0x678] sm:%s1378] %v1801
                %v1803 = vld [vmem:[%s1385 + $0xd00] sm:%s1378]
                %1804 = vst [vmem:[%s1386 + $0x680] sm:%s1378] %v1803
                %v1805 = vld [vmem:[%s1385 + $0xd10] sm:%s1378]
                %1806 = vst [vmem:[%s1386 + $0x688] sm:%s1378] %v1805
                %v1807 = vld [vmem:[%s1385 + $0xd20] sm:%s1378]
                %1808 = vst [vmem:[%s1386 + $0x690] sm:%s1378] %v1807
                %v1809 = vld [vmem:[%s1385 + $0xd30] sm:%s1378]
                %1810 = vst [vmem:[%s1386 + $0x698] sm:%s1378] %v1809
                %v1811 = vld [vmem:[%s1385 + $0xd40] sm:%s1378]
                %1812 = vst [vmem:[%s1386 + $0x6a0] sm:%s1378] %v1811
                %v1813 = vld [vmem:[%s1385 + $0xd50] sm:%s1378]
                %1814 = vst [vmem:[%s1386 + $0x6a8] sm:%s1378] %v1813
                %v1815 = vld [vmem:[%s1385 + $0xd60] sm:%s1378]
                %1816 = vst [vmem:[%s1386 + $0x6b0] sm:%s1378] %v1815
                %v1817 = vld [vmem:[%s1385 + $0xd70] sm:%s1378]
                %1818 = vst [vmem:[%s1386 + $0x6b8] sm:%s1378] %v1817
                %v1819 = vld [vmem:[%s1385 + $0xd80] sm:%s1378]
                %1820 = vst [vmem:[%s1386 + $0x6c0] sm:%s1378] %v1819
                %v1821 = vld [vmem:[%s1385 + $0xd90] sm:%s1378]
                %1822 = vst [vmem:[%s1386 + $0x6c8] sm:%s1378] %v1821
                %v1823 = vld [vmem:[%s1385 + $0xda0] sm:%s1378]
                %1824 = vst [vmem:[%s1386 + $0x6d0] sm:%s1378] %v1823
                %v1825 = vld [vmem:[%s1385 + $0xdb0] sm:%s1378]
                %1826 = vst [vmem:[%s1386 + $0x6d8] sm:%s1378] %v1825
                %v1827 = vld [vmem:[%s1385 + $0xdc0] sm:%s1378]
                %1828 = vst [vmem:[%s1386 + $0x6e0] sm:%s1378] %v1827
                %v1829 = vld [vmem:[%s1385 + $0xdd0] sm:%s1378]
                %1830 = vst [vmem:[%s1386 + $0x6e8] sm:%s1378] %v1829
                %v1831 = vld [vmem:[%s1385 + $0xde0] sm:%s1378]
                %1832 = vst [vmem:[%s1386 + $0x6f0] sm:%s1378] %v1831
                %v1833 = vld [vmem:[%s1385 + $0xdf0] sm:%s1378]
                %1834 = vst [vmem:[%s1386 + $0x6f8] sm:%s1378] %v1833
                %v1835 = vld [vmem:[%s1385 + $0xe00] sm:%s1378]
                %1836 = vst [vmem:[%s1386 + $0x700] sm:%s1378] %v1835
                %v1837 = vld [vmem:[%s1385 + $0xe10] sm:%s1378]
                %1838 = vst [vmem:[%s1386 + $0x708] sm:%s1378] %v1837
                %v1839 = vld [vmem:[%s1385 + $0xe20] sm:%s1378]
                %1840 = vst [vmem:[%s1386 + $0x710] sm:%s1378] %v1839
                %v1841 = vld [vmem:[%s1385 + $0xe30] sm:%s1378]
                %1842 = vst [vmem:[%s1386 + $0x718] sm:%s1378] %v1841
                %v1843 = vld [vmem:[%s1385 + $0xe40] sm:%s1378]
                %1844 = vst [vmem:[%s1386 + $0x720] sm:%s1378] %v1843
                %v1845 = vld [vmem:[%s1385 + $0xe50] sm:%s1378]
                %1846 = vst [vmem:[%s1386 + $0x728] sm:%s1378] %v1845
                %v1847 = vld [vmem:[%s1385 + $0xe60] sm:%s1378]
                %1848 = vst [vmem:[%s1386 + $0x730] sm:%s1378] %v1847
                %v1849 = vld [vmem:[%s1385 + $0xe70] sm:%s1378]
                %1850 = vst [vmem:[%s1386 + $0x738] sm:%s1378] %v1849
                %v1851 = vld [vmem:[%s1385 + $0xe80] sm:%s1378]
                %1852 = vst [vmem:[%s1386 + $0x740] sm:%s1378] %v1851
                %v1853 = vld [vmem:[%s1385 + $0xe90] sm:%s1378]
                %1854 = vst [vmem:[%s1386 + $0x748] sm:%s1378] %v1853
                %v1855 = vld [vmem:[%s1385 + $0xea0] sm:%s1378]
                %1856 = vst [vmem:[%s1386 + $0x750] sm:%s1378] %v1855
                %v1857 = vld [vmem:[%s1385 + $0xeb0] sm:%s1378]
                %1858 = vst [vmem:[%s1386 + $0x758] sm:%s1378] %v1857
                %v1859 = vld [vmem:[%s1385 + $0xec0] sm:%s1378]
                %1860 = vst [vmem:[%s1386 + $0x760] sm:%s1378] %v1859
                %v1861 = vld [vmem:[%s1385 + $0xed0] sm:%s1378]
                %1862 = vst [vmem:[%s1386 + $0x768] sm:%s1378] %v1861
                %v1863 = vld [vmem:[%s1385 + $0xee0] sm:%s1378]
                %1864 = vst [vmem:[%s1386 + $0x770] sm:%s1378] %v1863
                %v1865 = vld [vmem:[%s1385 + $0xef0] sm:%s1378]
                %1866 = vst [vmem:[%s1386 + $0x778] sm:%s1378] %v1865
                %v1867 = vld [vmem:[%s1385 + $0xf00] sm:%s1378]
                %1868 = vst [vmem:[%s1386 + $0x780] sm:%s1378] %v1867
                %v1869 = vld [vmem:[%s1385 + $0xf10] sm:%s1378]
                %1870 = vst [vmem:[%s1386 + $0x788] sm:%s1378] %v1869
                %v1871 = vld [vmem:[%s1385 + $0xf20] sm:%s1378]
                %1872 = vst [vmem:[%s1386 + $0x790] sm:%s1378] %v1871
                %v1873 = vld [vmem:[%s1385 + $0xf30] sm:%s1378]
                %1874 = vst [vmem:[%s1386 + $0x798] sm:%s1378] %v1873
                %v1875 = vld [vmem:[%s1385 + $0xf40] sm:%s1378]
                %1876 = vst [vmem:[%s1386 + $0x7a0] sm:%s1378] %v1875
                %v1877 = vld [vmem:[%s1385 + $0xf50] sm:%s1378]
                %1878 = vst [vmem:[%s1386 + $0x7a8] sm:%s1378] %v1877
                %v1879 = vld [vmem:[%s1385 + $0xf60] sm:%s1378]
                %1880 = vst [vmem:[%s1386 + $0x7b0] sm:%s1378] %v1879
                %v1881 = vld [vmem:[%s1385 + $0xf70] sm:%s1378]
                %1882 = vst [vmem:[%s1386 + $0x7b8] sm:%s1378] %v1881
                %v1883 = vld [vmem:[%s1385 + $0xf80] sm:%s1378]
                %1884 = vst [vmem:[%s1386 + $0x7c0] sm:%s1378] %v1883
                %v1885 = vld [vmem:[%s1385 + $0xf90] sm:%s1378]
                %1886 = vst [vmem:[%s1386 + $0x7c8] sm:%s1378] %v1885
                %v1887 = vld [vmem:[%s1385 + $0xfa0] sm:%s1378]
                %1888 = vst [vmem:[%s1386 + $0x7d0] sm:%s1378] %v1887
                %v1889 = vld [vmem:[%s1385 + $0xfb0] sm:%s1378]
                %1890 = vst [vmem:[%s1386 + $0x7d8] sm:%s1378] %v1889
                %v1891 = vld [vmem:[%s1385 + $0xfc0] sm:%s1378]
                %1892 = vst [vmem:[%s1386 + $0x7e0] sm:%s1378] %v1891
                %v1893 = vld [vmem:[%s1385 + $0xfd0] sm:%s1378]
                %1894 = vst [vmem:[%s1386 + $0x7e8] sm:%s1378] %v1893
                %v1895 = vld [vmem:[%s1385 + $0xfe0] sm:%s1378]
                %1896 = vst [vmem:[%s1386 + $0x7f0] sm:%s1378] %v1895
                %v1897 = vld [vmem:[%s1385 + $0xff0] sm:%s1378]
                %1898 = vst [vmem:[%s1386 + $0x7f8] sm:%s1378] %v1897
              $region95: #{_attention_mlp_forward.1} parent=89 // loop_footer
                %s1384 = sadd.s32 1, %s1380
              $region96: #{_attention_mlp_forward.1} parent=89 // loop_footer_branch
                %1379 = sbr.rel target = $region92
              $region97: #{_attention_mlp_forward.1} parent=89 // loop_exit
                _
            $region90: #{_attention_mlp_forward.1} parent=81 // pred_fallthru
              _
          $region82: #{_attention_mlp_forward.1} parent=77 // pred_fallthru
            _
          %2423 = vnop
        $region78: #{_attention_mlp_forward.1} parent=31 // pred_fallthru
          _
        // Predicated region
        $region113: #{_attention_mlp_forward.1} parent=31 // pred_check
          %p2424 = pneg %p120
        $region114: #{_attention_mlp_forward.1} parent=31 // pred_check_branch
          %2426 = sbr.rel (%p2424) target = $region116
        $region115: #{_attention_mlp_forward.1} parent=31 // pred_region
          %p2427 = scmp.lt.s32.totalorder %s22, 1
          %s2428 = scalar_select %p2427, %s22, 1
          %s2429 = smul.addr %s2428, 2
          %s2430 = smul.addr %s2429, 8
          %s2431 = scalar_lea.vmem %s3, %s2430
        $region116: #{_attention_mlp_forward.1} parent=31 // pred_fallthru
          _
      $region32: #{_attention_mlp_forward.1} parent=5 // pred_fallthru
        _
      %p2432 = scmp.le.s32.totalorder 1, %s22
      %p2433 = scmp.lt.s32.totalorder %s22, 3
      %p2434 = pnand %p2432, %p2433
      %p2435 = pneg %p2434
      // Predicated region
      $region117: #{_attention_mlp_forward.1} parent=5 // pred_check
        _
      $region118: #{_attention_mlp_forward.1} parent=5 // pred_check_branch
        %2437 = sbr.rel (%p2434) target = $region120
      $region119: #{_attention_mlp_forward.1} parent=5 // pred_region
        %s2438 = ssub.s32 %s22, 1
        %s2439 = sand.u32 %s61, 1
        %s2440 = sand.u32 %s61, 1
        %s2441 = smul.addr %s2440, 2048
        %s2442 = scalar_lea.vmem [#allocation2], %s2441
        // Predicated region
        $region121: #{_attention_mlp_forward.1} parent=119 // pred_check
          %p2443 = pneg %p74
        $region122: #{_attention_mlp_forward.1} parent=119 // pred_check_branch
          %2445 = sbr.rel (%p2443) target = $region124
        $region123: #{_attention_mlp_forward.1} parent=119 // pred_region
          _
        $region124: #{_attention_mlp_forward.1} parent=119 // pred_fallthru
          _
        %s2446 = sand.u32 %s87, 1
        %s2447 = sand.u32 %s87, 1
        %s2448 = smul.addr %s2447, 2048
        %s2449 = scalar_lea.vmem [#allocation3], %s2448
        // Predicated region
        $region125: #{_attention_mlp_forward.1} parent=119 // pred_check
          %p2450 = pneg %p100
        $region126: #{_attention_mlp_forward.1} parent=119 // pred_check_branch
          %2452 = sbr.rel (%p2450) target = $region128
        $region127: #{_attention_mlp_forward.1} parent=119 // pred_region
          _
        $region128: #{_attention_mlp_forward.1} parent=119 // pred_fallthru
          _
        %p2453 = scmp.lt.s32.totalorder %s27, 1
        %s2454 = scalar_select %p2453, %s27, 1
        %s2455 = smul.addr %s2454, 8
        %s2456 = scalar_lea.vmem %s0, %s2455
        %p2457 = pneg %p48
        %p2458 = pneg %p45
        %s2459 = sand.u32 %s61, 1
        %s2460 = sand.u32 %s61, 1
        %s2461 = smul.addr %s2460, 2048
        %s2462 = scalar_lea.vmem [#allocation2], %s2461
        %p2463 = pneg %p74
        %p2464 = pneg %p71
        %s2465 = sand.u32 %s87, 1
        %s2466 = sand.u32 %s87, 1
        %s2467 = smul.addr %s2466, 2048
        %s2468 = scalar_lea.vmem [#allocation3], %s2467
        %p2469 = pneg %p100
        %p2470 = pneg %p97
        %p2471 = scmp.lt.s32.totalorder %s27, 1
        %s2472 = scalar_select %p2471, %s27, 1
        %s2473 = smul.addr %s2472, 2
        %s2474 = smul.addr %s2473, 8
        %s2475 = scalar_lea.vmem %s3, %s2474
        %p2476 = pneg %p126
        %p2477 = pneg %p123
        %p2478 = pneg %p147
        %p2479 = pneg %p144
        %p2480 = pneg %p168
        %p2481 = pneg %p165
        %p2482 = pneg %p189
        %p2483 = pneg %p186
        %p2484 = pneg %p210
        %p2485 = pneg %p207
        %p2486 = pneg %p236
        %p2487 = pneg %p233
        %s2488 = sand.u32 %s223, 1
        %s2489 = scalar_lea.sflag [#allocation5], %s2488
        %s2490 = sand.u32 %s223, 1
        %s2491 = smul.addr %s2490, 8
        %s2492 = scalar_lea.vmem [#allocation4], %s2491
        %p2493 = pneg %p262
        %p2494 = pneg %p259
        %s2495 = sand.u32 %s249, 1
        %s2496 = scalar_lea.sflag [#allocation7], %s2495
        %s2497 = sand.u32 %s249, 1
        %s2498 = smul.addr %s2497, 16
        %s2499 = scalar_lea.vmem [#allocation6], %s2498
        %p2500 = scmp.lt.s32.totalorder %s27, 1
        %s2501 = scalar_select %p2500, %s27, 1
        %s2502 = smul.addr %s2501, 8
        %s2503 = scalar_lea.vmem %s0, %s2502
        %p2504 = scmp.lt.s32.totalorder %s27, 1
        %s2505 = scalar_select %p2504, %s27, 1
        %s2506 = smul.addr %s2505, 2
        %s2507 = smul.addr %s2506, 8
        %s2508 = scalar_lea.vmem %s3, %s2507
        %v2509 = vld [vmem:[%s2503] sm:$0xff]
        %v2510 = vld [vmem:[%s4] sm:$0xff]
        %v2511 = vld [vmem:[%s4 + $0x8] sm:$0xff]
        %v2512 = vld [vmem:[%s4 + $0x10] sm:$0xff]
        %v2513 = vld [vmem:[%s4 + $0x18] sm:$0xff]
        %v2514 = vld [vmem:[%s6] sm:$0x1]
        %v2516 = vlaneseq
        %v2517 = vshrl.u32 %v2516, 7
        %v2518 = vsub.s32 0, %v2517
        %v2519 = vrot.slane %v2514, %v2518
        %vm2521 = vcmask 261120
        %v2523 = vsel %vm2521, %v2509, 0
        %2525 = vmatprep.subr.mxu0 0.0
        %2526 = vmatpush1.msra.mxu0 0.0
        %2527 = vmatprep.subr.mxu0 0.0
        %2528 = vmatpush1.msra.mxu0 0.0
        %2529 = vmatprep.subr.mxu0 0.0
        %2530 = vmatpush1.msra.mxu0 0.0
        %2531 = vmatprep.subr.mxu0 0.0
        %2532 = vmatpush1.msra.mxu0 0.0
        %2533 = vmatprep.subr.mxu0 0.0
        %2534 = vmatpush1.msra.mxu0 0.0
        %2535 = vmatprep.subr.mxu0 0.0
        %2536 = vmatpush1.msra.mxu0 0.0
        %2537 = vmatprep.subr.mxu0 0.0
        %2538 = vmatpush1.msra.mxu0 0.0
        %2539 = vmatprep.subr.mxu0 0.0
        %2540 = vmatpush1.msra.mxu0 0.0
        %2541 = vmatprep.subr.mxu0 0.0
        %2542 = vmatpush1.msra.mxu0 0.0
        %2543 = vmatprep.subr.mxu0 0.0
        %2544 = vmatpush1.msra.mxu0 0.0
        %2545 = vmatprep.subr.mxu0 0.0
        %2546 = vmatpush1.msra.mxu0 0.0
        %2547 = vmatprep.subr.mxu0 0.0
        %2548 = vmatpush1.msra.mxu0 0.0
        %2549 = vmatprep.subr.mxu0 0.0
        %2550 = vmatpush1.msra.mxu0 %v2513
        %2551 = vmatprep.subr.mxu0 0.0
        %2552 = vmatpush1.msra.mxu0 %v2512
        %2553 = vmatprep.subr.mxu0 0.0
        %2554 = vmatpush1.msra.mxu0 %v2511
        %2555 = vmatprep.subr.mxu0 0.0
        %2556 = vmatpush1.msra.mxu0 %v2510
        %2557 = vmatprep.subr.mxu0 0.0
        %2558 = vmatpush2.msra.mxu0 0.0
        %2559 = vmatprep.subr.mxu0 0.0
        %2560 = vmatpush2.msra.mxu0 0.0
        %2561 = vmatprep.subr.mxu0 0.0
        %2562 = vmatpush2.msra.mxu0 0.0
        %2563 = vmatprep.subr.mxu0 0.0
        %2564 = vmatpush2.msra.mxu0 0.0
        %2565 = vmatprep.subr.mxu0 0.0
        %2566 = vmatpush2.msra.mxu0 0.0
        %2567 = vmatprep.subr.mxu0 0.0
        %2568 = vmatpush2.msra.mxu0 0.0
        %2569 = vmatprep.subr.mxu0 0.0
        %2570 = vmatpush2.msra.mxu0 0.0
        %2571 = vmatprep.subr.mxu0 0.0
        %2572 = vmatpush2.msra.mxu0 0.0
        %2573 = vmatprep.subr.mxu0 0.0
        %2574 = vmatpush2.msra.mxu0 0.0
        %2575 = vmatprep.subr.mxu0 0.0
        %2576 = vmatpush2.msra.mxu0 0.0
        %2577 = vmatprep.subr.mxu0 0.0
        %2578 = vmatpush2.msra.mxu0 0.0
        %2579 = vmatprep.subr.mxu0 0.0
        %2580 = vmatpush2.msra.mxu0 0.0
        %2581 = vmatprep.subr.mxu0 0.0
        %2582 = vmatpush2.msra.mxu0 0.0
        %2583 = vmatprep.subr.mxu0 0.0
        %2584 = vmatpush2.msra.mxu0 0.0
        %2585 = vmatprep.subr.mxu0 0.0
        %2586 = vmatpush2.msra.mxu0 0.0
        %2587 = vmatprep.subr.mxu0 0.0
        %2588 = vmatpush2.msra.mxu0 0.0
        %2589 = vmatprep.mubr.f32.mxu0 0.0
        %2590 = vmatmul.mubr.f32.gmra.mxu0 %v2523
        %v2591 = vpop.f32.mrf.mxu0
        %v2592 = vadd.f32 %v2519, %v2591
        %v2593 = vpop.f32.mrf.mxu0
        %2594 = vdwg.mxu0
        %v2595 = vld [vmem:[%s2442] sm:$0xff]
        %v2596 = vld [vmem:[%s2442 + $0x8] sm:$0xff]
        %v2597 = vld [vmem:[%s2442 + $0x10] sm:$0xff]
        %v2598 = vld [vmem:[%s2442 + $0x18] sm:$0xff]
        %v2599 = vld [vmem:[%s2442 + $0x20] sm:$0xff]
        %v2600 = vld [vmem:[%s2442 + $0x28] sm:$0xff]
        %v2601 = vld [vmem:[%s2442 + $0x30] sm:$0xff]
        %v2602 = vld [vmem:[%s2442 + $0x38] sm:$0xff]
        %v2603 = vld [vmem:[%s2442 + $0x40] sm:$0xff]
        %v2604 = vld [vmem:[%s2442 + $0x48] sm:$0xff]
        %v2605 = vld [vmem:[%s2442 + $0x50] sm:$0xff]
        %v2606 = vld [vmem:[%s2442 + $0x58] sm:$0xff]
        %v2607 = vld [vmem:[%s2442 + $0x60] sm:$0xff]
        %v2608 = vld [vmem:[%s2442 + $0x68] sm:$0xff]
        %v2609 = vld [vmem:[%s2442 + $0x70] sm:$0xff]
        %v2610 = vld [vmem:[%s2442 + $0x78] sm:$0xff]
        %v2611 = vld [vmem:[%s2442 + $0x80] sm:$0xff]
        %v2612 = vld [vmem:[%s2442 + $0x88] sm:$0xff]
        %v2613 = vld [vmem:[%s2442 + $0x90] sm:$0xff]
        %v2614 = vld [vmem:[%s2442 + $0x98] sm:$0xff]
        %v2615 = vld [vmem:[%s2442 + $0xa0] sm:$0xff]
        %v2616 = vld [vmem:[%s2442 + $0xa8] sm:$0xff]
        %v2617 = vld [vmem:[%s2442 + $0xb0] sm:$0xff]
        %v2618 = vld [vmem:[%s2442 + $0xb8] sm:$0xff]
        %v2619 = vld [vmem:[%s2442 + $0xc0] sm:$0xff]
        %v2620 = vld [vmem:[%s2442 + $0xc8] sm:$0xff]
        %v2621 = vld [vmem:[%s2442 + $0xd0] sm:$0xff]
        %v2622 = vld [vmem:[%s2442 + $0xd8] sm:$0xff]
        %v2623 = vld [vmem:[%s2442 + $0xe0] sm:$0xff]
        %v2624 = vld [vmem:[%s2442 + $0xe8] sm:$0xff]
        %v2625 = vld [vmem:[%s2442 + $0xf0] sm:$0xff]
        %v2626 = vld [vmem:[%s2442 + $0xf8] sm:$0xff]
        %v2627 = vld [vmem:[%s2442 + $0x100] sm:$0xff]
        %v2628 = vld [vmem:[%s2442 + $0x108] sm:$0xff]
        %v2629 = vld [vmem:[%s2442 + $0x110] sm:$0xff]
        %v2630 = vld [vmem:[%s2442 + $0x118] sm:$0xff]
        %v2631 = vld [vmem:[%s2442 + $0x120] sm:$0xff]
        %v2632 = vld [vmem:[%s2442 + $0x128] sm:$0xff]
        %v2633 = vld [vmem:[%s2442 + $0x130] sm:$0xff]
        %v2634 = vld [vmem:[%s2442 + $0x138] sm:$0xff]
        %v2635 = vld [vmem:[%s2442 + $0x140] sm:$0xff]
        %v2636 = vld [vmem:[%s2442 + $0x148] sm:$0xff]
        %v2637 = vld [vmem:[%s2442 + $0x150] sm:$0xff]
        %v2638 = vld [vmem:[%s2442 + $0x158] sm:$0xff]
        %v2639 = vld [vmem:[%s2442 + $0x160] sm:$0xff]
        %v2640 = vld [vmem:[%s2442 + $0x168] sm:$0xff]
        %v2641 = vld [vmem:[%s2442 + $0x170] sm:$0xff]
        %v2642 = vld [vmem:[%s2442 + $0x178] sm:$0xff]
        %v2643 = vld [vmem:[%s2442 + $0x180] sm:$0xff]
        %v2644 = vld [vmem:[%s2442 + $0x188] sm:$0xff]
        %v2645 = vld [vmem:[%s2442 + $0x190] sm:$0xff]
        %v2646 = vld [vmem:[%s2442 + $0x198] sm:$0xff]
        %v2647 = vld [vmem:[%s2442 + $0x1a0] sm:$0xff]
        %v2648 = vld [vmem:[%s2442 + $0x1a8] sm:$0xff]
        %v2649 = vld [vmem:[%s2442 + $0x1b0] sm:$0xff]
        %v2650 = vld [vmem:[%s2442 + $0x1b8] sm:$0xff]
        %v2651 = vld [vmem:[%s2442 + $0x1c0] sm:$0xff]
        %v2652 = vld [vmem:[%s2442 + $0x1c8] sm:$0xff]
        %v2653 = vld [vmem:[%s2442 + $0x1d0] sm:$0xff]
        %v2654 = vld [vmem:[%s2442 + $0x1d8] sm:$0xff]
        %v2655 = vld [vmem:[%s2442 + $0x1e0] sm:$0xff]
        %v2656 = vld [vmem:[%s2442 + $0x1e8] sm:$0xff]
        %v2657 = vld [vmem:[%s2442 + $0x1f0] sm:$0xff]
        %v2658 = vld [vmem:[%s2442 + $0x1f8] sm:$0xff]
        %v2659 = vld [vmem:[%s2442 + $0x200] sm:$0xff]
        %v2660 = vld [vmem:[%s2442 + $0x208] sm:$0xff]
        %v2661 = vld [vmem:[%s2442 + $0x210] sm:$0xff]
        %v2662 = vld [vmem:[%s2442 + $0x218] sm:$0xff]
        %v2663 = vld [vmem:[%s2442 + $0x220] sm:$0xff]
        %v2664 = vld [vmem:[%s2442 + $0x228] sm:$0xff]
        %v2665 = vld [vmem:[%s2442 + $0x230] sm:$0xff]
        %v2666 = vld [vmem:[%s2442 + $0x238] sm:$0xff]
        %v2667 = vld [vmem:[%s2442 + $0x240] sm:$0xff]
        %v2668 = vld [vmem:[%s2442 + $0x248] sm:$0xff]
        %v2669 = vld [vmem:[%s2442 + $0x250] sm:$0xff]
        %v2670 = vld [vmem:[%s2442 + $0x258] sm:$0xff]
        %v2671 = vld [vmem:[%s2442 + $0x260] sm:$0xff]
        %v2672 = vld [vmem:[%s2442 + $0x268] sm:$0xff]
        %v2673 = vld [vmem:[%s2442 + $0x270] sm:$0xff]
        %v2674 = vld [vmem:[%s2442 + $0x278] sm:$0xff]
        %v2675 = vld [vmem:[%s2442 + $0x280] sm:$0xff]
        %v2676 = vld [vmem:[%s2442 + $0x288] sm:$0xff]
        %v2677 = vld [vmem:[%s2442 + $0x290] sm:$0xff]
        %v2678 = vld [vmem:[%s2442 + $0x298] sm:$0xff]
        %v2679 = vld [vmem:[%s2442 + $0x2a0] sm:$0xff]
        %v2680 = vld [vmem:[%s2442 + $0x2a8] sm:$0xff]
        %v2681 = vld [vmem:[%s2442 + $0x2b0] sm:$0xff]
        %v2682 = vld [vmem:[%s2442 + $0x2b8] sm:$0xff]
        %v2683 = vld [vmem:[%s2442 + $0x2c0] sm:$0xff]
        %v2684 = vld [vmem:[%s2442 + $0x2c8] sm:$0xff]
        %v2685 = vld [vmem:[%s2442 + $0x2d0] sm:$0xff]
        %v2686 = vld [vmem:[%s2442 + $0x2d8] sm:$0xff]
        %v2687 = vld [vmem:[%s2442 + $0x2e0] sm:$0xff]
        %v2688 = vld [vmem:[%s2442 + $0x2e8] sm:$0xff]
        %v2689 = vld [vmem:[%s2442 + $0x2f0] sm:$0xff]
        %v2690 = vld [vmem:[%s2442 + $0x2f8] sm:$0xff]
        %v2691 = vld [vmem:[%s2442 + $0x300] sm:$0xff]
        %v2692 = vld [vmem:[%s2442 + $0x308] sm:$0xff]
        %v2693 = vld [vmem:[%s2442 + $0x310] sm:$0xff]
        %v2694 = vld [vmem:[%s2442 + $0x318] sm:$0xff]
        %v2695 = vld [vmem:[%s2442 + $0x320] sm:$0xff]
        %v2696 = vld [vmem:[%s2442 + $0x328] sm:$0xff]
        %v2697 = vld [vmem:[%s2442 + $0x330] sm:$0xff]
        %v2698 = vld [vmem:[%s2442 + $0x338] sm:$0xff]
        %v2699 = vld [vmem:[%s2442 + $0x340] sm:$0xff]
        %v2700 = vld [vmem:[%s2442 + $0x348] sm:$0xff]
        %v2701 = vld [vmem:[%s2442 + $0x350] sm:$0xff]
        %v2702 = vld [vmem:[%s2442 + $0x358] sm:$0xff]
        %v2703 = vld [vmem:[%s2442 + $0x360] sm:$0xff]
        %v2704 = vld [vmem:[%s2442 + $0x368] sm:$0xff]
        %v2705 = vld [vmem:[%s2442 + $0x370] sm:$0xff]
        %v2706 = vld [vmem:[%s2442 + $0x378] sm:$0xff]
        %v2707 = vld [vmem:[%s2442 + $0x380] sm:$0xff]
        %v2708 = vld [vmem:[%s2442 + $0x388] sm:$0xff]
        %v2709 = vld [vmem:[%s2442 + $0x390] sm:$0xff]
        %v2710 = vld [vmem:[%s2442 + $0x398] sm:$0xff]
        %v2711 = vld [vmem:[%s2442 + $0x3a0] sm:$0xff]
        %v2712 = vld [vmem:[%s2442 + $0x3a8] sm:$0xff]
        %v2713 = vld [vmem:[%s2442 + $0x3b0] sm:$0xff]
        %v2714 = vld [vmem:[%s2442 + $0x3b8] sm:$0xff]
        %v2715 = vld [vmem:[%s2442 + $0x3c0] sm:$0xff]
        %v2716 = vld [vmem:[%s2442 + $0x3c8] sm:$0xff]
        %v2717 = vld [vmem:[%s2442 + $0x3d0] sm:$0xff]
        %v2718 = vld [vmem:[%s2442 + $0x3d8] sm:$0xff]
        %v2719 = vld [vmem:[%s2442 + $0x3e0] sm:$0xff]
        %v2720 = vld [vmem:[%s2442 + $0x3e8] sm:$0xff]
        %v2721 = vld [vmem:[%s2442 + $0x3f0] sm:$0xff]
        %v2722 = vld [vmem:[%s2442 + $0x3f8] sm:$0xff]
        %v2723 = vld [vmem:[%s2442 + $0x400] sm:$0xff]
        %v2724 = vld [vmem:[%s2442 + $0x408] sm:$0xff]
        %v2725 = vld [vmem:[%s2442 + $0x410] sm:$0xff]
        %v2726 = vld [vmem:[%s2442 + $0x418] sm:$0xff]
        %v2727 = vld [vmem:[%s2442 + $0x420] sm:$0xff]
        %v2728 = vld [vmem:[%s2442 + $0x428] sm:$0xff]
        %v2729 = vld [vmem:[%s2442 + $0x430] sm:$0xff]
        %v2730 = vld [vmem:[%s2442 + $0x438] sm:$0xff]
        %v2731 = vld [vmem:[%s2442 + $0x440] sm:$0xff]
        %v2732 = vld [vmem:[%s2442 + $0x448] sm:$0xff]
        %v2733 = vld [vmem:[%s2442 + $0x450] sm:$0xff]
        %v2734 = vld [vmem:[%s2442 + $0x458] sm:$0xff]
        %v2735 = vld [vmem:[%s2442 + $0x460] sm:$0xff]
        %v2736 = vld [vmem:[%s2442 + $0x468] sm:$0xff]
        %v2737 = vld [vmem:[%s2442 + $0x470] sm:$0xff]
        %v2738 = vld [vmem:[%s2442 + $0x478] sm:$0xff]
        %v2739 = vld [vmem:[%s2442 + $0x480] sm:$0xff]
        %v2740 = vld [vmem:[%s2442 + $0x488] sm:$0xff]
        %v2741 = vld [vmem:[%s2442 + $0x490] sm:$0xff]
        %v2742 = vld [vmem:[%s2442 + $0x498] sm:$0xff]
        %v2743 = vld [vmem:[%s2442 + $0x4a0] sm:$0xff]
        %v2744 = vld [vmem:[%s2442 + $0x4a8] sm:$0xff]
        %v2745 = vld [vmem:[%s2442 + $0x4b0] sm:$0xff]
        %v2746 = vld [vmem:[%s2442 + $0x4b8] sm:$0xff]
        %v2747 = vld [vmem:[%s2442 + $0x4c0] sm:$0xff]
        %v2748 = vld [vmem:[%s2442 + $0x4c8] sm:$0xff]
        %v2749 = vld [vmem:[%s2442 + $0x4d0] sm:$0xff]
        %v2750 = vld [vmem:[%s2442 + $0x4d8] sm:$0xff]
        %v2751 = vld [vmem:[%s2442 + $0x4e0] sm:$0xff]
        %v2752 = vld [vmem:[%s2442 + $0x4e8] sm:$0xff]
        %v2753 = vld [vmem:[%s2442 + $0x4f0] sm:$0xff]
        %v2754 = vld [vmem:[%s2442 + $0x4f8] sm:$0xff]
        %v2755 = vld [vmem:[%s2442 + $0x500] sm:$0xff]
        %v2756 = vld [vmem:[%s2442 + $0x508] sm:$0xff]
        %v2757 = vld [vmem:[%s2442 + $0x510] sm:$0xff]
        %v2758 = vld [vmem:[%s2442 + $0x518] sm:$0xff]
        %v2759 = vld [vmem:[%s2442 + $0x520] sm:$0xff]
        %v2760 = vld [vmem:[%s2442 + $0x528] sm:$0xff]
        %v2761 = vld [vmem:[%s2442 + $0x530] sm:$0xff]
        %v2762 = vld [vmem:[%s2442 + $0x538] sm:$0xff]
        %v2763 = vld [vmem:[%s2442 + $0x540] sm:$0xff]
        %v2764 = vld [vmem:[%s2442 + $0x548] sm:$0xff]
        %v2765 = vld [vmem:[%s2442 + $0x550] sm:$0xff]
        %v2766 = vld [vmem:[%s2442 + $0x558] sm:$0xff]
        %v2767 = vld [vmem:[%s2442 + $0x560] sm:$0xff]
        %v2768 = vld [vmem:[%s2442 + $0x568] sm:$0xff]
        %v2769 = vld [vmem:[%s2442 + $0x570] sm:$0xff]
        %v2770 = vld [vmem:[%s2442 + $0x578] sm:$0xff]
        %v2771 = vld [vmem:[%s2442 + $0x580] sm:$0xff]
        %v2772 = vld [vmem:[%s2442 + $0x588] sm:$0xff]
        %v2773 = vld [vmem:[%s2442 + $0x590] sm:$0xff]
        %v2774 = vld [vmem:[%s2442 + $0x598] sm:$0xff]
        %v2775 = vld [vmem:[%s2442 + $0x5a0] sm:$0xff]
        %v2776 = vld [vmem:[%s2442 + $0x5a8] sm:$0xff]
        %v2777 = vld [vmem:[%s2442 + $0x5b0] sm:$0xff]
        %v2778 = vld [vmem:[%s2442 + $0x5b8] sm:$0xff]
        %v2779 = vld [vmem:[%s2442 + $0x5c0] sm:$0xff]
        %v2780 = vld [vmem:[%s2442 + $0x5c8] sm:$0xff]
        %v2781 = vld [vmem:[%s2442 + $0x5d0] sm:$0xff]
        %v2782 = vld [vmem:[%s2442 + $0x5d8] sm:$0xff]
        %v2783 = vld [vmem:[%s2442 + $0x5e0] sm:$0xff]
        %v2784 = vld [vmem:[%s2442 + $0x5e8] sm:$0xff]
        %v2785 = vld [vmem:[%s2442 + $0x5f0] sm:$0xff]
        %v2786 = vld [vmem:[%s2442 + $0x5f8] sm:$0xff]
        %v2787 = vld [vmem:[%s2442 + $0x600] sm:$0xff]
        %v2788 = vld [vmem:[%s2442 + $0x608] sm:$0xff]
        %v2789 = vld [vmem:[%s2442 + $0x610] sm:$0xff]
        %v2790 = vld [vmem:[%s2442 + $0x618] sm:$0xff]
        %v2791 = vld [vmem:[%s2442 + $0x620] sm:$0xff]
        %v2792 = vld [vmem:[%s2442 + $0x628] sm:$0xff]
        %v2793 = vld [vmem:[%s2442 + $0x630] sm:$0xff]
        %v2794 = vld [vmem:[%s2442 + $0x638] sm:$0xff]
        %v2795 = vld [vmem:[%s2442 + $0x640] sm:$0xff]
        %v2796 = vld [vmem:[%s2442 + $0x648] sm:$0xff]
        %v2797 = vld [vmem:[%s2442 + $0x650] sm:$0xff]
        %v2798 = vld [vmem:[%s2442 + $0x658] sm:$0xff]
        %v2799 = vld [vmem:[%s2442 + $0x660] sm:$0xff]
        %v2800 = vld [vmem:[%s2442 + $0x668] sm:$0xff]
        %v2801 = vld [vmem:[%s2442 + $0x670] sm:$0xff]
        %v2802 = vld [vmem:[%s2442 + $0x678] sm:$0xff]
        %v2803 = vld [vmem:[%s2442 + $0x680] sm:$0xff]
        %v2804 = vld [vmem:[%s2442 + $0x688] sm:$0xff]
        %v2805 = vld [vmem:[%s2442 + $0x690] sm:$0xff]
        %v2806 = vld [vmem:[%s2442 + $0x698] sm:$0xff]
        %v2807 = vld [vmem:[%s2442 + $0x6a0] sm:$0xff]
        %v2808 = vld [vmem:[%s2442 + $0x6a8] sm:$0xff]
        %v2809 = vld [vmem:[%s2442 + $0x6b0] sm:$0xff]
        %v2810 = vld [vmem:[%s2442 + $0x6b8] sm:$0xff]
        %v2811 = vld [vmem:[%s2442 + $0x6c0] sm:$0xff]
        %v2812 = vld [vmem:[%s2442 + $0x6c8] sm:$0xff]
        %v2813 = vld [vmem:[%s2442 + $0x6d0] sm:$0xff]
        %v2814 = vld [vmem:[%s2442 + $0x6d8] sm:$0xff]
        %v2815 = vld [vmem:[%s2442 + $0x6e0] sm:$0xff]
        %v2816 = vld [vmem:[%s2442 + $0x6e8] sm:$0xff]
        %v2817 = vld [vmem:[%s2442 + $0x6f0] sm:$0xff]
        %v2818 = vld [vmem:[%s2442 + $0x6f8] sm:$0xff]
        %v2819 = vld [vmem:[%s2442 + $0x700] sm:$0xff]
        %v2820 = vld [vmem:[%s2442 + $0x708] sm:$0xff]
        %v2821 = vld [vmem:[%s2442 + $0x710] sm:$0xff]
        %v2822 = vld [vmem:[%s2442 + $0x718] sm:$0xff]
        %v2823 = vld [vmem:[%s2442 + $0x720] sm:$0xff]
        %v2824 = vld [vmem:[%s2442 + $0x728] sm:$0xff]
        %v2825 = vld [vmem:[%s2442 + $0x730] sm:$0xff]
        %v2826 = vld [vmem:[%s2442 + $0x738] sm:$0xff]
        %v2827 = vld [vmem:[%s2442 + $0x740] sm:$0xff]
        %v2828 = vld [vmem:[%s2442 + $0x748] sm:$0xff]
        %v2829 = vld [vmem:[%s2442 + $0x750] sm:$0xff]
        %v2830 = vld [vmem:[%s2442 + $0x758] sm:$0xff]
        %v2831 = vld [vmem:[%s2442 + $0x760] sm:$0xff]
        %v2832 = vld [vmem:[%s2442 + $0x768] sm:$0xff]
        %v2833 = vld [vmem:[%s2442 + $0x770] sm:$0xff]
        %v2834 = vld [vmem:[%s2442 + $0x778] sm:$0xff]
        %v2835 = vld [vmem:[%s2442 + $0x780] sm:$0xff]
        %v2836 = vld [vmem:[%s2442 + $0x788] sm:$0xff]
        %v2837 = vld [vmem:[%s2442 + $0x790] sm:$0xff]
        %v2838 = vld [vmem:[%s2442 + $0x798] sm:$0xff]
        %v2839 = vld [vmem:[%s2442 + $0x7a0] sm:$0xff]
        %v2840 = vld [vmem:[%s2442 + $0x7a8] sm:$0xff]
        %v2841 = vld [vmem:[%s2442 + $0x7b0] sm:$0xff]
        %v2842 = vld [vmem:[%s2442 + $0x7b8] sm:$0xff]
        %v2843 = vld [vmem:[%s2442 + $0x7c0] sm:$0xff]
        %v2844 = vld [vmem:[%s2442 + $0x7c8] sm:$0xff]
        %v2845 = vld [vmem:[%s2442 + $0x7d0] sm:$0xff]
        %v2846 = vld [vmem:[%s2442 + $0x7d8] sm:$0xff]
        %v2847 = vld [vmem:[%s2442 + $0x7e0] sm:$0xff]
        %v2848 = vld [vmem:[%s2442 + $0x7e8] sm:$0xff]
        %v2849 = vld [vmem:[%s2442 + $0x7f0] sm:$0xff]
        %v2850 = vld [vmem:[%s2442 + $0x7f8] sm:$0xff]
        %v2851 = vld [vmem:[%s5] sm:$0xff]
        %v2852 = vld [vmem:[%s5 + $0x8] sm:$0xff]
        %v2853 = vld [vmem:[%s5 + $0x10] sm:$0xff]
        %v2854 = vld [vmem:[%s5 + $0x18] sm:$0xff]
        %v2856 = vsel %vm2521, %v2595, 0
        %v2859 = vsel %vm2521, %v2596, 0
        %v2862 = vsel %vm2521, %v2597, 0
        %v2865 = vsel %vm2521, %v2598, 0
        %v2868 = vsel %vm2521, %v2599, 0
        %v2871 = vsel %vm2521, %v2600, 0
        %v2874 = vsel %vm2521, %v2601, 0
        %v2877 = vsel %vm2521, %v2602, 0
        %v2880 = vsel %vm2521, %v2603, 0
        %v2883 = vsel %vm2521, %v2604, 0
        %v2886 = vsel %vm2521, %v2605, 0
        %v2889 = vsel %vm2521, %v2606, 0
        %v2892 = vsel %vm2521, %v2607, 0
        %v2895 = vsel %vm2521, %v2608, 0
        %v2898 = vsel %vm2521, %v2609, 0
        %v2901 = vsel %vm2521, %v2610, 0
        %v2904 = vsel %vm2521, %v2611, 0
        %v2907 = vsel %vm2521, %v2612, 0
        %v2910 = vsel %vm2521, %v2613, 0
        %v2913 = vsel %vm2521, %v2614, 0
        %v2916 = vsel %vm2521, %v2615, 0
        %v2919 = vsel %vm2521, %v2616, 0
        %v2922 = vsel %vm2521, %v2617, 0
        %v2925 = vsel %vm2521, %v2618, 0
        %v2928 = vsel %vm2521, %v2619, 0
        %v2931 = vsel %vm2521, %v2620, 0
        %v2934 = vsel %vm2521, %v2621, 0
        %v2937 = vsel %vm2521, %v2622, 0
        %v2940 = vsel %vm2521, %v2623, 0
        %v2943 = vsel %vm2521, %v2624, 0
        %v2946 = vsel %vm2521, %v2625, 0
        %v2949 = vsel %vm2521, %v2626, 0
        %v2952 = vsel %vm2521, %v2627, 0
        %v2955 = vsel %vm2521, %v2628, 0
        %v2958 = vsel %vm2521, %v2629, 0
        %v2961 = vsel %vm2521, %v2630, 0
        %v2964 = vsel %vm2521, %v2631, 0
        %v2967 = vsel %vm2521, %v2632, 0
        %v2970 = vsel %vm2521, %v2633, 0
        %v2973 = vsel %vm2521, %v2634, 0
        %v2976 = vsel %vm2521, %v2635, 0
        %v2979 = vsel %vm2521, %v2636, 0
        %v2982 = vsel %vm2521, %v2637, 0
        %v2985 = vsel %vm2521, %v2638, 0
        %v2988 = vsel %vm2521, %v2639, 0
        %v2991 = vsel %vm2521, %v2640, 0
        %v2994 = vsel %vm2521, %v2641, 0
        %v2997 = vsel %vm2521, %v2642, 0
        %v3000 = vsel %vm2521, %v2643, 0
        %v3003 = vsel %vm2521, %v2644, 0
        %v3006 = vsel %vm2521, %v2645, 0
        %v3009 = vsel %vm2521, %v2646, 0
        %v3012 = vsel %vm2521, %v2647, 0
        %v3015 = vsel %vm2521, %v2648, 0
        %v3018 = vsel %vm2521, %v2649, 0
        %v3021 = vsel %vm2521, %v2650, 0
        %v3024 = vsel %vm2521, %v2651, 0
        %v3027 = vsel %vm2521, %v2652, 0
        %v3030 = vsel %vm2521, %v2653, 0
        %v3033 = vsel %vm2521, %v2654, 0
        %v3036 = vsel %vm2521, %v2655, 0
        %v3039 = vsel %vm2521, %v2656, 0
        %v3042 = vsel %vm2521, %v2657, 0
        %v3045 = vsel %vm2521, %v2658, 0
        %v3048 = vsel %vm2521, %v2659, 0
        %v3051 = vsel %vm2521, %v2660, 0
        %v3054 = vsel %vm2521, %v2661, 0
        %v3057 = vsel %vm2521, %v2662, 0
        %v3060 = vsel %vm2521, %v2663, 0
        %v3063 = vsel %vm2521, %v2664, 0
        %v3066 = vsel %vm2521, %v2665, 0
        %v3069 = vsel %vm2521, %v2666, 0
        %v3072 = vsel %vm2521, %v2667, 0
        %v3075 = vsel %vm2521, %v2668, 0
        %v3078 = vsel %vm2521, %v2669, 0
        %v3081 = vsel %vm2521, %v2670, 0
        %v3084 = vsel %vm2521, %v2671, 0
        %v3087 = vsel %vm2521, %v2672, 0
        %v3090 = vsel %vm2521, %v2673, 0
        %v3093 = vsel %vm2521, %v2674, 0
        %v3096 = vsel %vm2521, %v2675, 0
        %v3099 = vsel %vm2521, %v2676, 0
        %v3102 = vsel %vm2521, %v2677, 0
        %v3105 = vsel %vm2521, %v2678, 0
        %v3108 = vsel %vm2521, %v2679, 0
        %v3111 = vsel %vm2521, %v2680, 0
        %v3114 = vsel %vm2521, %v2681, 0
        %v3117 = vsel %vm2521, %v2682, 0
        %v3120 = vsel %vm2521, %v2683, 0
        %v3123 = vsel %vm2521, %v2684, 0
        %v3126 = vsel %vm2521, %v2685, 0
        %v3129 = vsel %vm2521, %v2686, 0
        %v3132 = vsel %vm2521, %v2687, 0
        %v3135 = vsel %vm2521, %v2688, 0
        %v3138 = vsel %vm2521, %v2689, 0
        %v3141 = vsel %vm2521, %v2690, 0
        %v3144 = vsel %vm2521, %v2691, 0
        %v3147 = vsel %vm2521, %v2692, 0
        %v3150 = vsel %vm2521, %v2693, 0
        %v3153 = vsel %vm2521, %v2694, 0
        %v3156 = vsel %vm2521, %v2695, 0
        %v3159 = vsel %vm2521, %v2696, 0
        %v3162 = vsel %vm2521, %v2697, 0
        %v3165 = vsel %vm2521, %v2698, 0
        %v3168 = vsel %vm2521, %v2699, 0
        %v3171 = vsel %vm2521, %v2700, 0
        %v3174 = vsel %vm2521, %v2701, 0
        %v3177 = vsel %vm2521, %v2702, 0
        %v3180 = vsel %vm2521, %v2703, 0
        %v3183 = vsel %vm2521, %v2704, 0
        %v3186 = vsel %vm2521, %v2705, 0
        %v3189 = vsel %vm2521, %v2706, 0
        %v3192 = vsel %vm2521, %v2707, 0
        %v3195 = vsel %vm2521, %v2708, 0
        %v3198 = vsel %vm2521, %v2709, 0
        %v3201 = vsel %vm2521, %v2710, 0
        %v3204 = vsel %vm2521, %v2711, 0
        %v3207 = vsel %vm2521, %v2712, 0
        %v3210 = vsel %vm2521, %v2713, 0
        %v3213 = vsel %vm2521, %v2714, 0
        %v3216 = vsel %vm2521, %v2715, 0
        %v3219 = vsel %vm2521, %v2716, 0
        %v3222 = vsel %vm2521, %v2717, 0
        %v3225 = vsel %vm2521, %v2718, 0
        %v3228 = vsel %vm2521, %v2719, 0
        %v3231 = vsel %vm2521, %v2720, 0
        %v3234 = vsel %vm2521, %v2721, 0
        %v3237 = vsel %vm2521, %v2722, 0
        %v3240 = vsel %vm2521, %v2723, 0
        %v3243 = vsel %vm2521, %v2724, 0
        %v3246 = vsel %vm2521, %v2725, 0
        %v3249 = vsel %vm2521, %v2726, 0
        %v3252 = vsel %vm2521, %v2727, 0
        %v3255 = vsel %vm2521, %v2728, 0
        %v3258 = vsel %vm2521, %v2729, 0
        %v3261 = vsel %vm2521, %v2730, 0
        %v3264 = vsel %vm2521, %v2731, 0
        %v3267 = vsel %vm2521, %v2732, 0
        %v3270 = vsel %vm2521, %v2733, 0
        %v3273 = vsel %vm2521, %v2734, 0
        %v3276 = vsel %vm2521, %v2735, 0
        %v3279 = vsel %vm2521, %v2736, 0
        %v3282 = vsel %vm2521, %v2737, 0
        %v3285 = vsel %vm2521, %v2738, 0
        %v3288 = vsel %vm2521, %v2739, 0
        %v3291 = vsel %vm2521, %v2740, 0
        %v3294 = vsel %vm2521, %v2741, 0
        %v3297 = vsel %vm2521, %v2742, 0
        %v3300 = vsel %vm2521, %v2743, 0
        %v3303 = vsel %vm2521, %v2744, 0
        %v3306 = vsel %vm2521, %v2745, 0
        %v3309 = vsel %vm2521, %v2746, 0
        %v3312 = vsel %vm2521, %v2747, 0
        %v3315 = vsel %vm2521, %v2748, 0
        %v3318 = vsel %vm2521, %v2749, 0
        %v3321 = vsel %vm2521, %v2750, 0
        %v3324 = vsel %vm2521, %v2751, 0
        %v3327 = vsel %vm2521, %v2752, 0
        %v3330 = vsel %vm2521, %v2753, 0
        %v3333 = vsel %vm2521, %v2754, 0
        %v3336 = vsel %vm2521, %v2755, 0
        %v3339 = vsel %vm2521, %v2756, 0
        %v3342 = vsel %vm2521, %v2757, 0
        %v3345 = vsel %vm2521, %v2758, 0
        %v3348 = vsel %vm2521, %v2759, 0
        %v3351 = vsel %vm2521, %v2760, 0
        %v3354 = vsel %vm2521, %v2761, 0
        %v3357 = vsel %vm2521, %v2762, 0
        %v3360 = vsel %vm2521, %v2763, 0
        %v3363 = vsel %vm2521, %v2764, 0
        %v3366 = vsel %vm2521, %v2765, 0
        %v3369 = vsel %vm2521, %v2766, 0
        %v3372 = vsel %vm2521, %v2767, 0
        %v3375 = vsel %vm2521, %v2768, 0
        %v3378 = vsel %vm2521, %v2769, 0
        %v3381 = vsel %vm2521, %v2770, 0
        %v3384 = vsel %vm2521, %v2771, 0
        %v3387 = vsel %vm2521, %v2772, 0
        %v3390 = vsel %vm2521, %v2773, 0
        %v3393 = vsel %vm2521, %v2774, 0
        %v3396 = vsel %vm2521, %v2775, 0
        %v3399 = vsel %vm2521, %v2776, 0
        %v3402 = vsel %vm2521, %v2777, 0
        %v3405 = vsel %vm2521, %v2778, 0
        %v3408 = vsel %vm2521, %v2779, 0
        %v3411 = vsel %vm2521, %v2780, 0
        %v3414 = vsel %vm2521, %v2781, 0
        %v3417 = vsel %vm2521, %v2782, 0
        %v3420 = vsel %vm2521, %v2783, 0
        %v3423 = vsel %vm2521, %v2784, 0
        %v3426 = vsel %vm2521, %v2785, 0
        %v3429 = vsel %vm2521, %v2786, 0
        %v3432 = vsel %vm2521, %v2787, 0
        %v3435 = vsel %vm2521, %v2788, 0
        %v3438 = vsel %vm2521, %v2789, 0
        %v3441 = vsel %vm2521, %v2790, 0
        %v3444 = vsel %vm2521, %v2791, 0
        %v3447 = vsel %vm2521, %v2792, 0
        %v3450 = vsel %vm2521, %v2793, 0
        %v3453 = vsel %vm2521, %v2794, 0
        %v3456 = vsel %vm2521, %v2795, 0
        %v3459 = vsel %vm2521, %v2796, 0
        %v3462 = vsel %vm2521, %v2797, 0
        %v3465 = vsel %vm2521, %v2798, 0
        %v3468 = vsel %vm2521, %v2799, 0
        %v3471 = vsel %vm2521, %v2800, 0
        %v3474 = vsel %vm2521, %v2801, 0
        %v3477 = vsel %vm2521, %v2802, 0
        %v3480 = vsel %vm2521, %v2803, 0
        %v3483 = vsel %vm2521, %v2804, 0
        %v3486 = vsel %vm2521, %v2805, 0
        %v3489 = vsel %vm2521, %v2806, 0
        %v3492 = vsel %vm2521, %v2807, 0
        %v3495 = vsel %vm2521, %v2808, 0
        %v3498 = vsel %vm2521, %v2809, 0
        %v3501 = vsel %vm2521, %v2810, 0
        %v3504 = vsel %vm2521, %v2811, 0
        %v3507 = vsel %vm2521, %v2812, 0
        %v3510 = vsel %vm2521, %v2813, 0
        %v3513 = vsel %vm2521, %v2814, 0
        %v3516 = vsel %vm2521, %v2815, 0
        %v3519 = vsel %vm2521, %v2816, 0
        %v3522 = vsel %vm2521, %v2817, 0
        %v3525 = vsel %vm2521, %v2818, 0
        %v3528 = vsel %vm2521, %v2819, 0
        %v3531 = vsel %vm2521, %v2820, 0
        %v3534 = vsel %vm2521, %v2821, 0
        %v3537 = vsel %vm2521, %v2822, 0
        %v3540 = vsel %vm2521, %v2823, 0
        %v3543 = vsel %vm2521, %v2824, 0
        %v3546 = vsel %vm2521, %v2825, 0
        %v3549 = vsel %vm2521, %v2826, 0
        %v3552 = vsel %vm2521, %v2827, 0
        %v3555 = vsel %vm2521, %v2828, 0
        %v3558 = vsel %vm2521, %v2829, 0
        %v3561 = vsel %vm2521, %v2830, 0
        %v3564 = vsel %vm2521, %v2831, 0
        %v3567 = vsel %vm2521, %v2832, 0
        %v3570 = vsel %vm2521, %v2833, 0
        %v3573 = vsel %vm2521, %v2834, 0
        %v3576 = vsel %vm2521, %v2835, 0
        %v3579 = vsel %vm2521, %v2836, 0
        %v3582 = vsel %vm2521, %v2837, 0
        %v3585 = vsel %vm2521, %v2838, 0
        %v3588 = vsel %vm2521, %v2839, 0
        %v3591 = vsel %vm2521, %v2840, 0
        %v3594 = vsel %vm2521, %v2841, 0
        %v3597 = vsel %vm2521, %v2842, 0
        %v3600 = vsel %vm2521, %v2843, 0
        %v3603 = vsel %vm2521, %v2844, 0
        %v3606 = vsel %vm2521, %v2845, 0
        %v3609 = vsel %vm2521, %v2846, 0
        %v3612 = vsel %vm2521, %v2847, 0
        %v3615 = vsel %vm2521, %v2848, 0
        %v3618 = vsel %vm2521, %v2849, 0
        %v3621 = vsel %vm2521, %v2850, 0
        %3623 = vmatprep.subr.mxu0 0.0
        %3624 = vmatpush1.msra.mxu0 0.0
        %3625 = vmatprep.subr.mxu0 0.0
        %3626 = vmatpush1.msra.mxu0 0.0
        %3627 = vmatprep.subr.mxu0 0.0
        %3628 = vmatpush1.msra.mxu0 0.0
        %3629 = vmatprep.subr.mxu0 0.0
        %3630 = vmatpush1.msra.mxu0 0.0
        %3631 = vmatprep.subr.mxu0 0.0
        %3632 = vmatpush1.msra.mxu0 0.0
        %3633 = vmatprep.subr.mxu0 0.0
        %3634 = vmatpush1.msra.mxu0 0.0
        %3635 = vmatprep.subr.mxu0 0.0
        %3636 = vmatpush1.msra.mxu0 0.0
        %3637 = vmatprep.subr.mxu0 0.0
        %3638 = vmatpush1.msra.mxu0 0.0
        %3639 = vmatprep.subr.mxu0 0.0
        %3640 = vmatpush1.msra.mxu0 0.0
        %3641 = vmatprep.subr.mxu0 0.0
        %3642 = vmatpush1.msra.mxu0 0.0
        %3643 = vmatprep.subr.mxu0 0.0
        %3644 = vmatpush1.msra.mxu0 0.0
        %3645 = vmatprep.subr.mxu0 0.0
        %3646 = vmatpush1.msra.mxu0 0.0
        %3647 = vmatprep.subr.mxu0 0.0
        %3648 = vmatpush1.msra.mxu0 %v2854
        %3649 = vmatprep.subr.mxu0 0.0
        %3650 = vmatpush1.msra.mxu0 %v2853
        %3651 = vmatprep.subr.mxu0 0.0
        %3652 = vmatpush1.msra.mxu0 %v2852
        %3653 = vmatprep.subr.mxu0 0.0
        %3654 = vmatpush1.msra.mxu0 %v2851
        %3655 = vmatprep.subr.mxu0 0.0
        %3656 = vmatpush2.msra.mxu0 0.0
        %3657 = vmatprep.subr.mxu0 0.0
        %3658 = vmatpush2.msra.mxu0 0.0
        %3659 = vmatprep.subr.mxu0 0.0
        %3660 = vmatpush2.msra.mxu0 0.0
        %3661 = vmatprep.subr.mxu0 0.0
        %3662 = vmatpush2.msra.mxu0 0.0
        %3663 = vmatprep.subr.mxu0 0.0
        %3664 = vmatpush2.msra.mxu0 0.0
        %3665 = vmatprep.subr.mxu0 0.0
        %3666 = vmatpush2.msra.mxu0 0.0
        %3667 = vmatprep.subr.mxu0 0.0
        %3668 = vmatpush2.msra.mxu0 0.0
        %3669 = vmatprep.subr.mxu0 0.0
        %3670 = vmatpush2.msra.mxu0 0.0
        %3671 = vmatprep.subr.mxu0 0.0
        %3672 = vmatpush2.msra.mxu0 0.0
        %3673 = vmatprep.subr.mxu0 0.0
        %3674 = vmatpush2.msra.mxu0 0.0
        %3675 = vmatprep.subr.mxu0 0.0
        %3676 = vmatpush2.msra.mxu0 0.0
        %3677 = vmatprep.subr.mxu0 0.0
        %3678 = vmatpush2.msra.mxu0 0.0
        %3679 = vmatprep.subr.mxu0 0.0
        %3680 = vmatpush2.msra.mxu0 0.0
        %3681 = vmatprep.subr.mxu0 0.0
        %3682 = vmatpush2.msra.mxu0 0.0
        %3683 = vmatprep.subr.mxu0 0.0
        %3684 = vmatpush2.msra.mxu0 0.0
        %3685 = vmatprep.subr.mxu0 0.0
        %3686 = vmatpush2.msra.mxu0 0.0
        %3687 = vmatprep.mubr.f32.mxu0 0.0
        %3688 = vmatmul.mubr.f32.gmra.mxu0 %v2856
        %v3689 = vpop.f32.mrf.mxu0
        %v3690 = vadd.f32 0.0, %v3689
        %v3691 = vpop.f32.mrf.mxu0
        %3692 = vmatprep.mubr.f32.mxu0 0.0
        %3693 = vmatmul.mubr.f32.gmra.mxu0 %v2859
        %v3694 = vpop.f32.mrf.mxu0
        %v3695 = vadd.f32 0.0, %v3694
        %v3696 = vpop.f32.mrf.mxu0
        %3697 = vmatprep.mubr.f32.mxu0 0.0
        %3698 = vmatmul.mubr.f32.gmra.mxu0 %v2862
        %v3699 = vpop.f32.mrf.mxu0
        %v3700 = vadd.f32 0.0, %v3699
        %v3701 = vpop.f32.mrf.mxu0
        %3702 = vmatprep.mubr.f32.mxu0 0.0
        %3703 = vmatmul.mubr.f32.gmra.mxu0 %v2865
        %v3704 = vpop.f32.mrf.mxu0
        %v3705 = vadd.f32 0.0, %v3704
        %v3706 = vpop.f32.mrf.mxu0
        %3707 = vmatprep.mubr.f32.mxu0 0.0
        %3708 = vmatmul.mubr.f32.gmra.mxu0 %v2868
        %v3709 = vpop.f32.mrf.mxu0
        %v3710 = vadd.f32 0.0, %v3709
        %v3711 = vpop.f32.mrf.mxu0
        %3712 = vmatprep.mubr.f32.mxu0 0.0
        %3713 = vmatmul.mubr.f32.gmra.mxu0 %v2871
        %v3714 = vpop.f32.mrf.mxu0
        %v3715 = vadd.f32 0.0, %v3714
        %v3716 = vpop.f32.mrf.mxu0
        %3717 = vmatprep.mubr.f32.mxu0 0.0
        %3718 = vmatmul.mubr.f32.gmra.mxu0 %v2874
        %v3719 = vpop.f32.mrf.mxu0
        %v3720 = vadd.f32 0.0, %v3719
        %v3721 = vpop.f32.mrf.mxu0
        %3722 = vmatprep.mubr.f32.mxu0 0.0
        %3723 = vmatmul.mubr.f32.gmra.mxu0 %v2877
        %v3724 = vpop.f32.mrf.mxu0
        %v3725 = vadd.f32 0.0, %v3724
        %v3726 = vpop.f32.mrf.mxu0
        %3727 = vmatprep.mubr.f32.mxu0 0.0
        %3728 = vmatmul.mubr.f32.gmra.mxu0 %v2880
        %v3729 = vpop.f32.mrf.mxu0
        %v3730 = vadd.f32 0.0, %v3729
        %v3731 = vpop.f32.mrf.mxu0
        %3732 = vmatprep.mubr.f32.mxu0 0.0
        %3733 = vmatmul.mubr.f32.gmra.mxu0 %v2883
        %v3734 = vpop.f32.mrf.mxu0
        %v3735 = vadd.f32 0.0, %v3734
        %v3736 = vpop.f32.mrf.mxu0
        %3737 = vmatprep.mubr.f32.mxu0 0.0
        %3738 = vmatmul.mubr.f32.gmra.mxu0 %v2886
        %v3739 = vpop.f32.mrf.mxu0
        %v3740 = vadd.f32 0.0, %v3739
        %v3741 = vpop.f32.mrf.mxu0
        %3742 = vmatprep.mubr.f32.mxu0 0.0
        %3743 = vmatmul.mubr.f32.gmra.mxu0 %v2889
        %v3744 = vpop.f32.mrf.mxu0
        %v3745 = vadd.f32 0.0, %v3744
        %v3746 = vpop.f32.mrf.mxu0
        %3747 = vmatprep.mubr.f32.mxu0 0.0
        %3748 = vmatmul.mubr.f32.gmra.mxu0 %v2892
        %v3749 = vpop.f32.mrf.mxu0
        %v3750 = vadd.f32 0.0, %v3749
        %v3751 = vpop.f32.mrf.mxu0
        %3752 = vmatprep.mubr.f32.mxu0 0.0
        %3753 = vmatmul.mubr.f32.gmra.mxu0 %v2895
        %v3754 = vpop.f32.mrf.mxu0
        %v3755 = vadd.f32 0.0, %v3754
        %v3756 = vpop.f32.mrf.mxu0
        %3757 = vmatprep.mubr.f32.mxu0 0.0
        %3758 = vmatmul.mubr.f32.gmra.mxu0 %v2898
        %v3759 = vpop.f32.mrf.mxu0
        %v3760 = vadd.f32 0.0, %v3759
        %v3761 = vpop.f32.mrf.mxu0
        %3762 = vmatprep.mubr.f32.mxu0 0.0
        %3763 = vmatmul.mubr.f32.gmra.mxu0 %v2901
        %v3764 = vpop.f32.mrf.mxu0
        %v3765 = vadd.f32 0.0, %v3764
        %v3766 = vpop.f32.mrf.mxu0
        %3767 = vmatprep.mubr.f32.mxu0 0.0
        %3768 = vmatmul.mubr.f32.gmra.mxu0 %v2904
        %v3769 = vpop.f32.mrf.mxu0
        %v3770 = vadd.f32 0.0, %v3769
        %v3771 = vpop.f32.mrf.mxu0
        %3772 = vmatprep.mubr.f32.mxu0 0.0
        %3773 = vmatmul.mubr.f32.gmra.mxu0 %v2907
        %v3774 = vpop.f32.mrf.mxu0
        %v3775 = vadd.f32 0.0, %v3774
        %v3776 = vpop.f32.mrf.mxu0
        %3777 = vmatprep.mubr.f32.mxu0 0.0
        %3778 = vmatmul.mubr.f32.gmra.mxu0 %v2910
        %v3779 = vpop.f32.mrf.mxu0
        %v3780 = vadd.f32 0.0, %v3779
        %v3781 = vpop.f32.mrf.mxu0
        %3782 = vmatprep.mubr.f32.mxu0 0.0
        %3783 = vmatmul.mubr.f32.gmra.mxu0 %v2913
        %v3784 = vpop.f32.mrf.mxu0
        %v3785 = vadd.f32 0.0, %v3784
        %v3786 = vpop.f32.mrf.mxu0
        %3787 = vmatprep.mubr.f32.mxu0 0.0
        %3788 = vmatmul.mubr.f32.gmra.mxu0 %v2916
        %v3789 = vpop.f32.mrf.mxu0
        %v3790 = vadd.f32 0.0, %v3789
        %v3791 = vpop.f32.mrf.mxu0
        %3792 = vmatprep.mubr.f32.mxu0 0.0
        %3793 = vmatmul.mubr.f32.gmra.mxu0 %v2919
        %v3794 = vpop.f32.mrf.mxu0
        %v3795 = vadd.f32 0.0, %v3794
        %v3796 = vpop.f32.mrf.mxu0
        %3797 = vmatprep.mubr.f32.mxu0 0.0
        %3798 = vmatmul.mubr.f32.gmra.mxu0 %v2922
        %v3799 = vpop.f32.mrf.mxu0
        %v3800 = vadd.f32 0.0, %v3799
        %v3801 = vpop.f32.mrf.mxu0
        %3802 = vmatprep.mubr.f32.mxu0 0.0
        %3803 = vmatmul.mubr.f32.gmra.mxu0 %v2925
        %v3804 = vpop.f32.mrf.mxu0
        %v3805 = vadd.f32 0.0, %v3804
        %v3806 = vpop.f32.mrf.mxu0
        %3807 = vmatprep.mubr.f32.mxu0 0.0
        %3808 = vmatmul.mubr.f32.gmra.mxu0 %v2928
        %v3809 = vpop.f32.mrf.mxu0
        %v3810 = vadd.f32 0.0, %v3809
        %v3811 = vpop.f32.mrf.mxu0
        %3812 = vmatprep.mubr.f32.mxu0 0.0
        %3813 = vmatmul.mubr.f32.gmra.mxu0 %v2931
        %v3814 = vpop.f32.mrf.mxu0
        %v3815 = vadd.f32 0.0, %v3814
        %v3816 = vpop.f32.mrf.mxu0
        %3817 = vmatprep.mubr.f32.mxu0 0.0
        %3818 = vmatmul.mubr.f32.gmra.mxu0 %v2934
        %v3819 = vpop.f32.mrf.mxu0
        %v3820 = vadd.f32 0.0, %v3819
        %v3821 = vpop.f32.mrf.mxu0
        %3822 = vmatprep.mubr.f32.mxu0 0.0
        %3823 = vmatmul.mubr.f32.gmra.mxu0 %v2937
        %v3824 = vpop.f32.mrf.mxu0
        %v3825 = vadd.f32 0.0, %v3824
        %v3826 = vpop.f32.mrf.mxu0
        %3827 = vmatprep.mubr.f32.mxu0 0.0
        %3828 = vmatmul.mubr.f32.gmra.mxu0 %v2940
        %v3829 = vpop.f32.mrf.mxu0
        %v3830 = vadd.f32 0.0, %v3829
        %v3831 = vpop.f32.mrf.mxu0
        %3832 = vmatprep.mubr.f32.mxu0 0.0
        %3833 = vmatmul.mubr.f32.gmra.mxu0 %v2943
        %v3834 = vpop.f32.mrf.mxu0
        %v3835 = vadd.f32 0.0, %v3834
        %v3836 = vpop.f32.mrf.mxu0
        %3837 = vmatprep.mubr.f32.mxu0 0.0
        %3838 = vmatmul.mubr.f32.gmra.mxu0 %v2946
        %v3839 = vpop.f32.mrf.mxu0
        %v3840 = vadd.f32 0.0, %v3839
        %v3841 = vpop.f32.mrf.mxu0
        %3842 = vmatprep.mubr.f32.mxu0 0.0
        %3843 = vmatmul.mubr.f32.gmra.mxu0 %v2949
        %v3844 = vpop.f32.mrf.mxu0
        %v3845 = vadd.f32 0.0, %v3844
        %v3846 = vpop.f32.mrf.mxu0
        %3847 = vmatprep.mubr.f32.mxu0 0.0
        %3848 = vmatmul.mubr.f32.gmra.mxu0 %v2952
        %v3849 = vpop.f32.mrf.mxu0
        %v3850 = vadd.f32 0.0, %v3849
        %v3851 = vpop.f32.mrf.mxu0
        %3852 = vmatprep.mubr.f32.mxu0 0.0
        %3853 = vmatmul.mubr.f32.gmra.mxu0 %v2955
        %v3854 = vpop.f32.mrf.mxu0
        %v3855 = vadd.f32 0.0, %v3854
        %v3856 = vpop.f32.mrf.mxu0
        %3857 = vmatprep.mubr.f32.mxu0 0.0
        %3858 = vmatmul.mubr.f32.gmra.mxu0 %v2958
        %v3859 = vpop.f32.mrf.mxu0
        %v3860 = vadd.f32 0.0, %v3859
        %v3861 = vpop.f32.mrf.mxu0
        %3862 = vmatprep.mubr.f32.mxu0 0.0
        %3863 = vmatmul.mubr.f32.gmra.mxu0 %v2961
        %v3864 = vpop.f32.mrf.mxu0
        %v3865 = vadd.f32 0.0, %v3864
        %v3866 = vpop.f32.mrf.mxu0
        %3867 = vmatprep.mubr.f32.mxu0 0.0
        %3868 = vmatmul.mubr.f32.gmra.mxu0 %v2964
        %v3869 = vpop.f32.mrf.mxu0
        %v3870 = vadd.f32 0.0, %v3869
        %v3871 = vpop.f32.mrf.mxu0
        %3872 = vmatprep.mubr.f32.mxu0 0.0
        %3873 = vmatmul.mubr.f32.gmra.mxu0 %v2967
        %v3874 = vpop.f32.mrf.mxu0
        %v3875 = vadd.f32 0.0, %v3874
        %v3876 = vpop.f32.mrf.mxu0
        %3877 = vmatprep.mubr.f32.mxu0 0.0
        %3878 = vmatmul.mubr.f32.gmra.mxu0 %v2970
        %v3879 = vpop.f32.mrf.mxu0
        %v3880 = vadd.f32 0.0, %v3879
        %v3881 = vpop.f32.mrf.mxu0
        %3882 = vmatprep.mubr.f32.mxu0 0.0
        %3883 = vmatmul.mubr.f32.gmra.mxu0 %v2973
        %v3884 = vpop.f32.mrf.mxu0
        %v3885 = vadd.f32 0.0, %v3884
        %v3886 = vpop.f32.mrf.mxu0
        %3887 = vmatprep.mubr.f32.mxu0 0.0
        %3888 = vmatmul.mubr.f32.gmra.mxu0 %v2976
        %v3889 = vpop.f32.mrf.mxu0
        %v3890 = vadd.f32 0.0, %v3889
        %v3891 = vpop.f32.mrf.mxu0
        %3892 = vmatprep.mubr.f32.mxu0 0.0
        %3893 = vmatmul.mubr.f32.gmra.mxu0 %v2979
        %v3894 = vpop.f32.mrf.mxu0
        %v3895 = vadd.f32 0.0, %v3894
        %v3896 = vpop.f32.mrf.mxu0
        %3897 = vmatprep.mubr.f32.mxu0 0.0
        %3898 = vmatmul.mubr.f32.gmra.mxu0 %v2982
        %v3899 = vpop.f32.mrf.mxu0
        %v3900 = vadd.f32 0.0, %v3899
        %v3901 = vpop.f32.mrf.mxu0
        %3902 = vmatprep.mubr.f32.mxu0 0.0
        %3903 = vmatmul.mubr.f32.gmra.mxu0 %v2985
        %v3904 = vpop.f32.mrf.mxu0
        %v3905 = vadd.f32 0.0, %v3904
        %v3906 = vpop.f32.mrf.mxu0
        %3907 = vmatprep.mubr.f32.mxu0 0.0
        %3908 = vmatmul.mubr.f32.gmra.mxu0 %v2988
        %v3909 = vpop.f32.mrf.mxu0
        %v3910 = vadd.f32 0.0, %v3909
        %v3911 = vpop.f32.mrf.mxu0
        %3912 = vmatprep.mubr.f32.mxu0 0.0
        %3913 = vmatmul.mubr.f32.gmra.mxu0 %v2991
        %v3914 = vpop.f32.mrf.mxu0
        %v3915 = vadd.f32 0.0, %v3914
        %v3916 = vpop.f32.mrf.mxu0
        %3917 = vmatprep.mubr.f32.mxu0 0.0
        %3918 = vmatmul.mubr.f32.gmra.mxu0 %v2994
        %v3919 = vpop.f32.mrf.mxu0
        %v3920 = vadd.f32 0.0, %v3919
        %v3921 = vpop.f32.mrf.mxu0
        %3922 = vmatprep.mubr.f32.mxu0 0.0
        %3923 = vmatmul.mubr.f32.gmra.mxu0 %v2997
        %v3924 = vpop.f32.mrf.mxu0
        %v3925 = vadd.f32 0.0, %v3924
        %v3926 = vpop.f32.mrf.mxu0
        %3927 = vmatprep.mubr.f32.mxu0 0.0
        %3928 = vmatmul.mubr.f32.gmra.mxu0 %v3000
        %v3929 = vpop.f32.mrf.mxu0
        %v3930 = vadd.f32 0.0, %v3929
        %v3931 = vpop.f32.mrf.mxu0
        %3932 = vmatprep.mubr.f32.mxu0 0.0
        %3933 = vmatmul.mubr.f32.gmra.mxu0 %v3003
        %v3934 = vpop.f32.mrf.mxu0
        %v3935 = vadd.f32 0.0, %v3934
        %v3936 = vpop.f32.mrf.mxu0
        %3937 = vmatprep.mubr.f32.mxu0 0.0
        %3938 = vmatmul.mubr.f32.gmra.mxu0 %v3006
        %v3939 = vpop.f32.mrf.mxu0
        %v3940 = vadd.f32 0.0, %v3939
        %v3941 = vpop.f32.mrf.mxu0
        %3942 = vmatprep.mubr.f32.mxu0 0.0
        %3943 = vmatmul.mubr.f32.gmra.mxu0 %v3009
        %v3944 = vpop.f32.mrf.mxu0
        %v3945 = vadd.f32 0.0, %v3944
        %v3946 = vpop.f32.mrf.mxu0
        %3947 = vmatprep.mubr.f32.mxu0 0.0
        %3948 = vmatmul.mubr.f32.gmra.mxu0 %v3012
        %v3949 = vpop.f32.mrf.mxu0
        %v3950 = vadd.f32 0.0, %v3949
        %v3951 = vpop.f32.mrf.mxu0
        %3952 = vmatprep.mubr.f32.mxu0 0.0
        %3953 = vmatmul.mubr.f32.gmra.mxu0 %v3015
        %v3954 = vpop.f32.mrf.mxu0
        %v3955 = vadd.f32 0.0, %v3954
        %v3956 = vpop.f32.mrf.mxu0
        %3957 = vmatprep.mubr.f32.mxu0 0.0
        %3958 = vmatmul.mubr.f32.gmra.mxu0 %v3018
        %v3959 = vpop.f32.mrf.mxu0
        %v3960 = vadd.f32 0.0, %v3959
        %v3961 = vpop.f32.mrf.mxu0
        %3962 = vmatprep.mubr.f32.mxu0 0.0
        %3963 = vmatmul.mubr.f32.gmra.mxu0 %v3021
        %v3964 = vpop.f32.mrf.mxu0
        %v3965 = vadd.f32 0.0, %v3964
        %v3966 = vpop.f32.mrf.mxu0
        %3967 = vmatprep.mubr.f32.mxu0 0.0
        %3968 = vmatmul.mubr.f32.gmra.mxu0 %v3024
        %v3969 = vpop.f32.mrf.mxu0
        %v3970 = vadd.f32 0.0, %v3969
        %v3971 = vpop.f32.mrf.mxu0
        %3972 = vmatprep.mubr.f32.mxu0 0.0
        %3973 = vmatmul.mubr.f32.gmra.mxu0 %v3027
        %v3974 = vpop.f32.mrf.mxu0
        %v3975 = vadd.f32 0.0, %v3974
        %v3976 = vpop.f32.mrf.mxu0
        %3977 = vmatprep.mubr.f32.mxu0 0.0
        %3978 = vmatmul.mubr.f32.gmra.mxu0 %v3030
        %v3979 = vpop.f32.mrf.mxu0
        %v3980 = vadd.f32 0.0, %v3979
        %v3981 = vpop.f32.mrf.mxu0
        %3982 = vmatprep.mubr.f32.mxu0 0.0
        %3983 = vmatmul.mubr.f32.gmra.mxu0 %v3033
        %v3984 = vpop.f32.mrf.mxu0
        %v3985 = vadd.f32 0.0, %v3984
        %v3986 = vpop.f32.mrf.mxu0
        %3987 = vmatprep.mubr.f32.mxu0 0.0
        %3988 = vmatmul.mubr.f32.gmra.mxu0 %v3036
        %v3989 = vpop.f32.mrf.mxu0
        %v3990 = vadd.f32 0.0, %v3989
        %v3991 = vpop.f32.mrf.mxu0
        %3992 = vmatprep.mubr.f32.mxu0 0.0
        %3993 = vmatmul.mubr.f32.gmra.mxu0 %v3039
        %v3994 = vpop.f32.mrf.mxu0
        %v3995 = vadd.f32 0.0, %v3994
        %v3996 = vpop.f32.mrf.mxu0
        %3997 = vmatprep.mubr.f32.mxu0 0.0
        %3998 = vmatmul.mubr.f32.gmra.mxu0 %v3042
        %v3999 = vpop.f32.mrf.mxu0
        %v4000 = vadd.f32 0.0, %v3999
        %v4001 = vpop.f32.mrf.mxu0
        %4002 = vmatprep.mubr.f32.mxu0 0.0
        %4003 = vmatmul.mubr.f32.gmra.mxu0 %v3045
        %v4004 = vpop.f32.mrf.mxu0
        %v4005 = vadd.f32 0.0, %v4004
        %v4006 = vpop.f32.mrf.mxu0
        %4007 = vmatprep.mubr.f32.mxu0 0.0
        %4008 = vmatmul.mubr.f32.gmra.mxu0 %v3048
        %v4009 = vpop.f32.mrf.mxu0
        %v4010 = vadd.f32 0.0, %v4009
        %v4011 = vpop.f32.mrf.mxu0
        %4012 = vmatprep.mubr.f32.mxu0 0.0
        %4013 = vmatmul.mubr.f32.gmra.mxu0 %v3051
        %v4014 = vpop.f32.mrf.mxu0
        %v4015 = vadd.f32 0.0, %v4014
        %v4016 = vpop.f32.mrf.mxu0
        %4017 = vmatprep.mubr.f32.mxu0 0.0
        %4018 = vmatmul.mubr.f32.gmra.mxu0 %v3054
        %v4019 = vpop.f32.mrf.mxu0
        %v4020 = vadd.f32 0.0, %v4019
        %v4021 = vpop.f32.mrf.mxu0
        %4022 = vmatprep.mubr.f32.mxu0 0.0
        %4023 = vmatmul.mubr.f32.gmra.mxu0 %v3057
        %v4024 = vpop.f32.mrf.mxu0
        %v4025 = vadd.f32 0.0, %v4024
        %v4026 = vpop.f32.mrf.mxu0
        %4027 = vmatprep.mubr.f32.mxu0 0.0
        %4028 = vmatmul.mubr.f32.gmra.mxu0 %v3060
        %v4029 = vpop.f32.mrf.mxu0
        %v4030 = vadd.f32 0.0, %v4029
        %v4031 = vpop.f32.mrf.mxu0
        %4032 = vmatprep.mubr.f32.mxu0 0.0
        %4033 = vmatmul.mubr.f32.gmra.mxu0 %v3063
        %v4034 = vpop.f32.mrf.mxu0
        %v4035 = vadd.f32 0.0, %v4034
        %v4036 = vpop.f32.mrf.mxu0
        %4037 = vmatprep.mubr.f32.mxu0 0.0
        %4038 = vmatmul.mubr.f32.gmra.mxu0 %v3066
        %v4039 = vpop.f32.mrf.mxu0
        %v4040 = vadd.f32 0.0, %v4039
        %v4041 = vpop.f32.mrf.mxu0
        %4042 = vmatprep.mubr.f32.mxu0 0.0
        %4043 = vmatmul.mubr.f32.gmra.mxu0 %v3069
        %v4044 = vpop.f32.mrf.mxu0
        %v4045 = vadd.f32 0.0, %v4044
        %v4046 = vpop.f32.mrf.mxu0
        %4047 = vmatprep.mubr.f32.mxu0 0.0
        %4048 = vmatmul.mubr.f32.gmra.mxu0 %v3072
        %v4049 = vpop.f32.mrf.mxu0
        %v4050 = vadd.f32 0.0, %v4049
        %v4051 = vpop.f32.mrf.mxu0
        %4052 = vmatprep.mubr.f32.mxu0 0.0
        %4053 = vmatmul.mubr.f32.gmra.mxu0 %v3075
        %v4054 = vpop.f32.mrf.mxu0
        %v4055 = vadd.f32 0.0, %v4054
        %v4056 = vpop.f32.mrf.mxu0
        %4057 = vmatprep.mubr.f32.mxu0 0.0
        %4058 = vmatmul.mubr.f32.gmra.mxu0 %v3078
        %v4059 = vpop.f32.mrf.mxu0
        %v4060 = vadd.f32 0.0, %v4059
        %v4061 = vpop.f32.mrf.mxu0
        %4062 = vmatprep.mubr.f32.mxu0 0.0
        %4063 = vmatmul.mubr.f32.gmra.mxu0 %v3081
        %v4064 = vpop.f32.mrf.mxu0
        %v4065 = vadd.f32 0.0, %v4064
        %v4066 = vpop.f32.mrf.mxu0
        %4067 = vmatprep.mubr.f32.mxu0 0.0
        %4068 = vmatmul.mubr.f32.gmra.mxu0 %v3084
        %v4069 = vpop.f32.mrf.mxu0
        %v4070 = vadd.f32 0.0, %v4069
        %v4071 = vpop.f32.mrf.mxu0
        %4072 = vmatprep.mubr.f32.mxu0 0.0
        %4073 = vmatmul.mubr.f32.gmra.mxu0 %v3087
        %v4074 = vpop.f32.mrf.mxu0
        %v4075 = vadd.f32 0.0, %v4074
        %v4076 = vpop.f32.mrf.mxu0
        %4077 = vmatprep.mubr.f32.mxu0 0.0
        %4078 = vmatmul.mubr.f32.gmra.mxu0 %v3090
        %v4079 = vpop.f32.mrf.mxu0
        %v4080 = vadd.f32 0.0, %v4079
        %v4081 = vpop.f32.mrf.mxu0
        %4082 = vmatprep.mubr.f32.mxu0 0.0
        %4083 = vmatmul.mubr.f32.gmra.mxu0 %v3093
        %v4084 = vpop.f32.mrf.mxu0
        %v4085 = vadd.f32 0.0, %v4084
        %v4086 = vpop.f32.mrf.mxu0
        %4087 = vmatprep.mubr.f32.mxu0 0.0
        %4088 = vmatmul.mubr.f32.gmra.mxu0 %v3096
        %v4089 = vpop.f32.mrf.mxu0
        %v4090 = vadd.f32 0.0, %v4089
        %v4091 = vpop.f32.mrf.mxu0
        %4092 = vmatprep.mubr.f32.mxu0 0.0
        %4093 = vmatmul.mubr.f32.gmra.mxu0 %v3099
        %v4094 = vpop.f32.mrf.mxu0
        %v4095 = vadd.f32 0.0, %v4094
        %v4096 = vpop.f32.mrf.mxu0
        %4097 = vmatprep.mubr.f32.mxu0 0.0
        %4098 = vmatmul.mubr.f32.gmra.mxu0 %v3102
        %v4099 = vpop.f32.mrf.mxu0
        %v4100 = vadd.f32 0.0, %v4099
        %v4101 = vpop.f32.mrf.mxu0
        %4102 = vmatprep.mubr.f32.mxu0 0.0
        %4103 = vmatmul.mubr.f32.gmra.mxu0 %v3105
        %v4104 = vpop.f32.mrf.mxu0
        %v4105 = vadd.f32 0.0, %v4104
        %v4106 = vpop.f32.mrf.mxu0
        %4107 = vmatprep.mubr.f32.mxu0 0.0
        %4108 = vmatmul.mubr.f32.gmra.mxu0 %v3108
        %v4109 = vpop.f32.mrf.mxu0
        %v4110 = vadd.f32 0.0, %v4109
        %v4111 = vpop.f32.mrf.mxu0
        %4112 = vmatprep.mubr.f32.mxu0 0.0
        %4113 = vmatmul.mubr.f32.gmra.mxu0 %v3111
        %v4114 = vpop.f32.mrf.mxu0
        %v4115 = vadd.f32 0.0, %v4114
        %v4116 = vpop.f32.mrf.mxu0
        %4117 = vmatprep.mubr.f32.mxu0 0.0
        %4118 = vmatmul.mubr.f32.gmra.mxu0 %v3114
        %v4119 = vpop.f32.mrf.mxu0
        %v4120 = vadd.f32 0.0, %v4119
        %v4121 = vpop.f32.mrf.mxu0
        %4122 = vmatprep.mubr.f32.mxu0 0.0
        %4123 = vmatmul.mubr.f32.gmra.mxu0 %v3117
        %v4124 = vpop.f32.mrf.mxu0
        %v4125 = vadd.f32 0.0, %v4124
        %v4126 = vpop.f32.mrf.mxu0
        %4127 = vmatprep.mubr.f32.mxu0 0.0
        %4128 = vmatmul.mubr.f32.gmra.mxu0 %v3120
        %v4129 = vpop.f32.mrf.mxu0
        %v4130 = vadd.f32 0.0, %v4129
        %v4131 = vpop.f32.mrf.mxu0
        %4132 = vmatprep.mubr.f32.mxu0 0.0
        %4133 = vmatmul.mubr.f32.gmra.mxu0 %v3123
        %v4134 = vpop.f32.mrf.mxu0
        %v4135 = vadd.f32 0.0, %v4134
        %v4136 = vpop.f32.mrf.mxu0
        %4137 = vmatprep.mubr.f32.mxu0 0.0
        %4138 = vmatmul.mubr.f32.gmra.mxu0 %v3126
        %v4139 = vpop.f32.mrf.mxu0
        %v4140 = vadd.f32 0.0, %v4139
        %v4141 = vpop.f32.mrf.mxu0
        %4142 = vmatprep.mubr.f32.mxu0 0.0
        %4143 = vmatmul.mubr.f32.gmra.mxu0 %v3129
        %v4144 = vpop.f32.mrf.mxu0
        %v4145 = vadd.f32 0.0, %v4144
        %v4146 = vpop.f32.mrf.mxu0
        %4147 = vmatprep.mubr.f32.mxu0 0.0
        %4148 = vmatmul.mubr.f32.gmra.mxu0 %v3132
        %v4149 = vpop.f32.mrf.mxu0
        %v4150 = vadd.f32 0.0, %v4149
        %v4151 = vpop.f32.mrf.mxu0
        %4152 = vmatprep.mubr.f32.mxu0 0.0
        %4153 = vmatmul.mubr.f32.gmra.mxu0 %v3135
        %v4154 = vpop.f32.mrf.mxu0
        %v4155 = vadd.f32 0.0, %v4154
        %v4156 = vpop.f32.mrf.mxu0
        %4157 = vmatprep.mubr.f32.mxu0 0.0
        %4158 = vmatmul.mubr.f32.gmra.mxu0 %v3138
        %v4159 = vpop.f32.mrf.mxu0
        %v4160 = vadd.f32 0.0, %v4159
        %v4161 = vpop.f32.mrf.mxu0
        %4162 = vmatprep.mubr.f32.mxu0 0.0
        %4163 = vmatmul.mubr.f32.gmra.mxu0 %v3141
        %v4164 = vpop.f32.mrf.mxu0
        %v4165 = vadd.f32 0.0, %v4164
        %v4166 = vpop.f32.mrf.mxu0
        %4167 = vmatprep.mubr.f32.mxu0 0.0
        %4168 = vmatmul.mubr.f32.gmra.mxu0 %v3144
        %v4169 = vpop.f32.mrf.mxu0
        %v4170 = vadd.f32 0.0, %v4169
        %v4171 = vpop.f32.mrf.mxu0
        %4172 = vmatprep.mubr.f32.mxu0 0.0
        %4173 = vmatmul.mubr.f32.gmra.mxu0 %v3147
        %v4174 = vpop.f32.mrf.mxu0
        %v4175 = vadd.f32 0.0, %v4174
        %v4176 = vpop.f32.mrf.mxu0
        %4177 = vmatprep.mubr.f32.mxu0 0.0
        %4178 = vmatmul.mubr.f32.gmra.mxu0 %v3150
        %v4179 = vpop.f32.mrf.mxu0
        %v4180 = vadd.f32 0.0, %v4179
        %v4181 = vpop.f32.mrf.mxu0
        %4182 = vmatprep.mubr.f32.mxu0 0.0
        %4183 = vmatmul.mubr.f32.gmra.mxu0 %v3153
        %v4184 = vpop.f32.mrf.mxu0
        %v4185 = vadd.f32 0.0, %v4184
        %v4186 = vpop.f32.mrf.mxu0
        %4187 = vmatprep.mubr.f32.mxu0 0.0
        %4188 = vmatmul.mubr.f32.gmra.mxu0 %v3156
        %v4189 = vpop.f32.mrf.mxu0
        %v4190 = vadd.f32 0.0, %v4189
        %v4191 = vpop.f32.mrf.mxu0
        %4192 = vmatprep.mubr.f32.mxu0 0.0
        %4193 = vmatmul.mubr.f32.gmra.mxu0 %v3159
        %v4194 = vpop.f32.mrf.mxu0
        %v4195 = vadd.f32 0.0, %v4194
        %v4196 = vpop.f32.mrf.mxu0
        %4197 = vmatprep.mubr.f32.mxu0 0.0
        %4198 = vmatmul.mubr.f32.gmra.mxu0 %v3162
        %v4199 = vpop.f32.mrf.mxu0
        %v4200 = vadd.f32 0.0, %v4199
        %v4201 = vpop.f32.mrf.mxu0
        %4202 = vmatprep.mubr.f32.mxu0 0.0
        %4203 = vmatmul.mubr.f32.gmra.mxu0 %v3165
        %v4204 = vpop.f32.mrf.mxu0
        %v4205 = vadd.f32 0.0, %v4204
        %v4206 = vpop.f32.mrf.mxu0
        %4207 = vmatprep.mubr.f32.mxu0 0.0
        %4208 = vmatmul.mubr.f32.gmra.mxu0 %v3168
        %v4209 = vpop.f32.mrf.mxu0
        %v4210 = vadd.f32 0.0, %v4209
        %v4211 = vpop.f32.mrf.mxu0
        %4212 = vmatprep.mubr.f32.mxu0 0.0
        %4213 = vmatmul.mubr.f32.gmra.mxu0 %v3171
        %v4214 = vpop.f32.mrf.mxu0
        %v4215 = vadd.f32 0.0, %v4214
        %v4216 = vpop.f32.mrf.mxu0
        %4217 = vmatprep.mubr.f32.mxu0 0.0
        %4218 = vmatmul.mubr.f32.gmra.mxu0 %v3174
        %v4219 = vpop.f32.mrf.mxu0
        %v4220 = vadd.f32 0.0, %v4219
        %v4221 = vpop.f32.mrf.mxu0
        %4222 = vmatprep.mubr.f32.mxu0 0.0
        %4223 = vmatmul.mubr.f32.gmra.mxu0 %v3177
        %v4224 = vpop.f32.mrf.mxu0
        %v4225 = vadd.f32 0.0, %v4224
        %v4226 = vpop.f32.mrf.mxu0
        %4227 = vmatprep.mubr.f32.mxu0 0.0
        %4228 = vmatmul.mubr.f32.gmra.mxu0 %v3180
        %v4229 = vpop.f32.mrf.mxu0
        %v4230 = vadd.f32 0.0, %v4229
        %v4231 = vpop.f32.mrf.mxu0
        %4232 = vmatprep.mubr.f32.mxu0 0.0
        %4233 = vmatmul.mubr.f32.gmra.mxu0 %v3183
        %v4234 = vpop.f32.mrf.mxu0
        %v4235 = vadd.f32 0.0, %v4234
        %v4236 = vpop.f32.mrf.mxu0
        %4237 = vmatprep.mubr.f32.mxu0 0.0
        %4238 = vmatmul.mubr.f32.gmra.mxu0 %v3186
        %v4239 = vpop.f32.mrf.mxu0
        %v4240 = vadd.f32 0.0, %v4239
        %v4241 = vpop.f32.mrf.mxu0
        %4242 = vmatprep.mubr.f32.mxu0 0.0
        %4243 = vmatmul.mubr.f32.gmra.mxu0 %v3189
        %v4244 = vpop.f32.mrf.mxu0
        %v4245 = vadd.f32 0.0, %v4244
        %v4246 = vpop.f32.mrf.mxu0
        %4247 = vmatprep.mubr.f32.mxu0 0.0
        %4248 = vmatmul.mubr.f32.gmra.mxu0 %v3192
        %v4249 = vpop.f32.mrf.mxu0
        %v4250 = vadd.f32 0.0, %v4249
        %v4251 = vpop.f32.mrf.mxu0
        %4252 = vmatprep.mubr.f32.mxu0 0.0
        %4253 = vmatmul.mubr.f32.gmra.mxu0 %v3195
        %v4254 = vpop.f32.mrf.mxu0
        %v4255 = vadd.f32 0.0, %v4254
        %v4256 = vpop.f32.mrf.mxu0
        %4257 = vmatprep.mubr.f32.mxu0 0.0
        %4258 = vmatmul.mubr.f32.gmra.mxu0 %v3198
        %v4259 = vpop.f32.mrf.mxu0
        %v4260 = vadd.f32 0.0, %v4259
        %v4261 = vpop.f32.mrf.mxu0
        %4262 = vmatprep.mubr.f32.mxu0 0.0
        %4263 = vmatmul.mubr.f32.gmra.mxu0 %v3201
        %v4264 = vpop.f32.mrf.mxu0
        %v4265 = vadd.f32 0.0, %v4264
        %v4266 = vpop.f32.mrf.mxu0
        %4267 = vmatprep.mubr.f32.mxu0 0.0
        %4268 = vmatmul.mubr.f32.gmra.mxu0 %v3204
        %v4269 = vpop.f32.mrf.mxu0
        %v4270 = vadd.f32 0.0, %v4269
        %v4271 = vpop.f32.mrf.mxu0
        %4272 = vmatprep.mubr.f32.mxu0 0.0
        %4273 = vmatmul.mubr.f32.gmra.mxu0 %v3207
        %v4274 = vpop.f32.mrf.mxu0
        %v4275 = vadd.f32 0.0, %v4274
        %v4276 = vpop.f32.mrf.mxu0
        %4277 = vmatprep.mubr.f32.mxu0 0.0
        %4278 = vmatmul.mubr.f32.gmra.mxu0 %v3210
        %v4279 = vpop.f32.mrf.mxu0
        %v4280 = vadd.f32 0.0, %v4279
        %v4281 = vpop.f32.mrf.mxu0
        %4282 = vmatprep.mubr.f32.mxu0 0.0
        %4283 = vmatmul.mubr.f32.gmra.mxu0 %v3213
        %v4284 = vpop.f32.mrf.mxu0
        %v4285 = vadd.f32 0.0, %v4284
        %v4286 = vpop.f32.mrf.mxu0
        %4287 = vmatprep.mubr.f32.mxu0 0.0
        %4288 = vmatmul.mubr.f32.gmra.mxu0 %v3216
        %v4289 = vpop.f32.mrf.mxu0
        %v4290 = vadd.f32 0.0, %v4289
        %v4291 = vpop.f32.mrf.mxu0
        %4292 = vmatprep.mubr.f32.mxu0 0.0
        %4293 = vmatmul.mubr.f32.gmra.mxu0 %v3219
        %v4294 = vpop.f32.mrf.mxu0
        %v4295 = vadd.f32 0.0, %v4294
        %v4296 = vpop.f32.mrf.mxu0
        %4297 = vmatprep.mubr.f32.mxu0 0.0
        %4298 = vmatmul.mubr.f32.gmra.mxu0 %v3222
        %v4299 = vpop.f32.mrf.mxu0
        %v4300 = vadd.f32 0.0, %v4299
        %v4301 = vpop.f32.mrf.mxu0
        %4302 = vmatprep.mubr.f32.mxu0 0.0
        %4303 = vmatmul.mubr.f32.gmra.mxu0 %v3225
        %v4304 = vpop.f32.mrf.mxu0
        %v4305 = vadd.f32 0.0, %v4304
        %v4306 = vpop.f32.mrf.mxu0
        %4307 = vmatprep.mubr.f32.mxu0 0.0
        %4308 = vmatmul.mubr.f32.gmra.mxu0 %v3228
        %v4309 = vpop.f32.mrf.mxu0
        %v4310 = vadd.f32 0.0, %v4309
        %v4311 = vpop.f32.mrf.mxu0
        %4312 = vmatprep.mubr.f32.mxu0 0.0
        %4313 = vmatmul.mubr.f32.gmra.mxu0 %v3231
        %v4314 = vpop.f32.mrf.mxu0
        %v4315 = vadd.f32 0.0, %v4314
        %v4316 = vpop.f32.mrf.mxu0
        %4317 = vmatprep.mubr.f32.mxu0 0.0
        %4318 = vmatmul.mubr.f32.gmra.mxu0 %v3234
        %v4319 = vpop.f32.mrf.mxu0
        %v4320 = vadd.f32 0.0, %v4319
        %v4321 = vpop.f32.mrf.mxu0
        %4322 = vmatprep.mubr.f32.mxu0 0.0
        %4323 = vmatmul.mubr.f32.gmra.mxu0 %v3237
        %v4324 = vpop.f32.mrf.mxu0
        %v4325 = vadd.f32 0.0, %v4324
        %v4326 = vpop.f32.mrf.mxu0
        %4327 = vmatprep.mubr.f32.mxu0 0.0
        %4328 = vmatmul.mubr.f32.gmra.mxu0 %v3240
        %v4329 = vpop.f32.mrf.mxu0
        %v4330 = vadd.f32 0.0, %v4329
        %v4331 = vpop.f32.mrf.mxu0
        %4332 = vmatprep.mubr.f32.mxu0 0.0
        %4333 = vmatmul.mubr.f32.gmra.mxu0 %v3243
        %v4334 = vpop.f32.mrf.mxu0
        %v4335 = vadd.f32 0.0, %v4334
        %v4336 = vpop.f32.mrf.mxu0
        %4337 = vmatprep.mubr.f32.mxu0 0.0
        %4338 = vmatmul.mubr.f32.gmra.mxu0 %v3246
        %v4339 = vpop.f32.mrf.mxu0
        %v4340 = vadd.f32 0.0, %v4339
        %v4341 = vpop.f32.mrf.mxu0
        %4342 = vmatprep.mubr.f32.mxu0 0.0
        %4343 = vmatmul.mubr.f32.gmra.mxu0 %v3249
        %v4344 = vpop.f32.mrf.mxu0
        %v4345 = vadd.f32 0.0, %v4344
        %v4346 = vpop.f32.mrf.mxu0
        %4347 = vmatprep.mubr.f32.mxu0 0.0
        %4348 = vmatmul.mubr.f32.gmra.mxu0 %v3252
        %v4349 = vpop.f32.mrf.mxu0
        %v4350 = vadd.f32 0.0, %v4349
        %v4351 = vpop.f32.mrf.mxu0
        %4352 = vmatprep.mubr.f32.mxu0 0.0
        %4353 = vmatmul.mubr.f32.gmra.mxu0 %v3255
        %v4354 = vpop.f32.mrf.mxu0
        %v4355 = vadd.f32 0.0, %v4354
        %v4356 = vpop.f32.mrf.mxu0
        %4357 = vmatprep.mubr.f32.mxu0 0.0
        %4358 = vmatmul.mubr.f32.gmra.mxu0 %v3258
        %v4359 = vpop.f32.mrf.mxu0
        %v4360 = vadd.f32 0.0, %v4359
        %v4361 = vpop.f32.mrf.mxu0
        %4362 = vmatprep.mubr.f32.mxu0 0.0
        %4363 = vmatmul.mubr.f32.gmra.mxu0 %v3261
        %v4364 = vpop.f32.mrf.mxu0
        %v4365 = vadd.f32 0.0, %v4364
        %v4366 = vpop.f32.mrf.mxu0
        %4367 = vmatprep.mubr.f32.mxu0 0.0
        %4368 = vmatmul.mubr.f32.gmra.mxu0 %v3264
        %v4369 = vpop.f32.mrf.mxu0
        %v4370 = vadd.f32 0.0, %v4369
        %v4371 = vpop.f32.mrf.mxu0
        %4372 = vmatprep.mubr.f32.mxu0 0.0
        %4373 = vmatmul.mubr.f32.gmra.mxu0 %v3267
        %v4374 = vpop.f32.mrf.mxu0
        %v4375 = vadd.f32 0.0, %v4374
        %v4376 = vpop.f32.mrf.mxu0
        %4377 = vmatprep.mubr.f32.mxu0 0.0
        %4378 = vmatmul.mubr.f32.gmra.mxu0 %v3270
        %v4379 = vpop.f32.mrf.mxu0
        %v4380 = vadd.f32 0.0, %v4379
        %v4381 = vpop.f32.mrf.mxu0
        %4382 = vmatprep.mubr.f32.mxu0 0.0
        %4383 = vmatmul.mubr.f32.gmra.mxu0 %v3273
        %v4384 = vpop.f32.mrf.mxu0
        %v4385 = vadd.f32 0.0, %v4384
        %v4386 = vpop.f32.mrf.mxu0
        %4387 = vmatprep.mubr.f32.mxu0 0.0
        %4388 = vmatmul.mubr.f32.gmra.mxu0 %v3276
        %v4389 = vpop.f32.mrf.mxu0
        %v4390 = vadd.f32 0.0, %v4389
        %v4391 = vpop.f32.mrf.mxu0
        %4392 = vmatprep.mubr.f32.mxu0 0.0
        %4393 = vmatmul.mubr.f32.gmra.mxu0 %v3279
        %v4394 = vpop.f32.mrf.mxu0
        %v4395 = vadd.f32 0.0, %v4394
        %v4396 = vpop.f32.mrf.mxu0
        %4397 = vmatprep.mubr.f32.mxu0 0.0
        %4398 = vmatmul.mubr.f32.gmra.mxu0 %v3282
        %v4399 = vpop.f32.mrf.mxu0
        %v4400 = vadd.f32 0.0, %v4399
        %v4401 = vpop.f32.mrf.mxu0
        %4402 = vmatprep.mubr.f32.mxu0 0.0
        %4403 = vmatmul.mubr.f32.gmra.mxu0 %v3285
        %v4404 = vpop.f32.mrf.mxu0
        %v4405 = vadd.f32 0.0, %v4404
        %v4406 = vpop.f32.mrf.mxu0
        %4407 = vmatprep.mubr.f32.mxu0 0.0
        %4408 = vmatmul.mubr.f32.gmra.mxu0 %v3288
        %v4409 = vpop.f32.mrf.mxu0
        %v4410 = vadd.f32 0.0, %v4409
        %v4411 = vpop.f32.mrf.mxu0
        %4412 = vmatprep.mubr.f32.mxu0 0.0
        %4413 = vmatmul.mubr.f32.gmra.mxu0 %v3291
        %v4414 = vpop.f32.mrf.mxu0
        %v4415 = vadd.f32 0.0, %v4414
        %v4416 = vpop.f32.mrf.mxu0
        %4417 = vmatprep.mubr.f32.mxu0 0.0
        %4418 = vmatmul.mubr.f32.gmra.mxu0 %v3294
        %v4419 = vpop.f32.mrf.mxu0
        %v4420 = vadd.f32 0.0, %v4419
        %v4421 = vpop.f32.mrf.mxu0
        %4422 = vmatprep.mubr.f32.mxu0 0.0
        %4423 = vmatmul.mubr.f32.gmra.mxu0 %v3297
        %v4424 = vpop.f32.mrf.mxu0
        %v4425 = vadd.f32 0.0, %v4424
        %v4426 = vpop.f32.mrf.mxu0
        %4427 = vmatprep.mubr.f32.mxu0 0.0
        %4428 = vmatmul.mubr.f32.gmra.mxu0 %v3300
        %v4429 = vpop.f32.mrf.mxu0
        %v4430 = vadd.f32 0.0, %v4429
        %v4431 = vpop.f32.mrf.mxu0
        %4432 = vmatprep.mubr.f32.mxu0 0.0
        %4433 = vmatmul.mubr.f32.gmra.mxu0 %v3303
        %v4434 = vpop.f32.mrf.mxu0
        %v4435 = vadd.f32 0.0, %v4434
        %v4436 = vpop.f32.mrf.mxu0
        %4437 = vmatprep.mubr.f32.mxu0 0.0
        %4438 = vmatmul.mubr.f32.gmra.mxu0 %v3306
        %v4439 = vpop.f32.mrf.mxu0
        %v4440 = vadd.f32 0.0, %v4439
        %v4441 = vpop.f32.mrf.mxu0
        %4442 = vmatprep.mubr.f32.mxu0 0.0
        %4443 = vmatmul.mubr.f32.gmra.mxu0 %v3309
        %v4444 = vpop.f32.mrf.mxu0
        %v4445 = vadd.f32 0.0, %v4444
        %v4446 = vpop.f32.mrf.mxu0
        %4447 = vmatprep.mubr.f32.mxu0 0.0
        %4448 = vmatmul.mubr.f32.gmra.mxu0 %v3312
        %v4449 = vpop.f32.mrf.mxu0
        %v4450 = vadd.f32 0.0, %v4449
        %v4451 = vpop.f32.mrf.mxu0
        %4452 = vmatprep.mubr.f32.mxu0 0.0
        %4453 = vmatmul.mubr.f32.gmra.mxu0 %v3315
        %v4454 = vpop.f32.mrf.mxu0
        %v4455 = vadd.f32 0.0, %v4454
        %v4456 = vpop.f32.mrf.mxu0
        %4457 = vmatprep.mubr.f32.mxu0 0.0
        %4458 = vmatmul.mubr.f32.gmra.mxu0 %v3318
        %v4459 = vpop.f32.mrf.mxu0
        %v4460 = vadd.f32 0.0, %v4459
        %v4461 = vpop.f32.mrf.mxu0
        %4462 = vmatprep.mubr.f32.mxu0 0.0
        %4463 = vmatmul.mubr.f32.gmra.mxu0 %v3321
        %v4464 = vpop.f32.mrf.mxu0
        %v4465 = vadd.f32 0.0, %v4464
        %v4466 = vpop.f32.mrf.mxu0
        %4467 = vmatprep.mubr.f32.mxu0 0.0
        %4468 = vmatmul.mubr.f32.gmra.mxu0 %v3324
        %v4469 = vpop.f32.mrf.mxu0
        %v4470 = vadd.f32 0.0, %v4469
        %v4471 = vpop.f32.mrf.mxu0
        %4472 = vmatprep.mubr.f32.mxu0 0.0
        %4473 = vmatmul.mubr.f32.gmra.mxu0 %v3327
        %v4474 = vpop.f32.mrf.mxu0
        %v4475 = vadd.f32 0.0, %v4474
        %v4476 = vpop.f32.mrf.mxu0
        %4477 = vmatprep.mubr.f32.mxu0 0.0
        %4478 = vmatmul.mubr.f32.gmra.mxu0 %v3330
        %v4479 = vpop.f32.mrf.mxu0
        %v4480 = vadd.f32 0.0, %v4479
        %v4481 = vpop.f32.mrf.mxu0
        %4482 = vmatprep.mubr.f32.mxu0 0.0
        %4483 = vmatmul.mubr.f32.gmra.mxu0 %v3333
        %v4484 = vpop.f32.mrf.mxu0
        %v4485 = vadd.f32 0.0, %v4484
        %v4486 = vpop.f32.mrf.mxu0
        %4487 = vmatprep.mubr.f32.mxu0 0.0
        %4488 = vmatmul.mubr.f32.gmra.mxu0 %v3336
        %v4489 = vpop.f32.mrf.mxu0
        %v4490 = vadd.f32 0.0, %v4489
        %v4491 = vpop.f32.mrf.mxu0
        %4492 = vmatprep.mubr.f32.mxu0 0.0
        %4493 = vmatmul.mubr.f32.gmra.mxu0 %v3339
        %v4494 = vpop.f32.mrf.mxu0
        %v4495 = vadd.f32 0.0, %v4494
        %v4496 = vpop.f32.mrf.mxu0
        %4497 = vmatprep.mubr.f32.mxu0 0.0
        %4498 = vmatmul.mubr.f32.gmra.mxu0 %v3342
        %v4499 = vpop.f32.mrf.mxu0
        %v4500 = vadd.f32 0.0, %v4499
        %v4501 = vpop.f32.mrf.mxu0
        %4502 = vmatprep.mubr.f32.mxu0 0.0
        %4503 = vmatmul.mubr.f32.gmra.mxu0 %v3345
        %v4504 = vpop.f32.mrf.mxu0
        %v4505 = vadd.f32 0.0, %v4504
        %v4506 = vpop.f32.mrf.mxu0
        %4507 = vmatprep.mubr.f32.mxu0 0.0
        %4508 = vmatmul.mubr.f32.gmra.mxu0 %v3348
        %v4509 = vpop.f32.mrf.mxu0
        %v4510 = vadd.f32 0.0, %v4509
        %v4511 = vpop.f32.mrf.mxu0
        %4512 = vmatprep.mubr.f32.mxu0 0.0
        %4513 = vmatmul.mubr.f32.gmra.mxu0 %v3351
        %v4514 = vpop.f32.mrf.mxu0
        %v4515 = vadd.f32 0.0, %v4514
        %v4516 = vpop.f32.mrf.mxu0
        %4517 = vmatprep.mubr.f32.mxu0 0.0
        %4518 = vmatmul.mubr.f32.gmra.mxu0 %v3354
        %v4519 = vpop.f32.mrf.mxu0
        %v4520 = vadd.f32 0.0, %v4519
        %v4521 = vpop.f32.mrf.mxu0
        %4522 = vmatprep.mubr.f32.mxu0 0.0
        %4523 = vmatmul.mubr.f32.gmra.mxu0 %v3357
        %v4524 = vpop.f32.mrf.mxu0
        %v4525 = vadd.f32 0.0, %v4524
        %v4526 = vpop.f32.mrf.mxu0
        %4527 = vmatprep.mubr.f32.mxu0 0.0
        %4528 = vmatmul.mubr.f32.gmra.mxu0 %v3360
        %v4529 = vpop.f32.mrf.mxu0
        %v4530 = vadd.f32 0.0, %v4529
        %v4531 = vpop.f32.mrf.mxu0
        %4532 = vmatprep.mubr.f32.mxu0 0.0
        %4533 = vmatmul.mubr.f32.gmra.mxu0 %v3363
        %v4534 = vpop.f32.mrf.mxu0
        %v4535 = vadd.f32 0.0, %v4534
        %v4536 = vpop.f32.mrf.mxu0
        %4537 = vmatprep.mubr.f32.mxu0 0.0
        %4538 = vmatmul.mubr.f32.gmra.mxu0 %v3366
        %v4539 = vpop.f32.mrf.mxu0
        %v4540 = vadd.f32 0.0, %v4539
        %v4541 = vpop.f32.mrf.mxu0
        %4542 = vmatprep.mubr.f32.mxu0 0.0
        %4543 = vmatmul.mubr.f32.gmra.mxu0 %v3369
        %v4544 = vpop.f32.mrf.mxu0
        %v4545 = vadd.f32 0.0, %v4544
        %v4546 = vpop.f32.mrf.mxu0
        %4547 = vmatprep.mubr.f32.mxu0 0.0
        %4548 = vmatmul.mubr.f32.gmra.mxu0 %v3372
        %v4549 = vpop.f32.mrf.mxu0
        %v4550 = vadd.f32 0.0, %v4549
        %v4551 = vpop.f32.mrf.mxu0
        %4552 = vmatprep.mubr.f32.mxu0 0.0
        %4553 = vmatmul.mubr.f32.gmra.mxu0 %v3375
        %v4554 = vpop.f32.mrf.mxu0
        %v4555 = vadd.f32 0.0, %v4554
        %v4556 = vpop.f32.mrf.mxu0
        %4557 = vmatprep.mubr.f32.mxu0 0.0
        %4558 = vmatmul.mubr.f32.gmra.mxu0 %v3378
        %v4559 = vpop.f32.mrf.mxu0
        %v4560 = vadd.f32 0.0, %v4559
        %v4561 = vpop.f32.mrf.mxu0
        %4562 = vmatprep.mubr.f32.mxu0 0.0
        %4563 = vmatmul.mubr.f32.gmra.mxu0 %v3381
        %v4564 = vpop.f32.mrf.mxu0
        %v4565 = vadd.f32 0.0, %v4564
        %v4566 = vpop.f32.mrf.mxu0
        %4567 = vmatprep.mubr.f32.mxu0 0.0
        %4568 = vmatmul.mubr.f32.gmra.mxu0 %v3384
        %v4569 = vpop.f32.mrf.mxu0
        %v4570 = vadd.f32 0.0, %v4569
        %v4571 = vpop.f32.mrf.mxu0
        %4572 = vmatprep.mubr.f32.mxu0 0.0
        %4573 = vmatmul.mubr.f32.gmra.mxu0 %v3387
        %v4574 = vpop.f32.mrf.mxu0
        %v4575 = vadd.f32 0.0, %v4574
        %v4576 = vpop.f32.mrf.mxu0
        %4577 = vmatprep.mubr.f32.mxu0 0.0
        %4578 = vmatmul.mubr.f32.gmra.mxu0 %v3390
        %v4579 = vpop.f32.mrf.mxu0
        %v4580 = vadd.f32 0.0, %v4579
        %v4581 = vpop.f32.mrf.mxu0
        %4582 = vmatprep.mubr.f32.mxu0 0.0
        %4583 = vmatmul.mubr.f32.gmra.mxu0 %v3393
        %v4584 = vpop.f32.mrf.mxu0
        %v4585 = vadd.f32 0.0, %v4584
        %v4586 = vpop.f32.mrf.mxu0
        %4587 = vmatprep.mubr.f32.mxu0 0.0
        %4588 = vmatmul.mubr.f32.gmra.mxu0 %v3396
        %v4589 = vpop.f32.mrf.mxu0
        %v4590 = vadd.f32 0.0, %v4589
        %v4591 = vpop.f32.mrf.mxu0
        %4592 = vmatprep.mubr.f32.mxu0 0.0
        %4593 = vmatmul.mubr.f32.gmra.mxu0 %v3399
        %v4594 = vpop.f32.mrf.mxu0
        %v4595 = vadd.f32 0.0, %v4594
        %v4596 = vpop.f32.mrf.mxu0
        %4597 = vmatprep.mubr.f32.mxu0 0.0
        %4598 = vmatmul.mubr.f32.gmra.mxu0 %v3402
        %v4599 = vpop.f32.mrf.mxu0
        %v4600 = vadd.f32 0.0, %v4599
        %v4601 = vpop.f32.mrf.mxu0
        %4602 = vmatprep.mubr.f32.mxu0 0.0
        %4603 = vmatmul.mubr.f32.gmra.mxu0 %v3405
        %v4604 = vpop.f32.mrf.mxu0
        %v4605 = vadd.f32 0.0, %v4604
        %v4606 = vpop.f32.mrf.mxu0
        %4607 = vmatprep.mubr.f32.mxu0 0.0
        %4608 = vmatmul.mubr.f32.gmra.mxu0 %v3408
        %v4609 = vpop.f32.mrf.mxu0
        %v4610 = vadd.f32 0.0, %v4609
        %v4611 = vpop.f32.mrf.mxu0
        %4612 = vmatprep.mubr.f32.mxu0 0.0
        %4613 = vmatmul.mubr.f32.gmra.mxu0 %v3411
        %v4614 = vpop.f32.mrf.mxu0
        %v4615 = vadd.f32 0.0, %v4614
        %v4616 = vpop.f32.mrf.mxu0
        %4617 = vmatprep.mubr.f32.mxu0 0.0
        %4618 = vmatmul.mubr.f32.gmra.mxu0 %v3414
        %v4619 = vpop.f32.mrf.mxu0
        %v4620 = vadd.f32 0.0, %v4619
        %v4621 = vpop.f32.mrf.mxu0
        %4622 = vmatprep.mubr.f32.mxu0 0.0
        %4623 = vmatmul.mubr.f32.gmra.mxu0 %v3417
        %v4624 = vpop.f32.mrf.mxu0
        %v4625 = vadd.f32 0.0, %v4624
        %v4626 = vpop.f32.mrf.mxu0
        %4627 = vmatprep.mubr.f32.mxu0 0.0
        %4628 = vmatmul.mubr.f32.gmra.mxu0 %v3420
        %v4629 = vpop.f32.mrf.mxu0
        %v4630 = vadd.f32 0.0, %v4629
        %v4631 = vpop.f32.mrf.mxu0
        %4632 = vmatprep.mubr.f32.mxu0 0.0
        %4633 = vmatmul.mubr.f32.gmra.mxu0 %v3423
        %v4634 = vpop.f32.mrf.mxu0
        %v4635 = vadd.f32 0.0, %v4634
        %v4636 = vpop.f32.mrf.mxu0
        %4637 = vmatprep.mubr.f32.mxu0 0.0
        %4638 = vmatmul.mubr.f32.gmra.mxu0 %v3426
        %v4639 = vpop.f32.mrf.mxu0
        %v4640 = vadd.f32 0.0, %v4639
        %v4641 = vpop.f32.mrf.mxu0
        %4642 = vmatprep.mubr.f32.mxu0 0.0
        %4643 = vmatmul.mubr.f32.gmra.mxu0 %v3429
        %v4644 = vpop.f32.mrf.mxu0
        %v4645 = vadd.f32 0.0, %v4644
        %v4646 = vpop.f32.mrf.mxu0
        %4647 = vmatprep.mubr.f32.mxu0 0.0
        %4648 = vmatmul.mubr.f32.gmra.mxu0 %v3432
        %v4649 = vpop.f32.mrf.mxu0
        %v4650 = vadd.f32 0.0, %v4649
        %v4651 = vpop.f32.mrf.mxu0
        %4652 = vmatprep.mubr.f32.mxu0 0.0
        %4653 = vmatmul.mubr.f32.gmra.mxu0 %v3435
        %v4654 = vpop.f32.mrf.mxu0
        %v4655 = vadd.f32 0.0, %v4654
        %v4656 = vpop.f32.mrf.mxu0
        %4657 = vmatprep.mubr.f32.mxu0 0.0
        %4658 = vmatmul.mubr.f32.gmra.mxu0 %v3438
        %v4659 = vpop.f32.mrf.mxu0
        %v4660 = vadd.f32 0.0, %v4659
        %v4661 = vpop.f32.mrf.mxu0
        %4662 = vmatprep.mubr.f32.mxu0 0.0
        %4663 = vmatmul.mubr.f32.gmra.mxu0 %v3441
        %v4664 = vpop.f32.mrf.mxu0
        %v4665 = vadd.f32 0.0, %v4664
        %v4666 = vpop.f32.mrf.mxu0
        %4667 = vmatprep.mubr.f32.mxu0 0.0
        %4668 = vmatmul.mubr.f32.gmra.mxu0 %v3444
        %v4669 = vpop.f32.mrf.mxu0
        %v4670 = vadd.f32 0.0, %v4669
        %v4671 = vpop.f32.mrf.mxu0
        %4672 = vmatprep.mubr.f32.mxu0 0.0
        %4673 = vmatmul.mubr.f32.gmra.mxu0 %v3447
        %v4674 = vpop.f32.mrf.mxu0
        %v4675 = vadd.f32 0.0, %v4674
        %v4676 = vpop.f32.mrf.mxu0
        %4677 = vmatprep.mubr.f32.mxu0 0.0
        %4678 = vmatmul.mubr.f32.gmra.mxu0 %v3450
        %v4679 = vpop.f32.mrf.mxu0
        %v4680 = vadd.f32 0.0, %v4679
        %v4681 = vpop.f32.mrf.mxu0
        %4682 = vmatprep.mubr.f32.mxu0 0.0
        %4683 = vmatmul.mubr.f32.gmra.mxu0 %v3453
        %v4684 = vpop.f32.mrf.mxu0
        %v4685 = vadd.f32 0.0, %v4684
        %v4686 = vpop.f32.mrf.mxu0
        %4687 = vmatprep.mubr.f32.mxu0 0.0
        %4688 = vmatmul.mubr.f32.gmra.mxu0 %v3456
        %v4689 = vpop.f32.mrf.mxu0
        %v4690 = vadd.f32 0.0, %v4689
        %v4691 = vpop.f32.mrf.mxu0
        %4692 = vmatprep.mubr.f32.mxu0 0.0
        %4693 = vmatmul.mubr.f32.gmra.mxu0 %v3459
        %v4694 = vpop.f32.mrf.mxu0
        %v4695 = vadd.f32 0.0, %v4694
        %v4696 = vpop.f32.mrf.mxu0
        %4697 = vmatprep.mubr.f32.mxu0 0.0
        %4698 = vmatmul.mubr.f32.gmra.mxu0 %v3462
        %v4699 = vpop.f32.mrf.mxu0
        %v4700 = vadd.f32 0.0, %v4699
        %v4701 = vpop.f32.mrf.mxu0
        %4702 = vmatprep.mubr.f32.mxu0 0.0
        %4703 = vmatmul.mubr.f32.gmra.mxu0 %v3465
        %v4704 = vpop.f32.mrf.mxu0
        %v4705 = vadd.f32 0.0, %v4704
        %v4706 = vpop.f32.mrf.mxu0
        %4707 = vmatprep.mubr.f32.mxu0 0.0
        %4708 = vmatmul.mubr.f32.gmra.mxu0 %v3468
        %v4709 = vpop.f32.mrf.mxu0
        %v4710 = vadd.f32 0.0, %v4709
        %v4711 = vpop.f32.mrf.mxu0
        %4712 = vmatprep.mubr.f32.mxu0 0.0
        %4713 = vmatmul.mubr.f32.gmra.mxu0 %v3471
        %v4714 = vpop.f32.mrf.mxu0
        %v4715 = vadd.f32 0.0, %v4714
        %v4716 = vpop.f32.mrf.mxu0
        %4717 = vmatprep.mubr.f32.mxu0 0.0
        %4718 = vmatmul.mubr.f32.gmra.mxu0 %v3474
        %v4719 = vpop.f32.mrf.mxu0
        %v4720 = vadd.f32 0.0, %v4719
        %v4721 = vpop.f32.mrf.mxu0
        %4722 = vmatprep.mubr.f32.mxu0 0.0
        %4723 = vmatmul.mubr.f32.gmra.mxu0 %v3477
        %v4724 = vpop.f32.mrf.mxu0
        %v4725 = vadd.f32 0.0, %v4724
        %v4726 = vpop.f32.mrf.mxu0
        %4727 = vmatprep.mubr.f32.mxu0 0.0
        %4728 = vmatmul.mubr.f32.gmra.mxu0 %v3480
        %v4729 = vpop.f32.mrf.mxu0
        %v4730 = vadd.f32 0.0, %v4729
        %v4731 = vpop.f32.mrf.mxu0
        %4732 = vmatprep.mubr.f32.mxu0 0.0
        %4733 = vmatmul.mubr.f32.gmra.mxu0 %v3483
        %v4734 = vpop.f32.mrf.mxu0
        %v4735 = vadd.f32 0.0, %v4734
        %v4736 = vpop.f32.mrf.mxu0
        %4737 = vmatprep.mubr.f32.mxu0 0.0
        %4738 = vmatmul.mubr.f32.gmra.mxu0 %v3486
        %v4739 = vpop.f32.mrf.mxu0
        %v4740 = vadd.f32 0.0, %v4739
        %v4741 = vpop.f32.mrf.mxu0
        %4742 = vmatprep.mubr.f32.mxu0 0.0
        %4743 = vmatmul.mubr.f32.gmra.mxu0 %v3489
        %v4744 = vpop.f32.mrf.mxu0
        %v4745 = vadd.f32 0.0, %v4744
        %v4746 = vpop.f32.mrf.mxu0
        %4747 = vmatprep.mubr.f32.mxu0 0.0
        %4748 = vmatmul.mubr.f32.gmra.mxu0 %v3492
        %v4749 = vpop.f32.mrf.mxu0
        %v4750 = vadd.f32 0.0, %v4749
        %v4751 = vpop.f32.mrf.mxu0
        %4752 = vmatprep.mubr.f32.mxu0 0.0
        %4753 = vmatmul.mubr.f32.gmra.mxu0 %v3495
        %v4754 = vpop.f32.mrf.mxu0
        %v4755 = vadd.f32 0.0, %v4754
        %v4756 = vpop.f32.mrf.mxu0
        %4757 = vmatprep.mubr.f32.mxu0 0.0
        %4758 = vmatmul.mubr.f32.gmra.mxu0 %v3498
        %v4759 = vpop.f32.mrf.mxu0
        %v4760 = vadd.f32 0.0, %v4759
        %v4761 = vpop.f32.mrf.mxu0
        %4762 = vmatprep.mubr.f32.mxu0 0.0
        %4763 = vmatmul.mubr.f32.gmra.mxu0 %v3501
        %v4764 = vpop.f32.mrf.mxu0
        %v4765 = vadd.f32 0.0, %v4764
        %v4766 = vpop.f32.mrf.mxu0
        %4767 = vmatprep.mubr.f32.mxu0 0.0
        %4768 = vmatmul.mubr.f32.gmra.mxu0 %v3504
        %v4769 = vpop.f32.mrf.mxu0
        %v4770 = vadd.f32 0.0, %v4769
        %v4771 = vpop.f32.mrf.mxu0
        %4772 = vmatprep.mubr.f32.mxu0 0.0
        %4773 = vmatmul.mubr.f32.gmra.mxu0 %v3507
        %v4774 = vpop.f32.mrf.mxu0
        %v4775 = vadd.f32 0.0, %v4774
        %v4776 = vpop.f32.mrf.mxu0
        %4777 = vmatprep.mubr.f32.mxu0 0.0
        %4778 = vmatmul.mubr.f32.gmra.mxu0 %v3510
        %v4779 = vpop.f32.mrf.mxu0
        %v4780 = vadd.f32 0.0, %v4779
        %v4781 = vpop.f32.mrf.mxu0
        %4782 = vmatprep.mubr.f32.mxu0 0.0
        %4783 = vmatmul.mubr.f32.gmra.mxu0 %v3513
        %v4784 = vpop.f32.mrf.mxu0
        %v4785 = vadd.f32 0.0, %v4784
        %v4786 = vpop.f32.mrf.mxu0
        %4787 = vmatprep.mubr.f32.mxu0 0.0
        %4788 = vmatmul.mubr.f32.gmra.mxu0 %v3516
        %v4789 = vpop.f32.mrf.mxu0
        %v4790 = vadd.f32 0.0, %v4789
        %v4791 = vpop.f32.mrf.mxu0
        %4792 = vmatprep.mubr.f32.mxu0 0.0
        %4793 = vmatmul.mubr.f32.gmra.mxu0 %v3519
        %v4794 = vpop.f32.mrf.mxu0
        %v4795 = vadd.f32 0.0, %v4794
        %v4796 = vpop.f32.mrf.mxu0
        %4797 = vmatprep.mubr.f32.mxu0 0.0
        %4798 = vmatmul.mubr.f32.gmra.mxu0 %v3522
        %v4799 = vpop.f32.mrf.mxu0
        %v4800 = vadd.f32 0.0, %v4799
        %v4801 = vpop.f32.mrf.mxu0
        %4802 = vmatprep.mubr.f32.mxu0 0.0
        %4803 = vmatmul.mubr.f32.gmra.mxu0 %v3525
        %v4804 = vpop.f32.mrf.mxu0
        %v4805 = vadd.f32 0.0, %v4804
        %v4806 = vpop.f32.mrf.mxu0
        %4807 = vmatprep.mubr.f32.mxu0 0.0
        %4808 = vmatmul.mubr.f32.gmra.mxu0 %v3528
        %v4809 = vpop.f32.mrf.mxu0
        %v4810 = vadd.f32 0.0, %v4809
        %v4811 = vpop.f32.mrf.mxu0
        %4812 = vmatprep.mubr.f32.mxu0 0.0
        %4813 = vmatmul.mubr.f32.gmra.mxu0 %v3531
        %v4814 = vpop.f32.mrf.mxu0
        %v4815 = vadd.f32 0.0, %v4814
        %v4816 = vpop.f32.mrf.mxu0
        %4817 = vmatprep.mubr.f32.mxu0 0.0
        %4818 = vmatmul.mubr.f32.gmra.mxu0 %v3534
        %v4819 = vpop.f32.mrf.mxu0
        %v4820 = vadd.f32 0.0, %v4819
        %v4821 = vpop.f32.mrf.mxu0
        %4822 = vmatprep.mubr.f32.mxu0 0.0
        %4823 = vmatmul.mubr.f32.gmra.mxu0 %v3537
        %v4824 = vpop.f32.mrf.mxu0
        %v4825 = vadd.f32 0.0, %v4824
        %v4826 = vpop.f32.mrf.mxu0
        %4827 = vmatprep.mubr.f32.mxu0 0.0
        %4828 = vmatmul.mubr.f32.gmra.mxu0 %v3540
        %v4829 = vpop.f32.mrf.mxu0
        %v4830 = vadd.f32 0.0, %v4829
        %v4831 = vpop.f32.mrf.mxu0
        %4832 = vmatprep.mubr.f32.mxu0 0.0
        %4833 = vmatmul.mubr.f32.gmra.mxu0 %v3543
        %v4834 = vpop.f32.mrf.mxu0
        %v4835 = vadd.f32 0.0, %v4834
        %v4836 = vpop.f32.mrf.mxu0
        %4837 = vmatprep.mubr.f32.mxu0 0.0
        %4838 = vmatmul.mubr.f32.gmra.mxu0 %v3546
        %v4839 = vpop.f32.mrf.mxu0
        %v4840 = vadd.f32 0.0, %v4839
        %v4841 = vpop.f32.mrf.mxu0
        %4842 = vmatprep.mubr.f32.mxu0 0.0
        %4843 = vmatmul.mubr.f32.gmra.mxu0 %v3549
        %v4844 = vpop.f32.mrf.mxu0
        %v4845 = vadd.f32 0.0, %v4844
        %v4846 = vpop.f32.mrf.mxu0
        %4847 = vmatprep.mubr.f32.mxu0 0.0
        %4848 = vmatmul.mubr.f32.gmra.mxu0 %v3552
        %v4849 = vpop.f32.mrf.mxu0
        %v4850 = vadd.f32 0.0, %v4849
        %v4851 = vpop.f32.mrf.mxu0
        %4852 = vmatprep.mubr.f32.mxu0 0.0
        %4853 = vmatmul.mubr.f32.gmra.mxu0 %v3555
        %v4854 = vpop.f32.mrf.mxu0
        %v4855 = vadd.f32 0.0, %v4854
        %v4856 = vpop.f32.mrf.mxu0
        %4857 = vmatprep.mubr.f32.mxu0 0.0
        %4858 = vmatmul.mubr.f32.gmra.mxu0 %v3558
        %v4859 = vpop.f32.mrf.mxu0
        %v4860 = vadd.f32 0.0, %v4859
        %v4861 = vpop.f32.mrf.mxu0
        %4862 = vmatprep.mubr.f32.mxu0 0.0
        %4863 = vmatmul.mubr.f32.gmra.mxu0 %v3561
        %v4864 = vpop.f32.mrf.mxu0
        %v4865 = vadd.f32 0.0, %v4864
        %v4866 = vpop.f32.mrf.mxu0
        %4867 = vmatprep.mubr.f32.mxu0 0.0
        %4868 = vmatmul.mubr.f32.gmra.mxu0 %v3564
        %v4869 = vpop.f32.mrf.mxu0
        %v4870 = vadd.f32 0.0, %v4869
        %v4871 = vpop.f32.mrf.mxu0
        %4872 = vmatprep.mubr.f32.mxu0 0.0
        %4873 = vmatmul.mubr.f32.gmra.mxu0 %v3567
        %v4874 = vpop.f32.mrf.mxu0
        %v4875 = vadd.f32 0.0, %v4874
        %v4876 = vpop.f32.mrf.mxu0
        %4877 = vmatprep.mubr.f32.mxu0 0.0
        %4878 = vmatmul.mubr.f32.gmra.mxu0 %v3570
        %v4879 = vpop.f32.mrf.mxu0
        %v4880 = vadd.f32 0.0, %v4879
        %v4881 = vpop.f32.mrf.mxu0
        %4882 = vmatprep.mubr.f32.mxu0 0.0
        %4883 = vmatmul.mubr.f32.gmra.mxu0 %v3573
        %v4884 = vpop.f32.mrf.mxu0
        %v4885 = vadd.f32 0.0, %v4884
        %v4886 = vpop.f32.mrf.mxu0
        %4887 = vmatprep.mubr.f32.mxu0 0.0
        %4888 = vmatmul.mubr.f32.gmra.mxu0 %v3576
        %v4889 = vpop.f32.mrf.mxu0
        %v4890 = vadd.f32 0.0, %v4889
        %v4891 = vpop.f32.mrf.mxu0
        %4892 = vmatprep.mubr.f32.mxu0 0.0
        %4893 = vmatmul.mubr.f32.gmra.mxu0 %v3579
        %v4894 = vpop.f32.mrf.mxu0
        %v4895 = vadd.f32 0.0, %v4894
        %v4896 = vpop.f32.mrf.mxu0
        %4897 = vmatprep.mubr.f32.mxu0 0.0
        %4898 = vmatmul.mubr.f32.gmra.mxu0 %v3582
        %v4899 = vpop.f32.mrf.mxu0
        %v4900 = vadd.f32 0.0, %v4899
        %v4901 = vpop.f32.mrf.mxu0
        %4902 = vmatprep.mubr.f32.mxu0 0.0
        %4903 = vmatmul.mubr.f32.gmra.mxu0 %v3585
        %v4904 = vpop.f32.mrf.mxu0
        %v4905 = vadd.f32 0.0, %v4904
        %v4906 = vpop.f32.mrf.mxu0
        %4907 = vmatprep.mubr.f32.mxu0 0.0
        %4908 = vmatmul.mubr.f32.gmra.mxu0 %v3588
        %v4909 = vpop.f32.mrf.mxu0
        %v4910 = vadd.f32 0.0, %v4909
        %v4911 = vpop.f32.mrf.mxu0
        %4912 = vmatprep.mubr.f32.mxu0 0.0
        %4913 = vmatmul.mubr.f32.gmra.mxu0 %v3591
        %v4914 = vpop.f32.mrf.mxu0
        %v4915 = vadd.f32 0.0, %v4914
        %v4916 = vpop.f32.mrf.mxu0
        %4917 = vmatprep.mubr.f32.mxu0 0.0
        %4918 = vmatmul.mubr.f32.gmra.mxu0 %v3594
        %v4919 = vpop.f32.mrf.mxu0
        %v4920 = vadd.f32 0.0, %v4919
        %v4921 = vpop.f32.mrf.mxu0
        %4922 = vmatprep.mubr.f32.mxu0 0.0
        %4923 = vmatmul.mubr.f32.gmra.mxu0 %v3597
        %v4924 = vpop.f32.mrf.mxu0
        %v4925 = vadd.f32 0.0, %v4924
        %v4926 = vpop.f32.mrf.mxu0
        %4927 = vmatprep.mubr.f32.mxu0 0.0
        %4928 = vmatmul.mubr.f32.gmra.mxu0 %v3600
        %v4929 = vpop.f32.mrf.mxu0
        %v4930 = vadd.f32 0.0, %v4929
        %v4931 = vpop.f32.mrf.mxu0
        %4932 = vmatprep.mubr.f32.mxu0 0.0
        %4933 = vmatmul.mubr.f32.gmra.mxu0 %v3603
        %v4934 = vpop.f32.mrf.mxu0
        %v4935 = vadd.f32 0.0, %v4934
        %v4936 = vpop.f32.mrf.mxu0
        %4937 = vmatprep.mubr.f32.mxu0 0.0
        %4938 = vmatmul.mubr.f32.gmra.mxu0 %v3606
        %v4939 = vpop.f32.mrf.mxu0
        %v4940 = vadd.f32 0.0, %v4939
        %v4941 = vpop.f32.mrf.mxu0
        %4942 = vmatprep.mubr.f32.mxu0 0.0
        %4943 = vmatmul.mubr.f32.gmra.mxu0 %v3609
        %v4944 = vpop.f32.mrf.mxu0
        %v4945 = vadd.f32 0.0, %v4944
        %v4946 = vpop.f32.mrf.mxu0
        %4947 = vmatprep.mubr.f32.mxu0 0.0
        %4948 = vmatmul.mubr.f32.gmra.mxu0 %v3612
        %v4949 = vpop.f32.mrf.mxu0
        %v4950 = vadd.f32 0.0, %v4949
        %v4951 = vpop.f32.mrf.mxu0
        %4952 = vmatprep.mubr.f32.mxu0 0.0
        %4953 = vmatmul.mubr.f32.gmra.mxu0 %v3615
        %v4954 = vpop.f32.mrf.mxu0
        %v4955 = vadd.f32 0.0, %v4954
        %v4956 = vpop.f32.mrf.mxu0
        %4957 = vmatprep.mubr.f32.mxu0 0.0
        %4958 = vmatmul.mubr.f32.gmra.mxu0 %v3618
        %v4959 = vpop.f32.mrf.mxu0
        %v4960 = vadd.f32 0.0, %v4959
        %v4961 = vpop.f32.mrf.mxu0
        %4962 = vmatprep.mubr.f32.mxu0 0.0
        %4963 = vmatmul.mubr.f32.gmra.mxu0 %v3621
        %v4964 = vpop.f32.mrf.mxu0
        %v4965 = vadd.f32 0.0, %v4964
        %v4966 = vpop.f32.mrf.mxu0
        %4967 = vdwg.mxu0
        %v4968 = vadd.f32 %v3690, %v2592
        %v4969 = vadd.f32 %v3695, %v2592
        %v4970 = vadd.f32 %v3700, %v2592
        %v4971 = vadd.f32 %v3705, %v2592
        %v4972 = vadd.f32 %v3710, %v2592
        %v4973 = vadd.f32 %v3715, %v2592
        %v4974 = vadd.f32 %v3720, %v2592
        %v4975 = vadd.f32 %v3725, %v2592
        %v4976 = vadd.f32 %v3730, %v2592
        %v4977 = vadd.f32 %v3735, %v2592
        %v4978 = vadd.f32 %v3740, %v2592
        %v4979 = vadd.f32 %v3745, %v2592
        %v4980 = vadd.f32 %v3750, %v2592
        %v4981 = vadd.f32 %v3755, %v2592
        %v4982 = vadd.f32 %v3760, %v2592
        %v4983 = vadd.f32 %v3765, %v2592
        %v4984 = vadd.f32 %v3770, %v2592
        %v4985 = vadd.f32 %v3775, %v2592
        %v4986 = vadd.f32 %v3780, %v2592
        %v4987 = vadd.f32 %v3785, %v2592
        %v4988 = vadd.f32 %v3790, %v2592
        %v4989 = vadd.f32 %v3795, %v2592
        %v4990 = vadd.f32 %v3800, %v2592
        %v4991 = vadd.f32 %v3805, %v2592
        %v4992 = vadd.f32 %v3810, %v2592
        %v4993 = vadd.f32 %v3815, %v2592
        %v4994 = vadd.f32 %v3820, %v2592
        %v4995 = vadd.f32 %v3825, %v2592
        %v4996 = vadd.f32 %v3830, %v2592
        %v4997 = vadd.f32 %v3835, %v2592
        %v4998 = vadd.f32 %v3840, %v2592
        %v4999 = vadd.f32 %v3845, %v2592
        %v5000 = vadd.f32 %v3850, %v2592
        %v5001 = vadd.f32 %v3855, %v2592
        %v5002 = vadd.f32 %v3860, %v2592
        %v5003 = vadd.f32 %v3865, %v2592
        %v5004 = vadd.f32 %v3870, %v2592
        %v5005 = vadd.f32 %v3875, %v2592
        %v5006 = vadd.f32 %v3880, %v2592
        %v5007 = vadd.f32 %v3885, %v2592
        %v5008 = vadd.f32 %v3890, %v2592
        %v5009 = vadd.f32 %v3895, %v2592
        %v5010 = vadd.f32 %v3900, %v2592
        %v5011 = vadd.f32 %v3905, %v2592
        %v5012 = vadd.f32 %v3910, %v2592
        %v5013 = vadd.f32 %v3915, %v2592
        %v5014 = vadd.f32 %v3920, %v2592
        %v5015 = vadd.f32 %v3925, %v2592
        %v5016 = vadd.f32 %v3930, %v2592
        %v5017 = vadd.f32 %v3935, %v2592
        %v5018 = vadd.f32 %v3940, %v2592
        %v5019 = vadd.f32 %v3945, %v2592
        %v5020 = vadd.f32 %v3950, %v2592
        %v5021 = vadd.f32 %v3955, %v2592
        %v5022 = vadd.f32 %v3960, %v2592
        %v5023 = vadd.f32 %v3965, %v2592
        %v5024 = vadd.f32 %v3970, %v2592
        %v5025 = vadd.f32 %v3975, %v2592
        %v5026 = vadd.f32 %v3980, %v2592
        %v5027 = vadd.f32 %v3985, %v2592
        %v5028 = vadd.f32 %v3990, %v2592
        %v5029 = vadd.f32 %v3995, %v2592
        %v5030 = vadd.f32 %v4000, %v2592
        %v5031 = vadd.f32 %v4005, %v2592
        %v5032 = vadd.f32 %v4010, %v2592
        %v5033 = vadd.f32 %v4015, %v2592
        %v5034 = vadd.f32 %v4020, %v2592
        %v5035 = vadd.f32 %v4025, %v2592
        %v5036 = vadd.f32 %v4030, %v2592
        %v5037 = vadd.f32 %v4035, %v2592
        %v5038 = vadd.f32 %v4040, %v2592
        %v5039 = vadd.f32 %v4045, %v2592
        %v5040 = vadd.f32 %v4050, %v2592
        %v5041 = vadd.f32 %v4055, %v2592
        %v5042 = vadd.f32 %v4060, %v2592
        %v5043 = vadd.f32 %v4065, %v2592
        %v5044 = vadd.f32 %v4070, %v2592
        %v5045 = vadd.f32 %v4075, %v2592
        %v5046 = vadd.f32 %v4080, %v2592
        %v5047 = vadd.f32 %v4085, %v2592
        %v5048 = vadd.f32 %v4090, %v2592
        %v5049 = vadd.f32 %v4095, %v2592
        %v5050 = vadd.f32 %v4100, %v2592
        %v5051 = vadd.f32 %v4105, %v2592
        %v5052 = vadd.f32 %v4110, %v2592
        %v5053 = vadd.f32 %v4115, %v2592
        %v5054 = vadd.f32 %v4120, %v2592
        %v5055 = vadd.f32 %v4125, %v2592
        %v5056 = vadd.f32 %v4130, %v2592
        %v5057 = vadd.f32 %v4135, %v2592
        %v5058 = vadd.f32 %v4140, %v2592
        %v5059 = vadd.f32 %v4145, %v2592
        %v5060 = vadd.f32 %v4150, %v2592
        %v5061 = vadd.f32 %v4155, %v2592
        %v5062 = vadd.f32 %v4160, %v2592
        %v5063 = vadd.f32 %v4165, %v2592
        %v5064 = vadd.f32 %v4170, %v2592
        %v5065 = vadd.f32 %v4175, %v2592
        %v5066 = vadd.f32 %v4180, %v2592
        %v5067 = vadd.f32 %v4185, %v2592
        %v5068 = vadd.f32 %v4190, %v2592
        %v5069 = vadd.f32 %v4195, %v2592
        %v5070 = vadd.f32 %v4200, %v2592
        %v5071 = vadd.f32 %v4205, %v2592
        %v5072 = vadd.f32 %v4210, %v2592
        %v5073 = vadd.f32 %v4215, %v2592
        %v5074 = vadd.f32 %v4220, %v2592
        %v5075 = vadd.f32 %v4225, %v2592
        %v5076 = vadd.f32 %v4230, %v2592
        %v5077 = vadd.f32 %v4235, %v2592
        %v5078 = vadd.f32 %v4240, %v2592
        %v5079 = vadd.f32 %v4245, %v2592
        %v5080 = vadd.f32 %v4250, %v2592
        %v5081 = vadd.f32 %v4255, %v2592
        %v5082 = vadd.f32 %v4260, %v2592
        %v5083 = vadd.f32 %v4265, %v2592
        %v5084 = vadd.f32 %v4270, %v2592
        %v5085 = vadd.f32 %v4275, %v2592
        %v5086 = vadd.f32 %v4280, %v2592
        %v5087 = vadd.f32 %v4285, %v2592
        %v5088 = vadd.f32 %v4290, %v2592
        %v5089 = vadd.f32 %v4295, %v2592
        %v5090 = vadd.f32 %v4300, %v2592
        %v5091 = vadd.f32 %v4305, %v2592
        %v5092 = vadd.f32 %v4310, %v2592
        %v5093 = vadd.f32 %v4315, %v2592
        %v5094 = vadd.f32 %v4320, %v2592
        %v5095 = vadd.f32 %v4325, %v2592
        %v5096 = vadd.f32 %v4330, %v2592
        %v5097 = vadd.f32 %v4335, %v2592
        %v5098 = vadd.f32 %v4340, %v2592
        %v5099 = vadd.f32 %v4345, %v2592
        %v5100 = vadd.f32 %v4350, %v2592
        %v5101 = vadd.f32 %v4355, %v2592
        %v5102 = vadd.f32 %v4360, %v2592
        %v5103 = vadd.f32 %v4365, %v2592
        %v5104 = vadd.f32 %v4370, %v2592
        %v5105 = vadd.f32 %v4375, %v2592
        %v5106 = vadd.f32 %v4380, %v2592
        %v5107 = vadd.f32 %v4385, %v2592
        %v5108 = vadd.f32 %v4390, %v2592
        %v5109 = vadd.f32 %v4395, %v2592
        %v5110 = vadd.f32 %v4400, %v2592
        %v5111 = vadd.f32 %v4405, %v2592
        %v5112 = vadd.f32 %v4410, %v2592
        %v5113 = vadd.f32 %v4415, %v2592
        %v5114 = vadd.f32 %v4420, %v2592
        %v5115 = vadd.f32 %v4425, %v2592
        %v5116 = vadd.f32 %v4430, %v2592
        %v5117 = vadd.f32 %v4435, %v2592
        %v5118 = vadd.f32 %v4440, %v2592
        %v5119 = vadd.f32 %v4445, %v2592
        %v5120 = vadd.f32 %v4450, %v2592
        %v5121 = vadd.f32 %v4455, %v2592
        %v5122 = vadd.f32 %v4460, %v2592
        %v5123 = vadd.f32 %v4465, %v2592
        %v5124 = vadd.f32 %v4470, %v2592
        %v5125 = vadd.f32 %v4475, %v2592
        %v5126 = vadd.f32 %v4480, %v2592
        %v5127 = vadd.f32 %v4485, %v2592
        %v5128 = vadd.f32 %v4490, %v2592
        %v5129 = vadd.f32 %v4495, %v2592
        %v5130 = vadd.f32 %v4500, %v2592
        %v5131 = vadd.f32 %v4505, %v2592
        %v5132 = vadd.f32 %v4510, %v2592
        %v5133 = vadd.f32 %v4515, %v2592
        %v5134 = vadd.f32 %v4520, %v2592
        %v5135 = vadd.f32 %v4525, %v2592
        %v5136 = vadd.f32 %v4530, %v2592
        %v5137 = vadd.f32 %v4535, %v2592
        %v5138 = vadd.f32 %v4540, %v2592
        %v5139 = vadd.f32 %v4545, %v2592
        %v5140 = vadd.f32 %v4550, %v2592
        %v5141 = vadd.f32 %v4555, %v2592
        %v5142 = vadd.f32 %v4560, %v2592
        %v5143 = vadd.f32 %v4565, %v2592
        %v5144 = vadd.f32 %v4570, %v2592
        %v5145 = vadd.f32 %v4575, %v2592
        %v5146 = vadd.f32 %v4580, %v2592
        %v5147 = vadd.f32 %v4585, %v2592
        %v5148 = vadd.f32 %v4590, %v2592
        %v5149 = vadd.f32 %v4595, %v2592
        %v5150 = vadd.f32 %v4600, %v2592
        %v5151 = vadd.f32 %v4605, %v2592
        %v5152 = vadd.f32 %v4610, %v2592
        %v5153 = vadd.f32 %v4615, %v2592
        %v5154 = vadd.f32 %v4620, %v2592
        %v5155 = vadd.f32 %v4625, %v2592
        %v5156 = vadd.f32 %v4630, %v2592
        %v5157 = vadd.f32 %v4635, %v2592
        %v5158 = vadd.f32 %v4640, %v2592
        %v5159 = vadd.f32 %v4645, %v2592
        %v5160 = vadd.f32 %v4650, %v2592
        %v5161 = vadd.f32 %v4655, %v2592
        %v5162 = vadd.f32 %v4660, %v2592
        %v5163 = vadd.f32 %v4665, %v2592
        %v5164 = vadd.f32 %v4670, %v2592
        %v5165 = vadd.f32 %v4675, %v2592
        %v5166 = vadd.f32 %v4680, %v2592
        %v5167 = vadd.f32 %v4685, %v2592
        %v5168 = vadd.f32 %v4690, %v2592
        %v5169 = vadd.f32 %v4695, %v2592
        %v5170 = vadd.f32 %v4700, %v2592
        %v5171 = vadd.f32 %v4705, %v2592
        %v5172 = vadd.f32 %v4710, %v2592
        %v5173 = vadd.f32 %v4715, %v2592
        %v5174 = vadd.f32 %v4720, %v2592
        %v5175 = vadd.f32 %v4725, %v2592
        %v5176 = vadd.f32 %v4730, %v2592
        %v5177 = vadd.f32 %v4735, %v2592
        %v5178 = vadd.f32 %v4740, %v2592
        %v5179 = vadd.f32 %v4745, %v2592
        %v5180 = vadd.f32 %v4750, %v2592
        %v5181 = vadd.f32 %v4755, %v2592
        %v5182 = vadd.f32 %v4760, %v2592
        %v5183 = vadd.f32 %v4765, %v2592
        %v5184 = vadd.f32 %v4770, %v2592
        %v5185 = vadd.f32 %v4775, %v2592
        %v5186 = vadd.f32 %v4780, %v2592
        %v5187 = vadd.f32 %v4785, %v2592
        %v5188 = vadd.f32 %v4790, %v2592
        %v5189 = vadd.f32 %v4795, %v2592
        %v5190 = vadd.f32 %v4800, %v2592
        %v5191 = vadd.f32 %v4805, %v2592
        %v5192 = vadd.f32 %v4810, %v2592
        %v5193 = vadd.f32 %v4815, %v2592
        %v5194 = vadd.f32 %v4820, %v2592
        %v5195 = vadd.f32 %v4825, %v2592
        %v5196 = vadd.f32 %v4830, %v2592
        %v5197 = vadd.f32 %v4835, %v2592
        %v5198 = vadd.f32 %v4840, %v2592
        %v5199 = vadd.f32 %v4845, %v2592
        %v5200 = vadd.f32 %v4850, %v2592
        %v5201 = vadd.f32 %v4855, %v2592
        %v5202 = vadd.f32 %v4860, %v2592
        %v5203 = vadd.f32 %v4865, %v2592
        %v5204 = vadd.f32 %v4870, %v2592
        %v5205 = vadd.f32 %v4875, %v2592
        %v5206 = vadd.f32 %v4880, %v2592
        %v5207 = vadd.f32 %v4885, %v2592
        %v5208 = vadd.f32 %v4890, %v2592
        %v5209 = vadd.f32 %v4895, %v2592
        %v5210 = vadd.f32 %v4900, %v2592
        %v5211 = vadd.f32 %v4905, %v2592
        %v5212 = vadd.f32 %v4910, %v2592
        %v5213 = vadd.f32 %v4915, %v2592
        %v5214 = vadd.f32 %v4920, %v2592
        %v5215 = vadd.f32 %v4925, %v2592
        %v5216 = vadd.f32 %v4930, %v2592
        %v5217 = vadd.f32 %v4935, %v2592
        %v5218 = vadd.f32 %v4940, %v2592
        %v5219 = vadd.f32 %v4945, %v2592
        %v5220 = vadd.f32 %v4950, %v2592
        %v5221 = vadd.f32 %v4955, %v2592
        %v5222 = vadd.f32 %v4960, %v2592
        %v5223 = vadd.f32 %v4965, %v2592
        %v5224 = vtanh.pop %v4968
        %v5225 = vtanh.pop %v4969
        %v5226 = vtanh.pop %v4970
        %v5227 = vtanh.pop %v4971
        %v5228 = vtanh.pop %v4972
        %v5229 = vtanh.pop %v4973
        %v5230 = vtanh.pop %v4974
        %v5231 = vtanh.pop %v4975
        %v5232 = vtanh.pop %v4976
        %v5233 = vtanh.pop %v4977
        %v5234 = vtanh.pop %v4978
        %v5235 = vtanh.pop %v4979
        %v5236 = vtanh.pop %v4980
        %v5237 = vtanh.pop %v4981
        %v5238 = vtanh.pop %v4982
        %v5239 = vtanh.pop %v4983
        %v5240 = vtanh.pop %v4984
        %v5241 = vtanh.pop %v4985
        %v5242 = vtanh.pop %v4986
        %v5243 = vtanh.pop %v4987
        %v5244 = vtanh.pop %v4988
        %v5245 = vtanh.pop %v4989
        %v5246 = vtanh.pop %v4990
        %v5247 = vtanh.pop %v4991
        %v5248 = vtanh.pop %v4992
        %v5249 = vtanh.pop %v4993
        %v5250 = vtanh.pop %v4994
        %v5251 = vtanh.pop %v4995
        %v5252 = vtanh.pop %v4996
        %v5253 = vtanh.pop %v4997
        %v5254 = vtanh.pop %v4998
        %v5255 = vtanh.pop %v4999
        %v5256 = vtanh.pop %v5000
        %v5257 = vtanh.pop %v5001
        %v5258 = vtanh.pop %v5002
        %v5259 = vtanh.pop %v5003
        %v5260 = vtanh.pop %v5004
        %v5261 = vtanh.pop %v5005
        %v5262 = vtanh.pop %v5006
        %v5263 = vtanh.pop %v5007
        %v5264 = vtanh.pop %v5008
        %v5265 = vtanh.pop %v5009
        %v5266 = vtanh.pop %v5010
        %v5267 = vtanh.pop %v5011
        %v5268 = vtanh.pop %v5012
        %v5269 = vtanh.pop %v5013
        %v5270 = vtanh.pop %v5014
        %v5271 = vtanh.pop %v5015
        %v5272 = vtanh.pop %v5016
        %v5273 = vtanh.pop %v5017
        %v5274 = vtanh.pop %v5018
        %v5275 = vtanh.pop %v5019
        %v5276 = vtanh.pop %v5020
        %v5277 = vtanh.pop %v5021
        %v5278 = vtanh.pop %v5022
        %v5279 = vtanh.pop %v5023
        %v5280 = vtanh.pop %v5024
        %v5281 = vtanh.pop %v5025
        %v5282 = vtanh.pop %v5026
        %v5283 = vtanh.pop %v5027
        %v5284 = vtanh.pop %v5028
        %v5285 = vtanh.pop %v5029
        %v5286 = vtanh.pop %v5030
        %v5287 = vtanh.pop %v5031
        %v5288 = vtanh.pop %v5032
        %v5289 = vtanh.pop %v5033
        %v5290 = vtanh.pop %v5034
        %v5291 = vtanh.pop %v5035
        %v5292 = vtanh.pop %v5036
        %v5293 = vtanh.pop %v5037
        %v5294 = vtanh.pop %v5038
        %v5295 = vtanh.pop %v5039
        %v5296 = vtanh.pop %v5040
        %v5297 = vtanh.pop %v5041
        %v5298 = vtanh.pop %v5042
        %v5299 = vtanh.pop %v5043
        %v5300 = vtanh.pop %v5044
        %v5301 = vtanh.pop %v5045
        %v5302 = vtanh.pop %v5046
        %v5303 = vtanh.pop %v5047
        %v5304 = vtanh.pop %v5048
        %v5305 = vtanh.pop %v5049
        %v5306 = vtanh.pop %v5050
        %v5307 = vtanh.pop %v5051
        %v5308 = vtanh.pop %v5052
        %v5309 = vtanh.pop %v5053
        %v5310 = vtanh.pop %v5054
        %v5311 = vtanh.pop %v5055
        %v5312 = vtanh.pop %v5056
        %v5313 = vtanh.pop %v5057
        %v5314 = vtanh.pop %v5058
        %v5315 = vtanh.pop %v5059
        %v5316 = vtanh.pop %v5060
        %v5317 = vtanh.pop %v5061
        %v5318 = vtanh.pop %v5062
        %v5319 = vtanh.pop %v5063
        %v5320 = vtanh.pop %v5064
        %v5321 = vtanh.pop %v5065
        %v5322 = vtanh.pop %v5066
        %v5323 = vtanh.pop %v5067
        %v5324 = vtanh.pop %v5068
        %v5325 = vtanh.pop %v5069
        %v5326 = vtanh.pop %v5070
        %v5327 = vtanh.pop %v5071
        %v5328 = vtanh.pop %v5072
        %v5329 = vtanh.pop %v5073
        %v5330 = vtanh.pop %v5074
        %v5331 = vtanh.pop %v5075
        %v5332 = vtanh.pop %v5076
        %v5333 = vtanh.pop %v5077
        %v5334 = vtanh.pop %v5078
        %v5335 = vtanh.pop %v5079
        %v5336 = vtanh.pop %v5080
        %v5337 = vtanh.pop %v5081
        %v5338 = vtanh.pop %v5082
        %v5339 = vtanh.pop %v5083
        %v5340 = vtanh.pop %v5084
        %v5341 = vtanh.pop %v5085
        %v5342 = vtanh.pop %v5086
        %v5343 = vtanh.pop %v5087
        %v5344 = vtanh.pop %v5088
        %v5345 = vtanh.pop %v5089
        %v5346 = vtanh.pop %v5090
        %v5347 = vtanh.pop %v5091
        %v5348 = vtanh.pop %v5092
        %v5349 = vtanh.pop %v5093
        %v5350 = vtanh.pop %v5094
        %v5351 = vtanh.pop %v5095
        %v5352 = vtanh.pop %v5096
        %v5353 = vtanh.pop %v5097
        %v5354 = vtanh.pop %v5098
        %v5355 = vtanh.pop %v5099
        %v5356 = vtanh.pop %v5100
        %v5357 = vtanh.pop %v5101
        %v5358 = vtanh.pop %v5102
        %v5359 = vtanh.pop %v5103
        %v5360 = vtanh.pop %v5104
        %v5361 = vtanh.pop %v5105
        %v5362 = vtanh.pop %v5106
        %v5363 = vtanh.pop %v5107
        %v5364 = vtanh.pop %v5108
        %v5365 = vtanh.pop %v5109
        %v5366 = vtanh.pop %v5110
        %v5367 = vtanh.pop %v5111
        %v5368 = vtanh.pop %v5112
        %v5369 = vtanh.pop %v5113
        %v5370 = vtanh.pop %v5114
        %v5371 = vtanh.pop %v5115
        %v5372 = vtanh.pop %v5116
        %v5373 = vtanh.pop %v5117
        %v5374 = vtanh.pop %v5118
        %v5375 = vtanh.pop %v5119
        %v5376 = vtanh.pop %v5120
        %v5377 = vtanh.pop %v5121
        %v5378 = vtanh.pop %v5122
        %v5379 = vtanh.pop %v5123
        %v5380 = vtanh.pop %v5124
        %v5381 = vtanh.pop %v5125
        %v5382 = vtanh.pop %v5126
        %v5383 = vtanh.pop %v5127
        %v5384 = vtanh.pop %v5128
        %v5385 = vtanh.pop %v5129
        %v5386 = vtanh.pop %v5130
        %v5387 = vtanh.pop %v5131
        %v5388 = vtanh.pop %v5132
        %v5389 = vtanh.pop %v5133
        %v5390 = vtanh.pop %v5134
        %v5391 = vtanh.pop %v5135
        %v5392 = vtanh.pop %v5136
        %v5393 = vtanh.pop %v5137
        %v5394 = vtanh.pop %v5138
        %v5395 = vtanh.pop %v5139
        %v5396 = vtanh.pop %v5140
        %v5397 = vtanh.pop %v5141
        %v5398 = vtanh.pop %v5142
        %v5399 = vtanh.pop %v5143
        %v5400 = vtanh.pop %v5144
        %v5401 = vtanh.pop %v5145
        %v5402 = vtanh.pop %v5146
        %v5403 = vtanh.pop %v5147
        %v5404 = vtanh.pop %v5148
        %v5405 = vtanh.pop %v5149
        %v5406 = vtanh.pop %v5150
        %v5407 = vtanh.pop %v5151
        %v5408 = vtanh.pop %v5152
        %v5409 = vtanh.pop %v5153
        %v5410 = vtanh.pop %v5154
        %v5411 = vtanh.pop %v5155
        %v5412 = vtanh.pop %v5156
        %v5413 = vtanh.pop %v5157
        %v5414 = vtanh.pop %v5158
        %v5415 = vtanh.pop %v5159
        %v5416 = vtanh.pop %v5160
        %v5417 = vtanh.pop %v5161
        %v5418 = vtanh.pop %v5162
        %v5419 = vtanh.pop %v5163
        %v5420 = vtanh.pop %v5164
        %v5421 = vtanh.pop %v5165
        %v5422 = vtanh.pop %v5166
        %v5423 = vtanh.pop %v5167
        %v5424 = vtanh.pop %v5168
        %v5425 = vtanh.pop %v5169
        %v5426 = vtanh.pop %v5170
        %v5427 = vtanh.pop %v5171
        %v5428 = vtanh.pop %v5172
        %v5429 = vtanh.pop %v5173
        %v5430 = vtanh.pop %v5174
        %v5431 = vtanh.pop %v5175
        %v5432 = vtanh.pop %v5176
        %v5433 = vtanh.pop %v5177
        %v5434 = vtanh.pop %v5178
        %v5435 = vtanh.pop %v5179
        %v5436 = vtanh.pop %v5180
        %v5437 = vtanh.pop %v5181
        %v5438 = vtanh.pop %v5182
        %v5439 = vtanh.pop %v5183
        %v5440 = vtanh.pop %v5184
        %v5441 = vtanh.pop %v5185
        %v5442 = vtanh.pop %v5186
        %v5443 = vtanh.pop %v5187
        %v5444 = vtanh.pop %v5188
        %v5445 = vtanh.pop %v5189
        %v5446 = vtanh.pop %v5190
        %v5447 = vtanh.pop %v5191
        %v5448 = vtanh.pop %v5192
        %v5449 = vtanh.pop %v5193
        %v5450 = vtanh.pop %v5194
        %v5451 = vtanh.pop %v5195
        %v5452 = vtanh.pop %v5196
        %v5453 = vtanh.pop %v5197
        %v5454 = vtanh.pop %v5198
        %v5455 = vtanh.pop %v5199
        %v5456 = vtanh.pop %v5200
        %v5457 = vtanh.pop %v5201
        %v5458 = vtanh.pop %v5202
        %v5459 = vtanh.pop %v5203
        %v5460 = vtanh.pop %v5204
        %v5461 = vtanh.pop %v5205
        %v5462 = vtanh.pop %v5206
        %v5463 = vtanh.pop %v5207
        %v5464 = vtanh.pop %v5208
        %v5465 = vtanh.pop %v5209
        %v5466 = vtanh.pop %v5210
        %v5467 = vtanh.pop %v5211
        %v5468 = vtanh.pop %v5212
        %v5469 = vtanh.pop %v5213
        %v5470 = vtanh.pop %v5214
        %v5471 = vtanh.pop %v5215
        %v5472 = vtanh.pop %v5216
        %v5473 = vtanh.pop %v5217
        %v5474 = vtanh.pop %v5218
        %v5475 = vtanh.pop %v5219
        %v5476 = vtanh.pop %v5220
        %v5477 = vtanh.pop %v5221
        %v5478 = vtanh.pop %v5222
        %v5479 = vtanh.pop %v5223
        %v5480 = vld [vmem:[%s7] sm:$0x1]
        %v5482 = vlaneseq
        %v5483 = vshrl.u32 %v5482, 7
        %v5484 = vsub.s32 0, %v5483
        %v5485 = vrot.slane %v5480, %v5484
        %v5487 = vmul.f32 %v5224, %v5485
        %v5488 = vmul.f32 %v5225, %v5485
        %v5489 = vmul.f32 %v5226, %v5485
        %v5490 = vmul.f32 %v5227, %v5485
        %v5491 = vmul.f32 %v5228, %v5485
        %v5492 = vmul.f32 %v5229, %v5485
        %v5493 = vmul.f32 %v5230, %v5485
        %v5494 = vmul.f32 %v5231, %v5485
        %v5495 = vmul.f32 %v5232, %v5485
        %v5496 = vmul.f32 %v5233, %v5485
        %v5497 = vmul.f32 %v5234, %v5485
        %v5498 = vmul.f32 %v5235, %v5485
        %v5499 = vmul.f32 %v5236, %v5485
        %v5500 = vmul.f32 %v5237, %v5485
        %v5501 = vmul.f32 %v5238, %v5485
        %v5502 = vmul.f32 %v5239, %v5485
        %v5503 = vmul.f32 %v5240, %v5485
        %v5504 = vmul.f32 %v5241, %v5485
        %v5505 = vmul.f32 %v5242, %v5485
        %v5506 = vmul.f32 %v5243, %v5485
        %v5507 = vmul.f32 %v5244, %v5485
        %v5508 = vmul.f32 %v5245, %v5485
        %v5509 = vmul.f32 %v5246, %v5485
        %v5510 = vmul.f32 %v5247, %v5485
        %v5511 = vmul.f32 %v5248, %v5485
        %v5512 = vmul.f32 %v5249, %v5485
        %v5513 = vmul.f32 %v5250, %v5485
        %v5514 = vmul.f32 %v5251, %v5485
        %v5515 = vmul.f32 %v5252, %v5485
        %v5516 = vmul.f32 %v5253, %v5485
        %v5517 = vmul.f32 %v5254, %v5485
        %v5518 = vmul.f32 %v5255, %v5485
        %v5519 = vmul.f32 %v5256, %v5485
        %v5520 = vmul.f32 %v5257, %v5485
        %v5521 = vmul.f32 %v5258, %v5485
        %v5522 = vmul.f32 %v5259, %v5485
        %v5523 = vmul.f32 %v5260, %v5485
        %v5524 = vmul.f32 %v5261, %v5485
        %v5525 = vmul.f32 %v5262, %v5485
        %v5526 = vmul.f32 %v5263, %v5485
        %v5527 = vmul.f32 %v5264, %v5485
        %v5528 = vmul.f32 %v5265, %v5485
        %v5529 = vmul.f32 %v5266, %v5485
        %v5530 = vmul.f32 %v5267, %v5485
        %v5531 = vmul.f32 %v5268, %v5485
        %v5532 = vmul.f32 %v5269, %v5485
        %v5533 = vmul.f32 %v5270, %v5485
        %v5534 = vmul.f32 %v5271, %v5485
        %v5535 = vmul.f32 %v5272, %v5485
        %v5536 = vmul.f32 %v5273, %v5485
        %v5537 = vmul.f32 %v5274, %v5485
        %v5538 = vmul.f32 %v5275, %v5485
        %v5539 = vmul.f32 %v5276, %v5485
        %v5540 = vmul.f32 %v5277, %v5485
        %v5541 = vmul.f32 %v5278, %v5485
        %v5542 = vmul.f32 %v5279, %v5485
        %v5543 = vmul.f32 %v5280, %v5485
        %v5544 = vmul.f32 %v5281, %v5485
        %v5545 = vmul.f32 %v5282, %v5485
        %v5546 = vmul.f32 %v5283, %v5485
        %v5547 = vmul.f32 %v5284, %v5485
        %v5548 = vmul.f32 %v5285, %v5485
        %v5549 = vmul.f32 %v5286, %v5485
        %v5550 = vmul.f32 %v5287, %v5485
        %v5551 = vmul.f32 %v5288, %v5485
        %v5552 = vmul.f32 %v5289, %v5485
        %v5553 = vmul.f32 %v5290, %v5485
        %v5554 = vmul.f32 %v5291, %v5485
        %v5555 = vmul.f32 %v5292, %v5485
        %v5556 = vmul.f32 %v5293, %v5485
        %v5557 = vmul.f32 %v5294, %v5485
        %v5558 = vmul.f32 %v5295, %v5485
        %v5559 = vmul.f32 %v5296, %v5485
        %v5560 = vmul.f32 %v5297, %v5485
        %v5561 = vmul.f32 %v5298, %v5485
        %v5562 = vmul.f32 %v5299, %v5485
        %v5563 = vmul.f32 %v5300, %v5485
        %v5564 = vmul.f32 %v5301, %v5485
        %v5565 = vmul.f32 %v5302, %v5485
        %v5566 = vmul.f32 %v5303, %v5485
        %v5567 = vmul.f32 %v5304, %v5485
        %v5568 = vmul.f32 %v5305, %v5485
        %v5569 = vmul.f32 %v5306, %v5485
        %v5570 = vmul.f32 %v5307, %v5485
        %v5571 = vmul.f32 %v5308, %v5485
        %v5572 = vmul.f32 %v5309, %v5485
        %v5573 = vmul.f32 %v5310, %v5485
        %v5574 = vmul.f32 %v5311, %v5485
        %v5575 = vmul.f32 %v5312, %v5485
        %v5576 = vmul.f32 %v5313, %v5485
        %v5577 = vmul.f32 %v5314, %v5485
        %v5578 = vmul.f32 %v5315, %v5485
        %v5579 = vmul.f32 %v5316, %v5485
        %v5580 = vmul.f32 %v5317, %v5485
        %v5581 = vmul.f32 %v5318, %v5485
        %v5582 = vmul.f32 %v5319, %v5485
        %v5583 = vmul.f32 %v5320, %v5485
        %v5584 = vmul.f32 %v5321, %v5485
        %v5585 = vmul.f32 %v5322, %v5485
        %v5586 = vmul.f32 %v5323, %v5485
        %v5587 = vmul.f32 %v5324, %v5485
        %v5588 = vmul.f32 %v5325, %v5485
        %v5589 = vmul.f32 %v5326, %v5485
        %v5590 = vmul.f32 %v5327, %v5485
        %v5591 = vmul.f32 %v5328, %v5485
        %v5592 = vmul.f32 %v5329, %v5485
        %v5593 = vmul.f32 %v5330, %v5485
        %v5594 = vmul.f32 %v5331, %v5485
        %v5595 = vmul.f32 %v5332, %v5485
        %v5596 = vmul.f32 %v5333, %v5485
        %v5597 = vmul.f32 %v5334, %v5485
        %v5598 = vmul.f32 %v5335, %v5485
        %v5599 = vmul.f32 %v5336, %v5485
        %v5600 = vmul.f32 %v5337, %v5485
        %v5601 = vmul.f32 %v5338, %v5485
        %v5602 = vmul.f32 %v5339, %v5485
        %v5603 = vmul.f32 %v5340, %v5485
        %v5604 = vmul.f32 %v5341, %v5485
        %v5605 = vmul.f32 %v5342, %v5485
        %v5606 = vmul.f32 %v5343, %v5485
        %v5607 = vmul.f32 %v5344, %v5485
        %v5608 = vmul.f32 %v5345, %v5485
        %v5609 = vmul.f32 %v5346, %v5485
        %v5610 = vmul.f32 %v5347, %v5485
        %v5611 = vmul.f32 %v5348, %v5485
        %v5612 = vmul.f32 %v5349, %v5485
        %v5613 = vmul.f32 %v5350, %v5485
        %v5614 = vmul.f32 %v5351, %v5485
        %v5615 = vmul.f32 %v5352, %v5485
        %v5616 = vmul.f32 %v5353, %v5485
        %v5617 = vmul.f32 %v5354, %v5485
        %v5618 = vmul.f32 %v5355, %v5485
        %v5619 = vmul.f32 %v5356, %v5485
        %v5620 = vmul.f32 %v5357, %v5485
        %v5621 = vmul.f32 %v5358, %v5485
        %v5622 = vmul.f32 %v5359, %v5485
        %v5623 = vmul.f32 %v5360, %v5485
        %v5624 = vmul.f32 %v5361, %v5485
        %v5625 = vmul.f32 %v5362, %v5485
        %v5626 = vmul.f32 %v5363, %v5485
        %v5627 = vmul.f32 %v5364, %v5485
        %v5628 = vmul.f32 %v5365, %v5485
        %v5629 = vmul.f32 %v5366, %v5485
        %v5630 = vmul.f32 %v5367, %v5485
        %v5631 = vmul.f32 %v5368, %v5485
        %v5632 = vmul.f32 %v5369, %v5485
        %v5633 = vmul.f32 %v5370, %v5485
        %v5634 = vmul.f32 %v5371, %v5485
        %v5635 = vmul.f32 %v5372, %v5485
        %v5636 = vmul.f32 %v5373, %v5485
        %v5637 = vmul.f32 %v5374, %v5485
        %v5638 = vmul.f32 %v5375, %v5485
        %v5639 = vmul.f32 %v5376, %v5485
        %v5640 = vmul.f32 %v5377, %v5485
        %v5641 = vmul.f32 %v5378, %v5485
        %v5642 = vmul.f32 %v5379, %v5485
        %v5643 = vmul.f32 %v5380, %v5485
        %v5644 = vmul.f32 %v5381, %v5485
        %v5645 = vmul.f32 %v5382, %v5485
        %v5646 = vmul.f32 %v5383, %v5485
        %v5647 = vmul.f32 %v5384, %v5485
        %v5648 = vmul.f32 %v5385, %v5485
        %v5649 = vmul.f32 %v5386, %v5485
        %v5650 = vmul.f32 %v5387, %v5485
        %v5651 = vmul.f32 %v5388, %v5485
        %v5652 = vmul.f32 %v5389, %v5485
        %v5653 = vmul.f32 %v5390, %v5485
        %v5654 = vmul.f32 %v5391, %v5485
        %v5655 = vmul.f32 %v5392, %v5485
        %v5656 = vmul.f32 %v5393, %v5485
        %v5657 = vmul.f32 %v5394, %v5485
        %v5658 = vmul.f32 %v5395, %v5485
        %v5659 = vmul.f32 %v5396, %v5485
        %v5660 = vmul.f32 %v5397, %v5485
        %v5661 = vmul.f32 %v5398, %v5485
        %v5662 = vmul.f32 %v5399, %v5485
        %v5663 = vmul.f32 %v5400, %v5485
        %v5664 = vmul.f32 %v5401, %v5485
        %v5665 = vmul.f32 %v5402, %v5485
        %v5666 = vmul.f32 %v5403, %v5485
        %v5667 = vmul.f32 %v5404, %v5485
        %v5668 = vmul.f32 %v5405, %v5485
        %v5669 = vmul.f32 %v5406, %v5485
        %v5670 = vmul.f32 %v5407, %v5485
        %v5671 = vmul.f32 %v5408, %v5485
        %v5672 = vmul.f32 %v5409, %v5485
        %v5673 = vmul.f32 %v5410, %v5485
        %v5674 = vmul.f32 %v5411, %v5485
        %v5675 = vmul.f32 %v5412, %v5485
        %v5676 = vmul.f32 %v5413, %v5485
        %v5677 = vmul.f32 %v5414, %v5485
        %v5678 = vmul.f32 %v5415, %v5485
        %v5679 = vmul.f32 %v5416, %v5485
        %v5680 = vmul.f32 %v5417, %v5485
        %v5681 = vmul.f32 %v5418, %v5485
        %v5682 = vmul.f32 %v5419, %v5485
        %v5683 = vmul.f32 %v5420, %v5485
        %v5684 = vmul.f32 %v5421, %v5485
        %v5685 = vmul.f32 %v5422, %v5485
        %v5686 = vmul.f32 %v5423, %v5485
        %v5687 = vmul.f32 %v5424, %v5485
        %v5688 = vmul.f32 %v5425, %v5485
        %v5689 = vmul.f32 %v5426, %v5485
        %v5690 = vmul.f32 %v5427, %v5485
        %v5691 = vmul.f32 %v5428, %v5485
        %v5692 = vmul.f32 %v5429, %v5485
        %v5693 = vmul.f32 %v5430, %v5485
        %v5694 = vmul.f32 %v5431, %v5485
        %v5695 = vmul.f32 %v5432, %v5485
        %v5696 = vmul.f32 %v5433, %v5485
        %v5697 = vmul.f32 %v5434, %v5485
        %v5698 = vmul.f32 %v5435, %v5485
        %v5699 = vmul.f32 %v5436, %v5485
        %v5700 = vmul.f32 %v5437, %v5485
        %v5701 = vmul.f32 %v5438, %v5485
        %v5702 = vmul.f32 %v5439, %v5485
        %v5703 = vmul.f32 %v5440, %v5485
        %v5704 = vmul.f32 %v5441, %v5485
        %v5705 = vmul.f32 %v5442, %v5485
        %v5706 = vmul.f32 %v5443, %v5485
        %v5707 = vmul.f32 %v5444, %v5485
        %v5708 = vmul.f32 %v5445, %v5485
        %v5709 = vmul.f32 %v5446, %v5485
        %v5710 = vmul.f32 %v5447, %v5485
        %v5711 = vmul.f32 %v5448, %v5485
        %v5712 = vmul.f32 %v5449, %v5485
        %v5713 = vmul.f32 %v5450, %v5485
        %v5714 = vmul.f32 %v5451, %v5485
        %v5715 = vmul.f32 %v5452, %v5485
        %v5716 = vmul.f32 %v5453, %v5485
        %v5717 = vmul.f32 %v5454, %v5485
        %v5718 = vmul.f32 %v5455, %v5485
        %v5719 = vmul.f32 %v5456, %v5485
        %v5720 = vmul.f32 %v5457, %v5485
        %v5721 = vmul.f32 %v5458, %v5485
        %v5722 = vmul.f32 %v5459, %v5485
        %v5723 = vmul.f32 %v5460, %v5485
        %v5724 = vmul.f32 %v5461, %v5485
        %v5725 = vmul.f32 %v5462, %v5485
        %v5726 = vmul.f32 %v5463, %v5485
        %v5727 = vmul.f32 %v5464, %v5485
        %v5728 = vmul.f32 %v5465, %v5485
        %v5729 = vmul.f32 %v5466, %v5485
        %v5730 = vmul.f32 %v5467, %v5485
        %v5731 = vmul.f32 %v5468, %v5485
        %v5732 = vmul.f32 %v5469, %v5485
        %v5733 = vmul.f32 %v5470, %v5485
        %v5734 = vmul.f32 %v5471, %v5485
        %v5735 = vmul.f32 %v5472, %v5485
        %v5736 = vmul.f32 %v5473, %v5485
        %v5737 = vmul.f32 %v5474, %v5485
        %v5738 = vmul.f32 %v5475, %v5485
        %v5739 = vmul.f32 %v5476, %v5485
        %v5740 = vmul.f32 %v5477, %v5485
        %v5741 = vmul.f32 %v5478, %v5485
        %v5742 = vmul.f32 %v5479, %v5485
        %v5743 = vsel %vm2521, %v5487, 0.0
        %5744 = vadd.xlane.f32.xlu0 %v5743
        %v5745 = vpop.xlane.xlu0 %5744
        %v5746 = vsel %vm2521, %v5488, 0.0
        %5747 = vadd.xlane.f32.xlu0 %v5746
        %v5748 = vpop.xlane.xlu0 %5747
        %v5749 = vsel %vm2521, %v5489, 0.0
        %5750 = vadd.xlane.f32.xlu0 %v5749
        %v5751 = vpop.xlane.xlu0 %5750
        %v5752 = vsel %vm2521, %v5490, 0.0
        %5753 = vadd.xlane.f32.xlu0 %v5752
        %v5754 = vpop.xlane.xlu0 %5753
        %v5755 = vsel %vm2521, %v5491, 0.0
        %5756 = vadd.xlane.f32.xlu0 %v5755
        %v5757 = vpop.xlane.xlu0 %5756
        %v5758 = vsel %vm2521, %v5492, 0.0
        %5759 = vadd.xlane.f32.xlu0 %v5758
        %v5760 = vpop.xlane.xlu0 %5759
        %v5761 = vsel %vm2521, %v5493, 0.0
        %5762 = vadd.xlane.f32.xlu0 %v5761
        %v5763 = vpop.xlane.xlu0 %5762
        %v5764 = vsel %vm2521, %v5494, 0.0
        %5765 = vadd.xlane.f32.xlu0 %v5764
        %v5766 = vpop.xlane.xlu0 %5765
        %v5767 = vsel %vm2521, %v5495, 0.0
        %5768 = vadd.xlane.f32.xlu0 %v5767
        %v5769 = vpop.xlane.xlu0 %5768
        %v5770 = vsel %vm2521, %v5496, 0.0
        %5771 = vadd.xlane.f32.xlu0 %v5770
        %v5772 = vpop.xlane.xlu0 %5771
        %v5773 = vsel %vm2521, %v5497, 0.0
        %5774 = vadd.xlane.f32.xlu0 %v5773
        %v5775 = vpop.xlane.xlu0 %5774
        %v5776 = vsel %vm2521, %v5498, 0.0
        %5777 = vadd.xlane.f32.xlu0 %v5776
        %v5778 = vpop.xlane.xlu0 %5777
        %v5779 = vsel %vm2521, %v5499, 0.0
        %5780 = vadd.xlane.f32.xlu0 %v5779
        %v5781 = vpop.xlane.xlu0 %5780
        %v5782 = vsel %vm2521, %v5500, 0.0
        %5783 = vadd.xlane.f32.xlu0 %v5782
        %v5784 = vpop.xlane.xlu0 %5783
        %v5785 = vsel %vm2521, %v5501, 0.0
        %5786 = vadd.xlane.f32.xlu0 %v5785
        %v5787 = vpop.xlane.xlu0 %5786
        %v5788 = vsel %vm2521, %v5502, 0.0
        %5789 = vadd.xlane.f32.xlu0 %v5788
        %v5790 = vpop.xlane.xlu0 %5789
        %v5791 = vsel %vm2521, %v5503, 0.0
        %5792 = vadd.xlane.f32.xlu0 %v5791
        %v5793 = vpop.xlane.xlu0 %5792
        %v5794 = vsel %vm2521, %v5504, 0.0
        %5795 = vadd.xlane.f32.xlu0 %v5794
        %v5796 = vpop.xlane.xlu0 %5795
        %v5797 = vsel %vm2521, %v5505, 0.0
        %5798 = vadd.xlane.f32.xlu0 %v5797
        %v5799 = vpop.xlane.xlu0 %5798
        %v5800 = vsel %vm2521, %v5506, 0.0
        %5801 = vadd.xlane.f32.xlu0 %v5800
        %v5802 = vpop.xlane.xlu0 %5801
        %v5803 = vsel %vm2521, %v5507, 0.0
        %5804 = vadd.xlane.f32.xlu0 %v5803
        %v5805 = vpop.xlane.xlu0 %5804
        %v5806 = vsel %vm2521, %v5508, 0.0
        %5807 = vadd.xlane.f32.xlu0 %v5806
        %v5808 = vpop.xlane.xlu0 %5807
        %v5809 = vsel %vm2521, %v5509, 0.0
        %5810 = vadd.xlane.f32.xlu0 %v5809
        %v5811 = vpop.xlane.xlu0 %5810
        %v5812 = vsel %vm2521, %v5510, 0.0
        %5813 = vadd.xlane.f32.xlu0 %v5812
        %v5814 = vpop.xlane.xlu0 %5813
        %v5815 = vsel %vm2521, %v5511, 0.0
        %5816 = vadd.xlane.f32.xlu0 %v5815
        %v5817 = vpop.xlane.xlu0 %5816
        %v5818 = vsel %vm2521, %v5512, 0.0
        %5819 = vadd.xlane.f32.xlu0 %v5818
        %v5820 = vpop.xlane.xlu0 %5819
        %v5821 = vsel %vm2521, %v5513, 0.0
        %5822 = vadd.xlane.f32.xlu0 %v5821
        %v5823 = vpop.xlane.xlu0 %5822
        %v5824 = vsel %vm2521, %v5514, 0.0
        %5825 = vadd.xlane.f32.xlu0 %v5824
        %v5826 = vpop.xlane.xlu0 %5825
        %v5827 = vsel %vm2521, %v5515, 0.0
        %5828 = vadd.xlane.f32.xlu0 %v5827
        %v5829 = vpop.xlane.xlu0 %5828
        %v5830 = vsel %vm2521, %v5516, 0.0
        %5831 = vadd.xlane.f32.xlu0 %v5830
        %v5832 = vpop.xlane.xlu0 %5831
        %v5833 = vsel %vm2521, %v5517, 0.0
        %5834 = vadd.xlane.f32.xlu0 %v5833
        %v5835 = vpop.xlane.xlu0 %5834
        %v5836 = vsel %vm2521, %v5518, 0.0
        %5837 = vadd.xlane.f32.xlu0 %v5836
        %v5838 = vpop.xlane.xlu0 %5837
        %v5839 = vsel %vm2521, %v5519, 0.0
        %5840 = vadd.xlane.f32.xlu0 %v5839
        %v5841 = vpop.xlane.xlu0 %5840
        %v5842 = vsel %vm2521, %v5520, 0.0
        %5843 = vadd.xlane.f32.xlu0 %v5842
        %v5844 = vpop.xlane.xlu0 %5843
        %v5845 = vsel %vm2521, %v5521, 0.0
        %5846 = vadd.xlane.f32.xlu0 %v5845
        %v5847 = vpop.xlane.xlu0 %5846
        %v5848 = vsel %vm2521, %v5522, 0.0
        %5849 = vadd.xlane.f32.xlu0 %v5848
        %v5850 = vpop.xlane.xlu0 %5849
        %v5851 = vsel %vm2521, %v5523, 0.0
        %5852 = vadd.xlane.f32.xlu0 %v5851
        %v5853 = vpop.xlane.xlu0 %5852
        %v5854 = vsel %vm2521, %v5524, 0.0
        %5855 = vadd.xlane.f32.xlu0 %v5854
        %v5856 = vpop.xlane.xlu0 %5855
        %v5857 = vsel %vm2521, %v5525, 0.0
        %5858 = vadd.xlane.f32.xlu0 %v5857
        %v5859 = vpop.xlane.xlu0 %5858
        %v5860 = vsel %vm2521, %v5526, 0.0
        %5861 = vadd.xlane.f32.xlu0 %v5860
        %v5862 = vpop.xlane.xlu0 %5861
        %v5863 = vsel %vm2521, %v5527, 0.0
        %5864 = vadd.xlane.f32.xlu0 %v5863
        %v5865 = vpop.xlane.xlu0 %5864
        %v5866 = vsel %vm2521, %v5528, 0.0
        %5867 = vadd.xlane.f32.xlu0 %v5866
        %v5868 = vpop.xlane.xlu0 %5867
        %v5869 = vsel %vm2521, %v5529, 0.0
        %5870 = vadd.xlane.f32.xlu0 %v5869
        %v5871 = vpop.xlane.xlu0 %5870
        %v5872 = vsel %vm2521, %v5530, 0.0
        %5873 = vadd.xlane.f32.xlu0 %v5872
        %v5874 = vpop.xlane.xlu0 %5873
        %v5875 = vsel %vm2521, %v5531, 0.0
        %5876 = vadd.xlane.f32.xlu0 %v5875
        %v5877 = vpop.xlane.xlu0 %5876
        %v5878 = vsel %vm2521, %v5532, 0.0
        %5879 = vadd.xlane.f32.xlu0 %v5878
        %v5880 = vpop.xlane.xlu0 %5879
        %v5881 = vsel %vm2521, %v5533, 0.0
        %5882 = vadd.xlane.f32.xlu0 %v5881
        %v5883 = vpop.xlane.xlu0 %5882
        %v5884 = vsel %vm2521, %v5534, 0.0
        %5885 = vadd.xlane.f32.xlu0 %v5884
        %v5886 = vpop.xlane.xlu0 %5885
        %v5887 = vsel %vm2521, %v5535, 0.0
        %5888 = vadd.xlane.f32.xlu0 %v5887
        %v5889 = vpop.xlane.xlu0 %5888
        %v5890 = vsel %vm2521, %v5536, 0.0
        %5891 = vadd.xlane.f32.xlu0 %v5890
        %v5892 = vpop.xlane.xlu0 %5891
        %v5893 = vsel %vm2521, %v5537, 0.0
        %5894 = vadd.xlane.f32.xlu0 %v5893
        %v5895 = vpop.xlane.xlu0 %5894
        %v5896 = vsel %vm2521, %v5538, 0.0
        %5897 = vadd.xlane.f32.xlu0 %v5896
        %v5898 = vpop.xlane.xlu0 %5897
        %v5899 = vsel %vm2521, %v5539, 0.0
        %5900 = vadd.xlane.f32.xlu0 %v5899
        %v5901 = vpop.xlane.xlu0 %5900
        %v5902 = vsel %vm2521, %v5540, 0.0
        %5903 = vadd.xlane.f32.xlu0 %v5902
        %v5904 = vpop.xlane.xlu0 %5903
        %v5905 = vsel %vm2521, %v5541, 0.0
        %5906 = vadd.xlane.f32.xlu0 %v5905
        %v5907 = vpop.xlane.xlu0 %5906
        %v5908 = vsel %vm2521, %v5542, 0.0
        %5909 = vadd.xlane.f32.xlu0 %v5908
        %v5910 = vpop.xlane.xlu0 %5909
        %v5911 = vsel %vm2521, %v5543, 0.0
        %5912 = vadd.xlane.f32.xlu0 %v5911
        %v5913 = vpop.xlane.xlu0 %5912
        %v5914 = vsel %vm2521, %v5544, 0.0
        %5915 = vadd.xlane.f32.xlu0 %v5914
        %v5916 = vpop.xlane.xlu0 %5915
        %v5917 = vsel %vm2521, %v5545, 0.0
        %5918 = vadd.xlane.f32.xlu0 %v5917
        %v5919 = vpop.xlane.xlu0 %5918
        %v5920 = vsel %vm2521, %v5546, 0.0
        %5921 = vadd.xlane.f32.xlu0 %v5920
        %v5922 = vpop.xlane.xlu0 %5921
        %v5923 = vsel %vm2521, %v5547, 0.0
        %5924 = vadd.xlane.f32.xlu0 %v5923
        %v5925 = vpop.xlane.xlu0 %5924
        %v5926 = vsel %vm2521, %v5548, 0.0
        %5927 = vadd.xlane.f32.xlu0 %v5926
        %v5928 = vpop.xlane.xlu0 %5927
        %v5929 = vsel %vm2521, %v5549, 0.0
        %5930 = vadd.xlane.f32.xlu0 %v5929
        %v5931 = vpop.xlane.xlu0 %5930
        %v5932 = vsel %vm2521, %v5550, 0.0
        %5933 = vadd.xlane.f32.xlu0 %v5932
        %v5934 = vpop.xlane.xlu0 %5933
        %v5935 = vsel %vm2521, %v5551, 0.0
        %5936 = vadd.xlane.f32.xlu0 %v5935
        %v5937 = vpop.xlane.xlu0 %5936
        %v5938 = vsel %vm2521, %v5552, 0.0
        %5939 = vadd.xlane.f32.xlu0 %v5938
        %v5940 = vpop.xlane.xlu0 %5939
        %v5941 = vsel %vm2521, %v5553, 0.0
        %5942 = vadd.xlane.f32.xlu0 %v5941
        %v5943 = vpop.xlane.xlu0 %5942
        %v5944 = vsel %vm2521, %v5554, 0.0
        %5945 = vadd.xlane.f32.xlu0 %v5944
        %v5946 = vpop.xlane.xlu0 %5945
        %v5947 = vsel %vm2521, %v5555, 0.0
        %5948 = vadd.xlane.f32.xlu0 %v5947
        %v5949 = vpop.xlane.xlu0 %5948
        %v5950 = vsel %vm2521, %v5556, 0.0
        %5951 = vadd.xlane.f32.xlu0 %v5950
        %v5952 = vpop.xlane.xlu0 %5951
        %v5953 = vsel %vm2521, %v5557, 0.0
        %5954 = vadd.xlane.f32.xlu0 %v5953
        %v5955 = vpop.xlane.xlu0 %5954
        %v5956 = vsel %vm2521, %v5558, 0.0
        %5957 = vadd.xlane.f32.xlu0 %v5956
        %v5958 = vpop.xlane.xlu0 %5957
        %v5959 = vsel %vm2521, %v5559, 0.0
        %5960 = vadd.xlane.f32.xlu0 %v5959
        %v5961 = vpop.xlane.xlu0 %5960
        %v5962 = vsel %vm2521, %v5560, 0.0
        %5963 = vadd.xlane.f32.xlu0 %v5962
        %v5964 = vpop.xlane.xlu0 %5963
        %v5965 = vsel %vm2521, %v5561, 0.0
        %5966 = vadd.xlane.f32.xlu0 %v5965
        %v5967 = vpop.xlane.xlu0 %5966
        %v5968 = vsel %vm2521, %v5562, 0.0
        %5969 = vadd.xlane.f32.xlu0 %v5968
        %v5970 = vpop.xlane.xlu0 %5969
        %v5971 = vsel %vm2521, %v5563, 0.0
        %5972 = vadd.xlane.f32.xlu0 %v5971
        %v5973 = vpop.xlane.xlu0 %5972
        %v5974 = vsel %vm2521, %v5564, 0.0
        %5975 = vadd.xlane.f32.xlu0 %v5974
        %v5976 = vpop.xlane.xlu0 %5975
        %v5977 = vsel %vm2521, %v5565, 0.0
        %5978 = vadd.xlane.f32.xlu0 %v5977
        %v5979 = vpop.xlane.xlu0 %5978
        %v5980 = vsel %vm2521, %v5566, 0.0
        %5981 = vadd.xlane.f32.xlu0 %v5980
        %v5982 = vpop.xlane.xlu0 %5981
        %v5983 = vsel %vm2521, %v5567, 0.0
        %5984 = vadd.xlane.f32.xlu0 %v5983
        %v5985 = vpop.xlane.xlu0 %5984
        %v5986 = vsel %vm2521, %v5568, 0.0
        %5987 = vadd.xlane.f32.xlu0 %v5986
        %v5988 = vpop.xlane.xlu0 %5987
        %v5989 = vsel %vm2521, %v5569, 0.0
        %5990 = vadd.xlane.f32.xlu0 %v5989
        %v5991 = vpop.xlane.xlu0 %5990
        %v5992 = vsel %vm2521, %v5570, 0.0
        %5993 = vadd.xlane.f32.xlu0 %v5992
        %v5994 = vpop.xlane.xlu0 %5993
        %v5995 = vsel %vm2521, %v5571, 0.0
        %5996 = vadd.xlane.f32.xlu0 %v5995
        %v5997 = vpop.xlane.xlu0 %5996
        %v5998 = vsel %vm2521, %v5572, 0.0
        %5999 = vadd.xlane.f32.xlu0 %v5998
        %v6000 = vpop.xlane.xlu0 %5999
        %v6001 = vsel %vm2521, %v5573, 0.0
        %6002 = vadd.xlane.f32.xlu0 %v6001
        %v6003 = vpop.xlane.xlu0 %6002
        %v6004 = vsel %vm2521, %v5574, 0.0
        %6005 = vadd.xlane.f32.xlu0 %v6004
        %v6006 = vpop.xlane.xlu0 %6005
        %v6007 = vsel %vm2521, %v5575, 0.0
        %6008 = vadd.xlane.f32.xlu0 %v6007
        %v6009 = vpop.xlane.xlu0 %6008
        %v6010 = vsel %vm2521, %v5576, 0.0
        %6011 = vadd.xlane.f32.xlu0 %v6010
        %v6012 = vpop.xlane.xlu0 %6011
        %v6013 = vsel %vm2521, %v5577, 0.0
        %6014 = vadd.xlane.f32.xlu0 %v6013
        %v6015 = vpop.xlane.xlu0 %6014
        %v6016 = vsel %vm2521, %v5578, 0.0
        %6017 = vadd.xlane.f32.xlu0 %v6016
        %v6018 = vpop.xlane.xlu0 %6017
        %v6019 = vsel %vm2521, %v5579, 0.0
        %6020 = vadd.xlane.f32.xlu0 %v6019
        %v6021 = vpop.xlane.xlu0 %6020
        %v6022 = vsel %vm2521, %v5580, 0.0
        %6023 = vadd.xlane.f32.xlu0 %v6022
        %v6024 = vpop.xlane.xlu0 %6023
        %v6025 = vsel %vm2521, %v5581, 0.0
        %6026 = vadd.xlane.f32.xlu0 %v6025
        %v6027 = vpop.xlane.xlu0 %6026
        %v6028 = vsel %vm2521, %v5582, 0.0
        %6029 = vadd.xlane.f32.xlu0 %v6028
        %v6030 = vpop.xlane.xlu0 %6029
        %v6031 = vsel %vm2521, %v5583, 0.0
        %6032 = vadd.xlane.f32.xlu0 %v6031
        %v6033 = vpop.xlane.xlu0 %6032
        %v6034 = vsel %vm2521, %v5584, 0.0
        %6035 = vadd.xlane.f32.xlu0 %v6034
        %v6036 = vpop.xlane.xlu0 %6035
        %v6037 = vsel %vm2521, %v5585, 0.0
        %6038 = vadd.xlane.f32.xlu0 %v6037
        %v6039 = vpop.xlane.xlu0 %6038
        %v6040 = vsel %vm2521, %v5586, 0.0
        %6041 = vadd.xlane.f32.xlu0 %v6040
        %v6042 = vpop.xlane.xlu0 %6041
        %v6043 = vsel %vm2521, %v5587, 0.0
        %6044 = vadd.xlane.f32.xlu0 %v6043
        %v6045 = vpop.xlane.xlu0 %6044
        %v6046 = vsel %vm2521, %v5588, 0.0
        %6047 = vadd.xlane.f32.xlu0 %v6046
        %v6048 = vpop.xlane.xlu0 %6047
        %v6049 = vsel %vm2521, %v5589, 0.0
        %6050 = vadd.xlane.f32.xlu0 %v6049
        %v6051 = vpop.xlane.xlu0 %6050
        %v6052 = vsel %vm2521, %v5590, 0.0
        %6053 = vadd.xlane.f32.xlu0 %v6052
        %v6054 = vpop.xlane.xlu0 %6053
        %v6055 = vsel %vm2521, %v5591, 0.0
        %6056 = vadd.xlane.f32.xlu0 %v6055
        %v6057 = vpop.xlane.xlu0 %6056
        %v6058 = vsel %vm2521, %v5592, 0.0
        %6059 = vadd.xlane.f32.xlu0 %v6058
        %v6060 = vpop.xlane.xlu0 %6059
        %v6061 = vsel %vm2521, %v5593, 0.0
        %6062 = vadd.xlane.f32.xlu0 %v6061
        %v6063 = vpop.xlane.xlu0 %6062
        %v6064 = vsel %vm2521, %v5594, 0.0
        %6065 = vadd.xlane.f32.xlu0 %v6064
        %v6066 = vpop.xlane.xlu0 %6065
        %v6067 = vsel %vm2521, %v5595, 0.0
        %6068 = vadd.xlane.f32.xlu0 %v6067
        %v6069 = vpop.xlane.xlu0 %6068
        %v6070 = vsel %vm2521, %v5596, 0.0
        %6071 = vadd.xlane.f32.xlu0 %v6070
        %v6072 = vpop.xlane.xlu0 %6071
        %v6073 = vsel %vm2521, %v5597, 0.0
        %6074 = vadd.xlane.f32.xlu0 %v6073
        %v6075 = vpop.xlane.xlu0 %6074
        %v6076 = vsel %vm2521, %v5598, 0.0
        %6077 = vadd.xlane.f32.xlu0 %v6076
        %v6078 = vpop.xlane.xlu0 %6077
        %v6079 = vsel %vm2521, %v5599, 0.0
        %6080 = vadd.xlane.f32.xlu0 %v6079
        %v6081 = vpop.xlane.xlu0 %6080
        %v6082 = vsel %vm2521, %v5600, 0.0
        %6083 = vadd.xlane.f32.xlu0 %v6082
        %v6084 = vpop.xlane.xlu0 %6083
        %v6085 = vsel %vm2521, %v5601, 0.0
        %6086 = vadd.xlane.f32.xlu0 %v6085
        %v6087 = vpop.xlane.xlu0 %6086
        %v6088 = vsel %vm2521, %v5602, 0.0
        %6089 = vadd.xlane.f32.xlu0 %v6088
        %v6090 = vpop.xlane.xlu0 %6089
        %v6091 = vsel %vm2521, %v5603, 0.0
        %6092 = vadd.xlane.f32.xlu0 %v6091
        %v6093 = vpop.xlane.xlu0 %6092
        %v6094 = vsel %vm2521, %v5604, 0.0
        %6095 = vadd.xlane.f32.xlu0 %v6094
        %v6096 = vpop.xlane.xlu0 %6095
        %v6097 = vsel %vm2521, %v5605, 0.0
        %6098 = vadd.xlane.f32.xlu0 %v6097
        %v6099 = vpop.xlane.xlu0 %6098
        %v6100 = vsel %vm2521, %v5606, 0.0
        %6101 = vadd.xlane.f32.xlu0 %v6100
        %v6102 = vpop.xlane.xlu0 %6101
        %v6103 = vsel %vm2521, %v5607, 0.0
        %6104 = vadd.xlane.f32.xlu0 %v6103
        %v6105 = vpop.xlane.xlu0 %6104
        %v6106 = vsel %vm2521, %v5608, 0.0
        %6107 = vadd.xlane.f32.xlu0 %v6106
        %v6108 = vpop.xlane.xlu0 %6107
        %v6109 = vsel %vm2521, %v5609, 0.0
        %6110 = vadd.xlane.f32.xlu0 %v6109
        %v6111 = vpop.xlane.xlu0 %6110
        %v6112 = vsel %vm2521, %v5610, 0.0
        %6113 = vadd.xlane.f32.xlu0 %v6112
        %v6114 = vpop.xlane.xlu0 %6113
        %v6115 = vsel %vm2521, %v5611, 0.0
        %6116 = vadd.xlane.f32.xlu0 %v6115
        %v6117 = vpop.xlane.xlu0 %6116
        %v6118 = vsel %vm2521, %v5612, 0.0
        %6119 = vadd.xlane.f32.xlu0 %v6118
        %v6120 = vpop.xlane.xlu0 %6119
        %v6121 = vsel %vm2521, %v5613, 0.0
        %6122 = vadd.xlane.f32.xlu0 %v6121
        %v6123 = vpop.xlane.xlu0 %6122
        %v6124 = vsel %vm2521, %v5614, 0.0
        %6125 = vadd.xlane.f32.xlu0 %v6124
        %v6126 = vpop.xlane.xlu0 %6125
        %v6127 = vsel %vm2521, %v5615, 0.0
        %6128 = vadd.xlane.f32.xlu0 %v6127
        %v6129 = vpop.xlane.xlu0 %6128
        %v6130 = vsel %vm2521, %v5616, 0.0
        %6131 = vadd.xlane.f32.xlu0 %v6130
        %v6132 = vpop.xlane.xlu0 %6131
        %v6133 = vsel %vm2521, %v5617, 0.0
        %6134 = vadd.xlane.f32.xlu0 %v6133
        %v6135 = vpop.xlane.xlu0 %6134
        %v6136 = vsel %vm2521, %v5618, 0.0
        %6137 = vadd.xlane.f32.xlu0 %v6136
        %v6138 = vpop.xlane.xlu0 %6137
        %v6139 = vsel %vm2521, %v5619, 0.0
        %6140 = vadd.xlane.f32.xlu0 %v6139
        %v6141 = vpop.xlane.xlu0 %6140
        %v6142 = vsel %vm2521, %v5620, 0.0
        %6143 = vadd.xlane.f32.xlu0 %v6142
        %v6144 = vpop.xlane.xlu0 %6143
        %v6145 = vsel %vm2521, %v5621, 0.0
        %6146 = vadd.xlane.f32.xlu0 %v6145
        %v6147 = vpop.xlane.xlu0 %6146
        %v6148 = vsel %vm2521, %v5622, 0.0
        %6149 = vadd.xlane.f32.xlu0 %v6148
        %v6150 = vpop.xlane.xlu0 %6149
        %v6151 = vsel %vm2521, %v5623, 0.0
        %6152 = vadd.xlane.f32.xlu0 %v6151
        %v6153 = vpop.xlane.xlu0 %6152
        %v6154 = vsel %vm2521, %v5624, 0.0
        %6155 = vadd.xlane.f32.xlu0 %v6154
        %v6156 = vpop.xlane.xlu0 %6155
        %v6157 = vsel %vm2521, %v5625, 0.0
        %6158 = vadd.xlane.f32.xlu0 %v6157
        %v6159 = vpop.xlane.xlu0 %6158
        %v6160 = vsel %vm2521, %v5626, 0.0
        %6161 = vadd.xlane.f32.xlu0 %v6160
        %v6162 = vpop.xlane.xlu0 %6161
        %v6163 = vsel %vm2521, %v5627, 0.0
        %6164 = vadd.xlane.f32.xlu0 %v6163
        %v6165 = vpop.xlane.xlu0 %6164
        %v6166 = vsel %vm2521, %v5628, 0.0
        %6167 = vadd.xlane.f32.xlu0 %v6166
        %v6168 = vpop.xlane.xlu0 %6167
        %v6169 = vsel %vm2521, %v5629, 0.0
        %6170 = vadd.xlane.f32.xlu0 %v6169
        %v6171 = vpop.xlane.xlu0 %6170
        %v6172 = vsel %vm2521, %v5630, 0.0
        %6173 = vadd.xlane.f32.xlu0 %v6172
        %v6174 = vpop.xlane.xlu0 %6173
        %v6175 = vsel %vm2521, %v5631, 0.0
        %6176 = vadd.xlane.f32.xlu0 %v6175
        %v6177 = vpop.xlane.xlu0 %6176
        %v6178 = vsel %vm2521, %v5632, 0.0
        %6179 = vadd.xlane.f32.xlu0 %v6178
        %v6180 = vpop.xlane.xlu0 %6179
        %v6181 = vsel %vm2521, %v5633, 0.0
        %6182 = vadd.xlane.f32.xlu0 %v6181
        %v6183 = vpop.xlane.xlu0 %6182
        %v6184 = vsel %vm2521, %v5634, 0.0
        %6185 = vadd.xlane.f32.xlu0 %v6184
        %v6186 = vpop.xlane.xlu0 %6185
        %v6187 = vsel %vm2521, %v5635, 0.0
        %6188 = vadd.xlane.f32.xlu0 %v6187
        %v6189 = vpop.xlane.xlu0 %6188
        %v6190 = vsel %vm2521, %v5636, 0.0
        %6191 = vadd.xlane.f32.xlu0 %v6190
        %v6192 = vpop.xlane.xlu0 %6191
        %v6193 = vsel %vm2521, %v5637, 0.0
        %6194 = vadd.xlane.f32.xlu0 %v6193
        %v6195 = vpop.xlane.xlu0 %6194
        %v6196 = vsel %vm2521, %v5638, 0.0
        %6197 = vadd.xlane.f32.xlu0 %v6196
        %v6198 = vpop.xlane.xlu0 %6197
        %v6199 = vsel %vm2521, %v5639, 0.0
        %6200 = vadd.xlane.f32.xlu0 %v6199
        %v6201 = vpop.xlane.xlu0 %6200
        %v6202 = vsel %vm2521, %v5640, 0.0
        %6203 = vadd.xlane.f32.xlu0 %v6202
        %v6204 = vpop.xlane.xlu0 %6203
        %v6205 = vsel %vm2521, %v5641, 0.0
        %6206 = vadd.xlane.f32.xlu0 %v6205
        %v6207 = vpop.xlane.xlu0 %6206
        %v6208 = vsel %vm2521, %v5642, 0.0
        %6209 = vadd.xlane.f32.xlu0 %v6208
        %v6210 = vpop.xlane.xlu0 %6209
        %v6211 = vsel %vm2521, %v5643, 0.0
        %6212 = vadd.xlane.f32.xlu0 %v6211
        %v6213 = vpop.xlane.xlu0 %6212
        %v6214 = vsel %vm2521, %v5644, 0.0
        %6215 = vadd.xlane.f32.xlu0 %v6214
        %v6216 = vpop.xlane.xlu0 %6215
        %v6217 = vsel %vm2521, %v5645, 0.0
        %6218 = vadd.xlane.f32.xlu0 %v6217
        %v6219 = vpop.xlane.xlu0 %6218
        %v6220 = vsel %vm2521, %v5646, 0.0
        %6221 = vadd.xlane.f32.xlu0 %v6220
        %v6222 = vpop.xlane.xlu0 %6221
        %v6223 = vsel %vm2521, %v5647, 0.0
        %6224 = vadd.xlane.f32.xlu0 %v6223
        %v6225 = vpop.xlane.xlu0 %6224
        %v6226 = vsel %vm2521, %v5648, 0.0
        %6227 = vadd.xlane.f32.xlu0 %v6226
        %v6228 = vpop.xlane.xlu0 %6227
        %v6229 = vsel %vm2521, %v5649, 0.0
        %6230 = vadd.xlane.f32.xlu0 %v6229
        %v6231 = vpop.xlane.xlu0 %6230
        %v6232 = vsel %vm2521, %v5650, 0.0
        %6233 = vadd.xlane.f32.xlu0 %v6232
        %v6234 = vpop.xlane.xlu0 %6233
        %v6235 = vsel %vm2521, %v5651, 0.0
        %6236 = vadd.xlane.f32.xlu0 %v6235
        %v6237 = vpop.xlane.xlu0 %6236
        %v6238 = vsel %vm2521, %v5652, 0.0
        %6239 = vadd.xlane.f32.xlu0 %v6238
        %v6240 = vpop.xlane.xlu0 %6239
        %v6241 = vsel %vm2521, %v5653, 0.0
        %6242 = vadd.xlane.f32.xlu0 %v6241
        %v6243 = vpop.xlane.xlu0 %6242
        %v6244 = vsel %vm2521, %v5654, 0.0
        %6245 = vadd.xlane.f32.xlu0 %v6244
        %v6246 = vpop.xlane.xlu0 %6245
        %v6247 = vsel %vm2521, %v5655, 0.0
        %6248 = vadd.xlane.f32.xlu0 %v6247
        %v6249 = vpop.xlane.xlu0 %6248
        %v6250 = vsel %vm2521, %v5656, 0.0
        %6251 = vadd.xlane.f32.xlu0 %v6250
        %v6252 = vpop.xlane.xlu0 %6251
        %v6253 = vsel %vm2521, %v5657, 0.0
        %6254 = vadd.xlane.f32.xlu0 %v6253
        %v6255 = vpop.xlane.xlu0 %6254
        %v6256 = vsel %vm2521, %v5658, 0.0
        %6257 = vadd.xlane.f32.xlu0 %v6256
        %v6258 = vpop.xlane.xlu0 %6257
        %v6259 = vsel %vm2521, %v5659, 0.0
        %6260 = vadd.xlane.f32.xlu0 %v6259
        %v6261 = vpop.xlane.xlu0 %6260
        %v6262 = vsel %vm2521, %v5660, 0.0
        %6263 = vadd.xlane.f32.xlu0 %v6262
        %v6264 = vpop.xlane.xlu0 %6263
        %v6265 = vsel %vm2521, %v5661, 0.0
        %6266 = vadd.xlane.f32.xlu0 %v6265
        %v6267 = vpop.xlane.xlu0 %6266
        %v6268 = vsel %vm2521, %v5662, 0.0
        %6269 = vadd.xlane.f32.xlu0 %v6268
        %v6270 = vpop.xlane.xlu0 %6269
        %v6271 = vsel %vm2521, %v5663, 0.0
        %6272 = vadd.xlane.f32.xlu0 %v6271
        %v6273 = vpop.xlane.xlu0 %6272
        %v6274 = vsel %vm2521, %v5664, 0.0
        %6275 = vadd.xlane.f32.xlu0 %v6274
        %v6276 = vpop.xlane.xlu0 %6275
        %v6277 = vsel %vm2521, %v5665, 0.0
        %6278 = vadd.xlane.f32.xlu0 %v6277
        %v6279 = vpop.xlane.xlu0 %6278
        %v6280 = vsel %vm2521, %v5666, 0.0
        %6281 = vadd.xlane.f32.xlu0 %v6280
        %v6282 = vpop.xlane.xlu0 %6281
        %v6283 = vsel %vm2521, %v5667, 0.0
        %6284 = vadd.xlane.f32.xlu0 %v6283
        %v6285 = vpop.xlane.xlu0 %6284
        %v6286 = vsel %vm2521, %v5668, 0.0
        %6287 = vadd.xlane.f32.xlu0 %v6286
        %v6288 = vpop.xlane.xlu0 %6287
        %v6289 = vsel %vm2521, %v5669, 0.0
        %6290 = vadd.xlane.f32.xlu0 %v6289
        %v6291 = vpop.xlane.xlu0 %6290
        %v6292 = vsel %vm2521, %v5670, 0.0
        %6293 = vadd.xlane.f32.xlu0 %v6292
        %v6294 = vpop.xlane.xlu0 %6293
        %v6295 = vsel %vm2521, %v5671, 0.0
        %6296 = vadd.xlane.f32.xlu0 %v6295
        %v6297 = vpop.xlane.xlu0 %6296
        %v6298 = vsel %vm2521, %v5672, 0.0
        %6299 = vadd.xlane.f32.xlu0 %v6298
        %v6300 = vpop.xlane.xlu0 %6299
        %v6301 = vsel %vm2521, %v5673, 0.0
        %6302 = vadd.xlane.f32.xlu0 %v6301
        %v6303 = vpop.xlane.xlu0 %6302
        %v6304 = vsel %vm2521, %v5674, 0.0
        %6305 = vadd.xlane.f32.xlu0 %v6304
        %v6306 = vpop.xlane.xlu0 %6305
        %v6307 = vsel %vm2521, %v5675, 0.0
        %6308 = vadd.xlane.f32.xlu0 %v6307
        %v6309 = vpop.xlane.xlu0 %6308
        %v6310 = vsel %vm2521, %v5676, 0.0
        %6311 = vadd.xlane.f32.xlu0 %v6310
        %v6312 = vpop.xlane.xlu0 %6311
        %v6313 = vsel %vm2521, %v5677, 0.0
        %6314 = vadd.xlane.f32.xlu0 %v6313
        %v6315 = vpop.xlane.xlu0 %6314
        %v6316 = vsel %vm2521, %v5678, 0.0
        %6317 = vadd.xlane.f32.xlu0 %v6316
        %v6318 = vpop.xlane.xlu0 %6317
        %v6319 = vsel %vm2521, %v5679, 0.0
        %6320 = vadd.xlane.f32.xlu0 %v6319
        %v6321 = vpop.xlane.xlu0 %6320
        %v6322 = vsel %vm2521, %v5680, 0.0
        %6323 = vadd.xlane.f32.xlu0 %v6322
        %v6324 = vpop.xlane.xlu0 %6323
        %v6325 = vsel %vm2521, %v5681, 0.0
        %6326 = vadd.xlane.f32.xlu0 %v6325
        %v6327 = vpop.xlane.xlu0 %6326
        %v6328 = vsel %vm2521, %v5682, 0.0
        %6329 = vadd.xlane.f32.xlu0 %v6328
        %v6330 = vpop.xlane.xlu0 %6329
        %v6331 = vsel %vm2521, %v5683, 0.0
        %6332 = vadd.xlane.f32.xlu0 %v6331
        %v6333 = vpop.xlane.xlu0 %6332
        %v6334 = vsel %vm2521, %v5684, 0.0
        %6335 = vadd.xlane.f32.xlu0 %v6334
        %v6336 = vpop.xlane.xlu0 %6335
        %v6337 = vsel %vm2521, %v5685, 0.0
        %6338 = vadd.xlane.f32.xlu0 %v6337
        %v6339 = vpop.xlane.xlu0 %6338
        %v6340 = vsel %vm2521, %v5686, 0.0
        %6341 = vadd.xlane.f32.xlu0 %v6340
        %v6342 = vpop.xlane.xlu0 %6341
        %v6343 = vsel %vm2521, %v5687, 0.0
        %6344 = vadd.xlane.f32.xlu0 %v6343
        %v6345 = vpop.xlane.xlu0 %6344
        %v6346 = vsel %vm2521, %v5688, 0.0
        %6347 = vadd.xlane.f32.xlu0 %v6346
        %v6348 = vpop.xlane.xlu0 %6347
        %v6349 = vsel %vm2521, %v5689, 0.0
        %6350 = vadd.xlane.f32.xlu0 %v6349
        %v6351 = vpop.xlane.xlu0 %6350
        %v6352 = vsel %vm2521, %v5690, 0.0
        %6353 = vadd.xlane.f32.xlu0 %v6352
        %v6354 = vpop.xlane.xlu0 %6353
        %v6355 = vsel %vm2521, %v5691, 0.0
        %6356 = vadd.xlane.f32.xlu0 %v6355
        %v6357 = vpop.xlane.xlu0 %6356
        %v6358 = vsel %vm2521, %v5692, 0.0
        %6359 = vadd.xlane.f32.xlu0 %v6358
        %v6360 = vpop.xlane.xlu0 %6359
        %v6361 = vsel %vm2521, %v5693, 0.0
        %6362 = vadd.xlane.f32.xlu0 %v6361
        %v6363 = vpop.xlane.xlu0 %6362
        %v6364 = vsel %vm2521, %v5694, 0.0
        %6365 = vadd.xlane.f32.xlu0 %v6364
        %v6366 = vpop.xlane.xlu0 %6365
        %v6367 = vsel %vm2521, %v5695, 0.0
        %6368 = vadd.xlane.f32.xlu0 %v6367
        %v6369 = vpop.xlane.xlu0 %6368
        %v6370 = vsel %vm2521, %v5696, 0.0
        %6371 = vadd.xlane.f32.xlu0 %v6370
        %v6372 = vpop.xlane.xlu0 %6371
        %v6373 = vsel %vm2521, %v5697, 0.0
        %6374 = vadd.xlane.f32.xlu0 %v6373
        %v6375 = vpop.xlane.xlu0 %6374
        %v6376 = vsel %vm2521, %v5698, 0.0
        %6377 = vadd.xlane.f32.xlu0 %v6376
        %v6378 = vpop.xlane.xlu0 %6377
        %v6379 = vsel %vm2521, %v5699, 0.0
        %6380 = vadd.xlane.f32.xlu0 %v6379
        %v6381 = vpop.xlane.xlu0 %6380
        %v6382 = vsel %vm2521, %v5700, 0.0
        %6383 = vadd.xlane.f32.xlu0 %v6382
        %v6384 = vpop.xlane.xlu0 %6383
        %v6385 = vsel %vm2521, %v5701, 0.0
        %6386 = vadd.xlane.f32.xlu0 %v6385
        %v6387 = vpop.xlane.xlu0 %6386
        %v6388 = vsel %vm2521, %v5702, 0.0
        %6389 = vadd.xlane.f32.xlu0 %v6388
        %v6390 = vpop.xlane.xlu0 %6389
        %v6391 = vsel %vm2521, %v5703, 0.0
        %6392 = vadd.xlane.f32.xlu0 %v6391
        %v6393 = vpop.xlane.xlu0 %6392
        %v6394 = vsel %vm2521, %v5704, 0.0
        %6395 = vadd.xlane.f32.xlu0 %v6394
        %v6396 = vpop.xlane.xlu0 %6395
        %v6397 = vsel %vm2521, %v5705, 0.0
        %6398 = vadd.xlane.f32.xlu0 %v6397
        %v6399 = vpop.xlane.xlu0 %6398
        %v6400 = vsel %vm2521, %v5706, 0.0
        %6401 = vadd.xlane.f32.xlu0 %v6400
        %v6402 = vpop.xlane.xlu0 %6401
        %v6403 = vsel %vm2521, %v5707, 0.0
        %6404 = vadd.xlane.f32.xlu0 %v6403
        %v6405 = vpop.xlane.xlu0 %6404
        %v6406 = vsel %vm2521, %v5708, 0.0
        %6407 = vadd.xlane.f32.xlu0 %v6406
        %v6408 = vpop.xlane.xlu0 %6407
        %v6409 = vsel %vm2521, %v5709, 0.0
        %6410 = vadd.xlane.f32.xlu0 %v6409
        %v6411 = vpop.xlane.xlu0 %6410
        %v6412 = vsel %vm2521, %v5710, 0.0
        %6413 = vadd.xlane.f32.xlu0 %v6412
        %v6414 = vpop.xlane.xlu0 %6413
        %v6415 = vsel %vm2521, %v5711, 0.0
        %6416 = vadd.xlane.f32.xlu0 %v6415
        %v6417 = vpop.xlane.xlu0 %6416
        %v6418 = vsel %vm2521, %v5712, 0.0
        %6419 = vadd.xlane.f32.xlu0 %v6418
        %v6420 = vpop.xlane.xlu0 %6419
        %v6421 = vsel %vm2521, %v5713, 0.0
        %6422 = vadd.xlane.f32.xlu0 %v6421
        %v6423 = vpop.xlane.xlu0 %6422
        %v6424 = vsel %vm2521, %v5714, 0.0
        %6425 = vadd.xlane.f32.xlu0 %v6424
        %v6426 = vpop.xlane.xlu0 %6425
        %v6427 = vsel %vm2521, %v5715, 0.0
        %6428 = vadd.xlane.f32.xlu0 %v6427
        %v6429 = vpop.xlane.xlu0 %6428
        %v6430 = vsel %vm2521, %v5716, 0.0
        %6431 = vadd.xlane.f32.xlu0 %v6430
        %v6432 = vpop.xlane.xlu0 %6431
        %v6433 = vsel %vm2521, %v5717, 0.0
        %6434 = vadd.xlane.f32.xlu0 %v6433
        %v6435 = vpop.xlane.xlu0 %6434
        %v6436 = vsel %vm2521, %v5718, 0.0
        %6437 = vadd.xlane.f32.xlu0 %v6436
        %v6438 = vpop.xlane.xlu0 %6437
        %v6439 = vsel %vm2521, %v5719, 0.0
        %6440 = vadd.xlane.f32.xlu0 %v6439
        %v6441 = vpop.xlane.xlu0 %6440
        %v6442 = vsel %vm2521, %v5720, 0.0
        %6443 = vadd.xlane.f32.xlu0 %v6442
        %v6444 = vpop.xlane.xlu0 %6443
        %v6445 = vsel %vm2521, %v5721, 0.0
        %6446 = vadd.xlane.f32.xlu0 %v6445
        %v6447 = vpop.xlane.xlu0 %6446
        %v6448 = vsel %vm2521, %v5722, 0.0
        %6449 = vadd.xlane.f32.xlu0 %v6448
        %v6450 = vpop.xlane.xlu0 %6449
        %v6451 = vsel %vm2521, %v5723, 0.0
        %6452 = vadd.xlane.f32.xlu0 %v6451
        %v6453 = vpop.xlane.xlu0 %6452
        %v6454 = vsel %vm2521, %v5724, 0.0
        %6455 = vadd.xlane.f32.xlu0 %v6454
        %v6456 = vpop.xlane.xlu0 %6455
        %v6457 = vsel %vm2521, %v5725, 0.0
        %6458 = vadd.xlane.f32.xlu0 %v6457
        %v6459 = vpop.xlane.xlu0 %6458
        %v6460 = vsel %vm2521, %v5726, 0.0
        %6461 = vadd.xlane.f32.xlu0 %v6460
        %v6462 = vpop.xlane.xlu0 %6461
        %v6463 = vsel %vm2521, %v5727, 0.0
        %6464 = vadd.xlane.f32.xlu0 %v6463
        %v6465 = vpop.xlane.xlu0 %6464
        %v6466 = vsel %vm2521, %v5728, 0.0
        %6467 = vadd.xlane.f32.xlu0 %v6466
        %v6468 = vpop.xlane.xlu0 %6467
        %v6469 = vsel %vm2521, %v5729, 0.0
        %6470 = vadd.xlane.f32.xlu0 %v6469
        %v6471 = vpop.xlane.xlu0 %6470
        %v6472 = vsel %vm2521, %v5730, 0.0
        %6473 = vadd.xlane.f32.xlu0 %v6472
        %v6474 = vpop.xlane.xlu0 %6473
        %v6475 = vsel %vm2521, %v5731, 0.0
        %6476 = vadd.xlane.f32.xlu0 %v6475
        %v6477 = vpop.xlane.xlu0 %6476
        %v6478 = vsel %vm2521, %v5732, 0.0
        %6479 = vadd.xlane.f32.xlu0 %v6478
        %v6480 = vpop.xlane.xlu0 %6479
        %v6481 = vsel %vm2521, %v5733, 0.0
        %6482 = vadd.xlane.f32.xlu0 %v6481
        %v6483 = vpop.xlane.xlu0 %6482
        %v6484 = vsel %vm2521, %v5734, 0.0
        %6485 = vadd.xlane.f32.xlu0 %v6484
        %v6486 = vpop.xlane.xlu0 %6485
        %v6487 = vsel %vm2521, %v5735, 0.0
        %6488 = vadd.xlane.f32.xlu0 %v6487
        %v6489 = vpop.xlane.xlu0 %6488
        %v6490 = vsel %vm2521, %v5736, 0.0
        %6491 = vadd.xlane.f32.xlu0 %v6490
        %v6492 = vpop.xlane.xlu0 %6491
        %v6493 = vsel %vm2521, %v5737, 0.0
        %6494 = vadd.xlane.f32.xlu0 %v6493
        %v6495 = vpop.xlane.xlu0 %6494
        %v6496 = vsel %vm2521, %v5738, 0.0
        %6497 = vadd.xlane.f32.xlu0 %v6496
        %v6498 = vpop.xlane.xlu0 %6497
        %v6499 = vsel %vm2521, %v5739, 0.0
        %6500 = vadd.xlane.f32.xlu0 %v6499
        %v6501 = vpop.xlane.xlu0 %6500
        %v6502 = vsel %vm2521, %v5740, 0.0
        %6503 = vadd.xlane.f32.xlu0 %v6502
        %v6504 = vpop.xlane.xlu0 %6503
        %v6505 = vsel %vm2521, %v5741, 0.0
        %6506 = vadd.xlane.f32.xlu0 %v6505
        %v6507 = vpop.xlane.xlu0 %6506
        %v6508 = vsel %vm2521, %v5742, 0.0
        %6509 = vadd.xlane.f32.xlu0 %v6508
        %v6510 = vpop.xlane.xlu0 %6509
        %v6767 = vlaneseq
        %v6768 = vand.u32 %v6767, 127
        %v6769 = vlaneseq
        %v6770 = vshrl.u32 %v6769, 7
        %v6771 = vsub.s32 %v6768, %v6770
        %v6772 = vrot.slane %v5745, %v6771
        %v6773 = vlaneseq
        %v6774 = vshrl.u32 %v6773, 7
        %v6775 = vsub.s32 %v6768, %v6774
        %v6776 = vrot.slane %v5748, %v6775
        %v6777 = vlaneseq
        %v6778 = vshrl.u32 %v6777, 7
        %v6779 = vsub.s32 %v6768, %v6778
        %v6780 = vrot.slane %v5751, %v6779
        %v6781 = vlaneseq
        %v6782 = vshrl.u32 %v6781, 7
        %v6783 = vsub.s32 %v6768, %v6782
        %v6784 = vrot.slane %v5754, %v6783
        %v6785 = vlaneseq
        %v6786 = vshrl.u32 %v6785, 7
        %v6787 = vsub.s32 %v6768, %v6786
        %v6788 = vrot.slane %v5757, %v6787
        %v6789 = vlaneseq
        %v6790 = vshrl.u32 %v6789, 7
        %v6791 = vsub.s32 %v6768, %v6790
        %v6792 = vrot.slane %v5760, %v6791
        %v6793 = vlaneseq
        %v6794 = vshrl.u32 %v6793, 7
        %v6795 = vsub.s32 %v6768, %v6794
        %v6796 = vrot.slane %v5763, %v6795
        %v6797 = vlaneseq
        %v6798 = vshrl.u32 %v6797, 7
        %v6799 = vsub.s32 %v6768, %v6798
        %v6800 = vrot.slane %v5766, %v6799
        %v6801 = vlaneseq
        %v6802 = vshrl.u32 %v6801, 7
        %v6803 = vsub.s32 %v6768, %v6802
        %v6804 = vrot.slane %v5769, %v6803
        %v6805 = vlaneseq
        %v6806 = vshrl.u32 %v6805, 7
        %v6807 = vsub.s32 %v6768, %v6806
        %v6808 = vrot.slane %v5772, %v6807
        %v6809 = vlaneseq
        %v6810 = vshrl.u32 %v6809, 7
        %v6811 = vsub.s32 %v6768, %v6810
        %v6812 = vrot.slane %v5775, %v6811
        %v6813 = vlaneseq
        %v6814 = vshrl.u32 %v6813, 7
        %v6815 = vsub.s32 %v6768, %v6814
        %v6816 = vrot.slane %v5778, %v6815
        %v6817 = vlaneseq
        %v6818 = vshrl.u32 %v6817, 7
        %v6819 = vsub.s32 %v6768, %v6818
        %v6820 = vrot.slane %v5781, %v6819
        %v6821 = vlaneseq
        %v6822 = vshrl.u32 %v6821, 7
        %v6823 = vsub.s32 %v6768, %v6822
        %v6824 = vrot.slane %v5784, %v6823
        %v6825 = vlaneseq
        %v6826 = vshrl.u32 %v6825, 7
        %v6827 = vsub.s32 %v6768, %v6826
        %v6828 = vrot.slane %v5787, %v6827
        %v6829 = vlaneseq
        %v6830 = vshrl.u32 %v6829, 7
        %v6831 = vsub.s32 %v6768, %v6830
        %v6832 = vrot.slane %v5790, %v6831
        %v6833 = vlaneseq
        %v6834 = vshrl.u32 %v6833, 7
        %v6835 = vsub.s32 %v6768, %v6834
        %v6836 = vrot.slane %v5793, %v6835
        %v6837 = vlaneseq
        %v6838 = vshrl.u32 %v6837, 7
        %v6839 = vsub.s32 %v6768, %v6838
        %v6840 = vrot.slane %v5796, %v6839
        %v6841 = vlaneseq
        %v6842 = vshrl.u32 %v6841, 7
        %v6843 = vsub.s32 %v6768, %v6842
        %v6844 = vrot.slane %v5799, %v6843
        %v6845 = vlaneseq
        %v6846 = vshrl.u32 %v6845, 7
        %v6847 = vsub.s32 %v6768, %v6846
        %v6848 = vrot.slane %v5802, %v6847
        %v6849 = vlaneseq
        %v6850 = vshrl.u32 %v6849, 7
        %v6851 = vsub.s32 %v6768, %v6850
        %v6852 = vrot.slane %v5805, %v6851
        %v6853 = vlaneseq
        %v6854 = vshrl.u32 %v6853, 7
        %v6855 = vsub.s32 %v6768, %v6854
        %v6856 = vrot.slane %v5808, %v6855
        %v6857 = vlaneseq
        %v6858 = vshrl.u32 %v6857, 7
        %v6859 = vsub.s32 %v6768, %v6858
        %v6860 = vrot.slane %v5811, %v6859
        %v6861 = vlaneseq
        %v6862 = vshrl.u32 %v6861, 7
        %v6863 = vsub.s32 %v6768, %v6862
        %v6864 = vrot.slane %v5814, %v6863
        %v6865 = vlaneseq
        %v6866 = vshrl.u32 %v6865, 7
        %v6867 = vsub.s32 %v6768, %v6866
        %v6868 = vrot.slane %v5817, %v6867
        %v6869 = vlaneseq
        %v6870 = vshrl.u32 %v6869, 7
        %v6871 = vsub.s32 %v6768, %v6870
        %v6872 = vrot.slane %v5820, %v6871
        %v6873 = vlaneseq
        %v6874 = vshrl.u32 %v6873, 7
        %v6875 = vsub.s32 %v6768, %v6874
        %v6876 = vrot.slane %v5823, %v6875
        %v6877 = vlaneseq
        %v6878 = vshrl.u32 %v6877, 7
        %v6879 = vsub.s32 %v6768, %v6878
        %v6880 = vrot.slane %v5826, %v6879
        %v6881 = vlaneseq
        %v6882 = vshrl.u32 %v6881, 7
        %v6883 = vsub.s32 %v6768, %v6882
        %v6884 = vrot.slane %v5829, %v6883
        %v6885 = vlaneseq
        %v6886 = vshrl.u32 %v6885, 7
        %v6887 = vsub.s32 %v6768, %v6886
        %v6888 = vrot.slane %v5832, %v6887
        %v6889 = vlaneseq
        %v6890 = vshrl.u32 %v6889, 7
        %v6891 = vsub.s32 %v6768, %v6890
        %v6892 = vrot.slane %v5835, %v6891
        %v6893 = vlaneseq
        %v6894 = vshrl.u32 %v6893, 7
        %v6895 = vsub.s32 %v6768, %v6894
        %v6896 = vrot.slane %v5838, %v6895
        %v6897 = vlaneseq
        %v6898 = vshrl.u32 %v6897, 7
        %v6899 = vsub.s32 %v6768, %v6898
        %v6900 = vrot.slane %v5841, %v6899
        %v6901 = vlaneseq
        %v6902 = vshrl.u32 %v6901, 7
        %v6903 = vsub.s32 %v6768, %v6902
        %v6904 = vrot.slane %v5844, %v6903
        %v6905 = vlaneseq
        %v6906 = vshrl.u32 %v6905, 7
        %v6907 = vsub.s32 %v6768, %v6906
        %v6908 = vrot.slane %v5847, %v6907
        %v6909 = vlaneseq
        %v6910 = vshrl.u32 %v6909, 7
        %v6911 = vsub.s32 %v6768, %v6910
        %v6912 = vrot.slane %v5850, %v6911
        %v6913 = vlaneseq
        %v6914 = vshrl.u32 %v6913, 7
        %v6915 = vsub.s32 %v6768, %v6914
        %v6916 = vrot.slane %v5853, %v6915
        %v6917 = vlaneseq
        %v6918 = vshrl.u32 %v6917, 7
        %v6919 = vsub.s32 %v6768, %v6918
        %v6920 = vrot.slane %v5856, %v6919
        %v6921 = vlaneseq
        %v6922 = vshrl.u32 %v6921, 7
        %v6923 = vsub.s32 %v6768, %v6922
        %v6924 = vrot.slane %v5859, %v6923
        %v6925 = vlaneseq
        %v6926 = vshrl.u32 %v6925, 7
        %v6927 = vsub.s32 %v6768, %v6926
        %v6928 = vrot.slane %v5862, %v6927
        %v6929 = vlaneseq
        %v6930 = vshrl.u32 %v6929, 7
        %v6931 = vsub.s32 %v6768, %v6930
        %v6932 = vrot.slane %v5865, %v6931
        %v6933 = vlaneseq
        %v6934 = vshrl.u32 %v6933, 7
        %v6935 = vsub.s32 %v6768, %v6934
        %v6936 = vrot.slane %v5868, %v6935
        %v6937 = vlaneseq
        %v6938 = vshrl.u32 %v6937, 7
        %v6939 = vsub.s32 %v6768, %v6938
        %v6940 = vrot.slane %v5871, %v6939
        %v6941 = vlaneseq
        %v6942 = vshrl.u32 %v6941, 7
        %v6943 = vsub.s32 %v6768, %v6942
        %v6944 = vrot.slane %v5874, %v6943
        %v6945 = vlaneseq
        %v6946 = vshrl.u32 %v6945, 7
        %v6947 = vsub.s32 %v6768, %v6946
        %v6948 = vrot.slane %v5877, %v6947
        %v6949 = vlaneseq
        %v6950 = vshrl.u32 %v6949, 7
        %v6951 = vsub.s32 %v6768, %v6950
        %v6952 = vrot.slane %v5880, %v6951
        %v6953 = vlaneseq
        %v6954 = vshrl.u32 %v6953, 7
        %v6955 = vsub.s32 %v6768, %v6954
        %v6956 = vrot.slane %v5883, %v6955
        %v6957 = vlaneseq
        %v6958 = vshrl.u32 %v6957, 7
        %v6959 = vsub.s32 %v6768, %v6958
        %v6960 = vrot.slane %v5886, %v6959
        %v6961 = vlaneseq
        %v6962 = vshrl.u32 %v6961, 7
        %v6963 = vsub.s32 %v6768, %v6962
        %v6964 = vrot.slane %v5889, %v6963
        %v6965 = vlaneseq
        %v6966 = vshrl.u32 %v6965, 7
        %v6967 = vsub.s32 %v6768, %v6966
        %v6968 = vrot.slane %v5892, %v6967
        %v6969 = vlaneseq
        %v6970 = vshrl.u32 %v6969, 7
        %v6971 = vsub.s32 %v6768, %v6970
        %v6972 = vrot.slane %v5895, %v6971
        %v6973 = vlaneseq
        %v6974 = vshrl.u32 %v6973, 7
        %v6975 = vsub.s32 %v6768, %v6974
        %v6976 = vrot.slane %v5898, %v6975
        %v6977 = vlaneseq
        %v6978 = vshrl.u32 %v6977, 7
        %v6979 = vsub.s32 %v6768, %v6978
        %v6980 = vrot.slane %v5901, %v6979
        %v6981 = vlaneseq
        %v6982 = vshrl.u32 %v6981, 7
        %v6983 = vsub.s32 %v6768, %v6982
        %v6984 = vrot.slane %v5904, %v6983
        %v6985 = vlaneseq
        %v6986 = vshrl.u32 %v6985, 7
        %v6987 = vsub.s32 %v6768, %v6986
        %v6988 = vrot.slane %v5907, %v6987
        %v6989 = vlaneseq
        %v6990 = vshrl.u32 %v6989, 7
        %v6991 = vsub.s32 %v6768, %v6990
        %v6992 = vrot.slane %v5910, %v6991
        %v6993 = vlaneseq
        %v6994 = vshrl.u32 %v6993, 7
        %v6995 = vsub.s32 %v6768, %v6994
        %v6996 = vrot.slane %v5913, %v6995
        %v6997 = vlaneseq
        %v6998 = vshrl.u32 %v6997, 7
        %v6999 = vsub.s32 %v6768, %v6998
        %v7000 = vrot.slane %v5916, %v6999
        %v7001 = vlaneseq
        %v7002 = vshrl.u32 %v7001, 7
        %v7003 = vsub.s32 %v6768, %v7002
        %v7004 = vrot.slane %v5919, %v7003
        %v7005 = vlaneseq
        %v7006 = vshrl.u32 %v7005, 7
        %v7007 = vsub.s32 %v6768, %v7006
        %v7008 = vrot.slane %v5922, %v7007
        %v7009 = vlaneseq
        %v7010 = vshrl.u32 %v7009, 7
        %v7011 = vsub.s32 %v6768, %v7010
        %v7012 = vrot.slane %v5925, %v7011
        %v7013 = vlaneseq
        %v7014 = vshrl.u32 %v7013, 7
        %v7015 = vsub.s32 %v6768, %v7014
        %v7016 = vrot.slane %v5928, %v7015
        %v7017 = vlaneseq
        %v7018 = vshrl.u32 %v7017, 7
        %v7019 = vsub.s32 %v6768, %v7018
        %v7020 = vrot.slane %v5931, %v7019
        %v7021 = vlaneseq
        %v7022 = vshrl.u32 %v7021, 7
        %v7023 = vsub.s32 %v6768, %v7022
        %v7024 = vrot.slane %v5934, %v7023
        %v7025 = vlaneseq
        %v7026 = vshrl.u32 %v7025, 7
        %v7027 = vsub.s32 %v6768, %v7026
        %v7028 = vrot.slane %v5937, %v7027
        %v7029 = vlaneseq
        %v7030 = vshrl.u32 %v7029, 7
        %v7031 = vsub.s32 %v6768, %v7030
        %v7032 = vrot.slane %v5940, %v7031
        %v7033 = vlaneseq
        %v7034 = vshrl.u32 %v7033, 7
        %v7035 = vsub.s32 %v6768, %v7034
        %v7036 = vrot.slane %v5943, %v7035
        %v7037 = vlaneseq
        %v7038 = vshrl.u32 %v7037, 7
        %v7039 = vsub.s32 %v6768, %v7038
        %v7040 = vrot.slane %v5946, %v7039
        %v7041 = vlaneseq
        %v7042 = vshrl.u32 %v7041, 7
        %v7043 = vsub.s32 %v6768, %v7042
        %v7044 = vrot.slane %v5949, %v7043
        %v7045 = vlaneseq
        %v7046 = vshrl.u32 %v7045, 7
        %v7047 = vsub.s32 %v6768, %v7046
        %v7048 = vrot.slane %v5952, %v7047
        %v7049 = vlaneseq
        %v7050 = vshrl.u32 %v7049, 7
        %v7051 = vsub.s32 %v6768, %v7050
        %v7052 = vrot.slane %v5955, %v7051
        %v7053 = vlaneseq
        %v7054 = vshrl.u32 %v7053, 7
        %v7055 = vsub.s32 %v6768, %v7054
        %v7056 = vrot.slane %v5958, %v7055
        %v7057 = vlaneseq
        %v7058 = vshrl.u32 %v7057, 7
        %v7059 = vsub.s32 %v6768, %v7058
        %v7060 = vrot.slane %v5961, %v7059
        %v7061 = vlaneseq
        %v7062 = vshrl.u32 %v7061, 7
        %v7063 = vsub.s32 %v6768, %v7062
        %v7064 = vrot.slane %v5964, %v7063
        %v7065 = vlaneseq
        %v7066 = vshrl.u32 %v7065, 7
        %v7067 = vsub.s32 %v6768, %v7066
        %v7068 = vrot.slane %v5967, %v7067
        %v7069 = vlaneseq
        %v7070 = vshrl.u32 %v7069, 7
        %v7071 = vsub.s32 %v6768, %v7070
        %v7072 = vrot.slane %v5970, %v7071
        %v7073 = vlaneseq
        %v7074 = vshrl.u32 %v7073, 7
        %v7075 = vsub.s32 %v6768, %v7074
        %v7076 = vrot.slane %v5973, %v7075
        %v7077 = vlaneseq
        %v7078 = vshrl.u32 %v7077, 7
        %v7079 = vsub.s32 %v6768, %v7078
        %v7080 = vrot.slane %v5976, %v7079
        %v7081 = vlaneseq
        %v7082 = vshrl.u32 %v7081, 7
        %v7083 = vsub.s32 %v6768, %v7082
        %v7084 = vrot.slane %v5979, %v7083
        %v7085 = vlaneseq
        %v7086 = vshrl.u32 %v7085, 7
        %v7087 = vsub.s32 %v6768, %v7086
        %v7088 = vrot.slane %v5982, %v7087
        %v7089 = vlaneseq
        %v7090 = vshrl.u32 %v7089, 7
        %v7091 = vsub.s32 %v6768, %v7090
        %v7092 = vrot.slane %v5985, %v7091
        %v7093 = vlaneseq
        %v7094 = vshrl.u32 %v7093, 7
        %v7095 = vsub.s32 %v6768, %v7094
        %v7096 = vrot.slane %v5988, %v7095
        %v7097 = vlaneseq
        %v7098 = vshrl.u32 %v7097, 7
        %v7099 = vsub.s32 %v6768, %v7098
        %v7100 = vrot.slane %v5991, %v7099
        %v7101 = vlaneseq
        %v7102 = vshrl.u32 %v7101, 7
        %v7103 = vsub.s32 %v6768, %v7102
        %v7104 = vrot.slane %v5994, %v7103
        %v7105 = vlaneseq
        %v7106 = vshrl.u32 %v7105, 7
        %v7107 = vsub.s32 %v6768, %v7106
        %v7108 = vrot.slane %v5997, %v7107
        %v7109 = vlaneseq
        %v7110 = vshrl.u32 %v7109, 7
        %v7111 = vsub.s32 %v6768, %v7110
        %v7112 = vrot.slane %v6000, %v7111
        %v7113 = vlaneseq
        %v7114 = vshrl.u32 %v7113, 7
        %v7115 = vsub.s32 %v6768, %v7114
        %v7116 = vrot.slane %v6003, %v7115
        %v7117 = vlaneseq
        %v7118 = vshrl.u32 %v7117, 7
        %v7119 = vsub.s32 %v6768, %v7118
        %v7120 = vrot.slane %v6006, %v7119
        %v7121 = vlaneseq
        %v7122 = vshrl.u32 %v7121, 7
        %v7123 = vsub.s32 %v6768, %v7122
        %v7124 = vrot.slane %v6009, %v7123
        %v7125 = vlaneseq
        %v7126 = vshrl.u32 %v7125, 7
        %v7127 = vsub.s32 %v6768, %v7126
        %v7128 = vrot.slane %v6012, %v7127
        %v7129 = vlaneseq
        %v7130 = vshrl.u32 %v7129, 7
        %v7131 = vsub.s32 %v6768, %v7130
        %v7132 = vrot.slane %v6015, %v7131
        %v7133 = vlaneseq
        %v7134 = vshrl.u32 %v7133, 7
        %v7135 = vsub.s32 %v6768, %v7134
        %v7136 = vrot.slane %v6018, %v7135
        %v7137 = vlaneseq
        %v7138 = vshrl.u32 %v7137, 7
        %v7139 = vsub.s32 %v6768, %v7138
        %v7140 = vrot.slane %v6021, %v7139
        %v7141 = vlaneseq
        %v7142 = vshrl.u32 %v7141, 7
        %v7143 = vsub.s32 %v6768, %v7142
        %v7144 = vrot.slane %v6024, %v7143
        %v7145 = vlaneseq
        %v7146 = vshrl.u32 %v7145, 7
        %v7147 = vsub.s32 %v6768, %v7146
        %v7148 = vrot.slane %v6027, %v7147
        %v7149 = vlaneseq
        %v7150 = vshrl.u32 %v7149, 7
        %v7151 = vsub.s32 %v6768, %v7150
        %v7152 = vrot.slane %v6030, %v7151
        %v7153 = vlaneseq
        %v7154 = vshrl.u32 %v7153, 7
        %v7155 = vsub.s32 %v6768, %v7154
        %v7156 = vrot.slane %v6033, %v7155
        %v7157 = vlaneseq
        %v7158 = vshrl.u32 %v7157, 7
        %v7159 = vsub.s32 %v6768, %v7158
        %v7160 = vrot.slane %v6036, %v7159
        %v7161 = vlaneseq
        %v7162 = vshrl.u32 %v7161, 7
        %v7163 = vsub.s32 %v6768, %v7162
        %v7164 = vrot.slane %v6039, %v7163
        %v7165 = vlaneseq
        %v7166 = vshrl.u32 %v7165, 7
        %v7167 = vsub.s32 %v6768, %v7166
        %v7168 = vrot.slane %v6042, %v7167
        %v7169 = vlaneseq
        %v7170 = vshrl.u32 %v7169, 7
        %v7171 = vsub.s32 %v6768, %v7170
        %v7172 = vrot.slane %v6045, %v7171
        %v7173 = vlaneseq
        %v7174 = vshrl.u32 %v7173, 7
        %v7175 = vsub.s32 %v6768, %v7174
        %v7176 = vrot.slane %v6048, %v7175
        %v7177 = vlaneseq
        %v7178 = vshrl.u32 %v7177, 7
        %v7179 = vsub.s32 %v6768, %v7178
        %v7180 = vrot.slane %v6051, %v7179
        %v7181 = vlaneseq
        %v7182 = vshrl.u32 %v7181, 7
        %v7183 = vsub.s32 %v6768, %v7182
        %v7184 = vrot.slane %v6054, %v7183
        %v7185 = vlaneseq
        %v7186 = vshrl.u32 %v7185, 7
        %v7187 = vsub.s32 %v6768, %v7186
        %v7188 = vrot.slane %v6057, %v7187
        %v7189 = vlaneseq
        %v7190 = vshrl.u32 %v7189, 7
        %v7191 = vsub.s32 %v6768, %v7190
        %v7192 = vrot.slane %v6060, %v7191
        %v7193 = vlaneseq
        %v7194 = vshrl.u32 %v7193, 7
        %v7195 = vsub.s32 %v6768, %v7194
        %v7196 = vrot.slane %v6063, %v7195
        %v7197 = vlaneseq
        %v7198 = vshrl.u32 %v7197, 7
        %v7199 = vsub.s32 %v6768, %v7198
        %v7200 = vrot.slane %v6066, %v7199
        %v7201 = vlaneseq
        %v7202 = vshrl.u32 %v7201, 7
        %v7203 = vsub.s32 %v6768, %v7202
        %v7204 = vrot.slane %v6069, %v7203
        %v7205 = vlaneseq
        %v7206 = vshrl.u32 %v7205, 7
        %v7207 = vsub.s32 %v6768, %v7206
        %v7208 = vrot.slane %v6072, %v7207
        %v7209 = vlaneseq
        %v7210 = vshrl.u32 %v7209, 7
        %v7211 = vsub.s32 %v6768, %v7210
        %v7212 = vrot.slane %v6075, %v7211
        %v7213 = vlaneseq
        %v7214 = vshrl.u32 %v7213, 7
        %v7215 = vsub.s32 %v6768, %v7214
        %v7216 = vrot.slane %v6078, %v7215
        %v7217 = vlaneseq
        %v7218 = vshrl.u32 %v7217, 7
        %v7219 = vsub.s32 %v6768, %v7218
        %v7220 = vrot.slane %v6081, %v7219
        %v7221 = vlaneseq
        %v7222 = vshrl.u32 %v7221, 7
        %v7223 = vsub.s32 %v6768, %v7222
        %v7224 = vrot.slane %v6084, %v7223
        %v7225 = vlaneseq
        %v7226 = vshrl.u32 %v7225, 7
        %v7227 = vsub.s32 %v6768, %v7226
        %v7228 = vrot.slane %v6087, %v7227
        %v7229 = vlaneseq
        %v7230 = vshrl.u32 %v7229, 7
        %v7231 = vsub.s32 %v6768, %v7230
        %v7232 = vrot.slane %v6090, %v7231
        %v7233 = vlaneseq
        %v7234 = vshrl.u32 %v7233, 7
        %v7235 = vsub.s32 %v6768, %v7234
        %v7236 = vrot.slane %v6093, %v7235
        %v7237 = vlaneseq
        %v7238 = vshrl.u32 %v7237, 7
        %v7239 = vsub.s32 %v6768, %v7238
        %v7240 = vrot.slane %v6096, %v7239
        %v7241 = vlaneseq
        %v7242 = vshrl.u32 %v7241, 7
        %v7243 = vsub.s32 %v6768, %v7242
        %v7244 = vrot.slane %v6099, %v7243
        %v7245 = vlaneseq
        %v7246 = vshrl.u32 %v7245, 7
        %v7247 = vsub.s32 %v6768, %v7246
        %v7248 = vrot.slane %v6102, %v7247
        %v7249 = vlaneseq
        %v7250 = vshrl.u32 %v7249, 7
        %v7251 = vsub.s32 %v6768, %v7250
        %v7252 = vrot.slane %v6105, %v7251
        %v7253 = vlaneseq
        %v7254 = vshrl.u32 %v7253, 7
        %v7255 = vsub.s32 %v6768, %v7254
        %v7256 = vrot.slane %v6108, %v7255
        %v7257 = vlaneseq
        %v7258 = vshrl.u32 %v7257, 7
        %v7259 = vsub.s32 %v6768, %v7258
        %v7260 = vrot.slane %v6111, %v7259
        %v7261 = vlaneseq
        %v7262 = vshrl.u32 %v7261, 7
        %v7263 = vsub.s32 %v6768, %v7262
        %v7264 = vrot.slane %v6114, %v7263
        %v7265 = vlaneseq
        %v7266 = vshrl.u32 %v7265, 7
        %v7267 = vsub.s32 %v6768, %v7266
        %v7268 = vrot.slane %v6117, %v7267
        %v7269 = vlaneseq
        %v7270 = vshrl.u32 %v7269, 7
        %v7271 = vsub.s32 %v6768, %v7270
        %v7272 = vrot.slane %v6120, %v7271
        %v7273 = vlaneseq
        %v7274 = vshrl.u32 %v7273, 7
        %v7275 = vsub.s32 %v6768, %v7274
        %v7276 = vrot.slane %v6123, %v7275
        %v7277 = vlaneseq
        %v7278 = vshrl.u32 %v7277, 7
        %v7279 = vsub.s32 %v6768, %v7278
        %v7280 = vrot.slane %v6126, %v7279
        %v7281 = vlaneseq
        %v7282 = vshrl.u32 %v7281, 7
        %v7283 = vsub.s32 %v6768, %v7282
        %v7284 = vrot.slane %v6129, %v7283
        %v7285 = vlaneseq
        %v7286 = vshrl.u32 %v7285, 7
        %v7287 = vsub.s32 %v6768, %v7286
        %v7288 = vrot.slane %v6132, %v7287
        %v7289 = vlaneseq
        %v7290 = vshrl.u32 %v7289, 7
        %v7291 = vsub.s32 %v6768, %v7290
        %v7292 = vrot.slane %v6135, %v7291
        %v7293 = vlaneseq
        %v7294 = vshrl.u32 %v7293, 7
        %v7295 = vsub.s32 %v6768, %v7294
        %v7296 = vrot.slane %v6138, %v7295
        %v7297 = vlaneseq
        %v7298 = vshrl.u32 %v7297, 7
        %v7299 = vsub.s32 %v6768, %v7298
        %v7300 = vrot.slane %v6141, %v7299
        %v7301 = vlaneseq
        %v7302 = vshrl.u32 %v7301, 7
        %v7303 = vsub.s32 %v6768, %v7302
        %v7304 = vrot.slane %v6144, %v7303
        %v7305 = vlaneseq
        %v7306 = vshrl.u32 %v7305, 7
        %v7307 = vsub.s32 %v6768, %v7306
        %v7308 = vrot.slane %v6147, %v7307
        %v7309 = vlaneseq
        %v7310 = vshrl.u32 %v7309, 7
        %v7311 = vsub.s32 %v6768, %v7310
        %v7312 = vrot.slane %v6150, %v7311
        %v7313 = vlaneseq
        %v7314 = vshrl.u32 %v7313, 7
        %v7315 = vsub.s32 %v6768, %v7314
        %v7316 = vrot.slane %v6153, %v7315
        %v7317 = vlaneseq
        %v7318 = vshrl.u32 %v7317, 7
        %v7319 = vsub.s32 %v6768, %v7318
        %v7320 = vrot.slane %v6156, %v7319
        %v7321 = vlaneseq
        %v7322 = vshrl.u32 %v7321, 7
        %v7323 = vsub.s32 %v6768, %v7322
        %v7324 = vrot.slane %v6159, %v7323
        %v7325 = vlaneseq
        %v7326 = vshrl.u32 %v7325, 7
        %v7327 = vsub.s32 %v6768, %v7326
        %v7328 = vrot.slane %v6162, %v7327
        %v7329 = vlaneseq
        %v7330 = vshrl.u32 %v7329, 7
        %v7331 = vsub.s32 %v6768, %v7330
        %v7332 = vrot.slane %v6165, %v7331
        %v7333 = vlaneseq
        %v7334 = vshrl.u32 %v7333, 7
        %v7335 = vsub.s32 %v6768, %v7334
        %v7336 = vrot.slane %v6168, %v7335
        %v7337 = vlaneseq
        %v7338 = vshrl.u32 %v7337, 7
        %v7339 = vsub.s32 %v6768, %v7338
        %v7340 = vrot.slane %v6171, %v7339
        %v7341 = vlaneseq
        %v7342 = vshrl.u32 %v7341, 7
        %v7343 = vsub.s32 %v6768, %v7342
        %v7344 = vrot.slane %v6174, %v7343
        %v7345 = vlaneseq
        %v7346 = vshrl.u32 %v7345, 7
        %v7347 = vsub.s32 %v6768, %v7346
        %v7348 = vrot.slane %v6177, %v7347
        %v7349 = vlaneseq
        %v7350 = vshrl.u32 %v7349, 7
        %v7351 = vsub.s32 %v6768, %v7350
        %v7352 = vrot.slane %v6180, %v7351
        %v7353 = vlaneseq
        %v7354 = vshrl.u32 %v7353, 7
        %v7355 = vsub.s32 %v6768, %v7354
        %v7356 = vrot.slane %v6183, %v7355
        %v7357 = vlaneseq
        %v7358 = vshrl.u32 %v7357, 7
        %v7359 = vsub.s32 %v6768, %v7358
        %v7360 = vrot.slane %v6186, %v7359
        %v7361 = vlaneseq
        %v7362 = vshrl.u32 %v7361, 7
        %v7363 = vsub.s32 %v6768, %v7362
        %v7364 = vrot.slane %v6189, %v7363
        %v7365 = vlaneseq
        %v7366 = vshrl.u32 %v7365, 7
        %v7367 = vsub.s32 %v6768, %v7366
        %v7368 = vrot.slane %v6192, %v7367
        %v7369 = vlaneseq
        %v7370 = vshrl.u32 %v7369, 7
        %v7371 = vsub.s32 %v6768, %v7370
        %v7372 = vrot.slane %v6195, %v7371
        %v7373 = vlaneseq
        %v7374 = vshrl.u32 %v7373, 7
        %v7375 = vsub.s32 %v6768, %v7374
        %v7376 = vrot.slane %v6198, %v7375
        %v7377 = vlaneseq
        %v7378 = vshrl.u32 %v7377, 7
        %v7379 = vsub.s32 %v6768, %v7378
        %v7380 = vrot.slane %v6201, %v7379
        %v7381 = vlaneseq
        %v7382 = vshrl.u32 %v7381, 7
        %v7383 = vsub.s32 %v6768, %v7382
        %v7384 = vrot.slane %v6204, %v7383
        %v7385 = vlaneseq
        %v7386 = vshrl.u32 %v7385, 7
        %v7387 = vsub.s32 %v6768, %v7386
        %v7388 = vrot.slane %v6207, %v7387
        %v7389 = vlaneseq
        %v7390 = vshrl.u32 %v7389, 7
        %v7391 = vsub.s32 %v6768, %v7390
        %v7392 = vrot.slane %v6210, %v7391
        %v7393 = vlaneseq
        %v7394 = vshrl.u32 %v7393, 7
        %v7395 = vsub.s32 %v6768, %v7394
        %v7396 = vrot.slane %v6213, %v7395
        %v7397 = vlaneseq
        %v7398 = vshrl.u32 %v7397, 7
        %v7399 = vsub.s32 %v6768, %v7398
        %v7400 = vrot.slane %v6216, %v7399
        %v7401 = vlaneseq
        %v7402 = vshrl.u32 %v7401, 7
        %v7403 = vsub.s32 %v6768, %v7402
        %v7404 = vrot.slane %v6219, %v7403
        %v7405 = vlaneseq
        %v7406 = vshrl.u32 %v7405, 7
        %v7407 = vsub.s32 %v6768, %v7406
        %v7408 = vrot.slane %v6222, %v7407
        %v7409 = vlaneseq
        %v7410 = vshrl.u32 %v7409, 7
        %v7411 = vsub.s32 %v6768, %v7410
        %v7412 = vrot.slane %v6225, %v7411
        %v7413 = vlaneseq
        %v7414 = vshrl.u32 %v7413, 7
        %v7415 = vsub.s32 %v6768, %v7414
        %v7416 = vrot.slane %v6228, %v7415
        %v7417 = vlaneseq
        %v7418 = vshrl.u32 %v7417, 7
        %v7419 = vsub.s32 %v6768, %v7418
        %v7420 = vrot.slane %v6231, %v7419
        %v7421 = vlaneseq
        %v7422 = vshrl.u32 %v7421, 7
        %v7423 = vsub.s32 %v6768, %v7422
        %v7424 = vrot.slane %v6234, %v7423
        %v7425 = vlaneseq
        %v7426 = vshrl.u32 %v7425, 7
        %v7427 = vsub.s32 %v6768, %v7426
        %v7428 = vrot.slane %v6237, %v7427
        %v7429 = vlaneseq
        %v7430 = vshrl.u32 %v7429, 7
        %v7431 = vsub.s32 %v6768, %v7430
        %v7432 = vrot.slane %v6240, %v7431
        %v7433 = vlaneseq
        %v7434 = vshrl.u32 %v7433, 7
        %v7435 = vsub.s32 %v6768, %v7434
        %v7436 = vrot.slane %v6243, %v7435
        %v7437 = vlaneseq
        %v7438 = vshrl.u32 %v7437, 7
        %v7439 = vsub.s32 %v6768, %v7438
        %v7440 = vrot.slane %v6246, %v7439
        %v7441 = vlaneseq
        %v7442 = vshrl.u32 %v7441, 7
        %v7443 = vsub.s32 %v6768, %v7442
        %v7444 = vrot.slane %v6249, %v7443
        %v7445 = vlaneseq
        %v7446 = vshrl.u32 %v7445, 7
        %v7447 = vsub.s32 %v6768, %v7446
        %v7448 = vrot.slane %v6252, %v7447
        %v7449 = vlaneseq
        %v7450 = vshrl.u32 %v7449, 7
        %v7451 = vsub.s32 %v6768, %v7450
        %v7452 = vrot.slane %v6255, %v7451
        %v7453 = vlaneseq
        %v7454 = vshrl.u32 %v7453, 7
        %v7455 = vsub.s32 %v6768, %v7454
        %v7456 = vrot.slane %v6258, %v7455
        %v7457 = vlaneseq
        %v7458 = vshrl.u32 %v7457, 7
        %v7459 = vsub.s32 %v6768, %v7458
        %v7460 = vrot.slane %v6261, %v7459
        %v7461 = vlaneseq
        %v7462 = vshrl.u32 %v7461, 7
        %v7463 = vsub.s32 %v6768, %v7462
        %v7464 = vrot.slane %v6264, %v7463
        %v7465 = vlaneseq
        %v7466 = vshrl.u32 %v7465, 7
        %v7467 = vsub.s32 %v6768, %v7466
        %v7468 = vrot.slane %v6267, %v7467
        %v7469 = vlaneseq
        %v7470 = vshrl.u32 %v7469, 7
        %v7471 = vsub.s32 %v6768, %v7470
        %v7472 = vrot.slane %v6270, %v7471
        %v7473 = vlaneseq
        %v7474 = vshrl.u32 %v7473, 7
        %v7475 = vsub.s32 %v6768, %v7474
        %v7476 = vrot.slane %v6273, %v7475
        %v7477 = vlaneseq
        %v7478 = vshrl.u32 %v7477, 7
        %v7479 = vsub.s32 %v6768, %v7478
        %v7480 = vrot.slane %v6276, %v7479
        %v7481 = vlaneseq
        %v7482 = vshrl.u32 %v7481, 7
        %v7483 = vsub.s32 %v6768, %v7482
        %v7484 = vrot.slane %v6279, %v7483
        %v7485 = vlaneseq
        %v7486 = vshrl.u32 %v7485, 7
        %v7487 = vsub.s32 %v6768, %v7486
        %v7488 = vrot.slane %v6282, %v7487
        %v7489 = vlaneseq
        %v7490 = vshrl.u32 %v7489, 7
        %v7491 = vsub.s32 %v6768, %v7490
        %v7492 = vrot.slane %v6285, %v7491
        %v7493 = vlaneseq
        %v7494 = vshrl.u32 %v7493, 7
        %v7495 = vsub.s32 %v6768, %v7494
        %v7496 = vrot.slane %v6288, %v7495
        %v7497 = vlaneseq
        %v7498 = vshrl.u32 %v7497, 7
        %v7499 = vsub.s32 %v6768, %v7498
        %v7500 = vrot.slane %v6291, %v7499
        %v7501 = vlaneseq
        %v7502 = vshrl.u32 %v7501, 7
        %v7503 = vsub.s32 %v6768, %v7502
        %v7504 = vrot.slane %v6294, %v7503
        %v7505 = vlaneseq
        %v7506 = vshrl.u32 %v7505, 7
        %v7507 = vsub.s32 %v6768, %v7506
        %v7508 = vrot.slane %v6297, %v7507
        %v7509 = vlaneseq
        %v7510 = vshrl.u32 %v7509, 7
        %v7511 = vsub.s32 %v6768, %v7510
        %v7512 = vrot.slane %v6300, %v7511
        %v7513 = vlaneseq
        %v7514 = vshrl.u32 %v7513, 7
        %v7515 = vsub.s32 %v6768, %v7514
        %v7516 = vrot.slane %v6303, %v7515
        %v7517 = vlaneseq
        %v7518 = vshrl.u32 %v7517, 7
        %v7519 = vsub.s32 %v6768, %v7518
        %v7520 = vrot.slane %v6306, %v7519
        %v7521 = vlaneseq
        %v7522 = vshrl.u32 %v7521, 7
        %v7523 = vsub.s32 %v6768, %v7522
        %v7524 = vrot.slane %v6309, %v7523
        %v7525 = vlaneseq
        %v7526 = vshrl.u32 %v7525, 7
        %v7527 = vsub.s32 %v6768, %v7526
        %v7528 = vrot.slane %v6312, %v7527
        %v7529 = vlaneseq
        %v7530 = vshrl.u32 %v7529, 7
        %v7531 = vsub.s32 %v6768, %v7530
        %v7532 = vrot.slane %v6315, %v7531
        %v7533 = vlaneseq
        %v7534 = vshrl.u32 %v7533, 7
        %v7535 = vsub.s32 %v6768, %v7534
        %v7536 = vrot.slane %v6318, %v7535
        %v7537 = vlaneseq
        %v7538 = vshrl.u32 %v7537, 7
        %v7539 = vsub.s32 %v6768, %v7538
        %v7540 = vrot.slane %v6321, %v7539
        %v7541 = vlaneseq
        %v7542 = vshrl.u32 %v7541, 7
        %v7543 = vsub.s32 %v6768, %v7542
        %v7544 = vrot.slane %v6324, %v7543
        %v7545 = vlaneseq
        %v7546 = vshrl.u32 %v7545, 7
        %v7547 = vsub.s32 %v6768, %v7546
        %v7548 = vrot.slane %v6327, %v7547
        %v7549 = vlaneseq
        %v7550 = vshrl.u32 %v7549, 7
        %v7551 = vsub.s32 %v6768, %v7550
        %v7552 = vrot.slane %v6330, %v7551
        %v7553 = vlaneseq
        %v7554 = vshrl.u32 %v7553, 7
        %v7555 = vsub.s32 %v6768, %v7554
        %v7556 = vrot.slane %v6333, %v7555
        %v7557 = vlaneseq
        %v7558 = vshrl.u32 %v7557, 7
        %v7559 = vsub.s32 %v6768, %v7558
        %v7560 = vrot.slane %v6336, %v7559
        %v7561 = vlaneseq
        %v7562 = vshrl.u32 %v7561, 7
        %v7563 = vsub.s32 %v6768, %v7562
        %v7564 = vrot.slane %v6339, %v7563
        %v7565 = vlaneseq
        %v7566 = vshrl.u32 %v7565, 7
        %v7567 = vsub.s32 %v6768, %v7566
        %v7568 = vrot.slane %v6342, %v7567
        %v7569 = vlaneseq
        %v7570 = vshrl.u32 %v7569, 7
        %v7571 = vsub.s32 %v6768, %v7570
        %v7572 = vrot.slane %v6345, %v7571
        %v7573 = vlaneseq
        %v7574 = vshrl.u32 %v7573, 7
        %v7575 = vsub.s32 %v6768, %v7574
        %v7576 = vrot.slane %v6348, %v7575
        %v7577 = vlaneseq
        %v7578 = vshrl.u32 %v7577, 7
        %v7579 = vsub.s32 %v6768, %v7578
        %v7580 = vrot.slane %v6351, %v7579
        %v7581 = vlaneseq
        %v7582 = vshrl.u32 %v7581, 7
        %v7583 = vsub.s32 %v6768, %v7582
        %v7584 = vrot.slane %v6354, %v7583
        %v7585 = vlaneseq
        %v7586 = vshrl.u32 %v7585, 7
        %v7587 = vsub.s32 %v6768, %v7586
        %v7588 = vrot.slane %v6357, %v7587
        %v7589 = vlaneseq
        %v7590 = vshrl.u32 %v7589, 7
        %v7591 = vsub.s32 %v6768, %v7590
        %v7592 = vrot.slane %v6360, %v7591
        %v7593 = vlaneseq
        %v7594 = vshrl.u32 %v7593, 7
        %v7595 = vsub.s32 %v6768, %v7594
        %v7596 = vrot.slane %v6363, %v7595
        %v7597 = vlaneseq
        %v7598 = vshrl.u32 %v7597, 7
        %v7599 = vsub.s32 %v6768, %v7598
        %v7600 = vrot.slane %v6366, %v7599
        %v7601 = vlaneseq
        %v7602 = vshrl.u32 %v7601, 7
        %v7603 = vsub.s32 %v6768, %v7602
        %v7604 = vrot.slane %v6369, %v7603
        %v7605 = vlaneseq
        %v7606 = vshrl.u32 %v7605, 7
        %v7607 = vsub.s32 %v6768, %v7606
        %v7608 = vrot.slane %v6372, %v7607
        %v7609 = vlaneseq
        %v7610 = vshrl.u32 %v7609, 7
        %v7611 = vsub.s32 %v6768, %v7610
        %v7612 = vrot.slane %v6375, %v7611
        %v7613 = vlaneseq
        %v7614 = vshrl.u32 %v7613, 7
        %v7615 = vsub.s32 %v6768, %v7614
        %v7616 = vrot.slane %v6378, %v7615
        %v7617 = vlaneseq
        %v7618 = vshrl.u32 %v7617, 7
        %v7619 = vsub.s32 %v6768, %v7618
        %v7620 = vrot.slane %v6381, %v7619
        %v7621 = vlaneseq
        %v7622 = vshrl.u32 %v7621, 7
        %v7623 = vsub.s32 %v6768, %v7622
        %v7624 = vrot.slane %v6384, %v7623
        %v7625 = vlaneseq
        %v7626 = vshrl.u32 %v7625, 7
        %v7627 = vsub.s32 %v6768, %v7626
        %v7628 = vrot.slane %v6387, %v7627
        %v7629 = vlaneseq
        %v7630 = vshrl.u32 %v7629, 7
        %v7631 = vsub.s32 %v6768, %v7630
        %v7632 = vrot.slane %v6390, %v7631
        %v7633 = vlaneseq
        %v7634 = vshrl.u32 %v7633, 7
        %v7635 = vsub.s32 %v6768, %v7634
        %v7636 = vrot.slane %v6393, %v7635
        %v7637 = vlaneseq
        %v7638 = vshrl.u32 %v7637, 7
        %v7639 = vsub.s32 %v6768, %v7638
        %v7640 = vrot.slane %v6396, %v7639
        %v7641 = vlaneseq
        %v7642 = vshrl.u32 %v7641, 7
        %v7643 = vsub.s32 %v6768, %v7642
        %v7644 = vrot.slane %v6399, %v7643
        %v7645 = vlaneseq
        %v7646 = vshrl.u32 %v7645, 7
        %v7647 = vsub.s32 %v6768, %v7646
        %v7648 = vrot.slane %v6402, %v7647
        %v7649 = vlaneseq
        %v7650 = vshrl.u32 %v7649, 7
        %v7651 = vsub.s32 %v6768, %v7650
        %v7652 = vrot.slane %v6405, %v7651
        %v7653 = vlaneseq
        %v7654 = vshrl.u32 %v7653, 7
        %v7655 = vsub.s32 %v6768, %v7654
        %v7656 = vrot.slane %v6408, %v7655
        %v7657 = vlaneseq
        %v7658 = vshrl.u32 %v7657, 7
        %v7659 = vsub.s32 %v6768, %v7658
        %v7660 = vrot.slane %v6411, %v7659
        %v7661 = vlaneseq
        %v7662 = vshrl.u32 %v7661, 7
        %v7663 = vsub.s32 %v6768, %v7662
        %v7664 = vrot.slane %v6414, %v7663
        %v7665 = vlaneseq
        %v7666 = vshrl.u32 %v7665, 7
        %v7667 = vsub.s32 %v6768, %v7666
        %v7668 = vrot.slane %v6417, %v7667
        %v7669 = vlaneseq
        %v7670 = vshrl.u32 %v7669, 7
        %v7671 = vsub.s32 %v6768, %v7670
        %v7672 = vrot.slane %v6420, %v7671
        %v7673 = vlaneseq
        %v7674 = vshrl.u32 %v7673, 7
        %v7675 = vsub.s32 %v6768, %v7674
        %v7676 = vrot.slane %v6423, %v7675
        %v7677 = vlaneseq
        %v7678 = vshrl.u32 %v7677, 7
        %v7679 = vsub.s32 %v6768, %v7678
        %v7680 = vrot.slane %v6426, %v7679
        %v7681 = vlaneseq
        %v7682 = vshrl.u32 %v7681, 7
        %v7683 = vsub.s32 %v6768, %v7682
        %v7684 = vrot.slane %v6429, %v7683
        %v7685 = vlaneseq
        %v7686 = vshrl.u32 %v7685, 7
        %v7687 = vsub.s32 %v6768, %v7686
        %v7688 = vrot.slane %v6432, %v7687
        %v7689 = vlaneseq
        %v7690 = vshrl.u32 %v7689, 7
        %v7691 = vsub.s32 %v6768, %v7690
        %v7692 = vrot.slane %v6435, %v7691
        %v7693 = vlaneseq
        %v7694 = vshrl.u32 %v7693, 7
        %v7695 = vsub.s32 %v6768, %v7694
        %v7696 = vrot.slane %v6438, %v7695
        %v7697 = vlaneseq
        %v7698 = vshrl.u32 %v7697, 7
        %v7699 = vsub.s32 %v6768, %v7698
        %v7700 = vrot.slane %v6441, %v7699
        %v7701 = vlaneseq
        %v7702 = vshrl.u32 %v7701, 7
        %v7703 = vsub.s32 %v6768, %v7702
        %v7704 = vrot.slane %v6444, %v7703
        %v7705 = vlaneseq
        %v7706 = vshrl.u32 %v7705, 7
        %v7707 = vsub.s32 %v6768, %v7706
        %v7708 = vrot.slane %v6447, %v7707
        %v7709 = vlaneseq
        %v7710 = vshrl.u32 %v7709, 7
        %v7711 = vsub.s32 %v6768, %v7710
        %v7712 = vrot.slane %v6450, %v7711
        %v7713 = vlaneseq
        %v7714 = vshrl.u32 %v7713, 7
        %v7715 = vsub.s32 %v6768, %v7714
        %v7716 = vrot.slane %v6453, %v7715
        %v7717 = vlaneseq
        %v7718 = vshrl.u32 %v7717, 7
        %v7719 = vsub.s32 %v6768, %v7718
        %v7720 = vrot.slane %v6456, %v7719
        %v7721 = vlaneseq
        %v7722 = vshrl.u32 %v7721, 7
        %v7723 = vsub.s32 %v6768, %v7722
        %v7724 = vrot.slane %v6459, %v7723
        %v7725 = vlaneseq
        %v7726 = vshrl.u32 %v7725, 7
        %v7727 = vsub.s32 %v6768, %v7726
        %v7728 = vrot.slane %v6462, %v7727
        %v7729 = vlaneseq
        %v7730 = vshrl.u32 %v7729, 7
        %v7731 = vsub.s32 %v6768, %v7730
        %v7732 = vrot.slane %v6465, %v7731
        %v7733 = vlaneseq
        %v7734 = vshrl.u32 %v7733, 7
        %v7735 = vsub.s32 %v6768, %v7734
        %v7736 = vrot.slane %v6468, %v7735
        %v7737 = vlaneseq
        %v7738 = vshrl.u32 %v7737, 7
        %v7739 = vsub.s32 %v6768, %v7738
        %v7740 = vrot.slane %v6471, %v7739
        %v7741 = vlaneseq
        %v7742 = vshrl.u32 %v7741, 7
        %v7743 = vsub.s32 %v6768, %v7742
        %v7744 = vrot.slane %v6474, %v7743
        %v7745 = vlaneseq
        %v7746 = vshrl.u32 %v7745, 7
        %v7747 = vsub.s32 %v6768, %v7746
        %v7748 = vrot.slane %v6477, %v7747
        %v7749 = vlaneseq
        %v7750 = vshrl.u32 %v7749, 7
        %v7751 = vsub.s32 %v6768, %v7750
        %v7752 = vrot.slane %v6480, %v7751
        %v7753 = vlaneseq
        %v7754 = vshrl.u32 %v7753, 7
        %v7755 = vsub.s32 %v6768, %v7754
        %v7756 = vrot.slane %v6483, %v7755
        %v7757 = vlaneseq
        %v7758 = vshrl.u32 %v7757, 7
        %v7759 = vsub.s32 %v6768, %v7758
        %v7760 = vrot.slane %v6486, %v7759
        %v7761 = vlaneseq
        %v7762 = vshrl.u32 %v7761, 7
        %v7763 = vsub.s32 %v6768, %v7762
        %v7764 = vrot.slane %v6489, %v7763
        %v7765 = vlaneseq
        %v7766 = vshrl.u32 %v7765, 7
        %v7767 = vsub.s32 %v6768, %v7766
        %v7768 = vrot.slane %v6492, %v7767
        %v7769 = vlaneseq
        %v7770 = vshrl.u32 %v7769, 7
        %v7771 = vsub.s32 %v6768, %v7770
        %v7772 = vrot.slane %v6495, %v7771
        %v7773 = vlaneseq
        %v7774 = vshrl.u32 %v7773, 7
        %v7775 = vsub.s32 %v6768, %v7774
        %v7776 = vrot.slane %v6498, %v7775
        %v7777 = vlaneseq
        %v7778 = vshrl.u32 %v7777, 7
        %v7779 = vsub.s32 %v6768, %v7778
        %v7780 = vrot.slane %v6501, %v7779
        %v7781 = vlaneseq
        %v7782 = vshrl.u32 %v7781, 7
        %v7783 = vsub.s32 %v6768, %v7782
        %v7784 = vrot.slane %v6504, %v7783
        %v7785 = vlaneseq
        %v7786 = vshrl.u32 %v7785, 7
        %v7787 = vsub.s32 %v6768, %v7786
        %v7788 = vrot.slane %v6507, %v7787
        %v7789 = vlaneseq
        %v7790 = vshrl.u32 %v7789, 7
        %v7791 = vsub.s32 %v6768, %v7790
        %v7792 = vrot.slane %v6510, %v7791
        %vm7793 = vcmask 1041409
        %v7794 = vsel %vm7793, %v6776, %v6772
        %vm7795 = vcmask 1042434
        %v7796 = vsel %vm7795, %v6780, %v7794
        %vm7797 = vcmask 1043459
        %v7798 = vsel %vm7797, %v6784, %v7796
        %vm7799 = vcmask 1044484
        %v7800 = vsel %vm7799, %v6788, %v7798
        %vm7801 = vcmask 1045509
        %v7802 = vsel %vm7801, %v6792, %v7800
        %vm7803 = vcmask 1046534
        %v7804 = vsel %vm7803, %v6796, %v7802
        %vm7805 = vcmask 1047559
        %v7806 = vsel %vm7805, %v6800, %v7804
        %v7807 = vsel %vm7793, %v6808, %v6804
        %v7808 = vsel %vm7795, %v6812, %v7807
        %v7809 = vsel %vm7797, %v6816, %v7808
        %v7810 = vsel %vm7799, %v6820, %v7809
        %v7811 = vsel %vm7801, %v6824, %v7810
        %v7812 = vsel %vm7803, %v6828, %v7811
        %v7813 = vsel %vm7805, %v6832, %v7812
        %v7814 = vsel %vm7793, %v6840, %v6836
        %v7815 = vsel %vm7795, %v6844, %v7814
        %v7816 = vsel %vm7797, %v6848, %v7815
        %v7817 = vsel %vm7799, %v6852, %v7816
        %v7818 = vsel %vm7801, %v6856, %v7817
        %v7819 = vsel %vm7803, %v6860, %v7818
        %v7820 = vsel %vm7805, %v6864, %v7819
        %v7821 = vsel %vm7793, %v6872, %v6868
        %v7822 = vsel %vm7795, %v6876, %v7821
        %v7823 = vsel %vm7797, %v6880, %v7822
        %v7824 = vsel %vm7799, %v6884, %v7823
        %v7825 = vsel %vm7801, %v6888, %v7824
        %v7826 = vsel %vm7803, %v6892, %v7825
        %v7827 = vsel %vm7805, %v6896, %v7826
        %v7828 = vsel %vm7793, %v6904, %v6900
        %v7829 = vsel %vm7795, %v6908, %v7828
        %v7830 = vsel %vm7797, %v6912, %v7829
        %v7831 = vsel %vm7799, %v6916, %v7830
        %v7832 = vsel %vm7801, %v6920, %v7831
        %v7833 = vsel %vm7803, %v6924, %v7832
        %v7834 = vsel %vm7805, %v6928, %v7833
        %v7835 = vsel %vm7793, %v6936, %v6932
        %v7836 = vsel %vm7795, %v6940, %v7835
        %v7837 = vsel %vm7797, %v6944, %v7836
        %v7838 = vsel %vm7799, %v6948, %v7837
        %v7839 = vsel %vm7801, %v6952, %v7838
        %v7840 = vsel %vm7803, %v6956, %v7839
        %v7841 = vsel %vm7805, %v6960, %v7840
        %v7842 = vsel %vm7793, %v6968, %v6964
        %v7843 = vsel %vm7795, %v6972, %v7842
        %v7844 = vsel %vm7797, %v6976, %v7843
        %v7845 = vsel %vm7799, %v6980, %v7844
        %v7846 = vsel %vm7801, %v6984, %v7845
        %v7847 = vsel %vm7803, %v6988, %v7846
        %v7848 = vsel %vm7805, %v6992, %v7847
        %v7849 = vsel %vm7793, %v7000, %v6996
        %v7850 = vsel %vm7795, %v7004, %v7849
        %v7851 = vsel %vm7797, %v7008, %v7850
        %v7852 = vsel %vm7799, %v7012, %v7851
        %v7853 = vsel %vm7801, %v7016, %v7852
        %v7854 = vsel %vm7803, %v7020, %v7853
        %v7855 = vsel %vm7805, %v7024, %v7854
        %v7856 = vsel %vm7793, %v7032, %v7028
        %v7857 = vsel %vm7795, %v7036, %v7856
        %v7858 = vsel %vm7797, %v7040, %v7857
        %v7859 = vsel %vm7799, %v7044, %v7858
        %v7860 = vsel %vm7801, %v7048, %v7859
        %v7861 = vsel %vm7803, %v7052, %v7860
        %v7862 = vsel %vm7805, %v7056, %v7861
        %v7863 = vsel %vm7793, %v7064, %v7060
        %v7864 = vsel %vm7795, %v7068, %v7863
        %v7865 = vsel %vm7797, %v7072, %v7864
        %v7866 = vsel %vm7799, %v7076, %v7865
        %v7867 = vsel %vm7801, %v7080, %v7866
        %v7868 = vsel %vm7803, %v7084, %v7867
        %v7869 = vsel %vm7805, %v7088, %v7868
        %v7870 = vsel %vm7793, %v7096, %v7092
        %v7871 = vsel %vm7795, %v7100, %v7870
        %v7872 = vsel %vm7797, %v7104, %v7871
        %v7873 = vsel %vm7799, %v7108, %v7872
        %v7874 = vsel %vm7801, %v7112, %v7873
        %v7875 = vsel %vm7803, %v7116, %v7874
        %v7876 = vsel %vm7805, %v7120, %v7875
        %v7877 = vsel %vm7793, %v7128, %v7124
        %v7878 = vsel %vm7795, %v7132, %v7877
        %v7879 = vsel %vm7797, %v7136, %v7878
        %v7880 = vsel %vm7799, %v7140, %v7879
        %v7881 = vsel %vm7801, %v7144, %v7880
        %v7882 = vsel %vm7803, %v7148, %v7881
        %v7883 = vsel %vm7805, %v7152, %v7882
        %v7884 = vsel %vm7793, %v7160, %v7156
        %v7885 = vsel %vm7795, %v7164, %v7884
        %v7886 = vsel %vm7797, %v7168, %v7885
        %v7887 = vsel %vm7799, %v7172, %v7886
        %v7888 = vsel %vm7801, %v7176, %v7887
        %v7889 = vsel %vm7803, %v7180, %v7888
        %v7890 = vsel %vm7805, %v7184, %v7889
        %v7891 = vsel %vm7793, %v7192, %v7188
        %v7892 = vsel %vm7795, %v7196, %v7891
        %v7893 = vsel %vm7797, %v7200, %v7892
        %v7894 = vsel %vm7799, %v7204, %v7893
        %v7895 = vsel %vm7801, %v7208, %v7894
        %v7896 = vsel %vm7803, %v7212, %v7895
        %v7897 = vsel %vm7805, %v7216, %v7896
        %v7898 = vsel %vm7793, %v7224, %v7220
        %v7899 = vsel %vm7795, %v7228, %v7898
        %v7900 = vsel %vm7797, %v7232, %v7899
        %v7901 = vsel %vm7799, %v7236, %v7900
        %v7902 = vsel %vm7801, %v7240, %v7901
        %v7903 = vsel %vm7803, %v7244, %v7902
        %v7904 = vsel %vm7805, %v7248, %v7903
        %v7905 = vsel %vm7793, %v7256, %v7252
        %v7906 = vsel %vm7795, %v7260, %v7905
        %v7907 = vsel %vm7797, %v7264, %v7906
        %v7908 = vsel %vm7799, %v7268, %v7907
        %v7909 = vsel %vm7801, %v7272, %v7908
        %v7910 = vsel %vm7803, %v7276, %v7909
        %v7911 = vsel %vm7805, %v7280, %v7910
        %v7912 = vsel %vm7793, %v7288, %v7284
        %v7913 = vsel %vm7795, %v7292, %v7912
        %v7914 = vsel %vm7797, %v7296, %v7913
        %v7915 = vsel %vm7799, %v7300, %v7914
        %v7916 = vsel %vm7801, %v7304, %v7915
        %v7917 = vsel %vm7803, %v7308, %v7916
        %v7918 = vsel %vm7805, %v7312, %v7917
        %v7919 = vsel %vm7793, %v7320, %v7316
        %v7920 = vsel %vm7795, %v7324, %v7919
        %v7921 = vsel %vm7797, %v7328, %v7920
        %v7922 = vsel %vm7799, %v7332, %v7921
        %v7923 = vsel %vm7801, %v7336, %v7922
        %v7924 = vsel %vm7803, %v7340, %v7923
        %v7925 = vsel %vm7805, %v7344, %v7924
        %v7926 = vsel %vm7793, %v7352, %v7348
        %v7927 = vsel %vm7795, %v7356, %v7926
        %v7928 = vsel %vm7797, %v7360, %v7927
        %v7929 = vsel %vm7799, %v7364, %v7928
        %v7930 = vsel %vm7801, %v7368, %v7929
        %v7931 = vsel %vm7803, %v7372, %v7930
        %v7932 = vsel %vm7805, %v7376, %v7931
        %v7933 = vsel %vm7793, %v7384, %v7380
        %v7934 = vsel %vm7795, %v7388, %v7933
        %v7935 = vsel %vm7797, %v7392, %v7934
        %v7936 = vsel %vm7799, %v7396, %v7935
        %v7937 = vsel %vm7801, %v7400, %v7936
        %v7938 = vsel %vm7803, %v7404, %v7937
        %v7939 = vsel %vm7805, %v7408, %v7938
        %v7940 = vsel %vm7793, %v7416, %v7412
        %v7941 = vsel %vm7795, %v7420, %v7940
        %v7942 = vsel %vm7797, %v7424, %v7941
        %v7943 = vsel %vm7799, %v7428, %v7942
        %v7944 = vsel %vm7801, %v7432, %v7943
        %v7945 = vsel %vm7803, %v7436, %v7944
        %v7946 = vsel %vm7805, %v7440, %v7945
        %v7947 = vsel %vm7793, %v7448, %v7444
        %v7948 = vsel %vm7795, %v7452, %v7947
        %v7949 = vsel %vm7797, %v7456, %v7948
        %v7950 = vsel %vm7799, %v7460, %v7949
        %v7951 = vsel %vm7801, %v7464, %v7950
        %v7952 = vsel %vm7803, %v7468, %v7951
        %v7953 = vsel %vm7805, %v7472, %v7952
        %v7954 = vsel %vm7793, %v7480, %v7476
        %v7955 = vsel %vm7795, %v7484, %v7954
        %v7956 = vsel %vm7797, %v7488, %v7955
        %v7957 = vsel %vm7799, %v7492, %v7956
        %v7958 = vsel %vm7801, %v7496, %v7957
        %v7959 = vsel %vm7803, %v7500, %v7958
        %v7960 = vsel %vm7805, %v7504, %v7959
        %v7961 = vsel %vm7793, %v7512, %v7508
        %v7962 = vsel %vm7795, %v7516, %v7961
        %v7963 = vsel %vm7797, %v7520, %v7962
        %v7964 = vsel %vm7799, %v7524, %v7963
        %v7965 = vsel %vm7801, %v7528, %v7964
        %v7966 = vsel %vm7803, %v7532, %v7965
        %v7967 = vsel %vm7805, %v7536, %v7966
        %v7968 = vsel %vm7793, %v7544, %v7540
        %v7969 = vsel %vm7795, %v7548, %v7968
        %v7970 = vsel %vm7797, %v7552, %v7969
        %v7971 = vsel %vm7799, %v7556, %v7970
        %v7972 = vsel %vm7801, %v7560, %v7971
        %v7973 = vsel %vm7803, %v7564, %v7972
        %v7974 = vsel %vm7805, %v7568, %v7973
        %v7975 = vsel %vm7793, %v7576, %v7572
        %v7976 = vsel %vm7795, %v7580, %v7975
        %v7977 = vsel %vm7797, %v7584, %v7976
        %v7978 = vsel %vm7799, %v7588, %v7977
        %v7979 = vsel %vm7801, %v7592, %v7978
        %v7980 = vsel %vm7803, %v7596, %v7979
        %v7981 = vsel %vm7805, %v7600, %v7980
        %v7982 = vsel %vm7793, %v7608, %v7604
        %v7983 = vsel %vm7795, %v7612, %v7982
        %v7984 = vsel %vm7797, %v7616, %v7983
        %v7985 = vsel %vm7799, %v7620, %v7984
        %v7986 = vsel %vm7801, %v7624, %v7985
        %v7987 = vsel %vm7803, %v7628, %v7986
        %v7988 = vsel %vm7805, %v7632, %v7987
        %v7989 = vsel %vm7793, %v7640, %v7636
        %v7990 = vsel %vm7795, %v7644, %v7989
        %v7991 = vsel %vm7797, %v7648, %v7990
        %v7992 = vsel %vm7799, %v7652, %v7991
        %v7993 = vsel %vm7801, %v7656, %v7992
        %v7994 = vsel %vm7803, %v7660, %v7993
        %v7995 = vsel %vm7805, %v7664, %v7994
        %v7996 = vsel %vm7793, %v7672, %v7668
        %v7997 = vsel %vm7795, %v7676, %v7996
        %v7998 = vsel %vm7797, %v7680, %v7997
        %v7999 = vsel %vm7799, %v7684, %v7998
        %v8000 = vsel %vm7801, %v7688, %v7999
        %v8001 = vsel %vm7803, %v7692, %v8000
        %v8002 = vsel %vm7805, %v7696, %v8001
        %v8003 = vsel %vm7793, %v7704, %v7700
        %v8004 = vsel %vm7795, %v7708, %v8003
        %v8005 = vsel %vm7797, %v7712, %v8004
        %v8006 = vsel %vm7799, %v7716, %v8005
        %v8007 = vsel %vm7801, %v7720, %v8006
        %v8008 = vsel %vm7803, %v7724, %v8007
        %v8009 = vsel %vm7805, %v7728, %v8008
        %v8010 = vsel %vm7793, %v7736, %v7732
        %v8011 = vsel %vm7795, %v7740, %v8010
        %v8012 = vsel %vm7797, %v7744, %v8011
        %v8013 = vsel %vm7799, %v7748, %v8012
        %v8014 = vsel %vm7801, %v7752, %v8013
        %v8015 = vsel %vm7803, %v7756, %v8014
        %v8016 = vsel %vm7805, %v7760, %v8015
        %v8017 = vsel %vm7793, %v7768, %v7764
        %v8018 = vsel %vm7795, %v7772, %v8017
        %v8019 = vsel %vm7797, %v7776, %v8018
        %v8020 = vsel %vm7799, %v7780, %v8019
        %v8021 = vsel %vm7801, %v7784, %v8020
        %v8022 = vsel %vm7803, %v7788, %v8021
        %v8023 = vsel %vm7805, %v7792, %v8022
        %8056 = vxpose.xlu0.b32.start [1/16] %v7806, 128
        %8057 = vxpose.xlu0.b32.cont [2/16] %v7813, 128
        %8058 = vxpose.xlu0.b32.cont [3/16] %v7820, 128
        %8059 = vxpose.xlu0.b32.cont [4/16] %v7827, 128
        %8060 = vxpose.xlu0.b32.cont [5/16] %v7834, 128
        %8061 = vxpose.xlu0.b32.cont [6/16] %v7841, 128
        %8062 = vxpose.xlu0.b32.cont [7/16] %v7848, 128
        %8063 = vxpose.xlu0.b32.cont [8/16] %v7855, 128
        %8064 = vxpose.xlu0.b32.cont [9/16] %v7862, 128
        %8065 = vxpose.xlu0.b32.cont [10/16] %v7869, 128
        %8066 = vxpose.xlu0.b32.cont [11/16] %v7876, 128
        %8067 = vxpose.xlu0.b32.cont [12/16] %v7883, 128
        %8068 = vxpose.xlu0.b32.cont [13/16] %v7890, 128
        %8069 = vxpose.xlu0.b32.cont [14/16] %v7897, 128
        %8070 = vxpose.xlu0.b32.cont [15/16] %v7904, 128
        %8071 = vxpose.xlu0.b32.end [16/16] %v7911, 128
        %v8072 = vpop.trf.xlu0
        %v8073 = vpop.trf.xlu0
        %v8074 = vpop.trf.xlu0
        %v8075 = vpop.trf.xlu0
        %v8076 = vpop.trf.xlu0
        %v8077 = vpop.trf.xlu0
        %v8078 = vpop.trf.xlu0
        %v8079 = vpop.trf.xlu0
        %v8080 = vpop.trf.xlu0
        %v8081 = vpop.trf.xlu0
        %v8082 = vpop.trf.xlu0
        %v8083 = vpop.trf.xlu0
        %v8084 = vpop.trf.xlu0
        %v8085 = vpop.trf.xlu0
        %v8086 = vpop.trf.xlu0
        %v8087 = vpop.trf.xlu0
        %8088 = vxpose.xlu0.b32.start [1/16] %v7918, 128
        %8089 = vxpose.xlu0.b32.cont [2/16] %v7925, 128
        %8090 = vxpose.xlu0.b32.cont [3/16] %v7932, 128
        %8091 = vxpose.xlu0.b32.cont [4/16] %v7939, 128
        %8092 = vxpose.xlu0.b32.cont [5/16] %v7946, 128
        %8093 = vxpose.xlu0.b32.cont [6/16] %v7953, 128
        %8094 = vxpose.xlu0.b32.cont [7/16] %v7960, 128
        %8095 = vxpose.xlu0.b32.cont [8/16] %v7967, 128
        %8096 = vxpose.xlu0.b32.cont [9/16] %v7974, 128
        %8097 = vxpose.xlu0.b32.cont [10/16] %v7981, 128
        %8098 = vxpose.xlu0.b32.cont [11/16] %v7988, 128
        %8099 = vxpose.xlu0.b32.cont [12/16] %v7995, 128
        %8100 = vxpose.xlu0.b32.cont [13/16] %v8002, 128
        %8101 = vxpose.xlu0.b32.cont [14/16] %v8009, 128
        %8102 = vxpose.xlu0.b32.cont [15/16] %v8016, 128
        %8103 = vxpose.xlu0.b32.end [16/16] %v8023, 128
        %v8104 = vpop.trf.xlu0
        %v8105 = vpop.trf.xlu0
        %v8106 = vpop.trf.xlu0
        %v8107 = vpop.trf.xlu0
        %v8108 = vpop.trf.xlu0
        %v8109 = vpop.trf.xlu0
        %v8110 = vpop.trf.xlu0
        %v8111 = vpop.trf.xlu0
        %v8112 = vpop.trf.xlu0
        %v8113 = vpop.trf.xlu0
        %v8114 = vpop.trf.xlu0
        %v8115 = vpop.trf.xlu0
        %v8116 = vpop.trf.xlu0
        %v8117 = vpop.trf.xlu0
        %v8118 = vpop.trf.xlu0
        %v8119 = vpop.trf.xlu0
        %v8120 = vld [vmem:[%s2508] sm:$0xff]
        %v8121 = vld [vmem:[%s2508 + $0x8] sm:$0xff]
        %v8122 = vadd.f32 %v8072, %v8120
        %v8123 = vadd.f32 %v8104, %v8121
        %v8124 = vmax.f32 %v8122, %v8123
        %8125 = vmax.xlane.f32.xlu0 %v8124
        %v8126 = vpop.xlane.xlu0 %8125
        %v8127 = vsub.f32 %v8122, %v8126
        %v8128 = vsub.f32 %v8123, %v8126
        %v8129 = vmul.f32 %v8127, 1.442695
        %v8130 = vpow.pop %v8129
        %v8131 = vmul.f32 %v8128, 1.442695
        %v8132 = vpow.pop %v8131
        %v8133 = vadd.f32 %v8130, %v8132
        %8134 = vadd.xlane.f32.xlu0 %v8133
        %v8135 = vpop.xlane.xlu0 %8134
        %v8136 = vrcp.pop %v8135
        %v8137 = vmul.f32 1.0, %v8136
        %v8138 = vmul.f32 %v8130, %v8137
        %v8139 = vmul.f32 %v8132, %v8137
        %8140 = vst [vmem:[%s2499] sm:$0xff] %v8138
        %8141 = vst [vmem:[%s2499 + $0x8] sm:$0xff] %v8139
        %8142 = vxpose.xlu0.b32.start [1/16] %v8138, 128
        %8143 = vxpose.xlu0.b32.cont [2/16] 0.0, 128
        %8144 = vxpose.xlu0.b32.cont [3/16] 0.0, 128
        %8145 = vxpose.xlu0.b32.cont [4/16] 0.0, 128
        %8146 = vxpose.xlu0.b32.cont [5/16] 0.0, 128
        %8147 = vxpose.xlu0.b32.cont [6/16] 0.0, 128
        %8148 = vxpose.xlu0.b32.cont [7/16] 0.0, 128
        %8149 = vxpose.xlu0.b32.cont [8/16] 0.0, 128
        %8150 = vxpose.xlu0.b32.cont [9/16] 0.0, 128
        %8151 = vxpose.xlu0.b32.cont [10/16] 0.0, 128
        %8152 = vxpose.xlu0.b32.cont [11/16] 0.0, 128
        %8153 = vxpose.xlu0.b32.cont [12/16] 0.0, 128
        %8154 = vxpose.xlu0.b32.cont [13/16] 0.0, 128
        %8155 = vxpose.xlu0.b32.cont [14/16] 0.0, 128
        %8156 = vxpose.xlu0.b32.cont [15/16] 0.0, 128
        %8157 = vxpose.xlu0.b32.end [16/16] 0.0, 128
        %v8158 = vpop.trf.xlu0
        %v8159 = vpop.trf.xlu0
        %v8160 = vpop.trf.xlu0
        %v8161 = vpop.trf.xlu0
        %v8162 = vpop.trf.xlu0
        %v8163 = vpop.trf.xlu0
        %v8164 = vpop.trf.xlu0
        %v8165 = vpop.trf.xlu0
        %v8166 = vpop.trf.xlu0
        %v8167 = vpop.trf.xlu0
        %v8168 = vpop.trf.xlu0
        %v8169 = vpop.trf.xlu0
        %v8170 = vpop.trf.xlu0
        %v8171 = vpop.trf.xlu0
        %v8172 = vpop.trf.xlu0
        %v8173 = vpop.trf.xlu0
        %8174 = vxpose.xlu0.b32.start [1/16] %v8139, 128
        %8175 = vxpose.xlu0.b32.cont [2/16] 0.0, 128
        %8176 = vxpose.xlu0.b32.cont [3/16] 0.0, 128
        %8177 = vxpose.xlu0.b32.cont [4/16] 0.0, 128
        %8178 = vxpose.xlu0.b32.cont [5/16] 0.0, 128
        %8179 = vxpose.xlu0.b32.cont [6/16] 0.0, 128
        %8180 = vxpose.xlu0.b32.cont [7/16] 0.0, 128
        %8181 = vxpose.xlu0.b32.cont [8/16] 0.0, 128
        %8182 = vxpose.xlu0.b32.cont [9/16] 0.0, 128
        %8183 = vxpose.xlu0.b32.cont [10/16] 0.0, 128
        %8184 = vxpose.xlu0.b32.cont [11/16] 0.0, 128
        %8185 = vxpose.xlu0.b32.cont [12/16] 0.0, 128
        %8186 = vxpose.xlu0.b32.cont [13/16] 0.0, 128
        %8187 = vxpose.xlu0.b32.cont [14/16] 0.0, 128
        %8188 = vxpose.xlu0.b32.cont [15/16] 0.0, 128
        %8189 = vxpose.xlu0.b32.end [16/16] 0.0, 128
        %v8190 = vpop.trf.xlu0
        %v8191 = vpop.trf.xlu0
        %v8192 = vpop.trf.xlu0
        %v8193 = vpop.trf.xlu0
        %v8194 = vpop.trf.xlu0
        %v8195 = vpop.trf.xlu0
        %v8196 = vpop.trf.xlu0
        %v8197 = vpop.trf.xlu0
        %v8198 = vpop.trf.xlu0
        %v8199 = vpop.trf.xlu0
        %v8200 = vpop.trf.xlu0
        %v8201 = vpop.trf.xlu0
        %v8202 = vpop.trf.xlu0
        %v8203 = vpop.trf.xlu0
        %v8204 = vpop.trf.xlu0
        %v8205 = vpop.trf.xlu0
        %v8206 = vlaneseq
        %v8207 = vshrl.u32 %v8206, 7
        %v8208 = vsub.s32 0, %v8207
        %v8209 = vrot.slane %v8158, %v8208
        %8211 = vbcast.lane.b32.xlu0 %v8209, 256
        %v8212 = vpop.permute.xlu0 %8211
        %v8213 = vlaneseq
        %v8214 = vshrl.u32 %v8213, 7
        %v8215 = vsub.s32 1, %v8214
        %v8216 = vrot.slane %v8158, %v8215
        %8218 = vbcast.lane.b32.xlu0 %v8216, 256
        %v8219 = vpop.permute.xlu0 %8218
        %v8220 = vlaneseq
        %v8221 = vshrl.u32 %v8220, 7
        %v8222 = vsub.s32 2, %v8221
        %v8223 = vrot.slane %v8158, %v8222
        %8225 = vbcast.lane.b32.xlu0 %v8223, 256
        %v8226 = vpop.permute.xlu0 %8225
        %v8227 = vlaneseq
        %v8228 = vshrl.u32 %v8227, 7
        %v8229 = vsub.s32 3, %v8228
        %v8230 = vrot.slane %v8158, %v8229
        %8232 = vbcast.lane.b32.xlu0 %v8230, 256
        %v8233 = vpop.permute.xlu0 %8232
        %v8234 = vlaneseq
        %v8235 = vshrl.u32 %v8234, 7
        %v8236 = vsub.s32 4, %v8235
        %v8237 = vrot.slane %v8158, %v8236
        %8239 = vbcast.lane.b32.xlu0 %v8237, 256
        %v8240 = vpop.permute.xlu0 %8239
        %v8241 = vlaneseq
        %v8242 = vshrl.u32 %v8241, 7
        %v8243 = vsub.s32 5, %v8242
        %v8244 = vrot.slane %v8158, %v8243
        %8246 = vbcast.lane.b32.xlu0 %v8244, 256
        %v8247 = vpop.permute.xlu0 %8246
        %v8248 = vlaneseq
        %v8249 = vshrl.u32 %v8248, 7
        %v8250 = vsub.s32 6, %v8249
        %v8251 = vrot.slane %v8158, %v8250
        %8253 = vbcast.lane.b32.xlu0 %v8251, 256
        %v8254 = vpop.permute.xlu0 %8253
        %v8255 = vlaneseq
        %v8256 = vshrl.u32 %v8255, 7
        %v8257 = vsub.s32 7, %v8256
        %v8258 = vrot.slane %v8158, %v8257
        %8260 = vbcast.lane.b32.xlu0 %v8258, 256
        %v8261 = vpop.permute.xlu0 %8260
        %v8262 = vlaneseq
        %v8263 = vshrl.u32 %v8262, 7
        %v8264 = vsub.s32 0, %v8263
        %v8265 = vrot.slane %v8159, %v8264
        %8267 = vbcast.lane.b32.xlu0 %v8265, 256
        %v8268 = vpop.permute.xlu0 %8267
        %v8269 = vlaneseq
        %v8270 = vshrl.u32 %v8269, 7
        %v8271 = vsub.s32 1, %v8270
        %v8272 = vrot.slane %v8159, %v8271
        %8274 = vbcast.lane.b32.xlu0 %v8272, 256
        %v8275 = vpop.permute.xlu0 %8274
        %v8276 = vlaneseq
        %v8277 = vshrl.u32 %v8276, 7
        %v8278 = vsub.s32 2, %v8277
        %v8279 = vrot.slane %v8159, %v8278
        %8281 = vbcast.lane.b32.xlu0 %v8279, 256
        %v8282 = vpop.permute.xlu0 %8281
        %v8283 = vlaneseq
        %v8284 = vshrl.u32 %v8283, 7
        %v8285 = vsub.s32 3, %v8284
        %v8286 = vrot.slane %v8159, %v8285
        %8288 = vbcast.lane.b32.xlu0 %v8286, 256
        %v8289 = vpop.permute.xlu0 %8288
        %v8290 = vlaneseq
        %v8291 = vshrl.u32 %v8290, 7
        %v8292 = vsub.s32 4, %v8291
        %v8293 = vrot.slane %v8159, %v8292
        %8295 = vbcast.lane.b32.xlu0 %v8293, 256
        %v8296 = vpop.permute.xlu0 %8295
        %v8297 = vlaneseq
        %v8298 = vshrl.u32 %v8297, 7
        %v8299 = vsub.s32 5, %v8298
        %v8300 = vrot.slane %v8159, %v8299
        %8302 = vbcast.lane.b32.xlu0 %v8300, 256
        %v8303 = vpop.permute.xlu0 %8302
        %v8304 = vlaneseq
        %v8305 = vshrl.u32 %v8304, 7
        %v8306 = vsub.s32 6, %v8305
        %v8307 = vrot.slane %v8159, %v8306
        %8309 = vbcast.lane.b32.xlu0 %v8307, 256
        %v8310 = vpop.permute.xlu0 %8309
        %v8311 = vlaneseq
        %v8312 = vshrl.u32 %v8311, 7
        %v8313 = vsub.s32 7, %v8312
        %v8314 = vrot.slane %v8159, %v8313
        %8316 = vbcast.lane.b32.xlu0 %v8314, 256
        %v8317 = vpop.permute.xlu0 %8316
        %v8318 = vlaneseq
        %v8319 = vshrl.u32 %v8318, 7
        %v8320 = vsub.s32 0, %v8319
        %v8321 = vrot.slane %v8160, %v8320
        %8323 = vbcast.lane.b32.xlu0 %v8321, 256
        %v8324 = vpop.permute.xlu0 %8323
        %v8325 = vlaneseq
        %v8326 = vshrl.u32 %v8325, 7
        %v8327 = vsub.s32 1, %v8326
        %v8328 = vrot.slane %v8160, %v8327
        %8330 = vbcast.lane.b32.xlu0 %v8328, 256
        %v8331 = vpop.permute.xlu0 %8330
        %v8332 = vlaneseq
        %v8333 = vshrl.u32 %v8332, 7
        %v8334 = vsub.s32 2, %v8333
        %v8335 = vrot.slane %v8160, %v8334
        %8337 = vbcast.lane.b32.xlu0 %v8335, 256
        %v8338 = vpop.permute.xlu0 %8337
        %v8339 = vlaneseq
        %v8340 = vshrl.u32 %v8339, 7
        %v8341 = vsub.s32 3, %v8340
        %v8342 = vrot.slane %v8160, %v8341
        %8344 = vbcast.lane.b32.xlu0 %v8342, 256
        %v8345 = vpop.permute.xlu0 %8344
        %v8346 = vlaneseq
        %v8347 = vshrl.u32 %v8346, 7
        %v8348 = vsub.s32 4, %v8347
        %v8349 = vrot.slane %v8160, %v8348
        %8351 = vbcast.lane.b32.xlu0 %v8349, 256
        %v8352 = vpop.permute.xlu0 %8351
        %v8353 = vlaneseq
        %v8354 = vshrl.u32 %v8353, 7
        %v8355 = vsub.s32 5, %v8354
        %v8356 = vrot.slane %v8160, %v8355
        %8358 = vbcast.lane.b32.xlu0 %v8356, 256
        %v8359 = vpop.permute.xlu0 %8358
        %v8360 = vlaneseq
        %v8361 = vshrl.u32 %v8360, 7
        %v8362 = vsub.s32 6, %v8361
        %v8363 = vrot.slane %v8160, %v8362
        %8365 = vbcast.lane.b32.xlu0 %v8363, 256
        %v8366 = vpop.permute.xlu0 %8365
        %v8367 = vlaneseq
        %v8368 = vshrl.u32 %v8367, 7
        %v8369 = vsub.s32 7, %v8368
        %v8370 = vrot.slane %v8160, %v8369
        %8372 = vbcast.lane.b32.xlu0 %v8370, 256
        %v8373 = vpop.permute.xlu0 %8372
        %v8374 = vlaneseq
        %v8375 = vshrl.u32 %v8374, 7
        %v8376 = vsub.s32 0, %v8375
        %v8377 = vrot.slane %v8161, %v8376
        %8379 = vbcast.lane.b32.xlu0 %v8377, 256
        %v8380 = vpop.permute.xlu0 %8379
        %v8381 = vlaneseq
        %v8382 = vshrl.u32 %v8381, 7
        %v8383 = vsub.s32 1, %v8382
        %v8384 = vrot.slane %v8161, %v8383
        %8386 = vbcast.lane.b32.xlu0 %v8384, 256
        %v8387 = vpop.permute.xlu0 %8386
        %v8388 = vlaneseq
        %v8389 = vshrl.u32 %v8388, 7
        %v8390 = vsub.s32 2, %v8389
        %v8391 = vrot.slane %v8161, %v8390
        %8393 = vbcast.lane.b32.xlu0 %v8391, 256
        %v8394 = vpop.permute.xlu0 %8393
        %v8395 = vlaneseq
        %v8396 = vshrl.u32 %v8395, 7
        %v8397 = vsub.s32 3, %v8396
        %v8398 = vrot.slane %v8161, %v8397
        %8400 = vbcast.lane.b32.xlu0 %v8398, 256
        %v8401 = vpop.permute.xlu0 %8400
        %v8402 = vlaneseq
        %v8403 = vshrl.u32 %v8402, 7
        %v8404 = vsub.s32 4, %v8403
        %v8405 = vrot.slane %v8161, %v8404
        %8407 = vbcast.lane.b32.xlu0 %v8405, 256
        %v8408 = vpop.permute.xlu0 %8407
        %v8409 = vlaneseq
        %v8410 = vshrl.u32 %v8409, 7
        %v8411 = vsub.s32 5, %v8410
        %v8412 = vrot.slane %v8161, %v8411
        %8414 = vbcast.lane.b32.xlu0 %v8412, 256
        %v8415 = vpop.permute.xlu0 %8414
        %v8416 = vlaneseq
        %v8417 = vshrl.u32 %v8416, 7
        %v8418 = vsub.s32 6, %v8417
        %v8419 = vrot.slane %v8161, %v8418
        %8421 = vbcast.lane.b32.xlu0 %v8419, 256
        %v8422 = vpop.permute.xlu0 %8421
        %v8423 = vlaneseq
        %v8424 = vshrl.u32 %v8423, 7
        %v8425 = vsub.s32 7, %v8424
        %v8426 = vrot.slane %v8161, %v8425
        %8428 = vbcast.lane.b32.xlu0 %v8426, 256
        %v8429 = vpop.permute.xlu0 %8428
        %v8430 = vlaneseq
        %v8431 = vshrl.u32 %v8430, 7
        %v8432 = vsub.s32 0, %v8431
        %v8433 = vrot.slane %v8162, %v8432
        %8435 = vbcast.lane.b32.xlu0 %v8433, 256
        %v8436 = vpop.permute.xlu0 %8435
        %v8437 = vlaneseq
        %v8438 = vshrl.u32 %v8437, 7
        %v8439 = vsub.s32 1, %v8438
        %v8440 = vrot.slane %v8162, %v8439
        %8442 = vbcast.lane.b32.xlu0 %v8440, 256
        %v8443 = vpop.permute.xlu0 %8442
        %v8444 = vlaneseq
        %v8445 = vshrl.u32 %v8444, 7
        %v8446 = vsub.s32 2, %v8445
        %v8447 = vrot.slane %v8162, %v8446
        %8449 = vbcast.lane.b32.xlu0 %v8447, 256
        %v8450 = vpop.permute.xlu0 %8449
        %v8451 = vlaneseq
        %v8452 = vshrl.u32 %v8451, 7
        %v8453 = vsub.s32 3, %v8452
        %v8454 = vrot.slane %v8162, %v8453
        %8456 = vbcast.lane.b32.xlu0 %v8454, 256
        %v8457 = vpop.permute.xlu0 %8456
        %v8458 = vlaneseq
        %v8459 = vshrl.u32 %v8458, 7
        %v8460 = vsub.s32 4, %v8459
        %v8461 = vrot.slane %v8162, %v8460
        %8463 = vbcast.lane.b32.xlu0 %v8461, 256
        %v8464 = vpop.permute.xlu0 %8463
        %v8465 = vlaneseq
        %v8466 = vshrl.u32 %v8465, 7
        %v8467 = vsub.s32 5, %v8466
        %v8468 = vrot.slane %v8162, %v8467
        %8470 = vbcast.lane.b32.xlu0 %v8468, 256
        %v8471 = vpop.permute.xlu0 %8470
        %v8472 = vlaneseq
        %v8473 = vshrl.u32 %v8472, 7
        %v8474 = vsub.s32 6, %v8473
        %v8475 = vrot.slane %v8162, %v8474
        %8477 = vbcast.lane.b32.xlu0 %v8475, 256
        %v8478 = vpop.permute.xlu0 %8477
        %v8479 = vlaneseq
        %v8480 = vshrl.u32 %v8479, 7
        %v8481 = vsub.s32 7, %v8480
        %v8482 = vrot.slane %v8162, %v8481
        %8484 = vbcast.lane.b32.xlu0 %v8482, 256
        %v8485 = vpop.permute.xlu0 %8484
        %v8486 = vlaneseq
        %v8487 = vshrl.u32 %v8486, 7
        %v8488 = vsub.s32 0, %v8487
        %v8489 = vrot.slane %v8163, %v8488
        %8491 = vbcast.lane.b32.xlu0 %v8489, 256
        %v8492 = vpop.permute.xlu0 %8491
        %v8493 = vlaneseq
        %v8494 = vshrl.u32 %v8493, 7
        %v8495 = vsub.s32 1, %v8494
        %v8496 = vrot.slane %v8163, %v8495
        %8498 = vbcast.lane.b32.xlu0 %v8496, 256
        %v8499 = vpop.permute.xlu0 %8498
        %v8500 = vlaneseq
        %v8501 = vshrl.u32 %v8500, 7
        %v8502 = vsub.s32 2, %v8501
        %v8503 = vrot.slane %v8163, %v8502
        %8505 = vbcast.lane.b32.xlu0 %v8503, 256
        %v8506 = vpop.permute.xlu0 %8505
        %v8507 = vlaneseq
        %v8508 = vshrl.u32 %v8507, 7
        %v8509 = vsub.s32 3, %v8508
        %v8510 = vrot.slane %v8163, %v8509
        %8512 = vbcast.lane.b32.xlu0 %v8510, 256
        %v8513 = vpop.permute.xlu0 %8512
        %v8514 = vlaneseq
        %v8515 = vshrl.u32 %v8514, 7
        %v8516 = vsub.s32 4, %v8515
        %v8517 = vrot.slane %v8163, %v8516
        %8519 = vbcast.lane.b32.xlu0 %v8517, 256
        %v8520 = vpop.permute.xlu0 %8519
        %v8521 = vlaneseq
        %v8522 = vshrl.u32 %v8521, 7
        %v8523 = vsub.s32 5, %v8522
        %v8524 = vrot.slane %v8163, %v8523
        %8526 = vbcast.lane.b32.xlu0 %v8524, 256
        %v8527 = vpop.permute.xlu0 %8526
        %v8528 = vlaneseq
        %v8529 = vshrl.u32 %v8528, 7
        %v8530 = vsub.s32 6, %v8529
        %v8531 = vrot.slane %v8163, %v8530
        %8533 = vbcast.lane.b32.xlu0 %v8531, 256
        %v8534 = vpop.permute.xlu0 %8533
        %v8535 = vlaneseq
        %v8536 = vshrl.u32 %v8535, 7
        %v8537 = vsub.s32 7, %v8536
        %v8538 = vrot.slane %v8163, %v8537
        %8540 = vbcast.lane.b32.xlu0 %v8538, 256
        %v8541 = vpop.permute.xlu0 %8540
        %v8542 = vlaneseq
        %v8543 = vshrl.u32 %v8542, 7
        %v8544 = vsub.s32 0, %v8543
        %v8545 = vrot.slane %v8164, %v8544
        %8547 = vbcast.lane.b32.xlu0 %v8545, 256
        %v8548 = vpop.permute.xlu0 %8547
        %v8549 = vlaneseq
        %v8550 = vshrl.u32 %v8549, 7
        %v8551 = vsub.s32 1, %v8550
        %v8552 = vrot.slane %v8164, %v8551
        %8554 = vbcast.lane.b32.xlu0 %v8552, 256
        %v8555 = vpop.permute.xlu0 %8554
        %v8556 = vlaneseq
        %v8557 = vshrl.u32 %v8556, 7
        %v8558 = vsub.s32 2, %v8557
        %v8559 = vrot.slane %v8164, %v8558
        %8561 = vbcast.lane.b32.xlu0 %v8559, 256
        %v8562 = vpop.permute.xlu0 %8561
        %v8563 = vlaneseq
        %v8564 = vshrl.u32 %v8563, 7
        %v8565 = vsub.s32 3, %v8564
        %v8566 = vrot.slane %v8164, %v8565
        %8568 = vbcast.lane.b32.xlu0 %v8566, 256
        %v8569 = vpop.permute.xlu0 %8568
        %v8570 = vlaneseq
        %v8571 = vshrl.u32 %v8570, 7
        %v8572 = vsub.s32 4, %v8571
        %v8573 = vrot.slane %v8164, %v8572
        %8575 = vbcast.lane.b32.xlu0 %v8573, 256
        %v8576 = vpop.permute.xlu0 %8575
        %v8577 = vlaneseq
        %v8578 = vshrl.u32 %v8577, 7
        %v8579 = vsub.s32 5, %v8578
        %v8580 = vrot.slane %v8164, %v8579
        %8582 = vbcast.lane.b32.xlu0 %v8580, 256
        %v8583 = vpop.permute.xlu0 %8582
        %v8584 = vlaneseq
        %v8585 = vshrl.u32 %v8584, 7
        %v8586 = vsub.s32 6, %v8585
        %v8587 = vrot.slane %v8164, %v8586
        %8589 = vbcast.lane.b32.xlu0 %v8587, 256
        %v8590 = vpop.permute.xlu0 %8589
        %v8591 = vlaneseq
        %v8592 = vshrl.u32 %v8591, 7
        %v8593 = vsub.s32 7, %v8592
        %v8594 = vrot.slane %v8164, %v8593
        %8596 = vbcast.lane.b32.xlu0 %v8594, 256
        %v8597 = vpop.permute.xlu0 %8596
        %v8598 = vlaneseq
        %v8599 = vshrl.u32 %v8598, 7
        %v8600 = vsub.s32 0, %v8599
        %v8601 = vrot.slane %v8165, %v8600
        %8603 = vbcast.lane.b32.xlu0 %v8601, 256
        %v8604 = vpop.permute.xlu0 %8603
        %v8605 = vlaneseq
        %v8606 = vshrl.u32 %v8605, 7
        %v8607 = vsub.s32 1, %v8606
        %v8608 = vrot.slane %v8165, %v8607
        %8610 = vbcast.lane.b32.xlu0 %v8608, 256
        %v8611 = vpop.permute.xlu0 %8610
        %v8612 = vlaneseq
        %v8613 = vshrl.u32 %v8612, 7
        %v8614 = vsub.s32 2, %v8613
        %v8615 = vrot.slane %v8165, %v8614
        %8617 = vbcast.lane.b32.xlu0 %v8615, 256
        %v8618 = vpop.permute.xlu0 %8617
        %v8619 = vlaneseq
        %v8620 = vshrl.u32 %v8619, 7
        %v8621 = vsub.s32 3, %v8620
        %v8622 = vrot.slane %v8165, %v8621
        %8624 = vbcast.lane.b32.xlu0 %v8622, 256
        %v8625 = vpop.permute.xlu0 %8624
        %v8626 = vlaneseq
        %v8627 = vshrl.u32 %v8626, 7
        %v8628 = vsub.s32 4, %v8627
        %v8629 = vrot.slane %v8165, %v8628
        %8631 = vbcast.lane.b32.xlu0 %v8629, 256
        %v8632 = vpop.permute.xlu0 %8631
        %v8633 = vlaneseq
        %v8634 = vshrl.u32 %v8633, 7
        %v8635 = vsub.s32 5, %v8634
        %v8636 = vrot.slane %v8165, %v8635
        %8638 = vbcast.lane.b32.xlu0 %v8636, 256
        %v8639 = vpop.permute.xlu0 %8638
        %v8640 = vlaneseq
        %v8641 = vshrl.u32 %v8640, 7
        %v8642 = vsub.s32 6, %v8641
        %v8643 = vrot.slane %v8165, %v8642
        %8645 = vbcast.lane.b32.xlu0 %v8643, 256
        %v8646 = vpop.permute.xlu0 %8645
        %v8647 = vlaneseq
        %v8648 = vshrl.u32 %v8647, 7
        %v8649 = vsub.s32 7, %v8648
        %v8650 = vrot.slane %v8165, %v8649
        %8652 = vbcast.lane.b32.xlu0 %v8650, 256
        %v8653 = vpop.permute.xlu0 %8652
        %v8654 = vlaneseq
        %v8655 = vshrl.u32 %v8654, 7
        %v8656 = vsub.s32 0, %v8655
        %v8657 = vrot.slane %v8166, %v8656
        %8659 = vbcast.lane.b32.xlu0 %v8657, 256
        %v8660 = vpop.permute.xlu0 %8659
        %v8661 = vlaneseq
        %v8662 = vshrl.u32 %v8661, 7
        %v8663 = vsub.s32 1, %v8662
        %v8664 = vrot.slane %v8166, %v8663
        %8666 = vbcast.lane.b32.xlu0 %v8664, 256
        %v8667 = vpop.permute.xlu0 %8666
        %v8668 = vlaneseq
        %v8669 = vshrl.u32 %v8668, 7
        %v8670 = vsub.s32 2, %v8669
        %v8671 = vrot.slane %v8166, %v8670
        %8673 = vbcast.lane.b32.xlu0 %v8671, 256
        %v8674 = vpop.permute.xlu0 %8673
        %v8675 = vlaneseq
        %v8676 = vshrl.u32 %v8675, 7
        %v8677 = vsub.s32 3, %v8676
        %v8678 = vrot.slane %v8166, %v8677
        %8680 = vbcast.lane.b32.xlu0 %v8678, 256
        %v8681 = vpop.permute.xlu0 %8680
        %v8682 = vlaneseq
        %v8683 = vshrl.u32 %v8682, 7
        %v8684 = vsub.s32 4, %v8683
        %v8685 = vrot.slane %v8166, %v8684
        %8687 = vbcast.lane.b32.xlu0 %v8685, 256
        %v8688 = vpop.permute.xlu0 %8687
        %v8689 = vlaneseq
        %v8690 = vshrl.u32 %v8689, 7
        %v8691 = vsub.s32 5, %v8690
        %v8692 = vrot.slane %v8166, %v8691
        %8694 = vbcast.lane.b32.xlu0 %v8692, 256
        %v8695 = vpop.permute.xlu0 %8694
        %v8696 = vlaneseq
        %v8697 = vshrl.u32 %v8696, 7
        %v8698 = vsub.s32 6, %v8697
        %v8699 = vrot.slane %v8166, %v8698
        %8701 = vbcast.lane.b32.xlu0 %v8699, 256
        %v8702 = vpop.permute.xlu0 %8701
        %v8703 = vlaneseq
        %v8704 = vshrl.u32 %v8703, 7
        %v8705 = vsub.s32 7, %v8704
        %v8706 = vrot.slane %v8166, %v8705
        %8708 = vbcast.lane.b32.xlu0 %v8706, 256
        %v8709 = vpop.permute.xlu0 %8708
        %v8710 = vlaneseq
        %v8711 = vshrl.u32 %v8710, 7
        %v8712 = vsub.s32 0, %v8711
        %v8713 = vrot.slane %v8167, %v8712
        %8715 = vbcast.lane.b32.xlu0 %v8713, 256
        %v8716 = vpop.permute.xlu0 %8715
        %v8717 = vlaneseq
        %v8718 = vshrl.u32 %v8717, 7
        %v8719 = vsub.s32 1, %v8718
        %v8720 = vrot.slane %v8167, %v8719
        %8722 = vbcast.lane.b32.xlu0 %v8720, 256
        %v8723 = vpop.permute.xlu0 %8722
        %v8724 = vlaneseq
        %v8725 = vshrl.u32 %v8724, 7
        %v8726 = vsub.s32 2, %v8725
        %v8727 = vrot.slane %v8167, %v8726
        %8729 = vbcast.lane.b32.xlu0 %v8727, 256
        %v8730 = vpop.permute.xlu0 %8729
        %v8731 = vlaneseq
        %v8732 = vshrl.u32 %v8731, 7
        %v8733 = vsub.s32 3, %v8732
        %v8734 = vrot.slane %v8167, %v8733
        %8736 = vbcast.lane.b32.xlu0 %v8734, 256
        %v8737 = vpop.permute.xlu0 %8736
        %v8738 = vlaneseq
        %v8739 = vshrl.u32 %v8738, 7
        %v8740 = vsub.s32 4, %v8739
        %v8741 = vrot.slane %v8167, %v8740
        %8743 = vbcast.lane.b32.xlu0 %v8741, 256
        %v8744 = vpop.permute.xlu0 %8743
        %v8745 = vlaneseq
        %v8746 = vshrl.u32 %v8745, 7
        %v8747 = vsub.s32 5, %v8746
        %v8748 = vrot.slane %v8167, %v8747
        %8750 = vbcast.lane.b32.xlu0 %v8748, 256
        %v8751 = vpop.permute.xlu0 %8750
        %v8752 = vlaneseq
        %v8753 = vshrl.u32 %v8752, 7
        %v8754 = vsub.s32 6, %v8753
        %v8755 = vrot.slane %v8167, %v8754
        %8757 = vbcast.lane.b32.xlu0 %v8755, 256
        %v8758 = vpop.permute.xlu0 %8757
        %v8759 = vlaneseq
        %v8760 = vshrl.u32 %v8759, 7
        %v8761 = vsub.s32 7, %v8760
        %v8762 = vrot.slane %v8167, %v8761
        %8764 = vbcast.lane.b32.xlu0 %v8762, 256
        %v8765 = vpop.permute.xlu0 %8764
        %v8766 = vlaneseq
        %v8767 = vshrl.u32 %v8766, 7
        %v8768 = vsub.s32 0, %v8767
        %v8769 = vrot.slane %v8168, %v8768
        %8771 = vbcast.lane.b32.xlu0 %v8769, 256
        %v8772 = vpop.permute.xlu0 %8771
        %v8773 = vlaneseq
        %v8774 = vshrl.u32 %v8773, 7
        %v8775 = vsub.s32 1, %v8774
        %v8776 = vrot.slane %v8168, %v8775
        %8778 = vbcast.lane.b32.xlu0 %v8776, 256
        %v8779 = vpop.permute.xlu0 %8778
        %v8780 = vlaneseq
        %v8781 = vshrl.u32 %v8780, 7
        %v8782 = vsub.s32 2, %v8781
        %v8783 = vrot.slane %v8168, %v8782
        %8785 = vbcast.lane.b32.xlu0 %v8783, 256
        %v8786 = vpop.permute.xlu0 %8785
        %v8787 = vlaneseq
        %v8788 = vshrl.u32 %v8787, 7
        %v8789 = vsub.s32 3, %v8788
        %v8790 = vrot.slane %v8168, %v8789
        %8792 = vbcast.lane.b32.xlu0 %v8790, 256
        %v8793 = vpop.permute.xlu0 %8792
        %v8794 = vlaneseq
        %v8795 = vshrl.u32 %v8794, 7
        %v8796 = vsub.s32 4, %v8795
        %v8797 = vrot.slane %v8168, %v8796
        %8799 = vbcast.lane.b32.xlu0 %v8797, 256
        %v8800 = vpop.permute.xlu0 %8799
        %v8801 = vlaneseq
        %v8802 = vshrl.u32 %v8801, 7
        %v8803 = vsub.s32 5, %v8802
        %v8804 = vrot.slane %v8168, %v8803
        %8806 = vbcast.lane.b32.xlu0 %v8804, 256
        %v8807 = vpop.permute.xlu0 %8806
        %v8808 = vlaneseq
        %v8809 = vshrl.u32 %v8808, 7
        %v8810 = vsub.s32 6, %v8809
        %v8811 = vrot.slane %v8168, %v8810
        %8813 = vbcast.lane.b32.xlu0 %v8811, 256
        %v8814 = vpop.permute.xlu0 %8813
        %v8815 = vlaneseq
        %v8816 = vshrl.u32 %v8815, 7
        %v8817 = vsub.s32 7, %v8816
        %v8818 = vrot.slane %v8168, %v8817
        %8820 = vbcast.lane.b32.xlu0 %v8818, 256
        %v8821 = vpop.permute.xlu0 %8820
        %v8822 = vlaneseq
        %v8823 = vshrl.u32 %v8822, 7
        %v8824 = vsub.s32 0, %v8823
        %v8825 = vrot.slane %v8169, %v8824
        %8827 = vbcast.lane.b32.xlu0 %v8825, 256
        %v8828 = vpop.permute.xlu0 %8827
        %v8829 = vlaneseq
        %v8830 = vshrl.u32 %v8829, 7
        %v8831 = vsub.s32 1, %v8830
        %v8832 = vrot.slane %v8169, %v8831
        %8834 = vbcast.lane.b32.xlu0 %v8832, 256
        %v8835 = vpop.permute.xlu0 %8834
        %v8836 = vlaneseq
        %v8837 = vshrl.u32 %v8836, 7
        %v8838 = vsub.s32 2, %v8837
        %v8839 = vrot.slane %v8169, %v8838
        %8841 = vbcast.lane.b32.xlu0 %v8839, 256
        %v8842 = vpop.permute.xlu0 %8841
        %v8843 = vlaneseq
        %v8844 = vshrl.u32 %v8843, 7
        %v8845 = vsub.s32 3, %v8844
        %v8846 = vrot.slane %v8169, %v8845
        %8848 = vbcast.lane.b32.xlu0 %v8846, 256
        %v8849 = vpop.permute.xlu0 %8848
        %v8850 = vlaneseq
        %v8851 = vshrl.u32 %v8850, 7
        %v8852 = vsub.s32 4, %v8851
        %v8853 = vrot.slane %v8169, %v8852
        %8855 = vbcast.lane.b32.xlu0 %v8853, 256
        %v8856 = vpop.permute.xlu0 %8855
        %v8857 = vlaneseq
        %v8858 = vshrl.u32 %v8857, 7
        %v8859 = vsub.s32 5, %v8858
        %v8860 = vrot.slane %v8169, %v8859
        %8862 = vbcast.lane.b32.xlu0 %v8860, 256
        %v8863 = vpop.permute.xlu0 %8862
        %v8864 = vlaneseq
        %v8865 = vshrl.u32 %v8864, 7
        %v8866 = vsub.s32 6, %v8865
        %v8867 = vrot.slane %v8169, %v8866
        %8869 = vbcast.lane.b32.xlu0 %v8867, 256
        %v8870 = vpop.permute.xlu0 %8869
        %v8871 = vlaneseq
        %v8872 = vshrl.u32 %v8871, 7
        %v8873 = vsub.s32 7, %v8872
        %v8874 = vrot.slane %v8169, %v8873
        %8876 = vbcast.lane.b32.xlu0 %v8874, 256
        %v8877 = vpop.permute.xlu0 %8876
        %v8878 = vlaneseq
        %v8879 = vshrl.u32 %v8878, 7
        %v8880 = vsub.s32 0, %v8879
        %v8881 = vrot.slane %v8170, %v8880
        %8883 = vbcast.lane.b32.xlu0 %v8881, 256
        %v8884 = vpop.permute.xlu0 %8883
        %v8885 = vlaneseq
        %v8886 = vshrl.u32 %v8885, 7
        %v8887 = vsub.s32 1, %v8886
        %v8888 = vrot.slane %v8170, %v8887
        %8890 = vbcast.lane.b32.xlu0 %v8888, 256
        %v8891 = vpop.permute.xlu0 %8890
        %v8892 = vlaneseq
        %v8893 = vshrl.u32 %v8892, 7
        %v8894 = vsub.s32 2, %v8893
        %v8895 = vrot.slane %v8170, %v8894
        %8897 = vbcast.lane.b32.xlu0 %v8895, 256
        %v8898 = vpop.permute.xlu0 %8897
        %v8899 = vlaneseq
        %v8900 = vshrl.u32 %v8899, 7
        %v8901 = vsub.s32 3, %v8900
        %v8902 = vrot.slane %v8170, %v8901
        %8904 = vbcast.lane.b32.xlu0 %v8902, 256
        %v8905 = vpop.permute.xlu0 %8904
        %v8906 = vlaneseq
        %v8907 = vshrl.u32 %v8906, 7
        %v8908 = vsub.s32 4, %v8907
        %v8909 = vrot.slane %v8170, %v8908
        %8911 = vbcast.lane.b32.xlu0 %v8909, 256
        %v8912 = vpop.permute.xlu0 %8911
        %v8913 = vlaneseq
        %v8914 = vshrl.u32 %v8913, 7
        %v8915 = vsub.s32 5, %v8914
        %v8916 = vrot.slane %v8170, %v8915
        %8918 = vbcast.lane.b32.xlu0 %v8916, 256
        %v8919 = vpop.permute.xlu0 %8918
        %v8920 = vlaneseq
        %v8921 = vshrl.u32 %v8920, 7
        %v8922 = vsub.s32 6, %v8921
        %v8923 = vrot.slane %v8170, %v8922
        %8925 = vbcast.lane.b32.xlu0 %v8923, 256
        %v8926 = vpop.permute.xlu0 %8925
        %v8927 = vlaneseq
        %v8928 = vshrl.u32 %v8927, 7
        %v8929 = vsub.s32 7, %v8928
        %v8930 = vrot.slane %v8170, %v8929
        %8932 = vbcast.lane.b32.xlu0 %v8930, 256
        %v8933 = vpop.permute.xlu0 %8932
        %v8934 = vlaneseq
        %v8935 = vshrl.u32 %v8934, 7
        %v8936 = vsub.s32 0, %v8935
        %v8937 = vrot.slane %v8171, %v8936
        %8939 = vbcast.lane.b32.xlu0 %v8937, 256
        %v8940 = vpop.permute.xlu0 %8939
        %v8941 = vlaneseq
        %v8942 = vshrl.u32 %v8941, 7
        %v8943 = vsub.s32 1, %v8942
        %v8944 = vrot.slane %v8171, %v8943
        %8946 = vbcast.lane.b32.xlu0 %v8944, 256
        %v8947 = vpop.permute.xlu0 %8946
        %v8948 = vlaneseq
        %v8949 = vshrl.u32 %v8948, 7
        %v8950 = vsub.s32 2, %v8949
        %v8951 = vrot.slane %v8171, %v8950
        %8953 = vbcast.lane.b32.xlu0 %v8951, 256
        %v8954 = vpop.permute.xlu0 %8953
        %v8955 = vlaneseq
        %v8956 = vshrl.u32 %v8955, 7
        %v8957 = vsub.s32 3, %v8956
        %v8958 = vrot.slane %v8171, %v8957
        %8960 = vbcast.lane.b32.xlu0 %v8958, 256
        %v8961 = vpop.permute.xlu0 %8960
        %v8962 = vlaneseq
        %v8963 = vshrl.u32 %v8962, 7
        %v8964 = vsub.s32 4, %v8963
        %v8965 = vrot.slane %v8171, %v8964
        %8967 = vbcast.lane.b32.xlu0 %v8965, 256
        %v8968 = vpop.permute.xlu0 %8967
        %v8969 = vlaneseq
        %v8970 = vshrl.u32 %v8969, 7
        %v8971 = vsub.s32 5, %v8970
        %v8972 = vrot.slane %v8171, %v8971
        %8974 = vbcast.lane.b32.xlu0 %v8972, 256
        %v8975 = vpop.permute.xlu0 %8974
        %v8976 = vlaneseq
        %v8977 = vshrl.u32 %v8976, 7
        %v8978 = vsub.s32 6, %v8977
        %v8979 = vrot.slane %v8171, %v8978
        %8981 = vbcast.lane.b32.xlu0 %v8979, 256
        %v8982 = vpop.permute.xlu0 %8981
        %v8983 = vlaneseq
        %v8984 = vshrl.u32 %v8983, 7
        %v8985 = vsub.s32 7, %v8984
        %v8986 = vrot.slane %v8171, %v8985
        %8988 = vbcast.lane.b32.xlu0 %v8986, 256
        %v8989 = vpop.permute.xlu0 %8988
        %v8990 = vlaneseq
        %v8991 = vshrl.u32 %v8990, 7
        %v8992 = vsub.s32 0, %v8991
        %v8993 = vrot.slane %v8172, %v8992
        %8995 = vbcast.lane.b32.xlu0 %v8993, 256
        %v8996 = vpop.permute.xlu0 %8995
        %v8997 = vlaneseq
        %v8998 = vshrl.u32 %v8997, 7
        %v8999 = vsub.s32 1, %v8998
        %v9000 = vrot.slane %v8172, %v8999
        %9002 = vbcast.lane.b32.xlu0 %v9000, 256
        %v9003 = vpop.permute.xlu0 %9002
        %v9004 = vlaneseq
        %v9005 = vshrl.u32 %v9004, 7
        %v9006 = vsub.s32 2, %v9005
        %v9007 = vrot.slane %v8172, %v9006
        %9009 = vbcast.lane.b32.xlu0 %v9007, 256
        %v9010 = vpop.permute.xlu0 %9009
        %v9011 = vlaneseq
        %v9012 = vshrl.u32 %v9011, 7
        %v9013 = vsub.s32 3, %v9012
        %v9014 = vrot.slane %v8172, %v9013
        %9016 = vbcast.lane.b32.xlu0 %v9014, 256
        %v9017 = vpop.permute.xlu0 %9016
        %v9018 = vlaneseq
        %v9019 = vshrl.u32 %v9018, 7
        %v9020 = vsub.s32 4, %v9019
        %v9021 = vrot.slane %v8172, %v9020
        %9023 = vbcast.lane.b32.xlu0 %v9021, 256
        %v9024 = vpop.permute.xlu0 %9023
        %v9025 = vlaneseq
        %v9026 = vshrl.u32 %v9025, 7
        %v9027 = vsub.s32 5, %v9026
        %v9028 = vrot.slane %v8172, %v9027
        %9030 = vbcast.lane.b32.xlu0 %v9028, 256
        %v9031 = vpop.permute.xlu0 %9030
        %v9032 = vlaneseq
        %v9033 = vshrl.u32 %v9032, 7
        %v9034 = vsub.s32 6, %v9033
        %v9035 = vrot.slane %v8172, %v9034
        %9037 = vbcast.lane.b32.xlu0 %v9035, 256
        %v9038 = vpop.permute.xlu0 %9037
        %v9039 = vlaneseq
        %v9040 = vshrl.u32 %v9039, 7
        %v9041 = vsub.s32 7, %v9040
        %v9042 = vrot.slane %v8172, %v9041
        %9044 = vbcast.lane.b32.xlu0 %v9042, 256
        %v9045 = vpop.permute.xlu0 %9044
        %v9046 = vlaneseq
        %v9047 = vshrl.u32 %v9046, 7
        %v9048 = vsub.s32 0, %v9047
        %v9049 = vrot.slane %v8173, %v9048
        %9051 = vbcast.lane.b32.xlu0 %v9049, 256
        %v9052 = vpop.permute.xlu0 %9051
        %v9053 = vlaneseq
        %v9054 = vshrl.u32 %v9053, 7
        %v9055 = vsub.s32 1, %v9054
        %v9056 = vrot.slane %v8173, %v9055
        %9058 = vbcast.lane.b32.xlu0 %v9056, 256
        %v9059 = vpop.permute.xlu0 %9058
        %v9060 = vlaneseq
        %v9061 = vshrl.u32 %v9060, 7
        %v9062 = vsub.s32 2, %v9061
        %v9063 = vrot.slane %v8173, %v9062
        %9065 = vbcast.lane.b32.xlu0 %v9063, 256
        %v9066 = vpop.permute.xlu0 %9065
        %v9067 = vlaneseq
        %v9068 = vshrl.u32 %v9067, 7
        %v9069 = vsub.s32 3, %v9068
        %v9070 = vrot.slane %v8173, %v9069
        %9072 = vbcast.lane.b32.xlu0 %v9070, 256
        %v9073 = vpop.permute.xlu0 %9072
        %v9074 = vlaneseq
        %v9075 = vshrl.u32 %v9074, 7
        %v9076 = vsub.s32 4, %v9075
        %v9077 = vrot.slane %v8173, %v9076
        %9079 = vbcast.lane.b32.xlu0 %v9077, 256
        %v9080 = vpop.permute.xlu0 %9079
        %v9081 = vlaneseq
        %v9082 = vshrl.u32 %v9081, 7
        %v9083 = vsub.s32 5, %v9082
        %v9084 = vrot.slane %v8173, %v9083
        %9086 = vbcast.lane.b32.xlu0 %v9084, 256
        %v9087 = vpop.permute.xlu0 %9086
        %v9088 = vlaneseq
        %v9089 = vshrl.u32 %v9088, 7
        %v9090 = vsub.s32 6, %v9089
        %v9091 = vrot.slane %v8173, %v9090
        %9093 = vbcast.lane.b32.xlu0 %v9091, 256
        %v9094 = vpop.permute.xlu0 %9093
        %v9095 = vlaneseq
        %v9096 = vshrl.u32 %v9095, 7
        %v9097 = vsub.s32 7, %v9096
        %v9098 = vrot.slane %v8173, %v9097
        %9100 = vbcast.lane.b32.xlu0 %v9098, 256
        %v9101 = vpop.permute.xlu0 %9100
        %v9102 = vlaneseq
        %v9103 = vshrl.u32 %v9102, 7
        %v9104 = vsub.s32 0, %v9103
        %v9105 = vrot.slane %v8190, %v9104
        %9107 = vbcast.lane.b32.xlu0 %v9105, 256
        %v9108 = vpop.permute.xlu0 %9107
        %v9109 = vlaneseq
        %v9110 = vshrl.u32 %v9109, 7
        %v9111 = vsub.s32 1, %v9110
        %v9112 = vrot.slane %v8190, %v9111
        %9114 = vbcast.lane.b32.xlu0 %v9112, 256
        %v9115 = vpop.permute.xlu0 %9114
        %v9116 = vlaneseq
        %v9117 = vshrl.u32 %v9116, 7
        %v9118 = vsub.s32 2, %v9117
        %v9119 = vrot.slane %v8190, %v9118
        %9121 = vbcast.lane.b32.xlu0 %v9119, 256
        %v9122 = vpop.permute.xlu0 %9121
        %v9123 = vlaneseq
        %v9124 = vshrl.u32 %v9123, 7
        %v9125 = vsub.s32 3, %v9124
        %v9126 = vrot.slane %v8190, %v9125
        %9128 = vbcast.lane.b32.xlu0 %v9126, 256
        %v9129 = vpop.permute.xlu0 %9128
        %v9130 = vlaneseq
        %v9131 = vshrl.u32 %v9130, 7
        %v9132 = vsub.s32 4, %v9131
        %v9133 = vrot.slane %v8190, %v9132
        %9135 = vbcast.lane.b32.xlu0 %v9133, 256
        %v9136 = vpop.permute.xlu0 %9135
        %v9137 = vlaneseq
        %v9138 = vshrl.u32 %v9137, 7
        %v9139 = vsub.s32 5, %v9138
        %v9140 = vrot.slane %v8190, %v9139
        %9142 = vbcast.lane.b32.xlu0 %v9140, 256
        %v9143 = vpop.permute.xlu0 %9142
        %v9144 = vlaneseq
        %v9145 = vshrl.u32 %v9144, 7
        %v9146 = vsub.s32 6, %v9145
        %v9147 = vrot.slane %v8190, %v9146
        %9149 = vbcast.lane.b32.xlu0 %v9147, 256
        %v9150 = vpop.permute.xlu0 %9149
        %v9151 = vlaneseq
        %v9152 = vshrl.u32 %v9151, 7
        %v9153 = vsub.s32 7, %v9152
        %v9154 = vrot.slane %v8190, %v9153
        %9156 = vbcast.lane.b32.xlu0 %v9154, 256
        %v9157 = vpop.permute.xlu0 %9156
        %v9158 = vlaneseq
        %v9159 = vshrl.u32 %v9158, 7
        %v9160 = vsub.s32 0, %v9159
        %v9161 = vrot.slane %v8191, %v9160
        %9163 = vbcast.lane.b32.xlu0 %v9161, 256
        %v9164 = vpop.permute.xlu0 %9163
        %v9165 = vlaneseq
        %v9166 = vshrl.u32 %v9165, 7
        %v9167 = vsub.s32 1, %v9166
        %v9168 = vrot.slane %v8191, %v9167
        %9170 = vbcast.lane.b32.xlu0 %v9168, 256
        %v9171 = vpop.permute.xlu0 %9170
        %v9172 = vlaneseq
        %v9173 = vshrl.u32 %v9172, 7
        %v9174 = vsub.s32 2, %v9173
        %v9175 = vrot.slane %v8191, %v9174
        %9177 = vbcast.lane.b32.xlu0 %v9175, 256
        %v9178 = vpop.permute.xlu0 %9177
        %v9179 = vlaneseq
        %v9180 = vshrl.u32 %v9179, 7
        %v9181 = vsub.s32 3, %v9180
        %v9182 = vrot.slane %v8191, %v9181
        %9184 = vbcast.lane.b32.xlu0 %v9182, 256
        %v9185 = vpop.permute.xlu0 %9184
        %v9186 = vlaneseq
        %v9187 = vshrl.u32 %v9186, 7
        %v9188 = vsub.s32 4, %v9187
        %v9189 = vrot.slane %v8191, %v9188
        %9191 = vbcast.lane.b32.xlu0 %v9189, 256
        %v9192 = vpop.permute.xlu0 %9191
        %v9193 = vlaneseq
        %v9194 = vshrl.u32 %v9193, 7
        %v9195 = vsub.s32 5, %v9194
        %v9196 = vrot.slane %v8191, %v9195
        %9198 = vbcast.lane.b32.xlu0 %v9196, 256
        %v9199 = vpop.permute.xlu0 %9198
        %v9200 = vlaneseq
        %v9201 = vshrl.u32 %v9200, 7
        %v9202 = vsub.s32 6, %v9201
        %v9203 = vrot.slane %v8191, %v9202
        %9205 = vbcast.lane.b32.xlu0 %v9203, 256
        %v9206 = vpop.permute.xlu0 %9205
        %v9207 = vlaneseq
        %v9208 = vshrl.u32 %v9207, 7
        %v9209 = vsub.s32 7, %v9208
        %v9210 = vrot.slane %v8191, %v9209
        %9212 = vbcast.lane.b32.xlu0 %v9210, 256
        %v9213 = vpop.permute.xlu0 %9212
        %v9214 = vlaneseq
        %v9215 = vshrl.u32 %v9214, 7
        %v9216 = vsub.s32 0, %v9215
        %v9217 = vrot.slane %v8192, %v9216
        %9219 = vbcast.lane.b32.xlu0 %v9217, 256
        %v9220 = vpop.permute.xlu0 %9219
        %v9221 = vlaneseq
        %v9222 = vshrl.u32 %v9221, 7
        %v9223 = vsub.s32 1, %v9222
        %v9224 = vrot.slane %v8192, %v9223
        %9226 = vbcast.lane.b32.xlu0 %v9224, 256
        %v9227 = vpop.permute.xlu0 %9226
        %v9228 = vlaneseq
        %v9229 = vshrl.u32 %v9228, 7
        %v9230 = vsub.s32 2, %v9229
        %v9231 = vrot.slane %v8192, %v9230
        %9233 = vbcast.lane.b32.xlu0 %v9231, 256
        %v9234 = vpop.permute.xlu0 %9233
        %v9235 = vlaneseq
        %v9236 = vshrl.u32 %v9235, 7
        %v9237 = vsub.s32 3, %v9236
        %v9238 = vrot.slane %v8192, %v9237
        %9240 = vbcast.lane.b32.xlu0 %v9238, 256
        %v9241 = vpop.permute.xlu0 %9240
        %v9242 = vlaneseq
        %v9243 = vshrl.u32 %v9242, 7
        %v9244 = vsub.s32 4, %v9243
        %v9245 = vrot.slane %v8192, %v9244
        %9247 = vbcast.lane.b32.xlu0 %v9245, 256
        %v9248 = vpop.permute.xlu0 %9247
        %v9249 = vlaneseq
        %v9250 = vshrl.u32 %v9249, 7
        %v9251 = vsub.s32 5, %v9250
        %v9252 = vrot.slane %v8192, %v9251
        %9254 = vbcast.lane.b32.xlu0 %v9252, 256
        %v9255 = vpop.permute.xlu0 %9254
        %v9256 = vlaneseq
        %v9257 = vshrl.u32 %v9256, 7
        %v9258 = vsub.s32 6, %v9257
        %v9259 = vrot.slane %v8192, %v9258
        %9261 = vbcast.lane.b32.xlu0 %v9259, 256
        %v9262 = vpop.permute.xlu0 %9261
        %v9263 = vlaneseq
        %v9264 = vshrl.u32 %v9263, 7
        %v9265 = vsub.s32 7, %v9264
        %v9266 = vrot.slane %v8192, %v9265
        %9268 = vbcast.lane.b32.xlu0 %v9266, 256
        %v9269 = vpop.permute.xlu0 %9268
        %v9270 = vlaneseq
        %v9271 = vshrl.u32 %v9270, 7
        %v9272 = vsub.s32 0, %v9271
        %v9273 = vrot.slane %v8193, %v9272
        %9275 = vbcast.lane.b32.xlu0 %v9273, 256
        %v9276 = vpop.permute.xlu0 %9275
        %v9277 = vlaneseq
        %v9278 = vshrl.u32 %v9277, 7
        %v9279 = vsub.s32 1, %v9278
        %v9280 = vrot.slane %v8193, %v9279
        %9282 = vbcast.lane.b32.xlu0 %v9280, 256
        %v9283 = vpop.permute.xlu0 %9282
        %v9284 = vlaneseq
        %v9285 = vshrl.u32 %v9284, 7
        %v9286 = vsub.s32 2, %v9285
        %v9287 = vrot.slane %v8193, %v9286
        %9289 = vbcast.lane.b32.xlu0 %v9287, 256
        %v9290 = vpop.permute.xlu0 %9289
        %v9291 = vlaneseq
        %v9292 = vshrl.u32 %v9291, 7
        %v9293 = vsub.s32 3, %v9292
        %v9294 = vrot.slane %v8193, %v9293
        %9296 = vbcast.lane.b32.xlu0 %v9294, 256
        %v9297 = vpop.permute.xlu0 %9296
        %v9298 = vlaneseq
        %v9299 = vshrl.u32 %v9298, 7
        %v9300 = vsub.s32 4, %v9299
        %v9301 = vrot.slane %v8193, %v9300
        %9303 = vbcast.lane.b32.xlu0 %v9301, 256
        %v9304 = vpop.permute.xlu0 %9303
        %v9305 = vlaneseq
        %v9306 = vshrl.u32 %v9305, 7
        %v9307 = vsub.s32 5, %v9306
        %v9308 = vrot.slane %v8193, %v9307
        %9310 = vbcast.lane.b32.xlu0 %v9308, 256
        %v9311 = vpop.permute.xlu0 %9310
        %v9312 = vlaneseq
        %v9313 = vshrl.u32 %v9312, 7
        %v9314 = vsub.s32 6, %v9313
        %v9315 = vrot.slane %v8193, %v9314
        %9317 = vbcast.lane.b32.xlu0 %v9315, 256
        %v9318 = vpop.permute.xlu0 %9317
        %v9319 = vlaneseq
        %v9320 = vshrl.u32 %v9319, 7
        %v9321 = vsub.s32 7, %v9320
        %v9322 = vrot.slane %v8193, %v9321
        %9324 = vbcast.lane.b32.xlu0 %v9322, 256
        %v9325 = vpop.permute.xlu0 %9324
        %v9326 = vlaneseq
        %v9327 = vshrl.u32 %v9326, 7
        %v9328 = vsub.s32 0, %v9327
        %v9329 = vrot.slane %v8194, %v9328
        %9331 = vbcast.lane.b32.xlu0 %v9329, 256
        %v9332 = vpop.permute.xlu0 %9331
        %v9333 = vlaneseq
        %v9334 = vshrl.u32 %v9333, 7
        %v9335 = vsub.s32 1, %v9334
        %v9336 = vrot.slane %v8194, %v9335
        %9338 = vbcast.lane.b32.xlu0 %v9336, 256
        %v9339 = vpop.permute.xlu0 %9338
        %v9340 = vlaneseq
        %v9341 = vshrl.u32 %v9340, 7
        %v9342 = vsub.s32 2, %v9341
        %v9343 = vrot.slane %v8194, %v9342
        %9345 = vbcast.lane.b32.xlu0 %v9343, 256
        %v9346 = vpop.permute.xlu0 %9345
        %v9347 = vlaneseq
        %v9348 = vshrl.u32 %v9347, 7
        %v9349 = vsub.s32 3, %v9348
        %v9350 = vrot.slane %v8194, %v9349
        %9352 = vbcast.lane.b32.xlu0 %v9350, 256
        %v9353 = vpop.permute.xlu0 %9352
        %v9354 = vlaneseq
        %v9355 = vshrl.u32 %v9354, 7
        %v9356 = vsub.s32 4, %v9355
        %v9357 = vrot.slane %v8194, %v9356
        %9359 = vbcast.lane.b32.xlu0 %v9357, 256
        %v9360 = vpop.permute.xlu0 %9359
        %v9361 = vlaneseq
        %v9362 = vshrl.u32 %v9361, 7
        %v9363 = vsub.s32 5, %v9362
        %v9364 = vrot.slane %v8194, %v9363
        %9366 = vbcast.lane.b32.xlu0 %v9364, 256
        %v9367 = vpop.permute.xlu0 %9366
        %v9368 = vlaneseq
        %v9369 = vshrl.u32 %v9368, 7
        %v9370 = vsub.s32 6, %v9369
        %v9371 = vrot.slane %v8194, %v9370
        %9373 = vbcast.lane.b32.xlu0 %v9371, 256
        %v9374 = vpop.permute.xlu0 %9373
        %v9375 = vlaneseq
        %v9376 = vshrl.u32 %v9375, 7
        %v9377 = vsub.s32 7, %v9376
        %v9378 = vrot.slane %v8194, %v9377
        %9380 = vbcast.lane.b32.xlu0 %v9378, 256
        %v9381 = vpop.permute.xlu0 %9380
        %v9382 = vlaneseq
        %v9383 = vshrl.u32 %v9382, 7
        %v9384 = vsub.s32 0, %v9383
        %v9385 = vrot.slane %v8195, %v9384
        %9387 = vbcast.lane.b32.xlu0 %v9385, 256
        %v9388 = vpop.permute.xlu0 %9387
        %v9389 = vlaneseq
        %v9390 = vshrl.u32 %v9389, 7
        %v9391 = vsub.s32 1, %v9390
        %v9392 = vrot.slane %v8195, %v9391
        %9394 = vbcast.lane.b32.xlu0 %v9392, 256
        %v9395 = vpop.permute.xlu0 %9394
        %v9396 = vlaneseq
        %v9397 = vshrl.u32 %v9396, 7
        %v9398 = vsub.s32 2, %v9397
        %v9399 = vrot.slane %v8195, %v9398
        %9401 = vbcast.lane.b32.xlu0 %v9399, 256
        %v9402 = vpop.permute.xlu0 %9401
        %v9403 = vlaneseq
        %v9404 = vshrl.u32 %v9403, 7
        %v9405 = vsub.s32 3, %v9404
        %v9406 = vrot.slane %v8195, %v9405
        %9408 = vbcast.lane.b32.xlu0 %v9406, 256
        %v9409 = vpop.permute.xlu0 %9408
        %v9410 = vlaneseq
        %v9411 = vshrl.u32 %v9410, 7
        %v9412 = vsub.s32 4, %v9411
        %v9413 = vrot.slane %v8195, %v9412
        %9415 = vbcast.lane.b32.xlu0 %v9413, 256
        %v9416 = vpop.permute.xlu0 %9415
        %v9417 = vlaneseq
        %v9418 = vshrl.u32 %v9417, 7
        %v9419 = vsub.s32 5, %v9418
        %v9420 = vrot.slane %v8195, %v9419
        %9422 = vbcast.lane.b32.xlu0 %v9420, 256
        %v9423 = vpop.permute.xlu0 %9422
        %v9424 = vlaneseq
        %v9425 = vshrl.u32 %v9424, 7
        %v9426 = vsub.s32 6, %v9425
        %v9427 = vrot.slane %v8195, %v9426
        %9429 = vbcast.lane.b32.xlu0 %v9427, 256
        %v9430 = vpop.permute.xlu0 %9429
        %v9431 = vlaneseq
        %v9432 = vshrl.u32 %v9431, 7
        %v9433 = vsub.s32 7, %v9432
        %v9434 = vrot.slane %v8195, %v9433
        %9436 = vbcast.lane.b32.xlu0 %v9434, 256
        %v9437 = vpop.permute.xlu0 %9436
        %v9438 = vlaneseq
        %v9439 = vshrl.u32 %v9438, 7
        %v9440 = vsub.s32 0, %v9439
        %v9441 = vrot.slane %v8196, %v9440
        %9443 = vbcast.lane.b32.xlu0 %v9441, 256
        %v9444 = vpop.permute.xlu0 %9443
        %v9445 = vlaneseq
        %v9446 = vshrl.u32 %v9445, 7
        %v9447 = vsub.s32 1, %v9446
        %v9448 = vrot.slane %v8196, %v9447
        %9450 = vbcast.lane.b32.xlu0 %v9448, 256
        %v9451 = vpop.permute.xlu0 %9450
        %v9452 = vlaneseq
        %v9453 = vshrl.u32 %v9452, 7
        %v9454 = vsub.s32 2, %v9453
        %v9455 = vrot.slane %v8196, %v9454
        %9457 = vbcast.lane.b32.xlu0 %v9455, 256
        %v9458 = vpop.permute.xlu0 %9457
        %v9459 = vlaneseq
        %v9460 = vshrl.u32 %v9459, 7
        %v9461 = vsub.s32 3, %v9460
        %v9462 = vrot.slane %v8196, %v9461
        %9464 = vbcast.lane.b32.xlu0 %v9462, 256
        %v9465 = vpop.permute.xlu0 %9464
        %v9466 = vlaneseq
        %v9467 = vshrl.u32 %v9466, 7
        %v9468 = vsub.s32 4, %v9467
        %v9469 = vrot.slane %v8196, %v9468
        %9471 = vbcast.lane.b32.xlu0 %v9469, 256
        %v9472 = vpop.permute.xlu0 %9471
        %v9473 = vlaneseq
        %v9474 = vshrl.u32 %v9473, 7
        %v9475 = vsub.s32 5, %v9474
        %v9476 = vrot.slane %v8196, %v9475
        %9478 = vbcast.lane.b32.xlu0 %v9476, 256
        %v9479 = vpop.permute.xlu0 %9478
        %v9480 = vlaneseq
        %v9481 = vshrl.u32 %v9480, 7
        %v9482 = vsub.s32 6, %v9481
        %v9483 = vrot.slane %v8196, %v9482
        %9485 = vbcast.lane.b32.xlu0 %v9483, 256
        %v9486 = vpop.permute.xlu0 %9485
        %v9487 = vlaneseq
        %v9488 = vshrl.u32 %v9487, 7
        %v9489 = vsub.s32 7, %v9488
        %v9490 = vrot.slane %v8196, %v9489
        %9492 = vbcast.lane.b32.xlu0 %v9490, 256
        %v9493 = vpop.permute.xlu0 %9492
        %v9494 = vlaneseq
        %v9495 = vshrl.u32 %v9494, 7
        %v9496 = vsub.s32 0, %v9495
        %v9497 = vrot.slane %v8197, %v9496
        %9499 = vbcast.lane.b32.xlu0 %v9497, 256
        %v9500 = vpop.permute.xlu0 %9499
        %v9501 = vlaneseq
        %v9502 = vshrl.u32 %v9501, 7
        %v9503 = vsub.s32 1, %v9502
        %v9504 = vrot.slane %v8197, %v9503
        %9506 = vbcast.lane.b32.xlu0 %v9504, 256
        %v9507 = vpop.permute.xlu0 %9506
        %v9508 = vlaneseq
        %v9509 = vshrl.u32 %v9508, 7
        %v9510 = vsub.s32 2, %v9509
        %v9511 = vrot.slane %v8197, %v9510
        %9513 = vbcast.lane.b32.xlu0 %v9511, 256
        %v9514 = vpop.permute.xlu0 %9513
        %v9515 = vlaneseq
        %v9516 = vshrl.u32 %v9515, 7
        %v9517 = vsub.s32 3, %v9516
        %v9518 = vrot.slane %v8197, %v9517
        %9520 = vbcast.lane.b32.xlu0 %v9518, 256
        %v9521 = vpop.permute.xlu0 %9520
        %v9522 = vlaneseq
        %v9523 = vshrl.u32 %v9522, 7
        %v9524 = vsub.s32 4, %v9523
        %v9525 = vrot.slane %v8197, %v9524
        %9527 = vbcast.lane.b32.xlu0 %v9525, 256
        %v9528 = vpop.permute.xlu0 %9527
        %v9529 = vlaneseq
        %v9530 = vshrl.u32 %v9529, 7
        %v9531 = vsub.s32 5, %v9530
        %v9532 = vrot.slane %v8197, %v9531
        %9534 = vbcast.lane.b32.xlu0 %v9532, 256
        %v9535 = vpop.permute.xlu0 %9534
        %v9536 = vlaneseq
        %v9537 = vshrl.u32 %v9536, 7
        %v9538 = vsub.s32 6, %v9537
        %v9539 = vrot.slane %v8197, %v9538
        %9541 = vbcast.lane.b32.xlu0 %v9539, 256
        %v9542 = vpop.permute.xlu0 %9541
        %v9543 = vlaneseq
        %v9544 = vshrl.u32 %v9543, 7
        %v9545 = vsub.s32 7, %v9544
        %v9546 = vrot.slane %v8197, %v9545
        %9548 = vbcast.lane.b32.xlu0 %v9546, 256
        %v9549 = vpop.permute.xlu0 %9548
        %v9550 = vlaneseq
        %v9551 = vshrl.u32 %v9550, 7
        %v9552 = vsub.s32 0, %v9551
        %v9553 = vrot.slane %v8198, %v9552
        %9555 = vbcast.lane.b32.xlu0 %v9553, 256
        %v9556 = vpop.permute.xlu0 %9555
        %v9557 = vlaneseq
        %v9558 = vshrl.u32 %v9557, 7
        %v9559 = vsub.s32 1, %v9558
        %v9560 = vrot.slane %v8198, %v9559
        %9562 = vbcast.lane.b32.xlu0 %v9560, 256
        %v9563 = vpop.permute.xlu0 %9562
        %v9564 = vlaneseq
        %v9565 = vshrl.u32 %v9564, 7
        %v9566 = vsub.s32 2, %v9565
        %v9567 = vrot.slane %v8198, %v9566
        %9569 = vbcast.lane.b32.xlu0 %v9567, 256
        %v9570 = vpop.permute.xlu0 %9569
        %v9571 = vlaneseq
        %v9572 = vshrl.u32 %v9571, 7
        %v9573 = vsub.s32 3, %v9572
        %v9574 = vrot.slane %v8198, %v9573
        %9576 = vbcast.lane.b32.xlu0 %v9574, 256
        %v9577 = vpop.permute.xlu0 %9576
        %v9578 = vlaneseq
        %v9579 = vshrl.u32 %v9578, 7
        %v9580 = vsub.s32 4, %v9579
        %v9581 = vrot.slane %v8198, %v9580
        %9583 = vbcast.lane.b32.xlu0 %v9581, 256
        %v9584 = vpop.permute.xlu0 %9583
        %v9585 = vlaneseq
        %v9586 = vshrl.u32 %v9585, 7
        %v9587 = vsub.s32 5, %v9586
        %v9588 = vrot.slane %v8198, %v9587
        %9590 = vbcast.lane.b32.xlu0 %v9588, 256
        %v9591 = vpop.permute.xlu0 %9590
        %v9592 = vlaneseq
        %v9593 = vshrl.u32 %v9592, 7
        %v9594 = vsub.s32 6, %v9593
        %v9595 = vrot.slane %v8198, %v9594
        %9597 = vbcast.lane.b32.xlu0 %v9595, 256
        %v9598 = vpop.permute.xlu0 %9597
        %v9599 = vlaneseq
        %v9600 = vshrl.u32 %v9599, 7
        %v9601 = vsub.s32 7, %v9600
        %v9602 = vrot.slane %v8198, %v9601
        %9604 = vbcast.lane.b32.xlu0 %v9602, 256
        %v9605 = vpop.permute.xlu0 %9604
        %v9606 = vlaneseq
        %v9607 = vshrl.u32 %v9606, 7
        %v9608 = vsub.s32 0, %v9607
        %v9609 = vrot.slane %v8199, %v9608
        %9611 = vbcast.lane.b32.xlu0 %v9609, 256
        %v9612 = vpop.permute.xlu0 %9611
        %v9613 = vlaneseq
        %v9614 = vshrl.u32 %v9613, 7
        %v9615 = vsub.s32 1, %v9614
        %v9616 = vrot.slane %v8199, %v9615
        %9618 = vbcast.lane.b32.xlu0 %v9616, 256
        %v9619 = vpop.permute.xlu0 %9618
        %v9620 = vlaneseq
        %v9621 = vshrl.u32 %v9620, 7
        %v9622 = vsub.s32 2, %v9621
        %v9623 = vrot.slane %v8199, %v9622
        %9625 = vbcast.lane.b32.xlu0 %v9623, 256
        %v9626 = vpop.permute.xlu0 %9625
        %v9627 = vlaneseq
        %v9628 = vshrl.u32 %v9627, 7
        %v9629 = vsub.s32 3, %v9628
        %v9630 = vrot.slane %v8199, %v9629
        %9632 = vbcast.lane.b32.xlu0 %v9630, 256
        %v9633 = vpop.permute.xlu0 %9632
        %v9634 = vlaneseq
        %v9635 = vshrl.u32 %v9634, 7
        %v9636 = vsub.s32 4, %v9635
        %v9637 = vrot.slane %v8199, %v9636
        %9639 = vbcast.lane.b32.xlu0 %v9637, 256
        %v9640 = vpop.permute.xlu0 %9639
        %v9641 = vlaneseq
        %v9642 = vshrl.u32 %v9641, 7
        %v9643 = vsub.s32 5, %v9642
        %v9644 = vrot.slane %v8199, %v9643
        %9646 = vbcast.lane.b32.xlu0 %v9644, 256
        %v9647 = vpop.permute.xlu0 %9646
        %v9648 = vlaneseq
        %v9649 = vshrl.u32 %v9648, 7
        %v9650 = vsub.s32 6, %v9649
        %v9651 = vrot.slane %v8199, %v9650
        %9653 = vbcast.lane.b32.xlu0 %v9651, 256
        %v9654 = vpop.permute.xlu0 %9653
        %v9655 = vlaneseq
        %v9656 = vshrl.u32 %v9655, 7
        %v9657 = vsub.s32 7, %v9656
        %v9658 = vrot.slane %v8199, %v9657
        %9660 = vbcast.lane.b32.xlu0 %v9658, 256
        %v9661 = vpop.permute.xlu0 %9660
        %v9662 = vlaneseq
        %v9663 = vshrl.u32 %v9662, 7
        %v9664 = vsub.s32 0, %v9663
        %v9665 = vrot.slane %v8200, %v9664
        %9667 = vbcast.lane.b32.xlu0 %v9665, 256
        %v9668 = vpop.permute.xlu0 %9667
        %v9669 = vlaneseq
        %v9670 = vshrl.u32 %v9669, 7
        %v9671 = vsub.s32 1, %v9670
        %v9672 = vrot.slane %v8200, %v9671
        %9674 = vbcast.lane.b32.xlu0 %v9672, 256
        %v9675 = vpop.permute.xlu0 %9674
        %v9676 = vlaneseq
        %v9677 = vshrl.u32 %v9676, 7
        %v9678 = vsub.s32 2, %v9677
        %v9679 = vrot.slane %v8200, %v9678
        %9681 = vbcast.lane.b32.xlu0 %v9679, 256
        %v9682 = vpop.permute.xlu0 %9681
        %v9683 = vlaneseq
        %v9684 = vshrl.u32 %v9683, 7
        %v9685 = vsub.s32 3, %v9684
        %v9686 = vrot.slane %v8200, %v9685
        %9688 = vbcast.lane.b32.xlu0 %v9686, 256
        %v9689 = vpop.permute.xlu0 %9688
        %v9690 = vlaneseq
        %v9691 = vshrl.u32 %v9690, 7
        %v9692 = vsub.s32 4, %v9691
        %v9693 = vrot.slane %v8200, %v9692
        %9695 = vbcast.lane.b32.xlu0 %v9693, 256
        %v9696 = vpop.permute.xlu0 %9695
        %v9697 = vlaneseq
        %v9698 = vshrl.u32 %v9697, 7
        %v9699 = vsub.s32 5, %v9698
        %v9700 = vrot.slane %v8200, %v9699
        %9702 = vbcast.lane.b32.xlu0 %v9700, 256
        %v9703 = vpop.permute.xlu0 %9702
        %v9704 = vlaneseq
        %v9705 = vshrl.u32 %v9704, 7
        %v9706 = vsub.s32 6, %v9705
        %v9707 = vrot.slane %v8200, %v9706
        %9709 = vbcast.lane.b32.xlu0 %v9707, 256
        %v9710 = vpop.permute.xlu0 %9709
        %v9711 = vlaneseq
        %v9712 = vshrl.u32 %v9711, 7
        %v9713 = vsub.s32 7, %v9712
        %v9714 = vrot.slane %v8200, %v9713
        %9716 = vbcast.lane.b32.xlu0 %v9714, 256
        %v9717 = vpop.permute.xlu0 %9716
        %v9718 = vlaneseq
        %v9719 = vshrl.u32 %v9718, 7
        %v9720 = vsub.s32 0, %v9719
        %v9721 = vrot.slane %v8201, %v9720
        %9723 = vbcast.lane.b32.xlu0 %v9721, 256
        %v9724 = vpop.permute.xlu0 %9723
        %v9725 = vlaneseq
        %v9726 = vshrl.u32 %v9725, 7
        %v9727 = vsub.s32 1, %v9726
        %v9728 = vrot.slane %v8201, %v9727
        %9730 = vbcast.lane.b32.xlu0 %v9728, 256
        %v9731 = vpop.permute.xlu0 %9730
        %v9732 = vlaneseq
        %v9733 = vshrl.u32 %v9732, 7
        %v9734 = vsub.s32 2, %v9733
        %v9735 = vrot.slane %v8201, %v9734
        %9737 = vbcast.lane.b32.xlu0 %v9735, 256
        %v9738 = vpop.permute.xlu0 %9737
        %v9739 = vlaneseq
        %v9740 = vshrl.u32 %v9739, 7
        %v9741 = vsub.s32 3, %v9740
        %v9742 = vrot.slane %v8201, %v9741
        %9744 = vbcast.lane.b32.xlu0 %v9742, 256
        %v9745 = vpop.permute.xlu0 %9744
        %v9746 = vlaneseq
        %v9747 = vshrl.u32 %v9746, 7
        %v9748 = vsub.s32 4, %v9747
        %v9749 = vrot.slane %v8201, %v9748
        %9751 = vbcast.lane.b32.xlu0 %v9749, 256
        %v9752 = vpop.permute.xlu0 %9751
        %v9753 = vlaneseq
        %v9754 = vshrl.u32 %v9753, 7
        %v9755 = vsub.s32 5, %v9754
        %v9756 = vrot.slane %v8201, %v9755
        %9758 = vbcast.lane.b32.xlu0 %v9756, 256
        %v9759 = vpop.permute.xlu0 %9758
        %v9760 = vlaneseq
        %v9761 = vshrl.u32 %v9760, 7
        %v9762 = vsub.s32 6, %v9761
        %v9763 = vrot.slane %v8201, %v9762
        %9765 = vbcast.lane.b32.xlu0 %v9763, 256
        %v9766 = vpop.permute.xlu0 %9765
        %v9767 = vlaneseq
        %v9768 = vshrl.u32 %v9767, 7
        %v9769 = vsub.s32 7, %v9768
        %v9770 = vrot.slane %v8201, %v9769
        %9772 = vbcast.lane.b32.xlu0 %v9770, 256
        %v9773 = vpop.permute.xlu0 %9772
        %v9774 = vlaneseq
        %v9775 = vshrl.u32 %v9774, 7
        %v9776 = vsub.s32 0, %v9775
        %v9777 = vrot.slane %v8202, %v9776
        %9779 = vbcast.lane.b32.xlu0 %v9777, 256
        %v9780 = vpop.permute.xlu0 %9779
        %v9781 = vlaneseq
        %v9782 = vshrl.u32 %v9781, 7
        %v9783 = vsub.s32 1, %v9782
        %v9784 = vrot.slane %v8202, %v9783
        %9786 = vbcast.lane.b32.xlu0 %v9784, 256
        %v9787 = vpop.permute.xlu0 %9786
        %v9788 = vlaneseq
        %v9789 = vshrl.u32 %v9788, 7
        %v9790 = vsub.s32 2, %v9789
        %v9791 = vrot.slane %v8202, %v9790
        %9793 = vbcast.lane.b32.xlu0 %v9791, 256
        %v9794 = vpop.permute.xlu0 %9793
        %v9795 = vlaneseq
        %v9796 = vshrl.u32 %v9795, 7
        %v9797 = vsub.s32 3, %v9796
        %v9798 = vrot.slane %v8202, %v9797
        %9800 = vbcast.lane.b32.xlu0 %v9798, 256
        %v9801 = vpop.permute.xlu0 %9800
        %v9802 = vlaneseq
        %v9803 = vshrl.u32 %v9802, 7
        %v9804 = vsub.s32 4, %v9803
        %v9805 = vrot.slane %v8202, %v9804
        %9807 = vbcast.lane.b32.xlu0 %v9805, 256
        %v9808 = vpop.permute.xlu0 %9807
        %v9809 = vlaneseq
        %v9810 = vshrl.u32 %v9809, 7
        %v9811 = vsub.s32 5, %v9810
        %v9812 = vrot.slane %v8202, %v9811
        %9814 = vbcast.lane.b32.xlu0 %v9812, 256
        %v9815 = vpop.permute.xlu0 %9814
        %v9816 = vlaneseq
        %v9817 = vshrl.u32 %v9816, 7
        %v9818 = vsub.s32 6, %v9817
        %v9819 = vrot.slane %v8202, %v9818
        %9821 = vbcast.lane.b32.xlu0 %v9819, 256
        %v9822 = vpop.permute.xlu0 %9821
        %v9823 = vlaneseq
        %v9824 = vshrl.u32 %v9823, 7
        %v9825 = vsub.s32 7, %v9824
        %v9826 = vrot.slane %v8202, %v9825
        %9828 = vbcast.lane.b32.xlu0 %v9826, 256
        %v9829 = vpop.permute.xlu0 %9828
        %v9830 = vlaneseq
        %v9831 = vshrl.u32 %v9830, 7
        %v9832 = vsub.s32 0, %v9831
        %v9833 = vrot.slane %v8203, %v9832
        %9835 = vbcast.lane.b32.xlu0 %v9833, 256
        %v9836 = vpop.permute.xlu0 %9835
        %v9837 = vlaneseq
        %v9838 = vshrl.u32 %v9837, 7
        %v9839 = vsub.s32 1, %v9838
        %v9840 = vrot.slane %v8203, %v9839
        %9842 = vbcast.lane.b32.xlu0 %v9840, 256
        %v9843 = vpop.permute.xlu0 %9842
        %v9844 = vlaneseq
        %v9845 = vshrl.u32 %v9844, 7
        %v9846 = vsub.s32 2, %v9845
        %v9847 = vrot.slane %v8203, %v9846
        %9849 = vbcast.lane.b32.xlu0 %v9847, 256
        %v9850 = vpop.permute.xlu0 %9849
        %v9851 = vlaneseq
        %v9852 = vshrl.u32 %v9851, 7
        %v9853 = vsub.s32 3, %v9852
        %v9854 = vrot.slane %v8203, %v9853
        %9856 = vbcast.lane.b32.xlu0 %v9854, 256
        %v9857 = vpop.permute.xlu0 %9856
        %v9858 = vlaneseq
        %v9859 = vshrl.u32 %v9858, 7
        %v9860 = vsub.s32 4, %v9859
        %v9861 = vrot.slane %v8203, %v9860
        %9863 = vbcast.lane.b32.xlu0 %v9861, 256
        %v9864 = vpop.permute.xlu0 %9863
        %v9865 = vlaneseq
        %v9866 = vshrl.u32 %v9865, 7
        %v9867 = vsub.s32 5, %v9866
        %v9868 = vrot.slane %v8203, %v9867
        %9870 = vbcast.lane.b32.xlu0 %v9868, 256
        %v9871 = vpop.permute.xlu0 %9870
        %v9872 = vlaneseq
        %v9873 = vshrl.u32 %v9872, 7
        %v9874 = vsub.s32 6, %v9873
        %v9875 = vrot.slane %v8203, %v9874
        %9877 = vbcast.lane.b32.xlu0 %v9875, 256
        %v9878 = vpop.permute.xlu0 %9877
        %v9879 = vlaneseq
        %v9880 = vshrl.u32 %v9879, 7
        %v9881 = vsub.s32 7, %v9880
        %v9882 = vrot.slane %v8203, %v9881
        %9884 = vbcast.lane.b32.xlu0 %v9882, 256
        %v9885 = vpop.permute.xlu0 %9884
        %v9886 = vlaneseq
        %v9887 = vshrl.u32 %v9886, 7
        %v9888 = vsub.s32 0, %v9887
        %v9889 = vrot.slane %v8204, %v9888
        %9891 = vbcast.lane.b32.xlu0 %v9889, 256
        %v9892 = vpop.permute.xlu0 %9891
        %v9893 = vlaneseq
        %v9894 = vshrl.u32 %v9893, 7
        %v9895 = vsub.s32 1, %v9894
        %v9896 = vrot.slane %v8204, %v9895
        %9898 = vbcast.lane.b32.xlu0 %v9896, 256
        %v9899 = vpop.permute.xlu0 %9898
        %v9900 = vlaneseq
        %v9901 = vshrl.u32 %v9900, 7
        %v9902 = vsub.s32 2, %v9901
        %v9903 = vrot.slane %v8204, %v9902
        %9905 = vbcast.lane.b32.xlu0 %v9903, 256
        %v9906 = vpop.permute.xlu0 %9905
        %v9907 = vlaneseq
        %v9908 = vshrl.u32 %v9907, 7
        %v9909 = vsub.s32 3, %v9908
        %v9910 = vrot.slane %v8204, %v9909
        %9912 = vbcast.lane.b32.xlu0 %v9910, 256
        %v9913 = vpop.permute.xlu0 %9912
        %v9914 = vlaneseq
        %v9915 = vshrl.u32 %v9914, 7
        %v9916 = vsub.s32 4, %v9915
        %v9917 = vrot.slane %v8204, %v9916
        %9919 = vbcast.lane.b32.xlu0 %v9917, 256
        %v9920 = vpop.permute.xlu0 %9919
        %v9921 = vlaneseq
        %v9922 = vshrl.u32 %v9921, 7
        %v9923 = vsub.s32 5, %v9922
        %v9924 = vrot.slane %v8204, %v9923
        %9926 = vbcast.lane.b32.xlu0 %v9924, 256
        %v9927 = vpop.permute.xlu0 %9926
        %v9928 = vlaneseq
        %v9929 = vshrl.u32 %v9928, 7
        %v9930 = vsub.s32 6, %v9929
        %v9931 = vrot.slane %v8204, %v9930
        %9933 = vbcast.lane.b32.xlu0 %v9931, 256
        %v9934 = vpop.permute.xlu0 %9933
        %v9935 = vlaneseq
        %v9936 = vshrl.u32 %v9935, 7
        %v9937 = vsub.s32 7, %v9936
        %v9938 = vrot.slane %v8204, %v9937
        %9940 = vbcast.lane.b32.xlu0 %v9938, 256
        %v9941 = vpop.permute.xlu0 %9940
        %v9942 = vlaneseq
        %v9943 = vshrl.u32 %v9942, 7
        %v9944 = vsub.s32 0, %v9943
        %v9945 = vrot.slane %v8205, %v9944
        %9947 = vbcast.lane.b32.xlu0 %v9945, 256
        %v9948 = vpop.permute.xlu0 %9947
        %v9949 = vlaneseq
        %v9950 = vshrl.u32 %v9949, 7
        %v9951 = vsub.s32 1, %v9950
        %v9952 = vrot.slane %v8205, %v9951
        %9954 = vbcast.lane.b32.xlu0 %v9952, 256
        %v9955 = vpop.permute.xlu0 %9954
        %v9956 = vlaneseq
        %v9957 = vshrl.u32 %v9956, 7
        %v9958 = vsub.s32 2, %v9957
        %v9959 = vrot.slane %v8205, %v9958
        %9961 = vbcast.lane.b32.xlu0 %v9959, 256
        %v9962 = vpop.permute.xlu0 %9961
        %v9963 = vlaneseq
        %v9964 = vshrl.u32 %v9963, 7
        %v9965 = vsub.s32 3, %v9964
        %v9966 = vrot.slane %v8205, %v9965
        %9968 = vbcast.lane.b32.xlu0 %v9966, 256
        %v9969 = vpop.permute.xlu0 %9968
        %v9970 = vlaneseq
        %v9971 = vshrl.u32 %v9970, 7
        %v9972 = vsub.s32 4, %v9971
        %v9973 = vrot.slane %v8205, %v9972
        %9975 = vbcast.lane.b32.xlu0 %v9973, 256
        %v9976 = vpop.permute.xlu0 %9975
        %v9977 = vlaneseq
        %v9978 = vshrl.u32 %v9977, 7
        %v9979 = vsub.s32 5, %v9978
        %v9980 = vrot.slane %v8205, %v9979
        %9982 = vbcast.lane.b32.xlu0 %v9980, 256
        %v9983 = vpop.permute.xlu0 %9982
        %v9984 = vlaneseq
        %v9985 = vshrl.u32 %v9984, 7
        %v9986 = vsub.s32 6, %v9985
        %v9987 = vrot.slane %v8205, %v9986
        %9989 = vbcast.lane.b32.xlu0 %v9987, 256
        %v9990 = vpop.permute.xlu0 %9989
        %v9991 = vlaneseq
        %v9992 = vshrl.u32 %v9991, 7
        %v9993 = vsub.s32 7, %v9992
        %v9994 = vrot.slane %v8205, %v9993
        %9996 = vbcast.lane.b32.xlu0 %v9994, 256
        %v9997 = vpop.permute.xlu0 %9996
        %v9998 = vld [vmem:[%s2449] sm:$0xff]
        %v9999 = vld [vmem:[%s2449 + $0x8] sm:$0xff]
        %v10000 = vld [vmem:[%s2449 + $0x10] sm:$0xff]
        %v10001 = vld [vmem:[%s2449 + $0x18] sm:$0xff]
        %v10002 = vld [vmem:[%s2449 + $0x20] sm:$0xff]
        %v10003 = vld [vmem:[%s2449 + $0x28] sm:$0xff]
        %v10004 = vld [vmem:[%s2449 + $0x30] sm:$0xff]
        %v10005 = vld [vmem:[%s2449 + $0x38] sm:$0xff]
        %v10006 = vld [vmem:[%s2449 + $0x40] sm:$0xff]
        %v10007 = vld [vmem:[%s2449 + $0x48] sm:$0xff]
        %v10008 = vld [vmem:[%s2449 + $0x50] sm:$0xff]
        %v10009 = vld [vmem:[%s2449 + $0x58] sm:$0xff]
        %v10010 = vld [vmem:[%s2449 + $0x60] sm:$0xff]
        %v10011 = vld [vmem:[%s2449 + $0x68] sm:$0xff]
        %v10012 = vld [vmem:[%s2449 + $0x70] sm:$0xff]
        %v10013 = vld [vmem:[%s2449 + $0x78] sm:$0xff]
        %v10014 = vld [vmem:[%s2449 + $0x80] sm:$0xff]
        %v10015 = vld [vmem:[%s2449 + $0x88] sm:$0xff]
        %v10016 = vld [vmem:[%s2449 + $0x90] sm:$0xff]
        %v10017 = vld [vmem:[%s2449 + $0x98] sm:$0xff]
        %v10018 = vld [vmem:[%s2449 + $0xa0] sm:$0xff]
        %v10019 = vld [vmem:[%s2449 + $0xa8] sm:$0xff]
        %v10020 = vld [vmem:[%s2449 + $0xb0] sm:$0xff]
        %v10021 = vld [vmem:[%s2449 + $0xb8] sm:$0xff]
        %v10022 = vld [vmem:[%s2449 + $0xc0] sm:$0xff]
        %v10023 = vld [vmem:[%s2449 + $0xc8] sm:$0xff]
        %v10024 = vld [vmem:[%s2449 + $0xd0] sm:$0xff]
        %v10025 = vld [vmem:[%s2449 + $0xd8] sm:$0xff]
        %v10026 = vld [vmem:[%s2449 + $0xe0] sm:$0xff]
        %v10027 = vld [vmem:[%s2449 + $0xe8] sm:$0xff]
        %v10028 = vld [vmem:[%s2449 + $0xf0] sm:$0xff]
        %v10029 = vld [vmem:[%s2449 + $0xf8] sm:$0xff]
        %v10030 = vld [vmem:[%s2449 + $0x100] sm:$0xff]
        %v10031 = vld [vmem:[%s2449 + $0x108] sm:$0xff]
        %v10032 = vld [vmem:[%s2449 + $0x110] sm:$0xff]
        %v10033 = vld [vmem:[%s2449 + $0x118] sm:$0xff]
        %v10034 = vld [vmem:[%s2449 + $0x120] sm:$0xff]
        %v10035 = vld [vmem:[%s2449 + $0x128] sm:$0xff]
        %v10036 = vld [vmem:[%s2449 + $0x130] sm:$0xff]
        %v10037 = vld [vmem:[%s2449 + $0x138] sm:$0xff]
        %v10038 = vld [vmem:[%s2449 + $0x140] sm:$0xff]
        %v10039 = vld [vmem:[%s2449 + $0x148] sm:$0xff]
        %v10040 = vld [vmem:[%s2449 + $0x150] sm:$0xff]
        %v10041 = vld [vmem:[%s2449 + $0x158] sm:$0xff]
        %v10042 = vld [vmem:[%s2449 + $0x160] sm:$0xff]
        %v10043 = vld [vmem:[%s2449 + $0x168] sm:$0xff]
        %v10044 = vld [vmem:[%s2449 + $0x170] sm:$0xff]
        %v10045 = vld [vmem:[%s2449 + $0x178] sm:$0xff]
        %v10046 = vld [vmem:[%s2449 + $0x180] sm:$0xff]
        %v10047 = vld [vmem:[%s2449 + $0x188] sm:$0xff]
        %v10048 = vld [vmem:[%s2449 + $0x190] sm:$0xff]
        %v10049 = vld [vmem:[%s2449 + $0x198] sm:$0xff]
        %v10050 = vld [vmem:[%s2449 + $0x1a0] sm:$0xff]
        %v10051 = vld [vmem:[%s2449 + $0x1a8] sm:$0xff]
        %v10052 = vld [vmem:[%s2449 + $0x1b0] sm:$0xff]
        %v10053 = vld [vmem:[%s2449 + $0x1b8] sm:$0xff]
        %v10054 = vld [vmem:[%s2449 + $0x1c0] sm:$0xff]
        %v10055 = vld [vmem:[%s2449 + $0x1c8] sm:$0xff]
        %v10056 = vld [vmem:[%s2449 + $0x1d0] sm:$0xff]
        %v10057 = vld [vmem:[%s2449 + $0x1d8] sm:$0xff]
        %v10058 = vld [vmem:[%s2449 + $0x1e0] sm:$0xff]
        %v10059 = vld [vmem:[%s2449 + $0x1e8] sm:$0xff]
        %v10060 = vld [vmem:[%s2449 + $0x1f0] sm:$0xff]
        %v10061 = vld [vmem:[%s2449 + $0x1f8] sm:$0xff]
        %v10062 = vld [vmem:[%s2449 + $0x200] sm:$0xff]
        %v10063 = vld [vmem:[%s2449 + $0x208] sm:$0xff]
        %v10064 = vld [vmem:[%s2449 + $0x210] sm:$0xff]
        %v10065 = vld [vmem:[%s2449 + $0x218] sm:$0xff]
        %v10066 = vld [vmem:[%s2449 + $0x220] sm:$0xff]
        %v10067 = vld [vmem:[%s2449 + $0x228] sm:$0xff]
        %v10068 = vld [vmem:[%s2449 + $0x230] sm:$0xff]
        %v10069 = vld [vmem:[%s2449 + $0x238] sm:$0xff]
        %v10070 = vld [vmem:[%s2449 + $0x240] sm:$0xff]
        %v10071 = vld [vmem:[%s2449 + $0x248] sm:$0xff]
        %v10072 = vld [vmem:[%s2449 + $0x250] sm:$0xff]
        %v10073 = vld [vmem:[%s2449 + $0x258] sm:$0xff]
        %v10074 = vld [vmem:[%s2449 + $0x260] sm:$0xff]
        %v10075 = vld [vmem:[%s2449 + $0x268] sm:$0xff]
        %v10076 = vld [vmem:[%s2449 + $0x270] sm:$0xff]
        %v10077 = vld [vmem:[%s2449 + $0x278] sm:$0xff]
        %v10078 = vld [vmem:[%s2449 + $0x280] sm:$0xff]
        %v10079 = vld [vmem:[%s2449 + $0x288] sm:$0xff]
        %v10080 = vld [vmem:[%s2449 + $0x290] sm:$0xff]
        %v10081 = vld [vmem:[%s2449 + $0x298] sm:$0xff]
        %v10082 = vld [vmem:[%s2449 + $0x2a0] sm:$0xff]
        %v10083 = vld [vmem:[%s2449 + $0x2a8] sm:$0xff]
        %v10084 = vld [vmem:[%s2449 + $0x2b0] sm:$0xff]
        %v10085 = vld [vmem:[%s2449 + $0x2b8] sm:$0xff]
        %v10086 = vld [vmem:[%s2449 + $0x2c0] sm:$0xff]
        %v10087 = vld [vmem:[%s2449 + $0x2c8] sm:$0xff]
        %v10088 = vld [vmem:[%s2449 + $0x2d0] sm:$0xff]
        %v10089 = vld [vmem:[%s2449 + $0x2d8] sm:$0xff]
        %v10090 = vld [vmem:[%s2449 + $0x2e0] sm:$0xff]
        %v10091 = vld [vmem:[%s2449 + $0x2e8] sm:$0xff]
        %v10092 = vld [vmem:[%s2449 + $0x2f0] sm:$0xff]
        %v10093 = vld [vmem:[%s2449 + $0x2f8] sm:$0xff]
        %v10094 = vld [vmem:[%s2449 + $0x300] sm:$0xff]
        %v10095 = vld [vmem:[%s2449 + $0x308] sm:$0xff]
        %v10096 = vld [vmem:[%s2449 + $0x310] sm:$0xff]
        %v10097 = vld [vmem:[%s2449 + $0x318] sm:$0xff]
        %v10098 = vld [vmem:[%s2449 + $0x320] sm:$0xff]
        %v10099 = vld [vmem:[%s2449 + $0x328] sm:$0xff]
        %v10100 = vld [vmem:[%s2449 + $0x330] sm:$0xff]
        %v10101 = vld [vmem:[%s2449 + $0x338] sm:$0xff]
        %v10102 = vld [vmem:[%s2449 + $0x340] sm:$0xff]
        %v10103 = vld [vmem:[%s2449 + $0x348] sm:$0xff]
        %v10104 = vld [vmem:[%s2449 + $0x350] sm:$0xff]
        %v10105 = vld [vmem:[%s2449 + $0x358] sm:$0xff]
        %v10106 = vld [vmem:[%s2449 + $0x360] sm:$0xff]
        %v10107 = vld [vmem:[%s2449 + $0x368] sm:$0xff]
        %v10108 = vld [vmem:[%s2449 + $0x370] sm:$0xff]
        %v10109 = vld [vmem:[%s2449 + $0x378] sm:$0xff]
        %v10110 = vld [vmem:[%s2449 + $0x380] sm:$0xff]
        %v10111 = vld [vmem:[%s2449 + $0x388] sm:$0xff]
        %v10112 = vld [vmem:[%s2449 + $0x390] sm:$0xff]
        %v10113 = vld [vmem:[%s2449 + $0x398] sm:$0xff]
        %v10114 = vld [vmem:[%s2449 + $0x3a0] sm:$0xff]
        %v10115 = vld [vmem:[%s2449 + $0x3a8] sm:$0xff]
        %v10116 = vld [vmem:[%s2449 + $0x3b0] sm:$0xff]
        %v10117 = vld [vmem:[%s2449 + $0x3b8] sm:$0xff]
        %v10118 = vld [vmem:[%s2449 + $0x3c0] sm:$0xff]
        %v10119 = vld [vmem:[%s2449 + $0x3c8] sm:$0xff]
        %v10120 = vld [vmem:[%s2449 + $0x3d0] sm:$0xff]
        %v10121 = vld [vmem:[%s2449 + $0x3d8] sm:$0xff]
        %v10122 = vld [vmem:[%s2449 + $0x3e0] sm:$0xff]
        %v10123 = vld [vmem:[%s2449 + $0x3e8] sm:$0xff]
        %v10124 = vld [vmem:[%s2449 + $0x3f0] sm:$0xff]
        %v10125 = vld [vmem:[%s2449 + $0x3f8] sm:$0xff]
        %v10126 = vld [vmem:[%s2449 + $0x400] sm:$0xff]
        %v10127 = vld [vmem:[%s2449 + $0x408] sm:$0xff]
        %v10128 = vld [vmem:[%s2449 + $0x410] sm:$0xff]
        %v10129 = vld [vmem:[%s2449 + $0x418] sm:$0xff]
        %v10130 = vld [vmem:[%s2449 + $0x420] sm:$0xff]
        %v10131 = vld [vmem:[%s2449 + $0x428] sm:$0xff]
        %v10132 = vld [vmem:[%s2449 + $0x430] sm:$0xff]
        %v10133 = vld [vmem:[%s2449 + $0x438] sm:$0xff]
        %v10134 = vld [vmem:[%s2449 + $0x440] sm:$0xff]
        %v10135 = vld [vmem:[%s2449 + $0x448] sm:$0xff]
        %v10136 = vld [vmem:[%s2449 + $0x450] sm:$0xff]
        %v10137 = vld [vmem:[%s2449 + $0x458] sm:$0xff]
        %v10138 = vld [vmem:[%s2449 + $0x460] sm:$0xff]
        %v10139 = vld [vmem:[%s2449 + $0x468] sm:$0xff]
        %v10140 = vld [vmem:[%s2449 + $0x470] sm:$0xff]
        %v10141 = vld [vmem:[%s2449 + $0x478] sm:$0xff]
        %v10142 = vld [vmem:[%s2449 + $0x480] sm:$0xff]
        %v10143 = vld [vmem:[%s2449 + $0x488] sm:$0xff]
        %v10144 = vld [vmem:[%s2449 + $0x490] sm:$0xff]
        %v10145 = vld [vmem:[%s2449 + $0x498] sm:$0xff]
        %v10146 = vld [vmem:[%s2449 + $0x4a0] sm:$0xff]
        %v10147 = vld [vmem:[%s2449 + $0x4a8] sm:$0xff]
        %v10148 = vld [vmem:[%s2449 + $0x4b0] sm:$0xff]
        %v10149 = vld [vmem:[%s2449 + $0x4b8] sm:$0xff]
        %v10150 = vld [vmem:[%s2449 + $0x4c0] sm:$0xff]
        %v10151 = vld [vmem:[%s2449 + $0x4c8] sm:$0xff]
        %v10152 = vld [vmem:[%s2449 + $0x4d0] sm:$0xff]
        %v10153 = vld [vmem:[%s2449 + $0x4d8] sm:$0xff]
        %v10154 = vld [vmem:[%s2449 + $0x4e0] sm:$0xff]
        %v10155 = vld [vmem:[%s2449 + $0x4e8] sm:$0xff]
        %v10156 = vld [vmem:[%s2449 + $0x4f0] sm:$0xff]
        %v10157 = vld [vmem:[%s2449 + $0x4f8] sm:$0xff]
        %v10158 = vld [vmem:[%s2449 + $0x500] sm:$0xff]
        %v10159 = vld [vmem:[%s2449 + $0x508] sm:$0xff]
        %v10160 = vld [vmem:[%s2449 + $0x510] sm:$0xff]
        %v10161 = vld [vmem:[%s2449 + $0x518] sm:$0xff]
        %v10162 = vld [vmem:[%s2449 + $0x520] sm:$0xff]
        %v10163 = vld [vmem:[%s2449 + $0x528] sm:$0xff]
        %v10164 = vld [vmem:[%s2449 + $0x530] sm:$0xff]
        %v10165 = vld [vmem:[%s2449 + $0x538] sm:$0xff]
        %v10166 = vld [vmem:[%s2449 + $0x540] sm:$0xff]
        %v10167 = vld [vmem:[%s2449 + $0x548] sm:$0xff]
        %v10168 = vld [vmem:[%s2449 + $0x550] sm:$0xff]
        %v10169 = vld [vmem:[%s2449 + $0x558] sm:$0xff]
        %v10170 = vld [vmem:[%s2449 + $0x560] sm:$0xff]
        %v10171 = vld [vmem:[%s2449 + $0x568] sm:$0xff]
        %v10172 = vld [vmem:[%s2449 + $0x570] sm:$0xff]
        %v10173 = vld [vmem:[%s2449 + $0x578] sm:$0xff]
        %v10174 = vld [vmem:[%s2449 + $0x580] sm:$0xff]
        %v10175 = vld [vmem:[%s2449 + $0x588] sm:$0xff]
        %v10176 = vld [vmem:[%s2449 + $0x590] sm:$0xff]
        %v10177 = vld [vmem:[%s2449 + $0x598] sm:$0xff]
        %v10178 = vld [vmem:[%s2449 + $0x5a0] sm:$0xff]
        %v10179 = vld [vmem:[%s2449 + $0x5a8] sm:$0xff]
        %v10180 = vld [vmem:[%s2449 + $0x5b0] sm:$0xff]
        %v10181 = vld [vmem:[%s2449 + $0x5b8] sm:$0xff]
        %v10182 = vld [vmem:[%s2449 + $0x5c0] sm:$0xff]
        %v10183 = vld [vmem:[%s2449 + $0x5c8] sm:$0xff]
        %v10184 = vld [vmem:[%s2449 + $0x5d0] sm:$0xff]
        %v10185 = vld [vmem:[%s2449 + $0x5d8] sm:$0xff]
        %v10186 = vld [vmem:[%s2449 + $0x5e0] sm:$0xff]
        %v10187 = vld [vmem:[%s2449 + $0x5e8] sm:$0xff]
        %v10188 = vld [vmem:[%s2449 + $0x5f0] sm:$0xff]
        %v10189 = vld [vmem:[%s2449 + $0x5f8] sm:$0xff]
        %v10190 = vld [vmem:[%s2449 + $0x600] sm:$0xff]
        %v10191 = vld [vmem:[%s2449 + $0x608] sm:$0xff]
        %v10192 = vld [vmem:[%s2449 + $0x610] sm:$0xff]
        %v10193 = vld [vmem:[%s2449 + $0x618] sm:$0xff]
        %v10194 = vld [vmem:[%s2449 + $0x620] sm:$0xff]
        %v10195 = vld [vmem:[%s2449 + $0x628] sm:$0xff]
        %v10196 = vld [vmem:[%s2449 + $0x630] sm:$0xff]
        %v10197 = vld [vmem:[%s2449 + $0x638] sm:$0xff]
        %v10198 = vld [vmem:[%s2449 + $0x640] sm:$0xff]
        %v10199 = vld [vmem:[%s2449 + $0x648] sm:$0xff]
        %v10200 = vld [vmem:[%s2449 + $0x650] sm:$0xff]
        %v10201 = vld [vmem:[%s2449 + $0x658] sm:$0xff]
        %v10202 = vld [vmem:[%s2449 + $0x660] sm:$0xff]
        %v10203 = vld [vmem:[%s2449 + $0x668] sm:$0xff]
        %v10204 = vld [vmem:[%s2449 + $0x670] sm:$0xff]
        %v10205 = vld [vmem:[%s2449 + $0x678] sm:$0xff]
        %v10206 = vld [vmem:[%s2449 + $0x680] sm:$0xff]
        %v10207 = vld [vmem:[%s2449 + $0x688] sm:$0xff]
        %v10208 = vld [vmem:[%s2449 + $0x690] sm:$0xff]
        %v10209 = vld [vmem:[%s2449 + $0x698] sm:$0xff]
        %v10210 = vld [vmem:[%s2449 + $0x6a0] sm:$0xff]
        %v10211 = vld [vmem:[%s2449 + $0x6a8] sm:$0xff]
        %v10212 = vld [vmem:[%s2449 + $0x6b0] sm:$0xff]
        %v10213 = vld [vmem:[%s2449 + $0x6b8] sm:$0xff]
        %v10214 = vld [vmem:[%s2449 + $0x6c0] sm:$0xff]
        %v10215 = vld [vmem:[%s2449 + $0x6c8] sm:$0xff]
        %v10216 = vld [vmem:[%s2449 + $0x6d0] sm:$0xff]
        %v10217 = vld [vmem:[%s2449 + $0x6d8] sm:$0xff]
        %v10218 = vld [vmem:[%s2449 + $0x6e0] sm:$0xff]
        %v10219 = vld [vmem:[%s2449 + $0x6e8] sm:$0xff]
        %v10220 = vld [vmem:[%s2449 + $0x6f0] sm:$0xff]
        %v10221 = vld [vmem:[%s2449 + $0x6f8] sm:$0xff]
        %v10222 = vld [vmem:[%s2449 + $0x700] sm:$0xff]
        %v10223 = vld [vmem:[%s2449 + $0x708] sm:$0xff]
        %v10224 = vld [vmem:[%s2449 + $0x710] sm:$0xff]
        %v10225 = vld [vmem:[%s2449 + $0x718] sm:$0xff]
        %v10226 = vld [vmem:[%s2449 + $0x720] sm:$0xff]
        %v10227 = vld [vmem:[%s2449 + $0x728] sm:$0xff]
        %v10228 = vld [vmem:[%s2449 + $0x730] sm:$0xff]
        %v10229 = vld [vmem:[%s2449 + $0x738] sm:$0xff]
        %v10230 = vld [vmem:[%s2449 + $0x740] sm:$0xff]
        %v10231 = vld [vmem:[%s2449 + $0x748] sm:$0xff]
        %v10232 = vld [vmem:[%s2449 + $0x750] sm:$0xff]
        %v10233 = vld [vmem:[%s2449 + $0x758] sm:$0xff]
        %v10234 = vld [vmem:[%s2449 + $0x760] sm:$0xff]
        %v10235 = vld [vmem:[%s2449 + $0x768] sm:$0xff]
        %v10236 = vld [vmem:[%s2449 + $0x770] sm:$0xff]
        %v10237 = vld [vmem:[%s2449 + $0x778] sm:$0xff]
        %v10238 = vld [vmem:[%s2449 + $0x780] sm:$0xff]
        %v10239 = vld [vmem:[%s2449 + $0x788] sm:$0xff]
        %v10240 = vld [vmem:[%s2449 + $0x790] sm:$0xff]
        %v10241 = vld [vmem:[%s2449 + $0x798] sm:$0xff]
        %v10242 = vld [vmem:[%s2449 + $0x7a0] sm:$0xff]
        %v10243 = vld [vmem:[%s2449 + $0x7a8] sm:$0xff]
        %v10244 = vld [vmem:[%s2449 + $0x7b0] sm:$0xff]
        %v10245 = vld [vmem:[%s2449 + $0x7b8] sm:$0xff]
        %v10246 = vld [vmem:[%s2449 + $0x7c0] sm:$0xff]
        %v10247 = vld [vmem:[%s2449 + $0x7c8] sm:$0xff]
        %v10248 = vld [vmem:[%s2449 + $0x7d0] sm:$0xff]
        %v10249 = vld [vmem:[%s2449 + $0x7d8] sm:$0xff]
        %v10250 = vld [vmem:[%s2449 + $0x7e0] sm:$0xff]
        %v10251 = vld [vmem:[%s2449 + $0x7e8] sm:$0xff]
        %v10252 = vld [vmem:[%s2449 + $0x7f0] sm:$0xff]
        %v10253 = vld [vmem:[%s2449 + $0x7f8] sm:$0xff]
        %v10254 = vmul.f32 %v8212, %v9998
        %v10255 = vmul.f32 %v8219, %v9999
        %v10256 = vmul.f32 %v8226, %v10000
        %v10257 = vmul.f32 %v8233, %v10001
        %v10258 = vmul.f32 %v8240, %v10002
        %v10259 = vmul.f32 %v8247, %v10003
        %v10260 = vmul.f32 %v8254, %v10004
        %v10261 = vmul.f32 %v8261, %v10005
        %v10262 = vmul.f32 %v8268, %v10006
        %v10263 = vmul.f32 %v8275, %v10007
        %v10264 = vmul.f32 %v8282, %v10008
        %v10265 = vmul.f32 %v8289, %v10009
        %v10266 = vmul.f32 %v8296, %v10010
        %v10267 = vmul.f32 %v8303, %v10011
        %v10268 = vmul.f32 %v8310, %v10012
        %v10269 = vmul.f32 %v8317, %v10013
        %v10270 = vmul.f32 %v8324, %v10014
        %v10271 = vmul.f32 %v8331, %v10015
        %v10272 = vmul.f32 %v8338, %v10016
        %v10273 = vmul.f32 %v8345, %v10017
        %v10274 = vmul.f32 %v8352, %v10018
        %v10275 = vmul.f32 %v8359, %v10019
        %v10276 = vmul.f32 %v8366, %v10020
        %v10277 = vmul.f32 %v8373, %v10021
        %v10278 = vmul.f32 %v8380, %v10022
        %v10279 = vmul.f32 %v8387, %v10023
        %v10280 = vmul.f32 %v8394, %v10024
        %v10281 = vmul.f32 %v8401, %v10025
        %v10282 = vmul.f32 %v8408, %v10026
        %v10283 = vmul.f32 %v8415, %v10027
        %v10284 = vmul.f32 %v8422, %v10028
        %v10285 = vmul.f32 %v8429, %v10029
        %v10286 = vmul.f32 %v8436, %v10030
        %v10287 = vmul.f32 %v8443, %v10031
        %v10288 = vmul.f32 %v8450, %v10032
        %v10289 = vmul.f32 %v8457, %v10033
        %v10290 = vmul.f32 %v8464, %v10034
        %v10291 = vmul.f32 %v8471, %v10035
        %v10292 = vmul.f32 %v8478, %v10036
        %v10293 = vmul.f32 %v8485, %v10037
        %v10294 = vmul.f32 %v8492, %v10038
        %v10295 = vmul.f32 %v8499, %v10039
        %v10296 = vmul.f32 %v8506, %v10040
        %v10297 = vmul.f32 %v8513, %v10041
        %v10298 = vmul.f32 %v8520, %v10042
        %v10299 = vmul.f32 %v8527, %v10043
        %v10300 = vmul.f32 %v8534, %v10044
        %v10301 = vmul.f32 %v8541, %v10045
        %v10302 = vmul.f32 %v8548, %v10046
        %v10303 = vmul.f32 %v8555, %v10047
        %v10304 = vmul.f32 %v8562, %v10048
        %v10305 = vmul.f32 %v8569, %v10049
        %v10306 = vmul.f32 %v8576, %v10050
        %v10307 = vmul.f32 %v8583, %v10051
        %v10308 = vmul.f32 %v8590, %v10052
        %v10309 = vmul.f32 %v8597, %v10053
        %v10310 = vmul.f32 %v8604, %v10054
        %v10311 = vmul.f32 %v8611, %v10055
        %v10312 = vmul.f32 %v8618, %v10056
        %v10313 = vmul.f32 %v8625, %v10057
        %v10314 = vmul.f32 %v8632, %v10058
        %v10315 = vmul.f32 %v8639, %v10059
        %v10316 = vmul.f32 %v8646, %v10060
        %v10317 = vmul.f32 %v8653, %v10061
        %v10318 = vmul.f32 %v8660, %v10062
        %v10319 = vmul.f32 %v8667, %v10063
        %v10320 = vmul.f32 %v8674, %v10064
        %v10321 = vmul.f32 %v8681, %v10065
        %v10322 = vmul.f32 %v8688, %v10066
        %v10323 = vmul.f32 %v8695, %v10067
        %v10324 = vmul.f32 %v8702, %v10068
        %v10325 = vmul.f32 %v8709, %v10069
        %v10326 = vmul.f32 %v8716, %v10070
        %v10327 = vmul.f32 %v8723, %v10071
        %v10328 = vmul.f32 %v8730, %v10072
        %v10329 = vmul.f32 %v8737, %v10073
        %v10330 = vmul.f32 %v8744, %v10074
        %v10331 = vmul.f32 %v8751, %v10075
        %v10332 = vmul.f32 %v8758, %v10076
        %v10333 = vmul.f32 %v8765, %v10077
        %v10334 = vmul.f32 %v8772, %v10078
        %v10335 = vmul.f32 %v8779, %v10079
        %v10336 = vmul.f32 %v8786, %v10080
        %v10337 = vmul.f32 %v8793, %v10081
        %v10338 = vmul.f32 %v8800, %v10082
        %v10339 = vmul.f32 %v8807, %v10083
        %v10340 = vmul.f32 %v8814, %v10084
        %v10341 = vmul.f32 %v8821, %v10085
        %v10342 = vmul.f32 %v8828, %v10086
        %v10343 = vmul.f32 %v8835, %v10087
        %v10344 = vmul.f32 %v8842, %v10088
        %v10345 = vmul.f32 %v8849, %v10089
        %v10346 = vmul.f32 %v8856, %v10090
        %v10347 = vmul.f32 %v8863, %v10091
        %v10348 = vmul.f32 %v8870, %v10092
        %v10349 = vmul.f32 %v8877, %v10093
        %v10350 = vmul.f32 %v8884, %v10094
        %v10351 = vmul.f32 %v8891, %v10095
        %v10352 = vmul.f32 %v8898, %v10096
        %v10353 = vmul.f32 %v8905, %v10097
        %v10354 = vmul.f32 %v8912, %v10098
        %v10355 = vmul.f32 %v8919, %v10099
        %v10356 = vmul.f32 %v8926, %v10100
        %v10357 = vmul.f32 %v8933, %v10101
        %v10358 = vmul.f32 %v8940, %v10102
        %v10359 = vmul.f32 %v8947, %v10103
        %v10360 = vmul.f32 %v8954, %v10104
        %v10361 = vmul.f32 %v8961, %v10105
        %v10362 = vmul.f32 %v8968, %v10106
        %v10363 = vmul.f32 %v8975, %v10107
        %v10364 = vmul.f32 %v8982, %v10108
        %v10365 = vmul.f32 %v8989, %v10109
        %v10366 = vmul.f32 %v8996, %v10110
        %v10367 = vmul.f32 %v9003, %v10111
        %v10368 = vmul.f32 %v9010, %v10112
        %v10369 = vmul.f32 %v9017, %v10113
        %v10370 = vmul.f32 %v9024, %v10114
        %v10371 = vmul.f32 %v9031, %v10115
        %v10372 = vmul.f32 %v9038, %v10116
        %v10373 = vmul.f32 %v9045, %v10117
        %v10374 = vmul.f32 %v9052, %v10118
        %v10375 = vmul.f32 %v9059, %v10119
        %v10376 = vmul.f32 %v9066, %v10120
        %v10377 = vmul.f32 %v9073, %v10121
        %v10378 = vmul.f32 %v9080, %v10122
        %v10379 = vmul.f32 %v9087, %v10123
        %v10380 = vmul.f32 %v9094, %v10124
        %v10381 = vmul.f32 %v9101, %v10125
        %v10382 = vmul.f32 %v9108, %v10126
        %v10383 = vmul.f32 %v9115, %v10127
        %v10384 = vmul.f32 %v9122, %v10128
        %v10385 = vmul.f32 %v9129, %v10129
        %v10386 = vmul.f32 %v9136, %v10130
        %v10387 = vmul.f32 %v9143, %v10131
        %v10388 = vmul.f32 %v9150, %v10132
        %v10389 = vmul.f32 %v9157, %v10133
        %v10390 = vmul.f32 %v9164, %v10134
        %v10391 = vmul.f32 %v9171, %v10135
        %v10392 = vmul.f32 %v9178, %v10136
        %v10393 = vmul.f32 %v9185, %v10137
        %v10394 = vmul.f32 %v9192, %v10138
        %v10395 = vmul.f32 %v9199, %v10139
        %v10396 = vmul.f32 %v9206, %v10140
        %v10397 = vmul.f32 %v9213, %v10141
        %v10398 = vmul.f32 %v9220, %v10142
        %v10399 = vmul.f32 %v9227, %v10143
        %v10400 = vmul.f32 %v9234, %v10144
        %v10401 = vmul.f32 %v9241, %v10145
        %v10402 = vmul.f32 %v9248, %v10146
        %v10403 = vmul.f32 %v9255, %v10147
        %v10404 = vmul.f32 %v9262, %v10148
        %v10405 = vmul.f32 %v9269, %v10149
        %v10406 = vmul.f32 %v9276, %v10150
        %v10407 = vmul.f32 %v9283, %v10151
        %v10408 = vmul.f32 %v9290, %v10152
        %v10409 = vmul.f32 %v9297, %v10153
        %v10410 = vmul.f32 %v9304, %v10154
        %v10411 = vmul.f32 %v9311, %v10155
        %v10412 = vmul.f32 %v9318, %v10156
        %v10413 = vmul.f32 %v9325, %v10157
        %v10414 = vmul.f32 %v9332, %v10158
        %v10415 = vmul.f32 %v9339, %v10159
        %v10416 = vmul.f32 %v9346, %v10160
        %v10417 = vmul.f32 %v9353, %v10161
        %v10418 = vmul.f32 %v9360, %v10162
        %v10419 = vmul.f32 %v9367, %v10163
        %v10420 = vmul.f32 %v9374, %v10164
        %v10421 = vmul.f32 %v9381, %v10165
        %v10422 = vmul.f32 %v9388, %v10166
        %v10423 = vmul.f32 %v9395, %v10167
        %v10424 = vmul.f32 %v9402, %v10168
        %v10425 = vmul.f32 %v9409, %v10169
        %v10426 = vmul.f32 %v9416, %v10170
        %v10427 = vmul.f32 %v9423, %v10171
        %v10428 = vmul.f32 %v9430, %v10172
        %v10429 = vmul.f32 %v9437, %v10173
        %v10430 = vmul.f32 %v9444, %v10174
        %v10431 = vmul.f32 %v9451, %v10175
        %v10432 = vmul.f32 %v9458, %v10176
        %v10433 = vmul.f32 %v9465, %v10177
        %v10434 = vmul.f32 %v9472, %v10178
        %v10435 = vmul.f32 %v9479, %v10179
        %v10436 = vmul.f32 %v9486, %v10180
        %v10437 = vmul.f32 %v9493, %v10181
        %v10438 = vmul.f32 %v9500, %v10182
        %v10439 = vmul.f32 %v9507, %v10183
        %v10440 = vmul.f32 %v9514, %v10184
        %v10441 = vmul.f32 %v9521, %v10185
        %v10442 = vmul.f32 %v9528, %v10186
        %v10443 = vmul.f32 %v9535, %v10187
        %v10444 = vmul.f32 %v9542, %v10188
        %v10445 = vmul.f32 %v9549, %v10189
        %v10446 = vmul.f32 %v9556, %v10190
        %v10447 = vmul.f32 %v9563, %v10191
        %v10448 = vmul.f32 %v9570, %v10192
        %v10449 = vmul.f32 %v9577, %v10193
        %v10450 = vmul.f32 %v9584, %v10194
        %v10451 = vmul.f32 %v9591, %v10195
        %v10452 = vmul.f32 %v9598, %v10196
        %v10453 = vmul.f32 %v9605, %v10197
        %v10454 = vmul.f32 %v9612, %v10198
        %v10455 = vmul.f32 %v9619, %v10199
        %v10456 = vmul.f32 %v9626, %v10200
        %v10457 = vmul.f32 %v9633, %v10201
        %v10458 = vmul.f32 %v9640, %v10202
        %v10459 = vmul.f32 %v9647, %v10203
        %v10460 = vmul.f32 %v9654, %v10204
        %v10461 = vmul.f32 %v9661, %v10205
        %v10462 = vmul.f32 %v9668, %v10206
        %v10463 = vmul.f32 %v9675, %v10207
        %v10464 = vmul.f32 %v9682, %v10208
        %v10465 = vmul.f32 %v9689, %v10209
        %v10466 = vmul.f32 %v9696, %v10210
        %v10467 = vmul.f32 %v9703, %v10211
        %v10468 = vmul.f32 %v9710, %v10212
        %v10469 = vmul.f32 %v9717, %v10213
        %v10470 = vmul.f32 %v9724, %v10214
        %v10471 = vmul.f32 %v9731, %v10215
        %v10472 = vmul.f32 %v9738, %v10216
        %v10473 = vmul.f32 %v9745, %v10217
        %v10474 = vmul.f32 %v9752, %v10218
        %v10475 = vmul.f32 %v9759, %v10219
        %v10476 = vmul.f32 %v9766, %v10220
        %v10477 = vmul.f32 %v9773, %v10221
        %v10478 = vmul.f32 %v9780, %v10222
        %v10479 = vmul.f32 %v9787, %v10223
        %v10480 = vmul.f32 %v9794, %v10224
        %v10481 = vmul.f32 %v9801, %v10225
        %v10482 = vmul.f32 %v9808, %v10226
        %v10483 = vmul.f32 %v9815, %v10227
        %v10484 = vmul.f32 %v9822, %v10228
        %v10485 = vmul.f32 %v9829, %v10229
        %v10486 = vmul.f32 %v9836, %v10230
        %v10487 = vmul.f32 %v9843, %v10231
        %v10488 = vmul.f32 %v9850, %v10232
        %v10489 = vmul.f32 %v9857, %v10233
        %v10490 = vmul.f32 %v9864, %v10234
        %v10491 = vmul.f32 %v9871, %v10235
        %v10492 = vmul.f32 %v9878, %v10236
        %v10493 = vmul.f32 %v9885, %v10237
        %v10494 = vmul.f32 %v9892, %v10238
        %v10495 = vmul.f32 %v9899, %v10239
        %v10496 = vmul.f32 %v9906, %v10240
        %v10497 = vmul.f32 %v9913, %v10241
        %v10498 = vmul.f32 %v9920, %v10242
        %v10499 = vmul.f32 %v9927, %v10243
        %v10500 = vmul.f32 %v9934, %v10244
        %v10501 = vmul.f32 %v9941, %v10245
        %v10502 = vmul.f32 %v9948, %v10246
        %v10503 = vmul.f32 %v9955, %v10247
        %v10504 = vmul.f32 %v9962, %v10248
        %v10505 = vmul.f32 %v9969, %v10249
        %v10506 = vmul.f32 %v9976, %v10250
        %v10507 = vmul.f32 %v9983, %v10251
        %v10508 = vmul.f32 %v9990, %v10252
        %v10509 = vmul.f32 %v9997, %v10253
        %v10510 = vsel %vm2521, %v10254, 0.0
        %v10511 = vsel %vm2521, %v10255, 0.0
        %v10512 = vadd.f32 %v10510, %v10511
        %v10513 = vsel %vm2521, %v10256, 0.0
        %v10514 = vadd.f32 %v10512, %v10513
        %v10515 = vsel %vm2521, %v10257, 0.0
        %v10516 = vadd.f32 %v10514, %v10515
        %v10517 = vsel %vm2521, %v10258, 0.0
        %v10518 = vadd.f32 %v10516, %v10517
        %v10519 = vsel %vm2521, %v10259, 0.0
        %v10520 = vadd.f32 %v10518, %v10519
        %v10521 = vsel %vm2521, %v10260, 0.0
        %v10522 = vadd.f32 %v10520, %v10521
        %v10523 = vsel %vm2521, %v10261, 0.0
        %v10524 = vadd.f32 %v10522, %v10523
        %v10525 = vsel %vm2521, %v10262, 0.0
        %v10526 = vadd.f32 %v10524, %v10525
        %v10527 = vsel %vm2521, %v10263, 0.0
        %v10528 = vadd.f32 %v10526, %v10527
        %v10529 = vsel %vm2521, %v10264, 0.0
        %v10530 = vadd.f32 %v10528, %v10529
        %v10531 = vsel %vm2521, %v10265, 0.0
        %v10532 = vadd.f32 %v10530, %v10531
        %v10533 = vsel %vm2521, %v10266, 0.0
        %v10534 = vadd.f32 %v10532, %v10533
        %v10535 = vsel %vm2521, %v10267, 0.0
        %v10536 = vadd.f32 %v10534, %v10535
        %v10537 = vsel %vm2521, %v10268, 0.0
        %v10538 = vadd.f32 %v10536, %v10537
        %v10539 = vsel %vm2521, %v10269, 0.0
        %v10540 = vadd.f32 %v10538, %v10539
        %v10541 = vsel %vm2521, %v10270, 0.0
        %v10542 = vadd.f32 %v10540, %v10541
        %v10543 = vsel %vm2521, %v10271, 0.0
        %v10544 = vadd.f32 %v10542, %v10543
        %v10545 = vsel %vm2521, %v10272, 0.0
        %v10546 = vadd.f32 %v10544, %v10545
        %v10547 = vsel %vm2521, %v10273, 0.0
        %v10548 = vadd.f32 %v10546, %v10547
        %v10549 = vsel %vm2521, %v10274, 0.0
        %v10550 = vadd.f32 %v10548, %v10549
        %v10551 = vsel %vm2521, %v10275, 0.0
        %v10552 = vadd.f32 %v10550, %v10551
        %v10553 = vsel %vm2521, %v10276, 0.0
        %v10554 = vadd.f32 %v10552, %v10553
        %v10555 = vsel %vm2521, %v10277, 0.0
        %v10556 = vadd.f32 %v10554, %v10555
        %v10557 = vsel %vm2521, %v10278, 0.0
        %v10558 = vadd.f32 %v10556, %v10557
        %v10559 = vsel %vm2521, %v10279, 0.0
        %v10560 = vadd.f32 %v10558, %v10559
        %v10561 = vsel %vm2521, %v10280, 0.0
        %v10562 = vadd.f32 %v10560, %v10561
        %v10563 = vsel %vm2521, %v10281, 0.0
        %v10564 = vadd.f32 %v10562, %v10563
        %v10565 = vsel %vm2521, %v10282, 0.0
        %v10566 = vadd.f32 %v10564, %v10565
        %v10567 = vsel %vm2521, %v10283, 0.0
        %v10568 = vadd.f32 %v10566, %v10567
        %v10569 = vsel %vm2521, %v10284, 0.0
        %v10570 = vadd.f32 %v10568, %v10569
        %v10571 = vsel %vm2521, %v10285, 0.0
        %v10572 = vadd.f32 %v10570, %v10571
        %v10573 = vsel %vm2521, %v10286, 0.0
        %v10574 = vadd.f32 %v10572, %v10573
        %v10575 = vsel %vm2521, %v10287, 0.0
        %v10576 = vadd.f32 %v10574, %v10575
        %v10577 = vsel %vm2521, %v10288, 0.0
        %v10578 = vadd.f32 %v10576, %v10577
        %v10579 = vsel %vm2521, %v10289, 0.0
        %v10580 = vadd.f32 %v10578, %v10579
        %v10581 = vsel %vm2521, %v10290, 0.0
        %v10582 = vadd.f32 %v10580, %v10581
        %v10583 = vsel %vm2521, %v10291, 0.0
        %v10584 = vadd.f32 %v10582, %v10583
        %v10585 = vsel %vm2521, %v10292, 0.0
        %v10586 = vadd.f32 %v10584, %v10585
        %v10587 = vsel %vm2521, %v10293, 0.0
        %v10588 = vadd.f32 %v10586, %v10587
        %v10589 = vsel %vm2521, %v10294, 0.0
        %v10590 = vadd.f32 %v10588, %v10589
        %v10591 = vsel %vm2521, %v10295, 0.0
        %v10592 = vadd.f32 %v10590, %v10591
        %v10593 = vsel %vm2521, %v10296, 0.0
        %v10594 = vadd.f32 %v10592, %v10593
        %v10595 = vsel %vm2521, %v10297, 0.0
        %v10596 = vadd.f32 %v10594, %v10595
        %v10597 = vsel %vm2521, %v10298, 0.0
        %v10598 = vadd.f32 %v10596, %v10597
        %v10599 = vsel %vm2521, %v10299, 0.0
        %v10600 = vadd.f32 %v10598, %v10599
        %v10601 = vsel %vm2521, %v10300, 0.0
        %v10602 = vadd.f32 %v10600, %v10601
        %v10603 = vsel %vm2521, %v10301, 0.0
        %v10604 = vadd.f32 %v10602, %v10603
        %v10605 = vsel %vm2521, %v10302, 0.0
        %v10606 = vadd.f32 %v10604, %v10605
        %v10607 = vsel %vm2521, %v10303, 0.0
        %v10608 = vadd.f32 %v10606, %v10607
        %v10609 = vsel %vm2521, %v10304, 0.0
        %v10610 = vadd.f32 %v10608, %v10609
        %v10611 = vsel %vm2521, %v10305, 0.0
        %v10612 = vadd.f32 %v10610, %v10611
        %v10613 = vsel %vm2521, %v10306, 0.0
        %v10614 = vadd.f32 %v10612, %v10613
        %v10615 = vsel %vm2521, %v10307, 0.0
        %v10616 = vadd.f32 %v10614, %v10615
        %v10617 = vsel %vm2521, %v10308, 0.0
        %v10618 = vadd.f32 %v10616, %v10617
        %v10619 = vsel %vm2521, %v10309, 0.0
        %v10620 = vadd.f32 %v10618, %v10619
        %v10621 = vsel %vm2521, %v10310, 0.0
        %v10622 = vadd.f32 %v10620, %v10621
        %v10623 = vsel %vm2521, %v10311, 0.0
        %v10624 = vadd.f32 %v10622, %v10623
        %v10625 = vsel %vm2521, %v10312, 0.0
        %v10626 = vadd.f32 %v10624, %v10625
        %v10627 = vsel %vm2521, %v10313, 0.0
        %v10628 = vadd.f32 %v10626, %v10627
        %v10629 = vsel %vm2521, %v10314, 0.0
        %v10630 = vadd.f32 %v10628, %v10629
        %v10631 = vsel %vm2521, %v10315, 0.0
        %v10632 = vadd.f32 %v10630, %v10631
        %v10633 = vsel %vm2521, %v10316, 0.0
        %v10634 = vadd.f32 %v10632, %v10633
        %v10635 = vsel %vm2521, %v10317, 0.0
        %v10636 = vadd.f32 %v10634, %v10635
        %v10637 = vsel %vm2521, %v10318, 0.0
        %v10638 = vadd.f32 %v10636, %v10637
        %v10639 = vsel %vm2521, %v10319, 0.0
        %v10640 = vadd.f32 %v10638, %v10639
        %v10641 = vsel %vm2521, %v10320, 0.0
        %v10642 = vadd.f32 %v10640, %v10641
        %v10643 = vsel %vm2521, %v10321, 0.0
        %v10644 = vadd.f32 %v10642, %v10643
        %v10645 = vsel %vm2521, %v10322, 0.0
        %v10646 = vadd.f32 %v10644, %v10645
        %v10647 = vsel %vm2521, %v10323, 0.0
        %v10648 = vadd.f32 %v10646, %v10647
        %v10649 = vsel %vm2521, %v10324, 0.0
        %v10650 = vadd.f32 %v10648, %v10649
        %v10651 = vsel %vm2521, %v10325, 0.0
        %v10652 = vadd.f32 %v10650, %v10651
        %v10653 = vsel %vm2521, %v10326, 0.0
        %v10654 = vadd.f32 %v10652, %v10653
        %v10655 = vsel %vm2521, %v10327, 0.0
        %v10656 = vadd.f32 %v10654, %v10655
        %v10657 = vsel %vm2521, %v10328, 0.0
        %v10658 = vadd.f32 %v10656, %v10657
        %v10659 = vsel %vm2521, %v10329, 0.0
        %v10660 = vadd.f32 %v10658, %v10659
        %v10661 = vsel %vm2521, %v10330, 0.0
        %v10662 = vadd.f32 %v10660, %v10661
        %v10663 = vsel %vm2521, %v10331, 0.0
        %v10664 = vadd.f32 %v10662, %v10663
        %v10665 = vsel %vm2521, %v10332, 0.0
        %v10666 = vadd.f32 %v10664, %v10665
        %v10667 = vsel %vm2521, %v10333, 0.0
        %v10668 = vadd.f32 %v10666, %v10667
        %v10669 = vsel %vm2521, %v10334, 0.0
        %v10670 = vadd.f32 %v10668, %v10669
        %v10671 = vsel %vm2521, %v10335, 0.0
        %v10672 = vadd.f32 %v10670, %v10671
        %v10673 = vsel %vm2521, %v10336, 0.0
        %v10674 = vadd.f32 %v10672, %v10673
        %v10675 = vsel %vm2521, %v10337, 0.0
        %v10676 = vadd.f32 %v10674, %v10675
        %v10677 = vsel %vm2521, %v10338, 0.0
        %v10678 = vadd.f32 %v10676, %v10677
        %v10679 = vsel %vm2521, %v10339, 0.0
        %v10680 = vadd.f32 %v10678, %v10679
        %v10681 = vsel %vm2521, %v10340, 0.0
        %v10682 = vadd.f32 %v10680, %v10681
        %v10683 = vsel %vm2521, %v10341, 0.0
        %v10684 = vadd.f32 %v10682, %v10683
        %v10685 = vsel %vm2521, %v10342, 0.0
        %v10686 = vadd.f32 %v10684, %v10685
        %v10687 = vsel %vm2521, %v10343, 0.0
        %v10688 = vadd.f32 %v10686, %v10687
        %v10689 = vsel %vm2521, %v10344, 0.0
        %v10690 = vadd.f32 %v10688, %v10689
        %v10691 = vsel %vm2521, %v10345, 0.0
        %v10692 = vadd.f32 %v10690, %v10691
        %v10693 = vsel %vm2521, %v10346, 0.0
        %v10694 = vadd.f32 %v10692, %v10693
        %v10695 = vsel %vm2521, %v10347, 0.0
        %v10696 = vadd.f32 %v10694, %v10695
        %v10697 = vsel %vm2521, %v10348, 0.0
        %v10698 = vadd.f32 %v10696, %v10697
        %v10699 = vsel %vm2521, %v10349, 0.0
        %v10700 = vadd.f32 %v10698, %v10699
        %v10701 = vsel %vm2521, %v10350, 0.0
        %v10702 = vadd.f32 %v10700, %v10701
        %v10703 = vsel %vm2521, %v10351, 0.0
        %v10704 = vadd.f32 %v10702, %v10703
        %v10705 = vsel %vm2521, %v10352, 0.0
        %v10706 = vadd.f32 %v10704, %v10705
        %v10707 = vsel %vm2521, %v10353, 0.0
        %v10708 = vadd.f32 %v10706, %v10707
        %v10709 = vsel %vm2521, %v10354, 0.0
        %v10710 = vadd.f32 %v10708, %v10709
        %v10711 = vsel %vm2521, %v10355, 0.0
        %v10712 = vadd.f32 %v10710, %v10711
        %v10713 = vsel %vm2521, %v10356, 0.0
        %v10714 = vadd.f32 %v10712, %v10713
        %v10715 = vsel %vm2521, %v10357, 0.0
        %v10716 = vadd.f32 %v10714, %v10715
        %v10717 = vsel %vm2521, %v10358, 0.0
        %v10718 = vadd.f32 %v10716, %v10717
        %v10719 = vsel %vm2521, %v10359, 0.0
        %v10720 = vadd.f32 %v10718, %v10719
        %v10721 = vsel %vm2521, %v10360, 0.0
        %v10722 = vadd.f32 %v10720, %v10721
        %v10723 = vsel %vm2521, %v10361, 0.0
        %v10724 = vadd.f32 %v10722, %v10723
        %v10725 = vsel %vm2521, %v10362, 0.0
        %v10726 = vadd.f32 %v10724, %v10725
        %v10727 = vsel %vm2521, %v10363, 0.0
        %v10728 = vadd.f32 %v10726, %v10727
        %v10729 = vsel %vm2521, %v10364, 0.0
        %v10730 = vadd.f32 %v10728, %v10729
        %v10731 = vsel %vm2521, %v10365, 0.0
        %v10732 = vadd.f32 %v10730, %v10731
        %v10733 = vsel %vm2521, %v10366, 0.0
        %v10734 = vadd.f32 %v10732, %v10733
        %v10735 = vsel %vm2521, %v10367, 0.0
        %v10736 = vadd.f32 %v10734, %v10735
        %v10737 = vsel %vm2521, %v10368, 0.0
        %v10738 = vadd.f32 %v10736, %v10737
        %v10739 = vsel %vm2521, %v10369, 0.0
        %v10740 = vadd.f32 %v10738, %v10739
        %v10741 = vsel %vm2521, %v10370, 0.0
        %v10742 = vadd.f32 %v10740, %v10741
        %v10743 = vsel %vm2521, %v10371, 0.0
        %v10744 = vadd.f32 %v10742, %v10743
        %v10745 = vsel %vm2521, %v10372, 0.0
        %v10746 = vadd.f32 %v10744, %v10745
        %v10747 = vsel %vm2521, %v10373, 0.0
        %v10748 = vadd.f32 %v10746, %v10747
        %v10749 = vsel %vm2521, %v10374, 0.0
        %v10750 = vadd.f32 %v10748, %v10749
        %v10751 = vsel %vm2521, %v10375, 0.0
        %v10752 = vadd.f32 %v10750, %v10751
        %v10753 = vsel %vm2521, %v10376, 0.0
        %v10754 = vadd.f32 %v10752, %v10753
        %v10755 = vsel %vm2521, %v10377, 0.0
        %v10756 = vadd.f32 %v10754, %v10755
        %v10757 = vsel %vm2521, %v10378, 0.0
        %v10758 = vadd.f32 %v10756, %v10757
        %v10759 = vsel %vm2521, %v10379, 0.0
        %v10760 = vadd.f32 %v10758, %v10759
        %v10761 = vsel %vm2521, %v10380, 0.0
        %v10762 = vadd.f32 %v10760, %v10761
        %v10763 = vsel %vm2521, %v10381, 0.0
        %v10764 = vadd.f32 %v10762, %v10763
        %v10765 = vsel %vm2521, %v10382, 0.0
        %v10766 = vadd.f32 %v10764, %v10765
        %v10767 = vsel %vm2521, %v10383, 0.0
        %v10768 = vadd.f32 %v10766, %v10767
        %v10769 = vsel %vm2521, %v10384, 0.0
        %v10770 = vadd.f32 %v10768, %v10769
        %v10771 = vsel %vm2521, %v10385, 0.0
        %v10772 = vadd.f32 %v10770, %v10771
        %v10773 = vsel %vm2521, %v10386, 0.0
        %v10774 = vadd.f32 %v10772, %v10773
        %v10775 = vsel %vm2521, %v10387, 0.0
        %v10776 = vadd.f32 %v10774, %v10775
        %v10777 = vsel %vm2521, %v10388, 0.0
        %v10778 = vadd.f32 %v10776, %v10777
        %v10779 = vsel %vm2521, %v10389, 0.0
        %v10780 = vadd.f32 %v10778, %v10779
        %v10781 = vsel %vm2521, %v10390, 0.0
        %v10782 = vadd.f32 %v10780, %v10781
        %v10783 = vsel %vm2521, %v10391, 0.0
        %v10784 = vadd.f32 %v10782, %v10783
        %v10785 = vsel %vm2521, %v10392, 0.0
        %v10786 = vadd.f32 %v10784, %v10785
        %v10787 = vsel %vm2521, %v10393, 0.0
        %v10788 = vadd.f32 %v10786, %v10787
        %v10789 = vsel %vm2521, %v10394, 0.0
        %v10790 = vadd.f32 %v10788, %v10789
        %v10791 = vsel %vm2521, %v10395, 0.0
        %v10792 = vadd.f32 %v10790, %v10791
        %v10793 = vsel %vm2521, %v10396, 0.0
        %v10794 = vadd.f32 %v10792, %v10793
        %v10795 = vsel %vm2521, %v10397, 0.0
        %v10796 = vadd.f32 %v10794, %v10795
        %v10797 = vsel %vm2521, %v10398, 0.0
        %v10798 = vadd.f32 %v10796, %v10797
        %v10799 = vsel %vm2521, %v10399, 0.0
        %v10800 = vadd.f32 %v10798, %v10799
        %v10801 = vsel %vm2521, %v10400, 0.0
        %v10802 = vadd.f32 %v10800, %v10801
        %v10803 = vsel %vm2521, %v10401, 0.0
        %v10804 = vadd.f32 %v10802, %v10803
        %v10805 = vsel %vm2521, %v10402, 0.0
        %v10806 = vadd.f32 %v10804, %v10805
        %v10807 = vsel %vm2521, %v10403, 0.0
        %v10808 = vadd.f32 %v10806, %v10807
        %v10809 = vsel %vm2521, %v10404, 0.0
        %v10810 = vadd.f32 %v10808, %v10809
        %v10811 = vsel %vm2521, %v10405, 0.0
        %v10812 = vadd.f32 %v10810, %v10811
        %v10813 = vsel %vm2521, %v10406, 0.0
        %v10814 = vadd.f32 %v10812, %v10813
        %v10815 = vsel %vm2521, %v10407, 0.0
        %v10816 = vadd.f32 %v10814, %v10815
        %v10817 = vsel %vm2521, %v10408, 0.0
        %v10818 = vadd.f32 %v10816, %v10817
        %v10819 = vsel %vm2521, %v10409, 0.0
        %v10820 = vadd.f32 %v10818, %v10819
        %v10821 = vsel %vm2521, %v10410, 0.0
        %v10822 = vadd.f32 %v10820, %v10821
        %v10823 = vsel %vm2521, %v10411, 0.0
        %v10824 = vadd.f32 %v10822, %v10823
        %v10825 = vsel %vm2521, %v10412, 0.0
        %v10826 = vadd.f32 %v10824, %v10825
        %v10827 = vsel %vm2521, %v10413, 0.0
        %v10828 = vadd.f32 %v10826, %v10827
        %v10829 = vsel %vm2521, %v10414, 0.0
        %v10830 = vadd.f32 %v10828, %v10829
        %v10831 = vsel %vm2521, %v10415, 0.0
        %v10832 = vadd.f32 %v10830, %v10831
        %v10833 = vsel %vm2521, %v10416, 0.0
        %v10834 = vadd.f32 %v10832, %v10833
        %v10835 = vsel %vm2521, %v10417, 0.0
        %v10836 = vadd.f32 %v10834, %v10835
        %v10837 = vsel %vm2521, %v10418, 0.0
        %v10838 = vadd.f32 %v10836, %v10837
        %v10839 = vsel %vm2521, %v10419, 0.0
        %v10840 = vadd.f32 %v10838, %v10839
        %v10841 = vsel %vm2521, %v10420, 0.0
        %v10842 = vadd.f32 %v10840, %v10841
        %v10843 = vsel %vm2521, %v10421, 0.0
        %v10844 = vadd.f32 %v10842, %v10843
        %v10845 = vsel %vm2521, %v10422, 0.0
        %v10846 = vadd.f32 %v10844, %v10845
        %v10847 = vsel %vm2521, %v10423, 0.0
        %v10848 = vadd.f32 %v10846, %v10847
        %v10849 = vsel %vm2521, %v10424, 0.0
        %v10850 = vadd.f32 %v10848, %v10849
        %v10851 = vsel %vm2521, %v10425, 0.0
        %v10852 = vadd.f32 %v10850, %v10851
        %v10853 = vsel %vm2521, %v10426, 0.0
        %v10854 = vadd.f32 %v10852, %v10853
        %v10855 = vsel %vm2521, %v10427, 0.0
        %v10856 = vadd.f32 %v10854, %v10855
        %v10857 = vsel %vm2521, %v10428, 0.0
        %v10858 = vadd.f32 %v10856, %v10857
        %v10859 = vsel %vm2521, %v10429, 0.0
        %v10860 = vadd.f32 %v10858, %v10859
        %v10861 = vsel %vm2521, %v10430, 0.0
        %v10862 = vadd.f32 %v10860, %v10861
        %v10863 = vsel %vm2521, %v10431, 0.0
        %v10864 = vadd.f32 %v10862, %v10863
        %v10865 = vsel %vm2521, %v10432, 0.0
        %v10866 = vadd.f32 %v10864, %v10865
        %v10867 = vsel %vm2521, %v10433, 0.0
        %v10868 = vadd.f32 %v10866, %v10867
        %v10869 = vsel %vm2521, %v10434, 0.0
        %v10870 = vadd.f32 %v10868, %v10869
        %v10871 = vsel %vm2521, %v10435, 0.0
        %v10872 = vadd.f32 %v10870, %v10871
        %v10873 = vsel %vm2521, %v10436, 0.0
        %v10874 = vadd.f32 %v10872, %v10873
        %v10875 = vsel %vm2521, %v10437, 0.0
        %v10876 = vadd.f32 %v10874, %v10875
        %v10877 = vsel %vm2521, %v10438, 0.0
        %v10878 = vadd.f32 %v10876, %v10877
        %v10879 = vsel %vm2521, %v10439, 0.0
        %v10880 = vadd.f32 %v10878, %v10879
        %v10881 = vsel %vm2521, %v10440, 0.0
        %v10882 = vadd.f32 %v10880, %v10881
        %v10883 = vsel %vm2521, %v10441, 0.0
        %v10884 = vadd.f32 %v10882, %v10883
        %v10885 = vsel %vm2521, %v10442, 0.0
        %v10886 = vadd.f32 %v10884, %v10885
        %v10887 = vsel %vm2521, %v10443, 0.0
        %v10888 = vadd.f32 %v10886, %v10887
        %v10889 = vsel %vm2521, %v10444, 0.0
        %v10890 = vadd.f32 %v10888, %v10889
        %v10891 = vsel %vm2521, %v10445, 0.0
        %v10892 = vadd.f32 %v10890, %v10891
        %v10893 = vsel %vm2521, %v10446, 0.0
        %v10894 = vadd.f32 %v10892, %v10893
        %v10895 = vsel %vm2521, %v10447, 0.0
        %v10896 = vadd.f32 %v10894, %v10895
        %v10897 = vsel %vm2521, %v10448, 0.0
        %v10898 = vadd.f32 %v10896, %v10897
        %v10899 = vsel %vm2521, %v10449, 0.0
        %v10900 = vadd.f32 %v10898, %v10899
        %v10901 = vsel %vm2521, %v10450, 0.0
        %v10902 = vadd.f32 %v10900, %v10901
        %v10903 = vsel %vm2521, %v10451, 0.0
        %v10904 = vadd.f32 %v10902, %v10903
        %v10905 = vsel %vm2521, %v10452, 0.0
        %v10906 = vadd.f32 %v10904, %v10905
        %v10907 = vsel %vm2521, %v10453, 0.0
        %v10908 = vadd.f32 %v10906, %v10907
        %v10909 = vsel %vm2521, %v10454, 0.0
        %v10910 = vadd.f32 %v10908, %v10909
        %v10911 = vsel %vm2521, %v10455, 0.0
        %v10912 = vadd.f32 %v10910, %v10911
        %v10913 = vsel %vm2521, %v10456, 0.0
        %v10914 = vadd.f32 %v10912, %v10913
        %v10915 = vsel %vm2521, %v10457, 0.0
        %v10916 = vadd.f32 %v10914, %v10915
        %v10917 = vsel %vm2521, %v10458, 0.0
        %v10918 = vadd.f32 %v10916, %v10917
        %v10919 = vsel %vm2521, %v10459, 0.0
        %v10920 = vadd.f32 %v10918, %v10919
        %v10921 = vsel %vm2521, %v10460, 0.0
        %v10922 = vadd.f32 %v10920, %v10921
        %v10923 = vsel %vm2521, %v10461, 0.0
        %v10924 = vadd.f32 %v10922, %v10923
        %v10925 = vsel %vm2521, %v10462, 0.0
        %v10926 = vadd.f32 %v10924, %v10925
        %v10927 = vsel %vm2521, %v10463, 0.0
        %v10928 = vadd.f32 %v10926, %v10927
        %v10929 = vsel %vm2521, %v10464, 0.0
        %v10930 = vadd.f32 %v10928, %v10929
        %v10931 = vsel %vm2521, %v10465, 0.0
        %v10932 = vadd.f32 %v10930, %v10931
        %v10933 = vsel %vm2521, %v10466, 0.0
        %v10934 = vadd.f32 %v10932, %v10933
        %v10935 = vsel %vm2521, %v10467, 0.0
        %v10936 = vadd.f32 %v10934, %v10935
        %v10937 = vsel %vm2521, %v10468, 0.0
        %v10938 = vadd.f32 %v10936, %v10937
        %v10939 = vsel %vm2521, %v10469, 0.0
        %v10940 = vadd.f32 %v10938, %v10939
        %v10941 = vsel %vm2521, %v10470, 0.0
        %v10942 = vadd.f32 %v10940, %v10941
        %v10943 = vsel %vm2521, %v10471, 0.0
        %v10944 = vadd.f32 %v10942, %v10943
        %v10945 = vsel %vm2521, %v10472, 0.0
        %v10946 = vadd.f32 %v10944, %v10945
        %v10947 = vsel %vm2521, %v10473, 0.0
        %v10948 = vadd.f32 %v10946, %v10947
        %v10949 = vsel %vm2521, %v10474, 0.0
        %v10950 = vadd.f32 %v10948, %v10949
        %v10951 = vsel %vm2521, %v10475, 0.0
        %v10952 = vadd.f32 %v10950, %v10951
        %v10953 = vsel %vm2521, %v10476, 0.0
        %v10954 = vadd.f32 %v10952, %v10953
        %v10955 = vsel %vm2521, %v10477, 0.0
        %v10956 = vadd.f32 %v10954, %v10955
        %v10957 = vsel %vm2521, %v10478, 0.0
        %v10958 = vadd.f32 %v10956, %v10957
        %v10959 = vsel %vm2521, %v10479, 0.0
        %v10960 = vadd.f32 %v10958, %v10959
        %v10961 = vsel %vm2521, %v10480, 0.0
        %v10962 = vadd.f32 %v10960, %v10961
        %v10963 = vsel %vm2521, %v10481, 0.0
        %v10964 = vadd.f32 %v10962, %v10963
        %v10965 = vsel %vm2521, %v10482, 0.0
        %v10966 = vadd.f32 %v10964, %v10965
        %v10967 = vsel %vm2521, %v10483, 0.0
        %v10968 = vadd.f32 %v10966, %v10967
        %v10969 = vsel %vm2521, %v10484, 0.0
        %v10970 = vadd.f32 %v10968, %v10969
        %v10971 = vsel %vm2521, %v10485, 0.0
        %v10972 = vadd.f32 %v10970, %v10971
        %v10973 = vsel %vm2521, %v10486, 0.0
        %v10974 = vadd.f32 %v10972, %v10973
        %v10975 = vsel %vm2521, %v10487, 0.0
        %v10976 = vadd.f32 %v10974, %v10975
        %v10977 = vsel %vm2521, %v10488, 0.0
        %v10978 = vadd.f32 %v10976, %v10977
        %v10979 = vsel %vm2521, %v10489, 0.0
        %v10980 = vadd.f32 %v10978, %v10979
        %v10981 = vsel %vm2521, %v10490, 0.0
        %v10982 = vadd.f32 %v10980, %v10981
        %v10983 = vsel %vm2521, %v10491, 0.0
        %v10984 = vadd.f32 %v10982, %v10983
        %v10985 = vsel %vm2521, %v10492, 0.0
        %v10986 = vadd.f32 %v10984, %v10985
        %v10987 = vsel %vm2521, %v10493, 0.0
        %v10988 = vadd.f32 %v10986, %v10987
        %v10989 = vsel %vm2521, %v10494, 0.0
        %v10990 = vadd.f32 %v10988, %v10989
        %v10991 = vsel %vm2521, %v10495, 0.0
        %v10992 = vadd.f32 %v10990, %v10991
        %v10993 = vsel %vm2521, %v10496, 0.0
        %v10994 = vadd.f32 %v10992, %v10993
        %v10995 = vsel %vm2521, %v10497, 0.0
        %v10996 = vadd.f32 %v10994, %v10995
        %v10997 = vsel %vm2521, %v10498, 0.0
        %v10998 = vadd.f32 %v10996, %v10997
        %v10999 = vsel %vm2521, %v10499, 0.0
        %v11000 = vadd.f32 %v10998, %v10999
        %v11001 = vsel %vm2521, %v10500, 0.0
        %v11002 = vadd.f32 %v11000, %v11001
        %v11003 = vsel %vm2521, %v10501, 0.0
        %v11004 = vadd.f32 %v11002, %v11003
        %v11005 = vsel %vm2521, %v10502, 0.0
        %v11006 = vadd.f32 %v11004, %v11005
        %v11007 = vsel %vm2521, %v10503, 0.0
        %v11008 = vadd.f32 %v11006, %v11007
        %v11009 = vsel %vm2521, %v10504, 0.0
        %v11010 = vadd.f32 %v11008, %v11009
        %v11011 = vsel %vm2521, %v10505, 0.0
        %v11012 = vadd.f32 %v11010, %v11011
        %v11013 = vsel %vm2521, %v10506, 0.0
        %v11014 = vadd.f32 %v11012, %v11013
        %v11015 = vsel %vm2521, %v10507, 0.0
        %v11016 = vadd.f32 %v11014, %v11015
        %v11017 = vsel %vm2521, %v10508, 0.0
        %v11018 = vadd.f32 %v11016, %v11017
        %v11019 = vsel %vm2521, %v10509, 0.0
        %v11020 = vadd.f32 %v11018, %v11019
        %11021 = vst.msk [vmem:[%s2492] sm:$0xff] %vm2521, %v11020
        %s11022 = sand.u32 %s223, 1
        %s11023 = scalar_lea.sflag [#allocation5], %s11022
        %s11024 = sand.u32 %s223, 1
        %s11025 = smul.addr %s11024, 8
        %s11026 = scalar_lea.vmem [#allocation4], %s11025
        %s11027 = sand.u32 %s249, 1
        %s11028 = scalar_lea.sflag [#allocation7], %s11027
        %s11029 = sand.u32 %s249, 1
        %s11030 = smul.addr %s11029, 16
        %s11031 = scalar_lea.vmem [#allocation6], %s11030
        // Predicated region
        $region129: #{_attention_mlp_forward.1} parent=119 // pred_check
          %p11032 = pneg %p233
        $region130: #{_attention_mlp_forward.1} parent=119 // pred_check_branch
          %11034 = sbr.rel (%p11032) target = $region132
        $region131: #{_attention_mlp_forward.1} parent=119 // pred_region
          %s11036 = ssub.s32 128, 128
          %11037 = vsyncadd %s11023, %s11036
          %s11038 = smul.addr %s27, 128
          %s11039 = scalar_lea.hbm %s8, %s11038
          %s11041 = sshll.u32 %s11026, 4
          %s11042 = int_to_ptr.vmem [resolvable:$true] %s11041
          %11044 = dma.vmem_to_hbm [thread:$0]  %s11042, 128, %s11039, %s11023
        $region132: #{_attention_mlp_forward.1} parent=119 // pred_fallthru
          _
        // Predicated region
        $region133: #{_attention_mlp_forward.1} parent=119 // pred_check
          %p11045 = pneg %p259
        $region134: #{_attention_mlp_forward.1} parent=119 // pred_check_branch
          %11047 = sbr.rel (%p11045) target = $region136
        $region135: #{_attention_mlp_forward.1} parent=119 // pred_region
          %s11049 = ssub.s32 256, 256
          %11050 = vsyncadd %s11028, %s11049
          %s11051 = smul.addr %s27, 2
          %s11052 = smul.addr %s11051, 128
          %s11053 = scalar_lea.hbm %s9, %s11052
          %s11055 = sshll.u32 %s11031, 4
          %s11056 = int_to_ptr.vmem [resolvable:$true] %s11055
          %11058 = dma.vmem_to_hbm [thread:$0]  %s11056, 256, %s11053, %s11028
        $region136: #{_attention_mlp_forward.1} parent=119 // pred_fallthru
          _
      $region120: #{_attention_mlp_forward.1} parent=5 // pred_fallthru
        _
      %p11059 = scmp.le.s32.totalorder 2, %s22
      // Predicated region
      $region137: #{_attention_mlp_forward.1} parent=5 // pred_check
        %p11060 = pneg %p11059
      $region138: #{_attention_mlp_forward.1} parent=5 // pred_check_branch
        %11062 = sbr.rel (%p11060) target = $region140
      $region139: #{_attention_mlp_forward.1} parent=5 // pred_region
        %s11063 = ssub.s32 %s22, 2
        // Predicated region
        $region141: #{_attention_mlp_forward.1} parent=139 // pred_check
          %p11064 = pneg %p239
        $region142: #{_attention_mlp_forward.1} parent=139 // pred_check_branch
          %11066 = sbr.rel (%p11064) target = $region144
        $region143: #{_attention_mlp_forward.1} parent=139 // pred_region
          %s11067 = sand.u32 %s224, 1
          %s11068 = scalar_lea.sflag [#allocation5], %s11067
          %s11069 = sand.u32 %s224, 1
          %s11070 = smul.addr %s11069, 8
          %s11071 = scalar_lea.vmem [#allocation4], %s11070
          %11072 = dma.done %s11068, 128
        $region144: #{_attention_mlp_forward.1} parent=139 // pred_fallthru
          _
        // Predicated region
        $region145: #{_attention_mlp_forward.1} parent=139 // pred_check
          %p11073 = pneg %p265
        $region146: #{_attention_mlp_forward.1} parent=139 // pred_check_branch
          %11075 = sbr.rel (%p11073) target = $region148
        $region147: #{_attention_mlp_forward.1} parent=139 // pred_region
          %s11076 = sand.u32 %s250, 1
          %s11077 = scalar_lea.sflag [#allocation7], %s11076
          %s11078 = sand.u32 %s250, 1
          %s11079 = smul.addr %s11078, 16
          %s11080 = scalar_lea.vmem [#allocation6], %s11079
          %11081 = dma.done %s11077, 256
        $region148: #{_attention_mlp_forward.1} parent=139 // pred_fallthru
          _
      $region140: #{_attention_mlp_forward.1} parent=5 // pred_fallthru
        _
    $region6: #{_attention_mlp_forward.1} parent=1 // loop_footer
      %s26 = sadd.s32 1, %s22
    $region7: #{_attention_mlp_forward.1} parent=1 // loop_footer_branch
      %21 = sbr.rel target = $region3
    $region8: #{_attention_mlp_forward.1} parent=1 // loop_exit
      _
    %11082 = vsyncpa [#allocation5], 1
    %s11083 = scalar_lea.sflag [#allocation5], 1
    %11084 = vsyncpa %s11083, 1
    %11085 = vsyncpa [#allocation7], 1
    %s11086 = scalar_lea.sflag [#allocation7], 1
    %11087 = vsyncpa %s11086, 1

</llo_original>
